<compile_context>
chip_gen: v7x
topology: tpu7x:2x2x1
jax: 0.10.0
libtpu: 0.0.40
codegen_flags: <defaults>
</compile_context>

<pallas_src>
import functools

import jax
import jax.numpy as jnp
from jax import lax
from jax.experimental import pallas as pl
from jax.experimental.pallas import tpu as pltpu

NEG_SLOPE = 0.2          # LeakyReLU slope used throughout the discriminator
BN_EPS = 1e-5            # PyTorch BatchNorm2d default eps


def _round_up(x, m):
    return ((x + m - 1) // m) * m


# ---------------------------------------------------------------------------
# Fused conv-as-GEMM kernel with K-tiled accumulation:
#   out = leaky_relu( (A @ W) * scale + shift )
# A: (tm, tk) bf16 im2col patches, W: (tk, tn) bf16 weight tile,
# acc: (tm, tn) f32 VMEM scratch resident across the K grid axis.
# ---------------------------------------------------------------------------
def _conv_gemm_kernel(a_ref, w_ref, scale_ref, shift_ref, o_ref, acc_ref, *, apply_lrelu):
    @pl.when(pl.program_id(2) == 0)
    def _init():
        acc_ref[...] = jnp.zeros_like(acc_ref)

    acc_ref[...] += jnp.dot(a_ref[...], w_ref[...], preferred_element_type=jnp.float32)

    @pl.when(pl.program_id(2) == pl.num_programs(2) - 1)
    def _finalize():
        y = acc_ref[...] * scale_ref[...] + shift_ref[...]      # (1, tn) broadcasts over rows
        if apply_lrelu:
            y = jnp.where(y >= 0, y, NEG_SLOPE * y)
        o_ref[...] = y.astype(o_ref.dtype)


def fused_conv_matmul(a_bf16, w_p, scale_p, shift_p, n_valid, *,
                      apply_lrelu, tm_cap=256, tk_cap=1024, tn_cap=256):
    """a_bf16: (M, K) bf16 im2col patches.  w_p: (K, Np) bf16 pre-padded weight.
    scale_p / shift_p: (1, Np) f32 folded affine.  Returns (M, n_valid) f32."""
    M, K = a_bf16.shape
    Kw, Np = w_p.shape
    assert K == Kw and Np % 128 == 0

    # Row tile: multiple of 16 (bf16 sublane packing); K tile: 128-multiple or full-extent
    # (layer 0's K=48); Cout tile: 128-multiple.  Double-buffered blocks stay ~1 MiB each.
    tm = min(_round_up(M, 16), tm_cap)
    Mp = _round_up(M, tm)
    tk = min(K, tk_cap) if K % 128 == 0 else K
    assert K % tk == 0
    tn = min(Np, tn_cap)

    a_p = a_bf16 if Mp == M else jnp.pad(a_bf16, ((0, Mp - M), (0, 0)))

    out = pl.pallas_call(
        functools.partial(_conv_gemm_kernel, apply_lrelu=apply_lrelu),
        out_shape=jax.ShapeDtypeStruct((Mp, Np), jnp.float32),
        grid_spec=pltpu.PrefetchScalarGridSpec(
            num_scalar_prefetch=0,
            grid=(Mp // tm, Np // tn, K // tk),
            in_specs=[
                pl.BlockSpec((tm, tk), lambda i, j, k: (i, k)),   # patch tile
                pl.BlockSpec((tk, tn), lambda i, j, k: (k, j)),   # weight tile
                pl.BlockSpec((1, tn), lambda i, j, k: (0, j)),    # per-channel scale
                pl.BlockSpec((1, tn), lambda i, j, k: (0, j)),    # per-channel shift
            ],
            out_specs=pl.BlockSpec((tm, tn), lambda i, j, k: (i, j)),
            scratch_shapes=[pltpu.VMEM((tm, tn), jnp.float32)],
        ),
        compiler_params=pltpu.CompilerParams(
            dimension_semantics=("parallel", "parallel", "arbitrary"),
            vmem_limit_bytes=32 * 1024 * 1024,
        ),
    )(a_p, w_p, scale_p, shift_p)
    return out[:M, :n_valid]


# ---------------------------------------------------------------------------
# Wrapper-side layout transform: 4x4 im2col (XLA), NHWC, bf16
# ---------------------------------------------------------------------------
def _extract_patches_nhwc(x, *, ksize=4, stride=1, pad=1):
    N, H, W, C = x.shape
    OH = (H + 2 * pad - ksize) // stride + 1
    OW = (W + 2 * pad - ksize) // stride + 1
    assert OH >= 1 and OW >= 1, "input spatial size too small for this conv stack"
    xp = jnp.pad(x, ((0, 0), (pad, pad), (pad, pad), (0, 0)))
    cols = []
    for kh in range(ksize):
        for kw in range(ksize):
            cols.append(
                lax.slice(
                    xp,
                    (0, kh, kw, 0),
                    (N, kh + (OH - 1) * stride + 1, kw + (OW - 1) * stride + 1, C),
                    (1, stride, stride, 1),
                )
            )
    patches = jnp.stack(cols, axis=3)                      # (N, OH, OW, 16, C)
    return patches.reshape(N * OH * OW, ksize * ksize * C), OH, OW


# ---------------------------------------------------------------------------
# Discriminator parameters (mirrors NLayerDiscriminator(input_nc=3, ndf=64, n_layers=3))
# ---------------------------------------------------------------------------
def init_discriminator_params(key, input_nc=3, ndf=64, n_layers=3):
    # (cin, cout, stride, has_bias, has_bn, has_act)
    specs = [(input_nc, ndf, 2, True, False, True)]
    nf_mult = 1
    for n in range(1, n_layers):
        nf_prev, nf_mult = nf_mult, min(2 ** n, 8)
        specs.append((ndf * nf_prev, ndf * nf_mult, 2, False, True, True))
    nf_prev, nf_mult = nf_mult, min(2 ** n_layers, 8)
    specs.append((ndf * nf_prev, ndf * nf_mult, 1, False, True, True))
    specs.append((ndf * nf_mult, 1, 1, True, False, False))

    layers = []
    for (cin, cout, stride, has_bias, has_bn, has_act) in specs:
        key, kw_, kb, kg, kbe, km, kv = jax.random.split(key, 7)
        w = jax.random.normal(kw_, (4, 4, cin, cout), jnp.float32) / jnp.sqrt(16.0 * cin)
        bias = 0.1 * jax.random.normal(kb, (cout,), jnp.float32) if has_bias else None
        if has_bn:
            gamma = 1.0 + 0.1 * jax.random.normal(kg, (cout,), jnp.float32)
            beta = 0.1 * jax.random.normal(kbe, (cout,), jnp.float32)
            mean = 0.1 * jax.random.normal(km, (cout,), jnp.float32)
            var = jax.nn.softplus(jax.random.normal(kv, (cout,), jnp.float32)) + 0.5
            bn = (gamma, beta, mean, var)
        else:
            bn = None
        layers.append(dict(w=w, bias=bias, bn=bn, stride=stride, act=has_act))
    return layers


def _fold_affine(layer):
    """Fold conv bias + eval-mode BatchNorm into per-channel (scale, shift)."""
    cout = layer["w"].shape[-1]
    scale = jnp.ones((cout,), jnp.float32)
    shift = jnp.zeros((cout,), jnp.float32)
    if layer["bias"] is not None:
        shift = shift + layer["bias"]
    if layer["bn"] is not None:
        gamma, beta, mean, var = layer["bn"]
        bn_scale = gamma * lax.rsqrt(var + BN_EPS)        # precomputed reciprocal-multiply
        scale = scale * bn_scale
        shift = (shift - mean) * bn_scale + beta
    return scale, shift


def make_forward(layers):
    # Build lane-dense, pre-padded bf16 weights and f32 affines ONCE (hoisted out of forward).
    prepared = []
    for l in layers:
        kh, kw, cin, cout = l["w"].shape
        K = kh * kw * cin
        Np = _round_up(cout, 128)
        w_mat = l["w"].reshape(K, cout).astype(jnp.bfloat16)   # rows: [kh, kw, ci] order
        w_p = jnp.pad(w_mat, ((0, 0), (0, Np - cout)))
        scale, shift = _fold_affine(l)
        scale_p = jnp.pad(scale.reshape(1, cout), ((0, 0), (0, Np - cout)))
        shift_p = jnp.pad(shift.reshape(1, cout), ((0, 0), (0, Np - cout)))
        prepared.append(dict(w_p=w_p, scale_p=scale_p, shift_p=shift_p,
                             cout=cout, stride=l["stride"], act=l["act"]))

    def forward(x_nchw):
        x = jnp.transpose(x_nchw, (0, 2, 3, 1)).astype(jnp.float32)   # NCHW -> NHWC
        for p in prepared:
            n = x.shape[0]
            a, oh, ow = _extract_patches_nhwc(x.astype(jnp.bfloat16), stride=p["stride"])
            y = fused_conv_matmul(a, p["w_p"], p["scale_p"], p["shift_p"], p["cout"],
                                  apply_lrelu=p["act"])
            x = y.reshape(n, oh, ow, p["cout"])
        return jnp.transpose(x, (0, 3, 1, 2))                          # back to NCHW

    return forward


# ---------------------------------------------------------------------------
# Pure-JAX reference at matched precision (bf16 conv operands, f32 accumulation,
# f32 eval-mode BatchNorm + LeakyReLU) — same math as the Pallas path.
# ---------------------------------------------------------------------------
def reference_forward(x_nchw, layers):
    x = jnp.transpose(x_nchw, (0, 2, 3, 1)).astype(jnp.float32)
    for l in layers:
        y = lax.conv_general_dilated(
            x.astype(jnp.bfloat16), l["w"].astype(jnp.bfloat16),
            (l["stride"], l["stride"]), ((1, 1), (1, 1)),
            dimension_numbers=("NHWC", "HWIO", "NHWC"),
            preferred_element_type=jnp.float32)
        if l["bias"] is not None:
            y = y + l["bias"]
        if l["bn"] is not None:
            gamma, beta, mean, var = l["bn"]
            y = (y - mean) * lax.rsqrt(var + BN_EPS) * gamma + beta
        if l["act"]:
            y = jnp.where(y >= 0, y, NEG_SLOPE * y)
        x = y
    return jnp.transpose(x, (0, 3, 1, 2))


if __name__ == "__main__":
    key = jax.random.PRNGKey(0)
    key, kx, kp = jax.random.split(key, 3)

    # Smallest clean input for the 5-conv stack (3 stride-2 + 2 stride-1 4x4 convs):
    # 32x32 -> 16 -> 8 -> 4 -> 3 -> 2.  NCHW like the PyTorch module.
    x = jax.random.normal(kx, (2, 3, 32, 32), jnp.float32)
    layers = init_discriminator_params(kp, input_nc=3, ndf=64, n_layers=3)

    forward = jax.jit(make_forward(layers))
    out = jax.block_until_ready(forward(x))

    ref = jax.block_until_ready(reference_forward(x, layers))
    assert out.shape == ref.shape == (2, 1, 2, 2), out.shape
    assert out.dtype == jnp.float32
    max_err = float(jnp.max(jnp.abs(out - ref)))
    assert jnp.allclose(out, ref, atol=5e-3, rtol=5e-3), max_err

    print("KERNEL_OK")
</pallas_src>

<mosaic_0001>
module attributes {stable_mosaic.version = 11 : i64} {
  func.func @_conv_gemm_kernel(%arg0: i32, %arg1: i32, %arg2: i32, %arg3: memref<256x48xbf16, #tpu.memory_space<vmem>>, %arg4: memref<48x128xbf16, #tpu.memory_space<vmem>>, %arg5: memref<1x128xf32, #tpu.memory_space<vmem>>, %arg6: memref<1x128xf32, #tpu.memory_space<vmem>>, %arg7: memref<256x128xf32, #tpu.memory_space<vmem>>, %arg8: memref<256x128xf32, #tpu.memory_space<vmem>>) attributes {dimension_semantics = [#tpu.dimension_semantics<parallel>, #tpu.dimension_semantics<parallel>, #tpu.dimension_semantics<arbitrary>], iteration_bounds = array<i64: 2, 1, 1>, scalar_prefetch = 0 : i64, scratch_operands = 1 : i64, tpu.core_type = #tpu.core_type<tc>, window_params = [{transform_indices = @transform_0, window_bounds = array<i64: 256, 48>}, {transform_indices = @transform_1, window_bounds = array<i64: 48, 128>}, {transform_indices = @transform_2, window_bounds = array<i64: 1, 128>}, {transform_indices = @transform_3, window_bounds = array<i64: 1, 128>}, {transform_indices = @transform_4, window_bounds = array<i64: 256, 128>}]} {
    %c0_i32 = arith.constant 0 : i32
    %0 = arith.cmpi eq, %arg2, %c0_i32 : i32
    %1 = arith.extui %0 : i1 to i32
    %c0_i32_0 = arith.constant 0 : i32
    %2 = arith.cmpi ne, %1, %c0_i32_0 : i32
    scf.if %2 {
      %cst_10 = arith.constant 0.000000e+00 : f32
      %12 = vector.broadcast %cst_10 : f32 to vector<256x128xf32>
      %c0_11 = arith.constant 0 : index
      %c0_12 = arith.constant 0 : index
      %13 = vector.load %arg8[%c0_11, %c0_12] : memref<256x128xf32, #tpu.memory_space<vmem>>, vector<256x128xf32>
      tpu.vector_store %arg8[%c0_11, %c0_12], %12 {strides = array<i32>} : memref<256x128xf32, #tpu.memory_space<vmem>>, vector<256x128xf32>,
    } else {
    }
    %c0 = arith.constant 0 : index
    %c0_1 = arith.constant 0 : index
    %3 = vector.load %arg8[%c0, %c0_1] : memref<256x128xf32, #tpu.memory_space<vmem>>, vector<256x128xf32>
    %c0_2 = arith.constant 0 : index
    %c0_3 = arith.constant 0 : index
    %4 = vector.load %arg3[%c0_2, %c0_3] : memref<256x48xbf16, #tpu.memory_space<vmem>>, vector<256x48xbf16>
    %c0_4 = arith.constant 0 : index
    %c0_5 = arith.constant 0 : index
    %5 = vector.load %arg4[%c0_4, %c0_5] : memref<48x128xbf16, #tpu.memory_space<vmem>>, vector<48x128xbf16>
    %cst = arith.constant dense<0.000000e+00> : vector<256x128xf32>
    %6 = tpu.matmul %4, %5, %cst {dimension_numbers = #tpu.dot_dimension_numbers<[1], [0], [0], [1], [0, 0, 1, 1], [], []>} : vector<256x48xbf16>, vector<48x128xbf16>, vector<256x128xf32> -> vector<256x128xf32>
    %7 = arith.addf %3, %6 : vector<256x128xf32>
    %c0_6 = arith.constant 0 : index
    %c0_7 = arith.constant 0 : index
    %8 = vector.load %arg8[%c0_6, %c0_7] : memref<256x128xf32, #tpu.memory_space<vmem>>, vector<256x128xf32>
    tpu.vector_store %arg8[%c0_6, %c0_7], %7 {strides = array<i32>} : memref<256x128xf32, #tpu.memory_space<vmem>>, vector<256x128xf32>,
    %c0_i32_8 = arith.constant 0 : i32
    %9 = arith.cmpi eq, %arg2, %c0_i32_8 : i32
    %10 = arith.extui %9 : i1 to i32
    %c0_i32_9 = arith.constant 0 : i32
    %11 = arith.cmpi ne, %10, %c0_i32_9 : i32
    scf.if %11 {
      %c0_10 = arith.constant 0 : index
      %c0_11 = arith.constant 0 : index
      %12 = vector.load %arg8[%c0_10, %c0_11] : memref<256x128xf32, #tpu.memory_space<vmem>>, vector<256x128xf32>
      %c0_12 = arith.constant 0 : index
      %c0_13 = arith.constant 0 : index
      %13 = vector.load %arg5[%c0_12, %c0_13] : memref<1x128xf32, #tpu.memory_space<vmem>>, vector<1x128xf32>
      %14 = vector.broadcast %13 : vector<1x128xf32> to vector<256x128xf32>
      %15 = arith.mulf %12, %14 : vector<256x128xf32>
      %c0_14 = arith.constant 0 : index
      %c0_15 = arith.constant 0 : index
      %16 = vector.load %arg6[%c0_14, %c0_15] : memref<1x128xf32, #tpu.memory_space<vmem>>, vector<1x128xf32>
      %17 = vector.broadcast %16 : vector<1x128xf32> to vector<256x128xf32>
      %18 = arith.addf %15, %17 : vector<256x128xf32>
      %cst_16 = arith.constant 0.000000e+00 : f32
      %19 = vector.broadcast %cst_16 : f32 to vector<256x128xf32>
      %20 = arith.cmpf oge, %18, %19 : vector<256x128xf32>
      %cst_17 = arith.constant 2.000000e-01 : f32
      %21 = vector.broadcast %cst_17 : f32 to vector<256x128xf32>
      %22 = arith.mulf %21, %18 : vector<256x128xf32>
      %23 = arith.select %20, %18, %22 : vector<256x128xi1>, vector<256x128xf32>
      %c0_18 = arith.constant 0 : index
      %c0_19 = arith.constant 0 : index
      %24 = vector.load %arg7[%c0_18, %c0_19] : memref<256x128xf32, #tpu.memory_space<vmem>>, vector<256x128xf32>
      tpu.vector_store %arg7[%c0_18, %c0_19], %23 {strides = array<i32>} : memref<256x128xf32, #tpu.memory_space<vmem>>, vector<256x128xf32>,
    } else {
    }
    return
  }
  func.func @transform_0(%arg0: i32, %arg1: i32, %arg2: i32) -> (i32, i32) {
    %c0_i32 = arith.constant 0 : i32
    return %arg0, %arg2 : i32, i32
  }
  func.func @transform_1(%arg0: i32, %arg1: i32, %arg2: i32) -> (i32, i32) {
    %c0_i32 = arith.constant 0 : i32
    return %arg2, %arg1 : i32, i32
  }
  func.func @transform_2(%arg0: i32, %arg1: i32, %arg2: i32) -> (i32, i32) {
    %c0_i32 = arith.constant 0 : i32
    %c0_i32_0 = arith.constant 0 : i32
    return %c0_i32, %arg1 : i32, i32
  }
  func.func @transform_3(%arg0: i32, %arg1: i32, %arg2: i32) -> (i32, i32) {
    %c0_i32 = arith.constant 0 : i32
    %c0_i32_0 = arith.constant 0 : i32
    return %c0_i32, %arg1 : i32, i32
  }
  func.func @transform_4(%arg0: i32, %arg1: i32, %arg2: i32) -> (i32, i32) {
    %c0_i32 = arith.constant 0 : i32
    return %arg0, %arg1 : i32, i32
  }
}

module attributes {stable_mosaic.version = 11 : i64} {
  func.func @_conv_gemm_kernel(%arg0: i32, %arg1: i32, %arg2: i32, %arg3: memref<128x1024xbf16, #tpu.memory_space<vmem>>, %arg4: memref<1024x128xbf16, #tpu.memory_space<vmem>>, %arg5: memref<1x128xf32, #tpu.memory_space<vmem>>, %arg6: memref<1x128xf32, #tpu.memory_space<vmem>>, %arg7: memref<128x128xf32, #tpu.memory_space<vmem>>, %arg8: memref<128x128xf32, #tpu.memory_space<vmem>>) attributes {dimension_semantics = [#tpu.dimension_semantics<parallel>, #tpu.dimension_semantics<parallel>, #tpu.dimension_semantics<arbitrary>], iteration_bounds = array<i64: 1, 1, 1>, scalar_prefetch = 0 : i64, scratch_operands = 1 : i64, tpu.core_type = #tpu.core_type<tc>, window_params = [{transform_indices = @transform_0, window_bounds = array<i64: 128, 1024>}, {transform_indices = @transform_1, window_bounds = array<i64: 1024, 128>}, {transform_indices = @transform_2, window_bounds = array<i64: 1, 128>}, {transform_indices = @transform_3, window_bounds = array<i64: 1, 128>}, {transform_indices = @transform_4, window_bounds = array<i64: 128, 128>}]} {
    %c0_i32 = arith.constant 0 : i32
    %0 = arith.cmpi eq, %arg2, %c0_i32 : i32
    %1 = arith.extui %0 : i1 to i32
    %c0_i32_0 = arith.constant 0 : i32
    %2 = arith.cmpi ne, %1, %c0_i32_0 : i32
    scf.if %2 {
      %cst_10 = arith.constant 0.000000e+00 : f32
      %12 = vector.broadcast %cst_10 : f32 to vector<128x128xf32>
      %c0_11 = arith.constant 0 : index
      %c0_12 = arith.constant 0 : index
      %13 = vector.load %arg8[%c0_11, %c0_12] : memref<128x128xf32, #tpu.memory_space<vmem>>, vector<128x128xf32>
      tpu.vector_store %arg8[%c0_11, %c0_12], %12 {strides = array<i32>} : memref<128x128xf32, #tpu.memory_space<vmem>>, vector<128x128xf32>,
    } else {
    }
    %c0 = arith.constant 0 : index
    %c0_1 = arith.constant 0 : index
    %3 = vector.load %arg8[%c0, %c0_1] : memref<128x128xf32, #tpu.memory_space<vmem>>, vector<128x128xf32>
    %c0_2 = arith.constant 0 : index
    %c0_3 = arith.constant 0 : index
    %4 = vector.load %arg3[%c0_2, %c0_3] : memref<128x1024xbf16, #tpu.memory_space<vmem>>, vector<128x1024xbf16>
    %c0_4 = arith.constant 0 : index
    %c0_5 = arith.constant 0 : index
    %5 = vector.load %arg4[%c0_4, %c0_5] : memref<1024x128xbf16, #tpu.memory_space<vmem>>, vector<1024x128xbf16>
    %cst = arith.constant dense<0.000000e+00> : vector<128x128xf32>
    %6 = tpu.matmul %4, %5, %cst {dimension_numbers = #tpu.dot_dimension_numbers<[1], [0], [0], [1], [0, 0, 1, 1], [], []>} : vector<128x1024xbf16>, vector<1024x128xbf16>, vector<128x128xf32> -> vector<128x128xf32>
    %7 = arith.addf %3, %6 : vector<128x128xf32>
    %c0_6 = arith.constant 0 : index
    %c0_7 = arith.constant 0 : index
    %8 = vector.load %arg8[%c0_6, %c0_7] : memref<128x128xf32, #tpu.memory_space<vmem>>, vector<128x128xf32>
    tpu.vector_store %arg8[%c0_6, %c0_7], %7 {strides = array<i32>} : memref<128x128xf32, #tpu.memory_space<vmem>>, vector<128x128xf32>,
    %c0_i32_8 = arith.constant 0 : i32
    %9 = arith.cmpi eq, %arg2, %c0_i32_8 : i32
    %10 = arith.extui %9 : i1 to i32
    %c0_i32_9 = arith.constant 0 : i32
    %11 = arith.cmpi ne, %10, %c0_i32_9 : i32
    scf.if %11 {
      %c0_10 = arith.constant 0 : index
      %c0_11 = arith.constant 0 : index
      %12 = vector.load %arg8[%c0_10, %c0_11] : memref<128x128xf32, #tpu.memory_space<vmem>>, vector<128x128xf32>
      %c0_12 = arith.constant 0 : index
      %c0_13 = arith.constant 0 : index
      %13 = vector.load %arg5[%c0_12, %c0_13] : memref<1x128xf32, #tpu.memory_space<vmem>>, vector<1x128xf32>
      %14 = vector.broadcast %13 : vector<1x128xf32> to vector<128x128xf32>
      %15 = arith.mulf %12, %14 : vector<128x128xf32>
      %c0_14 = arith.constant 0 : index
      %c0_15 = arith.constant 0 : index
      %16 = vector.load %arg6[%c0_14, %c0_15] : memref<1x128xf32, #tpu.memory_space<vmem>>, vector<1x128xf32>
      %17 = vector.broadcast %16 : vector<1x128xf32> to vector<128x128xf32>
      %18 = arith.addf %15, %17 : vector<128x128xf32>
      %cst_16 = arith.constant 0.000000e+00 : f32
      %19 = vector.broadcast %cst_16 : f32 to vector<128x128xf32>
      %20 = arith.cmpf oge, %18, %19 : vector<128x128xf32>
      %cst_17 = arith.constant 2.000000e-01 : f32
      %21 = vector.broadcast %cst_17 : f32 to vector<128x128xf32>
      %22 = arith.mulf %21, %18 : vector<128x128xf32>
      %23 = arith.select %20, %18, %22 : vector<128x128xi1>, vector<128x128xf32>
      %c0_18 = arith.constant 0 : index
      %c0_19 = arith.constant 0 : index
      %24 = vector.load %arg7[%c0_18, %c0_19] : memref<128x128xf32, #tpu.memory_space<vmem>>, vector<128x128xf32>
      tpu.vector_store %arg7[%c0_18, %c0_19], %23 {strides = array<i32>} : memref<128x128xf32, #tpu.memory_space<vmem>>, vector<128x128xf32>,
    } else {
    }
    return
  }
  func.func @transform_0(%arg0: i32, %arg1: i32, %arg2: i32) -> (i32, i32) {
    %c0_i32 = arith.constant 0 : i32
    return %arg0, %arg2 : i32, i32
  }
  func.func @transform_1(%arg0: i32, %arg1: i32, %arg2: i32) -> (i32, i32) {
    %c0_i32 = arith.constant 0 : i32
    return %arg2, %arg1 : i32, i32
  }
  func.func @transform_2(%arg0: i32, %arg1: i32, %arg2: i32) -> (i32, i32) {
    %c0_i32 = arith.constant 0 : i32
    %c0_i32_0 = arith.constant 0 : i32
    return %c0_i32, %arg1 : i32, i32
  }
  func.func @transform_3(%arg0: i32, %arg1: i32, %arg2: i32) -> (i32, i32) {
    %c0_i32 = arith.constant 0 : i32
    %c0_i32_0 = arith.constant 0 : i32
    return %c0_i32, %arg1 : i32, i32
  }
  func.func @transform_4(%arg0: i32, %arg1: i32, %arg2: i32) -> (i32, i32) {
    %c0_i32 = arith.constant 0 : i32
    return %arg0, %arg1 : i32, i32
  }
}

module attributes {stable_mosaic.version = 11 : i64} {
  func.func @_conv_gemm_kernel(%arg0: i32, %arg1: i32, %arg2: i32, %arg3: memref<32x1024xbf16, #tpu.memory_space<vmem>>, %arg4: memref<1024x256xbf16, #tpu.memory_space<vmem>>, %arg5: memref<1x256xf32, #tpu.memory_space<vmem>>, %arg6: memref<1x256xf32, #tpu.memory_space<vmem>>, %arg7: memref<32x256xf32, #tpu.memory_space<vmem>>, %arg8: memref<32x256xf32, #tpu.memory_space<vmem>>) attributes {dimension_semantics = [#tpu.dimension_semantics<parallel>, #tpu.dimension_semantics<parallel>, #tpu.dimension_semantics<arbitrary>], iteration_bounds = array<i64: 1, 1, 2>, scalar_prefetch = 0 : i64, scratch_operands = 1 : i64, tpu.core_type = #tpu.core_type<tc>, window_params = [{transform_indices = @transform_0, window_bounds = array<i64: 32, 1024>}, {transform_indices = @transform_1, window_bounds = array<i64: 1024, 256>}, {transform_indices = @transform_2, window_bounds = array<i64: 1, 256>}, {transform_indices = @transform_3, window_bounds = array<i64: 1, 256>}, {transform_indices = @transform_4, window_bounds = array<i64: 32, 256>}]} {
    %c0_i32 = arith.constant 0 : i32
    %0 = arith.cmpi eq, %arg2, %c0_i32 : i32
    %1 = arith.extui %0 : i1 to i32
    %c0_i32_0 = arith.constant 0 : i32
    %2 = arith.cmpi ne, %1, %c0_i32_0 : i32
    scf.if %2 {
      %cst_9 = arith.constant 0.000000e+00 : f32
      %12 = vector.broadcast %cst_9 : f32 to vector<32x256xf32>
      %c0_10 = arith.constant 0 : index
      %c0_11 = arith.constant 0 : index
      %13 = vector.load %arg8[%c0_10, %c0_11] : memref<32x256xf32, #tpu.memory_space<vmem>>, vector<32x256xf32>
      tpu.vector_store %arg8[%c0_10, %c0_11], %12 {strides = array<i32>} : memref<32x256xf32, #tpu.memory_space<vmem>>, vector<32x256xf32>,
    } else {
    }
    %c0 = arith.constant 0 : index
    %c0_1 = arith.constant 0 : index
    %3 = vector.load %arg8[%c0, %c0_1] : memref<32x256xf32, #tpu.memory_space<vmem>>, vector<32x256xf32>
    %c0_2 = arith.constant 0 : index
    %c0_3 = arith.constant 0 : index
    %4 = vector.load %arg3[%c0_2, %c0_3] : memref<32x1024xbf16, #tpu.memory_space<vmem>>, vector<32x1024xbf16>
    %c0_4 = arith.constant 0 : index
    %c0_5 = arith.constant 0 : index
    %5 = vector.load %arg4[%c0_4, %c0_5] : memref<1024x256xbf16, #tpu.memory_space<vmem>>, vector<1024x256xbf16>
    %cst = arith.constant dense<0.000000e+00> : vector<32x256xf32>
    %6 = tpu.matmul %4, %5, %cst {dimension_numbers = #tpu.dot_dimension_numbers<[1], [0], [0], [1], [0, 0, 1, 1], [], []>} : vector<32x1024xbf16>, vector<1024x256xbf16>, vector<32x256xf32> -> vector<32x256xf32>
    %7 = arith.addf %3, %6 : vector<32x256xf32>
    %c0_6 = arith.constant 0 : index
    %c0_7 = arith.constant 0 : index
    %8 = vector.load %arg8[%c0_6, %c0_7] : memref<32x256xf32, #tpu.memory_space<vmem>>, vector<32x256xf32>
    tpu.vector_store %arg8[%c0_6, %c0_7], %7 {strides = array<i32>} : memref<32x256xf32, #tpu.memory_space<vmem>>, vector<32x256xf32>,
    %c1_i32 = arith.constant 1 : i32
    %9 = arith.cmpi eq, %arg2, %c1_i32 : i32
    %10 = arith.extui %9 : i1 to i32
    %c0_i32_8 = arith.constant 0 : i32
    %11 = arith.cmpi ne, %10, %c0_i32_8 : i32
    scf.if %11 {
      %c0_9 = arith.constant 0 : index
      %c0_10 = arith.constant 0 : index
      %12 = vector.load %arg8[%c0_9, %c0_10] : memref<32x256xf32, #tpu.memory_space<vmem>>, vector<32x256xf32>
      %c0_11 = arith.constant 0 : index
      %c0_12 = arith.constant 0 : index
      %13 = vector.load %arg5[%c0_11, %c0_12] : memref<1x256xf32, #tpu.memory_space<vmem>>, vector<1x256xf32>
      %14 = vector.broadcast %13 : vector<1x256xf32> to vector<32x256xf32>
      %15 = arith.mulf %12, %14 : vector<32x256xf32>
      %c0_13 = arith.constant 0 : index
      %c0_14 = arith.constant 0 : index
      %16 = vector.load %arg6[%c0_13, %c0_14] : memref<1x256xf32, #tpu.memory_space<vmem>>, vector<1x256xf32>
      %17 = vector.broadcast %16 : vector<1x256xf32> to vector<32x256xf32>
      %18 = arith.addf %15, %17 : vector<32x256xf32>
      %cst_15 = arith.constant 0.000000e+00 : f32
      %19 = vector.broadcast %cst_15 : f32 to vector<32x256xf32>
      %20 = arith.cmpf oge, %18, %19 : vector<32x256xf32>
      %cst_16 = arith.constant 2.000000e-01 : f32
      %21 = vector.broadcast %cst_16 : f32 to vector<32x256xf32>
      %22 = arith.mulf %21, %18 : vector<32x256xf32>
      %23 = arith.select %20, %18, %22 : vector<32x256xi1>, vector<32x256xf32>
      %c0_17 = arith.constant 0 : index
      %c0_18 = arith.constant 0 : index
      %24 = vector.load %arg7[%c0_17, %c0_18] : memref<32x256xf32, #tpu.memory_space<vmem>>, vector<32x256xf32>
      tpu.vector_store %arg7[%c0_17, %c0_18], %23 {strides = array<i32>} : memref<32x256xf32, #tpu.memory_space<vmem>>, vector<32x256xf32>,
    } else {
    }
    return
  }
  func.func @transform_0(%arg0: i32, %arg1: i32, %arg2: i32) -> (i32, i32) {
    %c0_i32 = arith.constant 0 : i32
    return %arg0, %arg2 : i32, i32
  }
  func.func @transform_1(%arg0: i32, %arg1: i32, %arg2: i32) -> (i32, i32) {
    %c0_i32 = arith.constant 0 : i32
    return %arg2, %arg1 : i32, i32
  }
  func.func @transform_2(%arg0: i32, %arg1: i32, %arg2: i32) -> (i32, i32) {
    %c0_i32 = arith.constant 0 : i32
    %c0_i32_0 = arith.constant 0 : i32
    return %c0_i32, %arg1 : i32, i32
  }
  func.func @transform_3(%arg0: i32, %arg1: i32, %arg2: i32) -> (i32, i32) {
    %c0_i32 = arith.constant 0 : i32
    %c0_i32_0 = arith.constant 0 : i32
    return %c0_i32, %arg1 : i32, i32
  }
  func.func @transform_4(%arg0: i32, %arg1: i32, %arg2: i32) -> (i32, i32) {
    %c0_i32 = arith.constant 0 : i32
    return %arg0, %arg1 : i32, i32
  }
}

module attributes {stable_mosaic.version = 11 : i64} {
  func.func @_conv_gemm_kernel(%arg0: i32, %arg1: i32, %arg2: i32, %arg3: memref<32x1024xbf16, #tpu.memory_space<vmem>>, %arg4: memref<1024x256xbf16, #tpu.memory_space<vmem>>, %arg5: memref<1x256xf32, #tpu.memory_space<vmem>>, %arg6: memref<1x256xf32, #tpu.memory_space<vmem>>, %arg7: memref<32x256xf32, #tpu.memory_space<vmem>>, %arg8: memref<32x256xf32, #tpu.memory_space<vmem>>) attributes {dimension_semantics = [#tpu.dimension_semantics<parallel>, #tpu.dimension_semantics<parallel>, #tpu.dimension_semantics<arbitrary>], iteration_bounds = array<i64: 1, 2, 4>, scalar_prefetch = 0 : i64, scratch_operands = 1 : i64, tpu.core_type = #tpu.core_type<tc>, window_params = [{transform_indices = @transform_0, window_bounds = array<i64: 32, 1024>}, {transform_indices = @transform_1, window_bounds = array<i64: 1024, 256>}, {transform_indices = @transform_2, window_bounds = array<i64: 1, 256>}, {transform_indices = @transform_3, window_bounds = array<i64: 1, 256>}, {transform_indices = @transform_4, window_bounds = array<i64: 32, 256>}]} {
    %c0_i32 = arith.constant 0 : i32
    %0 = arith.cmpi eq, %arg2, %c0_i32 : i32
    %1 = arith.extui %0 : i1 to i32
    %c0_i32_0 = arith.constant 0 : i32
    %2 = arith.cmpi ne, %1, %c0_i32_0 : i32
    scf.if %2 {
      %cst_9 = arith.constant 0.000000e+00 : f32
      %12 = vector.broadcast %cst_9 : f32 to vector<32x256xf32>
      %c0_10 = arith.constant 0 : index
      %c0_11 = arith.constant 0 : index
      %13 = vector.load %arg8[%c0_10, %c0_11] : memref<32x256xf32, #tpu.memory_space<vmem>>, vector<32x256xf32>
      tpu.vector_store %arg8[%c0_10, %c0_11], %12 {strides = array<i32>} : memref<32x256xf32, #tpu.memory_space<vmem>>, vector<32x256xf32>,
    } else {
    }
    %c0 = arith.constant 0 : index
    %c0_1 = arith.constant 0 : index
    %3 = vector.load %arg8[%c0, %c0_1] : memref<32x256xf32, #tpu.memory_space<vmem>>, vector<32x256xf32>
    %c0_2 = arith.constant 0 : index
    %c0_3 = arith.constant 0 : index
    %4 = vector.load %arg3[%c0_2, %c0_3] : memref<32x1024xbf16, #tpu.memory_space<vmem>>, vector<32x1024xbf16>
    %c0_4 = arith.constant 0 : index
    %c0_5 = arith.constant 0 : index
    %5 = vector.load %arg4[%c0_4, %c0_5] : memref<1024x256xbf16, #tpu.memory_space<vmem>>, vector<1024x256xbf16>
    %cst = arith.constant dense<0.000000e+00> : vector<32x256xf32>
    %6 = tpu.matmul %4, %5, %cst {dimension_numbers = #tpu.dot_dimension_numbers<[1], [0], [0], [1], [0, 0, 1, 1], [], []>} : vector<32x1024xbf16>, vector<1024x256xbf16>, vector<32x256xf32> -> vector<32x256xf32>
    %7 = arith.addf %3, %6 : vector<32x256xf32>
    %c0_6 = arith.constant 0 : index
    %c0_7 = arith.constant 0 : index
    %8 = vector.load %arg8[%c0_6, %c0_7] : memref<32x256xf32, #tpu.memory_space<vmem>>, vector<32x256xf32>
    tpu.vector_store %arg8[%c0_6, %c0_7], %7 {strides = array<i32>} : memref<32x256xf32, #tpu.memory_space<vmem>>, vector<32x256xf32>,
    %c3_i32 = arith.constant 3 : i32
    %9 = arith.cmpi eq, %arg2, %c3_i32 : i32
    %10 = arith.extui %9 : i1 to i32
    %c0_i32_8 = arith.constant 0 : i32
    %11 = arith.cmpi ne, %10, %c0_i32_8 : i32
    scf.if %11 {
      %c0_9 = arith.constant 0 : index
      %c0_10 = arith.constant 0 : index
      %12 = vector.load %arg8[%c0_9, %c0_10] : memref<32x256xf32, #tpu.memory_space<vmem>>, vector<32x256xf32>
      %c0_11 = arith.constant 0 : index
      %c0_12 = arith.constant 0 : index
      %13 = vector.load %arg5[%c0_11, %c0_12] : memref<1x256xf32, #tpu.memory_space<vmem>>, vector<1x256xf32>
      %14 = vector.broadcast %13 : vector<1x256xf32> to vector<32x256xf32>
      %15 = arith.mulf %12, %14 : vector<32x256xf32>
      %c0_13 = arith.constant 0 : index
      %c0_14 = arith.constant 0 : index
      %16 = vector.load %arg6[%c0_13, %c0_14] : memref<1x256xf32, #tpu.memory_space<vmem>>, vector<1x256xf32>
      %17 = vector.broadcast %16 : vector<1x256xf32> to vector<32x256xf32>
      %18 = arith.addf %15, %17 : vector<32x256xf32>
      %cst_15 = arith.constant 0.000000e+00 : f32
      %19 = vector.broadcast %cst_15 : f32 to vector<32x256xf32>
      %20 = arith.cmpf oge, %18, %19 : vector<32x256xf32>
      %cst_16 = arith.constant 2.000000e-01 : f32
      %21 = vector.broadcast %cst_16 : f32 to vector<32x256xf32>
      %22 = arith.mulf %21, %18 : vector<32x256xf32>
      %23 = arith.select %20, %18, %22 : vector<32x256xi1>, vector<32x256xf32>
      %c0_17 = arith.constant 0 : index
      %c0_18 = arith.constant 0 : index
      %24 = vector.load %arg7[%c0_17, %c0_18] : memref<32x256xf32, #tpu.memory_space<vmem>>, vector<32x256xf32>
      tpu.vector_store %arg7[%c0_17, %c0_18], %23 {strides = array<i32>} : memref<32x256xf32, #tpu.memory_space<vmem>>, vector<32x256xf32>,
    } else {
    }
    return
  }
  func.func @transform_0(%arg0: i32, %arg1: i32, %arg2: i32) -> (i32, i32) {
    %c0_i32 = arith.constant 0 : i32
    return %arg0, %arg2 : i32, i32
  }
  func.func @transform_1(%arg0: i32, %arg1: i32, %arg2: i32) -> (i32, i32) {
    %c0_i32 = arith.constant 0 : i32
    return %arg2, %arg1 : i32, i32
  }
  func.func @transform_2(%arg0: i32, %arg1: i32, %arg2: i32) -> (i32, i32) {
    %c0_i32 = arith.constant 0 : i32
    %c0_i32_0 = arith.constant 0 : i32
    return %c0_i32, %arg1 : i32, i32
  }
  func.func @transform_3(%arg0: i32, %arg1: i32, %arg2: i32) -> (i32, i32) {
    %c0_i32 = arith.constant 0 : i32
    %c0_i32_0 = arith.constant 0 : i32
    return %c0_i32, %arg1 : i32, i32
  }
  func.func @transform_4(%arg0: i32, %arg1: i32, %arg2: i32) -> (i32, i32) {
    %c0_i32 = arith.constant 0 : i32
    return %arg0, %arg1 : i32, i32
  }
}

module attributes {stable_mosaic.version = 11 : i64} {
  func.func @_conv_gemm_kernel(%arg0: i32, %arg1: i32, %arg2: i32, %arg3: memref<16x1024xbf16, #tpu.memory_space<vmem>>, %arg4: memref<1024x128xbf16, #tpu.memory_space<vmem>>, %arg5: memref<1x128xf32, #tpu.memory_space<vmem>>, %arg6: memref<1x128xf32, #tpu.memory_space<vmem>>, %arg7: memref<16x128xf32, #tpu.memory_space<vmem>>, %arg8: memref<16x128xf32, #tpu.memory_space<vmem>>) attributes {dimension_semantics = [#tpu.dimension_semantics<parallel>, #tpu.dimension_semantics<parallel>, #tpu.dimension_semantics<arbitrary>], iteration_bounds = array<i64: 1, 1, 8>, scalar_prefetch = 0 : i64, scratch_operands = 1 : i64, tpu.core_type = #tpu.core_type<tc>, window_params = [{transform_indices = @transform_0, window_bounds = array<i64: 16, 1024>}, {transform_indices = @transform_1, window_bounds = array<i64: 1024, 128>}, {transform_indices = @transform_2, window_bounds = array<i64: 1, 128>}, {transform_indices = @transform_3, window_bounds = array<i64: 1, 128>}, {transform_indices = @transform_4, window_bounds = array<i64: 16, 128>}]} {
    %c0_i32 = arith.constant 0 : i32
    %0 = arith.cmpi eq, %arg2, %c0_i32 : i32
    %1 = arith.extui %0 : i1 to i32
    %c0_i32_0 = arith.constant 0 : i32
    %2 = arith.cmpi ne, %1, %c0_i32_0 : i32
    scf.if %2 {
      %cst_9 = arith.constant 0.000000e+00 : f32
      %12 = vector.broadcast %cst_9 : f32 to vector<16x128xf32>
      %c0_10 = arith.constant 0 : index
      %c0_11 = arith.constant 0 : index
      %13 = vector.load %arg8[%c0_10, %c0_11] : memref<16x128xf32, #tpu.memory_space<vmem>>, vector<16x128xf32>
      tpu.vector_store %arg8[%c0_10, %c0_11], %12 {strides = array<i32>} : memref<16x128xf32, #tpu.memory_space<vmem>>, vector<16x128xf32>,
    } else {
    }
    %c0 = arith.constant 0 : index
    %c0_1 = arith.constant 0 : index
    %3 = vector.load %arg8[%c0, %c0_1] : memref<16x128xf32, #tpu.memory_space<vmem>>, vector<16x128xf32>
    %c0_2 = arith.constant 0 : index
    %c0_3 = arith.constant 0 : index
    %4 = vector.load %arg3[%c0_2, %c0_3] : memref<16x1024xbf16, #tpu.memory_space<vmem>>, vector<16x1024xbf16>
    %c0_4 = arith.constant 0 : index
    %c0_5 = arith.constant 0 : index
    %5 = vector.load %arg4[%c0_4, %c0_5] : memref<1024x128xbf16, #tpu.memory_space<vmem>>, vector<1024x128xbf16>
    %cst = arith.constant dense<0.000000e+00> : vector<16x128xf32>
    %6 = tpu.matmul %4, %5, %cst {dimension_numbers = #tpu.dot_dimension_numbers<[1], [0], [0], [1], [0, 0, 1, 1], [], []>} : vector<16x1024xbf16>, vector<1024x128xbf16>, vector<16x128xf32> -> vector<16x128xf32>
    %7 = arith.addf %3, %6 : vector<16x128xf32>
    %c0_6 = arith.constant 0 : index
    %c0_7 = arith.constant 0 : index
    %8 = vector.load %arg8[%c0_6, %c0_7] : memref<16x128xf32, #tpu.memory_space<vmem>>, vector<16x128xf32>
    tpu.vector_store %arg8[%c0_6, %c0_7], %7 {strides = array<i32>} : memref<16x128xf32, #tpu.memory_space<vmem>>, vector<16x128xf32>,
    %c7_i32 = arith.constant 7 : i32
    %9 = arith.cmpi eq, %arg2, %c7_i32 : i32
    %10 = arith.extui %9 : i1 to i32
    %c0_i32_8 = arith.constant 0 : i32
    %11 = arith.cmpi ne, %10, %c0_i32_8 : i32
    scf.if %11 {
      %c0_9 = arith.constant 0 : index
      %c0_10 = arith.constant 0 : index
      %12 = vector.load %arg8[%c0_9, %c0_10] : memref<16x128xf32, #tpu.memory_space<vmem>>, vector<16x128xf32>
      %c0_11 = arith.constant 0 : index
      %c0_12 = arith.constant 0 : index
      %13 = vector.load %arg5[%c0_11, %c0_12] : memref<1x128xf32, #tpu.memory_space<vmem>>, vector<1x128xf32>
      %14 = vector.broadcast %13 : vector<1x128xf32> to vector<16x128xf32>
      %15 = arith.mulf %12, %14 : vector<16x128xf32>
      %c0_13 = arith.constant 0 : index
      %c0_14 = arith.constant 0 : index
      %16 = vector.load %arg6[%c0_13, %c0_14] : memref<1x128xf32, #tpu.memory_space<vmem>>, vector<1x128xf32>
      %17 = vector.broadcast %16 : vector<1x128xf32> to vector<16x128xf32>
      %18 = arith.addf %15, %17 : vector<16x128xf32>
      %c0_15 = arith.constant 0 : index
      %c0_16 = arith.constant 0 : index
      %19 = vector.load %arg7[%c0_15, %c0_16] : memref<16x128xf32, #tpu.memory_space<vmem>>, vector<16x128xf32>
      tpu.vector_store %arg7[%c0_15, %c0_16], %18 {strides = array<i32>} : memref<16x128xf32, #tpu.memory_space<vmem>>, vector<16x128xf32>,
    } else {
    }
    return
  }
  func.func @transform_0(%arg0: i32, %arg1: i32, %arg2: i32) -> (i32, i32) {
    %c0_i32 = arith.constant 0 : i32
    return %arg0, %arg2 : i32, i32
  }
  func.func @transform_1(%arg0: i32, %arg1: i32, %arg2: i32) -> (i32, i32) {
    %c0_i32 = arith.constant 0 : i32
    return %arg2, %arg1 : i32, i32
  }
  func.func @transform_2(%arg0: i32, %arg1: i32, %arg2: i32) -> (i32, i32) {
    %c0_i32 = arith.constant 0 : i32
    %c0_i32_0 = arith.constant 0 : i32
    return %c0_i32, %arg1 : i32, i32
  }
  func.func @transform_3(%arg0: i32, %arg1: i32, %arg2: i32) -> (i32, i32) {
    %c0_i32 = arith.constant 0 : i32
    %c0_i32_0 = arith.constant 0 : i32
    return %c0_i32, %arg1 : i32, i32
  }
  func.func @transform_4(%arg0: i32, %arg1: i32, %arg2: i32) -> (i32, i32) {
    %c0_i32 = arith.constant 0 : i32
    return %arg0, %arg1 : i32, i32
  }
}

</mosaic_0001>

<llo_original>
// kernel: forward.5
$region0: #{forward.5}
  #allocation0 [shape = 'u32[]', space=smem, size = 0x4, offset = 0x4, fixed_abs, tag = 'smem constant byte address 0x4 - core index']
  #allocation1 [shape = 'u32[144,128]{1,0:T(1,128)}', space=vmem, size = 0x12000, scoped, tag = 'internal scratch']
  #allocation2 [shape = 'f32[256,128]{1,0:T(8,128)}', space=vmem, size = 0x20000, scoped, tag = 'scratch operand']
  %s0 = inlined_call_operand.vmem [shape: bf16[512,48], index: 0, kind: input, shape index: {}]
  %s1 = inlined_call_operand.hbm [shape: bf16[48,128], index: 1, kind: input, shape index: {}]
  %s2 = inlined_call_operand.hbm [shape: f32[1,128], index: 2, kind: input, shape index: {}]
  %s3 = inlined_call_operand.hbm [shape: f32[1,128], index: 3, kind: input, shape index: {}]
  %s4 = inlined_call_operand.vmem [shape: f32[512,128], index: 4, kind: output, shape index: {}]
  %s5 = sld [smem:[#allocation0]]
  $region69: #{forward.5} parent=0
    _
  %s7 = ssub.s32 1, %s5
  %s8 = scalar_select 0, %s7, %s5
  $region1: #{forward.5} parent=0
    #allocation3 [shape = 'u8[12288]{0}', space=vmem, size = 0x3000, scoped, tag = 'input window, operand 1, single buffered']
    #allocation4 [shape = 's32[2]{0}', space=sflag, size = 0x8, scoped, tag = 'scoped memory for forward.5']
    #allocation5 [shape = 'u8[512]{0}', space=vmem, size = 0x400, scoped, tag = 'input window, operand 2, single buffered']
    #allocation6 [shape = 's32[1]{0}', space=sflag, size = 0x4, scoped, tag = 'scoped memory for forward.5']
    #allocation7 [shape = 'u8[512]{0}', space=vmem, size = 0x400, scoped, tag = 'input window, operand 3, single buffered']
    %9 = vsyncpa [#allocation4], 0
    %10 = vsyncpa [#allocation6], 0
    loop: start=0, step=1, limit=4
    $region2: #{forward.5} parent=1 // loop_pre_header
      _
    $region3: #{forward.5} parent=1 // loop_header
      %s12 = sphi 0, %s16
      %p13 = scmp.ge.s32.totalorder %s12, 4
      %s19 = sphi 0, %s38
      %s20 = sphi 0, %s34
      %s21 = sphi 0, %s30
      %s22 = sphi 0, %s19
      %s23 = sphi 0, %s20
      %s24 = sphi 0, %s21
      %s25 = sphi 0, %s22
      %s26 = sphi 0, %s23
      %s27 = sphi 0, %s24
      %s43 = sphi 0, %s45
      %s46 = sphi 0, %s43
      %s47 = sphi 0, %s46
      %s63 = sphi 0, %s47
      %s71 = sphi 0, %s73
      %s74 = sphi 0, %s71
      %s75 = sphi 0, %s74
      %s91 = sphi 0, %s75
      %s97 = sphi 0, %s99
      %s100 = sphi 0, %s97
      %s101 = sphi 0, %s100
      %s117 = sphi 0, %s101
      %s123 = sphi 0, %s125
      %s126 = sphi 0, %s123
      %s127 = sphi 0, %s126
      %s143 = sphi 0, %s127
      %s151 = sphi 0, %s153
      %s154 = sphi 0, %s151
      %s155 = sphi 0, %s154
      %s171 = sphi 0, %s155
    $region4: #{forward.5} parent=1 // loop_header_branch
      %15 = sbr.rel (%p13) target = $region8
    $region5: #{forward.5} parent=1 // loop_body
      %s17 = ssub.s32 %s12, 1
      %s18 = ssub.s32 %s12, 2
      %s28 = sadd.s32 1, %s21
      %p29 = scmp.ge.s32.totalorder %s28, 1
      %s30 = scalar_select %p29, 0, %s28
      %s31 = sadd.s32 1, %s20
      %s32 = scalar_select %p29, %s31, %s20
      %p33 = scmp.ge.s32.totalorder %s32, 1
      %s34 = scalar_select %p33, 0, %s32
      %s35 = sadd.s32 1, %s19
      %s36 = scalar_select %p33, %s35, %s19
      %p37 = scmp.ge.s32.totalorder %s36, 2
      %s38 = scalar_select %p37, 0, %s36
      %s39 = ssub.s32 %s19, %s38
      %s40 = ssub.s32 %s21, %s30
      %s41 = sor.u32 %s39, %s40
      %p42 = scmp.eq.s32.totalorder %s41, 0
      %s44 = sadd.s32 %s43, 1
      %s45 = scalar_select %p42, %s43, %s44
      %p48 = pneg %p42
      %p49 = scmp.eq.s32.totalorder %s12, 1
      %p50 = por %p48, %p49
      %p51 = scmp.ne.s32.totalorder %s43, %s46
      %p52 = scmp.eq.s32.totalorder %s12, 0
      %p53 = por %p51, %p52
      %p54 = scmp.ne.s32.totalorder %s43, %s46
      %p55 = scmp.eq.s32.totalorder %s17, 1
      %p56 = por %p54, %p55
      %p57 = scmp.ne.s32.totalorder %s46, %s47
      %p58 = scmp.eq.s32.totalorder %s17, 0
      %p59 = por %p57, %p58
      %p60 = scmp.ne.s32.totalorder %s46, %s47
      %p61 = scmp.eq.s32.totalorder %s18, 1
      %p62 = por %p60, %p61
      %p64 = scmp.ne.s32.totalorder %s47, %s63
      %p65 = scmp.eq.s32.totalorder %s18, 0
      %p66 = por %p64, %p65
      %s67 = ssub.s32 %s21, %s30
      %s68 = ssub.s32 %s20, %s34
      %s69 = sor.u32 %s67, %s68
      %p70 = scmp.eq.s32.totalorder %s69, 0
      %s72 = sadd.s32 %s71, 1
      %s73 = scalar_select %p70, %s71, %s72
      %p76 = pneg %p70
      %p77 = scmp.eq.s32.totalorder %s12, 1
      %p78 = por %p76, %p77
      %p79 = scmp.ne.s32.totalorder %s71, %s74
      %p80 = scmp.eq.s32.totalorder %s12, 0
      %p81 = por %p79, %p80
      %p82 = scmp.ne.s32.totalorder %s71, %s74
      %p83 = scmp.eq.s32.totalorder %s17, 1
      %p84 = por %p82, %p83
      %p85 = scmp.ne.s32.totalorder %s74, %s75
      %p86 = scmp.eq.s32.totalorder %s17, 0
      %p87 = por %p85, %p86
      %p88 = scmp.ne.s32.totalorder %s74, %s75
      %p89 = scmp.eq.s32.totalorder %s18, 1
      %p90 = por %p88, %p89
      %p92 = scmp.ne.s32.totalorder %s75, %s91
      %p93 = scmp.eq.s32.totalorder %s18, 0
      %p94 = por %p92, %p93
      %s95 = ssub.s32 %s20, %s34
      %p96 = scmp.eq.s32.totalorder %s95, 0
      %s98 = sadd.s32 %s97, 1
      %s99 = scalar_select %p96, %s97, %s98
      %p102 = pneg %p96
      %p103 = scmp.eq.s32.totalorder %s12, 1
      %p104 = por %p102, %p103
      %p105 = scmp.ne.s32.totalorder %s97, %s100
      %p106 = scmp.eq.s32.totalorder %s12, 0
      %p107 = por %p105, %p106
      %p108 = scmp.ne.s32.totalorder %s97, %s100
      %p109 = scmp.eq.s32.totalorder %s17, 1
      %p110 = por %p108, %p109
      %p111 = scmp.ne.s32.totalorder %s100, %s101
      %p112 = scmp.eq.s32.totalorder %s17, 0
      %p113 = por %p111, %p112
      %p114 = scmp.ne.s32.totalorder %s100, %s101
      %p115 = scmp.eq.s32.totalorder %s18, 1
      %p116 = por %p114, %p115
      %p118 = scmp.ne.s32.totalorder %s101, %s117
      %p119 = scmp.eq.s32.totalorder %s18, 0
      %p120 = por %p118, %p119
      %s121 = ssub.s32 %s20, %s34
      %p122 = scmp.eq.s32.totalorder %s121, 0
      %s124 = sadd.s32 %s123, 1
      %s125 = scalar_select %p122, %s123, %s124
      %p128 = pneg %p122
      %p129 = scmp.eq.s32.totalorder %s12, 1
      %p130 = por %p128, %p129
      %p131 = scmp.ne.s32.totalorder %s123, %s126
      %p132 = scmp.eq.s32.totalorder %s12, 0
      %p133 = por %p131, %p132
      %p134 = scmp.ne.s32.totalorder %s123, %s126
      %p135 = scmp.eq.s32.totalorder %s17, 1
      %p136 = por %p134, %p135
      %p137 = scmp.ne.s32.totalorder %s126, %s127
      %p138 = scmp.eq.s32.totalorder %s17, 0
      %p139 = por %p137, %p138
      %p140 = scmp.ne.s32.totalorder %s126, %s127
      %p141 = scmp.eq.s32.totalorder %s18, 1
      %p142 = por %p140, %p141
      %p144 = scmp.ne.s32.totalorder %s127, %s143
      %p145 = scmp.eq.s32.totalorder %s18, 0
      %p146 = por %p144, %p145
      %s147 = ssub.s32 %s19, %s38
      %s148 = ssub.s32 %s20, %s34
      %s149 = sor.u32 %s147, %s148
      %p150 = scmp.eq.s32.totalorder %s149, 0
      %s152 = sadd.s32 %s151, 1
      %s153 = scalar_select %p150, %s151, %s152
      %p156 = pneg %p150
      %p157 = scmp.eq.s32.totalorder %s12, 1
      %p158 = por %p156, %p157
      %p159 = scmp.ne.s32.totalorder %s151, %s154
      %p160 = scmp.eq.s32.totalorder %s12, 0
      %p161 = por %p159, %p160
      %p162 = scmp.ne.s32.totalorder %s151, %s154
      %p163 = scmp.eq.s32.totalorder %s17, 1
      %p164 = por %p162, %p163
      %p165 = scmp.ne.s32.totalorder %s154, %s155
      %p166 = scmp.eq.s32.totalorder %s17, 0
      %p167 = por %p165, %p166
      %p168 = scmp.ne.s32.totalorder %s154, %s155
      %p169 = scmp.eq.s32.totalorder %s18, 1
      %p170 = por %p168, %p169
      %p172 = scmp.ne.s32.totalorder %s155, %s171
      %p173 = scmp.eq.s32.totalorder %s18, 0
      %p174 = por %p172, %p173
      %p175 = scmp.le.s32.totalorder 1, %s12
      %p176 = scmp.lt.s32.totalorder %s12, 3
      %p177 = pnand %p175, %p176
      %p178 = pneg %p177
      // Predicated region
      $region9: #{forward.5} parent=5 // pred_check
        _
      $region10: #{forward.5} parent=5 // pred_check_branch
        %180 = sbr.rel (%p177) target = $region12
      $region11: #{forward.5} parent=5 // pred_region
        %s181 = ssub.s32 %s12, 1
        // Predicated region
        $region13: #{forward.5} parent=11 // pred_check
          %p182 = pneg %p87
        $region14: #{forward.5} parent=11 // pred_check_branch
          %184 = sbr.rel (%p182) target = $region16
        $region15: #{forward.5} parent=11 // pred_region
          %s185 = smul.u32 6, %s24
          %s187 = ssub.s32 384, 384
          %188 = vsyncadd [#allocation4], %s187
          %s189 = sadd.s32 %s23, %s185
          %s190 = smul.addr %s189, 64
          %s191 = scalar_lea.hbm %s1, %s190
          %s192 = sshll.u32 [#allocation3], 4
          %s193 = int_to_ptr.vmem [resolvable:$true] %s192
          %198 = dma.hbm_to_vmem [thread:$0]  %s191, 384, %s193, [#allocation4], 64, 64, 4
        $region16: #{forward.5} parent=11 // pred_fallthru
          _
        // Predicated region
        $region17: #{forward.5} parent=11 // pred_check
          %p199 = pneg %p113
        $region18: #{forward.5} parent=11 // pred_check_branch
          %201 = sbr.rel (%p199) target = $region20
        $region19: #{forward.5} parent=11 // pred_region
          %s203 = ssub.s32 16, 16
          %204 = vsyncadd [#allocation6], %s203
          %s205 = smul.addr %s23, 16
          %s206 = scalar_lea.hbm %s2, %s205
          %s208 = sshll.u32 [#allocation5], 4
          %s209 = int_to_ptr.vmem [resolvable:$true] %s208
          %211 = dma.hbm_to_vmem [thread:$0]  %s206, 16, %s209, [#allocation6]
        $region20: #{forward.5} parent=11 // pred_fallthru
          _
        // Predicated region
        $region21: #{forward.5} parent=11 // pred_check
          %p212 = pneg %p139
        $region22: #{forward.5} parent=11 // pred_check_branch
          %214 = sbr.rel (%p212) target = $region24
        $region23: #{forward.5} parent=11 // pred_region
          %s216 = ssub.s32 16, 16
          %217 = vsyncadd [#allocation6], %s216
          %s218 = smul.addr %s23, 16
          %s219 = scalar_lea.hbm %s3, %s218
          %s221 = sshll.u32 [#allocation7], 4
          %s222 = int_to_ptr.vmem [resolvable:$true] %s221
          %224 = dma.hbm_to_vmem [thread:$0]  %s219, 16, %s222, [#allocation6]
        $region24: #{forward.5} parent=11 // pred_fallthru
          _
      $region12: #{forward.5} parent=5 // pred_fallthru
        _
      %p225 = scmp.lt.s32.totalorder %s12, 2
      // Predicated region
      $region25: #{forward.5} parent=5 // pred_check
        %p226 = pneg %p225
      $region26: #{forward.5} parent=5 // pred_check_branch
        %228 = sbr.rel (%p226) target = $region28
      $region27: #{forward.5} parent=5 // pred_region
        // Predicated region
        $region29: #{forward.5} parent=27 // pred_check
          %p229 = pneg %p53
        $region30: #{forward.5} parent=27 // pred_check_branch
          %231 = sbr.rel (%p229) target = $region32
        $region31: #{forward.5} parent=27 // pred_region
          %s232 = smul.u32 32, %s19
          %p233 = scmp.lt.s32.totalorder %s232, 63
          %s234 = scalar_select %p233, %s232, 63
          %p235 = scmp.lt.s32.totalorder %s21, 0
          %s236 = scalar_select %p235, %s21, 0
          %s237 = sadd.s32 %s236, %s234
          %s238 = smul.addr %s237, 4
          %s239 = scalar_lea.vmem %s0, %s238
          %s240 = smul.u32 32, %s19
        $region32: #{forward.5} parent=27 // pred_fallthru
          _
      $region28: #{forward.5} parent=5 // pred_fallthru
        _
      %p241 = scmp.le.s32.totalorder 1, %s12
      %p242 = scmp.lt.s32.totalorder %s12, 3
      %p243 = pnand %p241, %p242
      %p244 = pneg %p243
      // Predicated region
      $region33: #{forward.5} parent=5 // pred_check
        _
      $region34: #{forward.5} parent=5 // pred_check_branch
        %246 = sbr.rel (%p243) target = $region36
      $region35: #{forward.5} parent=5 // pred_region
        %s247 = ssub.s32 %s12, 1
        // Predicated region
        $region37: #{forward.5} parent=35 // pred_check
          %p248 = pneg %p87
        $region38: #{forward.5} parent=35 // pred_check_branch
          %250 = sbr.rel (%p248) target = $region40
        $region39: #{forward.5} parent=35 // pred_region
          %251 = dma.done [#allocation4], 384
        $region40: #{forward.5} parent=35 // pred_fallthru
          _
        // Predicated region
        $region41: #{forward.5} parent=35 // pred_check
          %p252 = pneg %p113
        $region42: #{forward.5} parent=35 // pred_check_branch
          %254 = sbr.rel (%p252) target = $region44
        $region43: #{forward.5} parent=35 // pred_region
          %255 = dma.done [#allocation6], 16
        $region44: #{forward.5} parent=35 // pred_fallthru
          _
        // Predicated region
        $region45: #{forward.5} parent=35 // pred_check
          %p256 = pneg %p139
        $region46: #{forward.5} parent=35 // pred_check_branch
          %258 = sbr.rel (%p256) target = $region48
        $region47: #{forward.5} parent=35 // pred_region
          %259 = dma.done [#allocation6], 16
        $region48: #{forward.5} parent=35 // pred_fallthru
          _
        %s260 = smul.u32 32, %s22
        %p261 = scmp.lt.s32.totalorder %s260, 63
        %s262 = scalar_select %p261, %s260, 63
        %p263 = scmp.lt.s32.totalorder %s24, 0
        %s264 = scalar_select %p263, %s24, 0
        %s265 = sadd.s32 %s264, %s262
        %s266 = smul.addr %s265, 4
        %s267 = scalar_lea.vmem %s0, %s266
        %p268 = pneg %p59
        %p269 = pneg %p56
        %p270 = pneg %p87
        %p271 = pneg %p84
        %p272 = pneg %p113
        %p273 = pneg %p110
        %p274 = pneg %p139
        %p275 = pneg %p136
        %p276 = pneg %p167
        %p277 = pneg %p164
        %s278 = smul.u32 32, %s22
        %p279 = scmp.lt.s32.totalorder %s278, 63
        %s280 = scalar_select %p279, %s278, 63
        %p281 = scmp.lt.s32.totalorder %s23, 0
        %s282 = scalar_select %p281, %s23, 0
        %s283 = sadd.s32 %s282, %s280
        %s284 = smul.addr %s283, 8
        %s285 = scalar_lea.vmem %s4, %s284
        %s286 = smul.u32 32, %s22
        %p287 = scmp.lt.s32.totalorder %s286, 63
        %s288 = scalar_select %p287, %s286, 63
        %p289 = scmp.lt.s32.totalorder %s24, 0
        %s290 = scalar_select %p289, %s24, 0
        %s291 = sadd.s32 %s290, %s288
        %s292 = smul.addr %s291, 4
        %s293 = scalar_lea.vmem %s0, %s292
        %s294 = smul.u32 32, %s22
        %s295 = smul.u32 6, %s24
        %s296 = smul.u32 32, %s22
        %p297 = scmp.lt.s32.totalorder %s296, 63
        %s298 = scalar_select %p297, %s296, 63
        %p299 = scmp.lt.s32.totalorder %s23, 0
        %s300 = scalar_select %p299, %s23, 0
        %s301 = sadd.s32 %s300, %s298
        %s302 = smul.addr %s301, 8
        %s303 = scalar_lea.vmem %s4, %s302
        %s304 = smul.u32 32, %s22
        %p306 = scmp.eq.s32.totalorder %s24, 0
        // Predicated region
        $region49: #{forward.5} parent=35 // pred_check
          %p307 = pneg %p306
        $region50: #{forward.5} parent=35 // pred_check_branch
          %309 = sbr.rel (%p307) target = $region52
        $region51: #{forward.5} parent=35 // pred_region
          %310 = vst [vmem:[#allocation2] sm:$0xff] 0.0
          %311 = vst [vmem:[#allocation2 + $0x8] sm:$0xff] 0.0
          %312 = vst [vmem:[#allocation2 + $0x10] sm:$0xff] 0.0
          %313 = vst [vmem:[#allocation2 + $0x18] sm:$0xff] 0.0
          %314 = vst [vmem:[#allocation2 + $0x20] sm:$0xff] 0.0
          %315 = vst [vmem:[#allocation2 + $0x28] sm:$0xff] 0.0
          %316 = vst [vmem:[#allocation2 + $0x30] sm:$0xff] 0.0
          %317 = vst [vmem:[#allocation2 + $0x38] sm:$0xff] 0.0
          %318 = vst [vmem:[#allocation2 + $0x40] sm:$0xff] 0.0
          %319 = vst [vmem:[#allocation2 + $0x48] sm:$0xff] 0.0
          %320 = vst [vmem:[#allocation2 + $0x50] sm:$0xff] 0.0
          %321 = vst [vmem:[#allocation2 + $0x58] sm:$0xff] 0.0
          %322 = vst [vmem:[#allocation2 + $0x60] sm:$0xff] 0.0
          %323 = vst [vmem:[#allocation2 + $0x68] sm:$0xff] 0.0
          %324 = vst [vmem:[#allocation2 + $0x70] sm:$0xff] 0.0
          %325 = vst [vmem:[#allocation2 + $0x78] sm:$0xff] 0.0
          %326 = vst [vmem:[#allocation2 + $0x80] sm:$0xff] 0.0
          %327 = vst [vmem:[#allocation2 + $0x88] sm:$0xff] 0.0
          %328 = vst [vmem:[#allocation2 + $0x90] sm:$0xff] 0.0
          %329 = vst [vmem:[#allocation2 + $0x98] sm:$0xff] 0.0
          %330 = vst [vmem:[#allocation2 + $0xa0] sm:$0xff] 0.0
          %331 = vst [vmem:[#allocation2 + $0xa8] sm:$0xff] 0.0
          %332 = vst [vmem:[#allocation2 + $0xb0] sm:$0xff] 0.0
          %333 = vst [vmem:[#allocation2 + $0xb8] sm:$0xff] 0.0
          %334 = vst [vmem:[#allocation2 + $0xc0] sm:$0xff] 0.0
          %335 = vst [vmem:[#allocation2 + $0xc8] sm:$0xff] 0.0
          %336 = vst [vmem:[#allocation2 + $0xd0] sm:$0xff] 0.0
          %337 = vst [vmem:[#allocation2 + $0xd8] sm:$0xff] 0.0
          %338 = vst [vmem:[#allocation2 + $0xe0] sm:$0xff] 0.0
          %339 = vst [vmem:[#allocation2 + $0xe8] sm:$0xff] 0.0
          %340 = vst [vmem:[#allocation2 + $0xf0] sm:$0xff] 0.0
          %341 = vst [vmem:[#allocation2 + $0xf8] sm:$0xff] 0.0
        $region52: #{forward.5} parent=35 // pred_fallthru
          _
        %v342 = vld [vmem:[#allocation2] sm:$0xff]
        %v343 = vld [vmem:[#allocation2 + $0x8] sm:$0xff]
        %v344 = vld [vmem:[#allocation2 + $0x10] sm:$0xff]
        %v345 = vld [vmem:[#allocation2 + $0x18] sm:$0xff]
        %v346 = vld [vmem:[#allocation2 + $0x20] sm:$0xff]
        %v347 = vld [vmem:[#allocation2 + $0x28] sm:$0xff]
        %v348 = vld [vmem:[#allocation2 + $0x30] sm:$0xff]
        %v349 = vld [vmem:[#allocation2 + $0x38] sm:$0xff]
        %v350 = vld [vmem:[#allocation2 + $0x40] sm:$0xff]
        %v351 = vld [vmem:[#allocation2 + $0x48] sm:$0xff]
        %v352 = vld [vmem:[#allocation2 + $0x50] sm:$0xff]
        %v353 = vld [vmem:[#allocation2 + $0x58] sm:$0xff]
        %v354 = vld [vmem:[#allocation2 + $0x60] sm:$0xff]
        %v355 = vld [vmem:[#allocation2 + $0x68] sm:$0xff]
        %v356 = vld [vmem:[#allocation2 + $0x70] sm:$0xff]
        %v357 = vld [vmem:[#allocation2 + $0x78] sm:$0xff]
        %v358 = vld [vmem:[#allocation2 + $0x80] sm:$0xff]
        %v359 = vld [vmem:[#allocation2 + $0x88] sm:$0xff]
        %v360 = vld [vmem:[#allocation2 + $0x90] sm:$0xff]
        %v361 = vld [vmem:[#allocation2 + $0x98] sm:$0xff]
        %v362 = vld [vmem:[#allocation2 + $0xa0] sm:$0xff]
        %v363 = vld [vmem:[#allocation2 + $0xa8] sm:$0xff]
        %v364 = vld [vmem:[#allocation2 + $0xb0] sm:$0xff]
        %v365 = vld [vmem:[#allocation2 + $0xb8] sm:$0xff]
        %v366 = vld [vmem:[#allocation2 + $0xc0] sm:$0xff]
        %v367 = vld [vmem:[#allocation2 + $0xc8] sm:$0xff]
        %v368 = vld [vmem:[#allocation2 + $0xd0] sm:$0xff]
        %v369 = vld [vmem:[#allocation2 + $0xd8] sm:$0xff]
        %v370 = vld [vmem:[#allocation2 + $0xe0] sm:$0xff]
        %v371 = vld [vmem:[#allocation2 + $0xe8] sm:$0xff]
        %v372 = vld [vmem:[#allocation2 + $0xf0] sm:$0xff]
        %v373 = vld [vmem:[#allocation2 + $0xf8] sm:$0xff]
        %v374 = vld [vmem:[%s293] sm:$0xf]
        %v375 = vld [vmem:[%s293 + $0x4] sm:$0xf]
        %v376 = vld [vmem:[%s293 + $0x8] sm:$0xf]
        %v377 = vld [vmem:[%s293 + $0xc] sm:$0xf]
        %v378 = vld [vmem:[%s293 + $0x10] sm:$0xf]
        %v379 = vld [vmem:[%s293 + $0x14] sm:$0xf]
        %v380 = vld [vmem:[%s293 + $0x18] sm:$0xf]
        %v381 = vld [vmem:[%s293 + $0x1c] sm:$0xf]
        %v382 = vld [vmem:[%s293 + $0x20] sm:$0xf]
        %v383 = vld [vmem:[%s293 + $0x24] sm:$0xf]
        %v384 = vld [vmem:[%s293 + $0x28] sm:$0xf]
        %v385 = vld [vmem:[%s293 + $0x2c] sm:$0xf]
        %v386 = vld [vmem:[%s293 + $0x30] sm:$0xf]
        %v387 = vld [vmem:[%s293 + $0x34] sm:$0xf]
        %v388 = vld [vmem:[%s293 + $0x38] sm:$0xf]
        %v389 = vld [vmem:[%s293 + $0x3c] sm:$0xf]
        %v390 = vld [vmem:[%s293 + $0x40] sm:$0xf]
        %v391 = vld [vmem:[%s293 + $0x44] sm:$0xf]
        %v392 = vld [vmem:[%s293 + $0x48] sm:$0xf]
        %v393 = vld [vmem:[%s293 + $0x4c] sm:$0xf]
        %v394 = vld [vmem:[%s293 + $0x50] sm:$0xf]
        %v395 = vld [vmem:[%s293 + $0x54] sm:$0xf]
        %v396 = vld [vmem:[%s293 + $0x58] sm:$0xf]
        %v397 = vld [vmem:[%s293 + $0x5c] sm:$0xf]
        %v398 = vld [vmem:[%s293 + $0x60] sm:$0xf]
        %v399 = vld [vmem:[%s293 + $0x64] sm:$0xf]
        %v400 = vld [vmem:[%s293 + $0x68] sm:$0xf]
        %v401 = vld [vmem:[%s293 + $0x6c] sm:$0xf]
        %v402 = vld [vmem:[%s293 + $0x70] sm:$0xf]
        %v403 = vld [vmem:[%s293 + $0x74] sm:$0xf]
        %v404 = vld [vmem:[%s293 + $0x78] sm:$0xf]
        %v405 = vld [vmem:[%s293 + $0x7c] sm:$0xf]
        %v406 = vld [vmem:[#allocation3] sm:$0xf]
        %v407 = vld [vmem:[#allocation3 + $0x4] sm:$0xf]
        %v408 = vld [vmem:[#allocation3 + $0x8] sm:$0xf]
        %v409 = vld [vmem:[#allocation3 + $0xc] sm:$0xf]
        %v410 = vld [vmem:[#allocation3 + $0x10] sm:$0xf]
        %v411 = vld [vmem:[#allocation3 + $0x14] sm:$0xf]
        %v444 = vunpack.c.l.b16 %v374
        %v445 = vunpack.c.l.b16 %v375
        %v446 = vunpack.c.l.b16 %v376
        %v447 = vunpack.c.l.b16 %v377
        %v448 = vunpack.c.l.b16 %v378
        %v449 = vunpack.c.l.b16 %v379
        %v450 = vunpack.c.l.b16 %v380
        %v451 = vunpack.c.l.b16 %v381
        %v452 = vunpack.c.l.b16 %v382
        %v453 = vunpack.c.l.b16 %v383
        %v454 = vunpack.c.l.b16 %v384
        %v455 = vunpack.c.l.b16 %v385
        %v456 = vunpack.c.l.b16 %v386
        %v457 = vunpack.c.l.b16 %v387
        %v458 = vunpack.c.l.b16 %v388
        %v459 = vunpack.c.l.b16 %v389
        %v460 = vunpack.c.l.b16 %v390
        %v461 = vunpack.c.l.b16 %v391
        %v462 = vunpack.c.l.b16 %v392
        %v463 = vunpack.c.l.b16 %v393
        %v464 = vunpack.c.l.b16 %v394
        %v465 = vunpack.c.l.b16 %v395
        %v466 = vunpack.c.l.b16 %v396
        %v467 = vunpack.c.l.b16 %v397
        %v468 = vunpack.c.l.b16 %v398
        %v469 = vunpack.c.l.b16 %v399
        %v470 = vunpack.c.l.b16 %v400
        %v471 = vunpack.c.l.b16 %v401
        %v472 = vunpack.c.l.b16 %v402
        %v473 = vunpack.c.l.b16 %v403
        %v474 = vunpack.c.l.b16 %v404
        %v475 = vunpack.c.l.b16 %v405
        %v476 = vpack.c.b16 %v445, %v444
        %v477 = vpack.c.b16 %v447, %v446
        %v478 = vpack.c.b16 %v449, %v448
        %v479 = vpack.c.b16 %v451, %v450
        %v480 = vpack.c.b16 %v453, %v452
        %v481 = vpack.c.b16 %v455, %v454
        %v482 = vpack.c.b16 %v457, %v456
        %v483 = vpack.c.b16 %v459, %v458
        %v484 = vpack.c.b16 %v461, %v460
        %v485 = vpack.c.b16 %v463, %v462
        %v486 = vpack.c.b16 %v465, %v464
        %v487 = vpack.c.b16 %v467, %v466
        %v488 = vpack.c.b16 %v469, %v468
        %v489 = vpack.c.b16 %v471, %v470
        %v490 = vpack.c.b16 %v473, %v472
        %v491 = vpack.c.b16 %v475, %v474
        %v498 = vunpack.c.l.b16 %v406
        %v499 = vunpack.c.l.b16 %v407
        %v500 = vunpack.c.l.b16 %v408
        %v501 = vunpack.c.l.b16 %v409
        %v502 = vunpack.c.l.b16 %v410
        %v503 = vunpack.c.l.b16 %v411
        %v504 = vpack.c.b16 %v499, %v498
        %v505 = vpack.c.b16 %v501, %v500
        %v506 = vpack.c.b16 %v503, %v502
        %vm510 = vcmask 392192
        %v512 = vsel %vm510, %v476, 0
        %v515 = vsel %vm510, %v477, 0
        %v518 = vsel %vm510, %v478, 0
        %v521 = vsel %vm510, %v479, 0
        %v524 = vsel %vm510, %v480, 0
        %v527 = vsel %vm510, %v481, 0
        %v530 = vsel %vm510, %v482, 0
        %v533 = vsel %vm510, %v483, 0
        %v536 = vsel %vm510, %v484, 0
        %v539 = vsel %vm510, %v485, 0
        %v542 = vsel %vm510, %v486, 0
        %v545 = vsel %vm510, %v487, 0
        %v548 = vsel %vm510, %v488, 0
        %v551 = vsel %vm510, %v489, 0
        %v554 = vsel %vm510, %v490, 0
        %v557 = vsel %vm510, %v491, 0
        %559 = vmatprep.subr.bf16.mxu0 0
        %560 = vmatpush1.bf16.msra.mxu0 %v504
        %561 = vmatprep.subr.bf16.mxu0 0
        %562 = vmatpush1.bf16.msra.mxu0 %v505
        %563 = vmatprep.subr.bf16.mxu0 0
        %564 = vmatpush1.bf16.msra.mxu0 %v506
        %565 = vmatprep.subr.bf16.mxu0 0
        %566 = vmatpush1.bf16.msra.mxu0 0
        %567 = vmatprep.subr.bf16.mxu0 0
        %568 = vmatpush1.bf16.msra.mxu0 0
        %569 = vmatprep.subr.bf16.mxu0 0
        %570 = vmatpush1.bf16.msra.mxu0 0
        %571 = vmatprep.subr.bf16.mxu0 0
        %572 = vmatpush1.bf16.msra.mxu0 0
        %573 = vmatprep.subr.bf16.mxu0 0
        %574 = vmatpush1.bf16.msra.mxu0 0
        %575 = vmatprep.subr.bf16.mxu0 0
        %576 = vmatpush1.bf16.msra.mxu0 0
        %577 = vmatprep.subr.bf16.mxu0 0
        %578 = vmatpush1.bf16.msra.mxu0 0
        %579 = vmatprep.subr.bf16.mxu0 0
        %580 = vmatpush1.bf16.msra.mxu0 0
        %581 = vmatprep.subr.bf16.mxu0 0
        %582 = vmatpush1.bf16.msra.mxu0 0
        %583 = vmatprep.subr.bf16.mxu0 0
        %584 = vmatpush1.bf16.msra.mxu0 0
        %585 = vmatprep.subr.bf16.mxu0 0
        %586 = vmatpush1.bf16.msra.mxu0 0
        %587 = vmatprep.subr.bf16.mxu0 0
        %588 = vmatpush1.bf16.msra.mxu0 0
        %589 = vmatprep.subr.bf16.mxu0 0
        %590 = vmatpush1.bf16.msra.mxu0 0
        %591 = vmatprep.mubr.bf16.mxu0 0
        %592 = vmatmul.mubr.bf16.gmra.mrb[0].mxu0 %v512
        %v593 = vpop.f32.mrb[0].mxu0
        %v594 = vadd.f32 0.0, %v593
        %v595 = vpop.f32.mrb[0].mxu0
        %v596 = vpop.f32.mrb[0].mxu0
        %v597 = vadd.f32 0.0, %v596
        %v598 = vpop.f32.mrb[0].mxu0
        %599 = vmatprep.mubr.bf16.mxu0 0
        %600 = vmatmul.mubr.bf16.gmra.mrb[0].mxu0 %v515
        %v601 = vpop.f32.mrb[0].mxu0
        %v602 = vadd.f32 0.0, %v601
        %v603 = vpop.f32.mrb[0].mxu0
        %v604 = vpop.f32.mrb[0].mxu0
        %v605 = vadd.f32 0.0, %v604
        %v606 = vpop.f32.mrb[0].mxu0
        %607 = vmatprep.mubr.bf16.mxu0 0
        %608 = vmatmul.mubr.bf16.gmra.mrb[0].mxu0 %v518
        %v609 = vpop.f32.mrb[0].mxu0
        %v610 = vadd.f32 0.0, %v609
        %v611 = vpop.f32.mrb[0].mxu0
        %v612 = vpop.f32.mrb[0].mxu0
        %v613 = vadd.f32 0.0, %v612
        %v614 = vpop.f32.mrb[0].mxu0
        %615 = vmatprep.mubr.bf16.mxu0 0
        %616 = vmatmul.mubr.bf16.gmra.mrb[0].mxu0 %v521
        %v617 = vpop.f32.mrb[0].mxu0
        %v618 = vadd.f32 0.0, %v617
        %v619 = vpop.f32.mrb[0].mxu0
        %v620 = vpop.f32.mrb[0].mxu0
        %v621 = vadd.f32 0.0, %v620
        %v622 = vpop.f32.mrb[0].mxu0
        %623 = vmatprep.mubr.bf16.mxu0 0
        %624 = vmatmul.mubr.bf16.gmra.mrb[0].mxu0 %v524
        %v625 = vpop.f32.mrb[0].mxu0
        %v626 = vadd.f32 0.0, %v625
        %v627 = vpop.f32.mrb[0].mxu0
        %v628 = vpop.f32.mrb[0].mxu0
        %v629 = vadd.f32 0.0, %v628
        %v630 = vpop.f32.mrb[0].mxu0
        %631 = vmatprep.mubr.bf16.mxu0 0
        %632 = vmatmul.mubr.bf16.gmra.mrb[0].mxu0 %v527
        %v633 = vpop.f32.mrb[0].mxu0
        %v634 = vadd.f32 0.0, %v633
        %v635 = vpop.f32.mrb[0].mxu0
        %v636 = vpop.f32.mrb[0].mxu0
        %v637 = vadd.f32 0.0, %v636
        %v638 = vpop.f32.mrb[0].mxu0
        %639 = vmatprep.mubr.bf16.mxu0 0
        %640 = vmatmul.mubr.bf16.gmra.mrb[0].mxu0 %v530
        %v641 = vpop.f32.mrb[0].mxu0
        %v642 = vadd.f32 0.0, %v641
        %v643 = vpop.f32.mrb[0].mxu0
        %v644 = vpop.f32.mrb[0].mxu0
        %v645 = vadd.f32 0.0, %v644
        %v646 = vpop.f32.mrb[0].mxu0
        %647 = vmatprep.mubr.bf16.mxu0 0
        %648 = vmatmul.mubr.bf16.gmra.mrb[0].mxu0 %v533
        %v649 = vpop.f32.mrb[0].mxu0
        %v650 = vadd.f32 0.0, %v649
        %v651 = vpop.f32.mrb[0].mxu0
        %v652 = vpop.f32.mrb[0].mxu0
        %v653 = vadd.f32 0.0, %v652
        %v654 = vpop.f32.mrb[0].mxu0
        %655 = vmatprep.mubr.bf16.mxu0 0
        %656 = vmatmul.mubr.bf16.gmra.mrb[0].mxu0 %v536
        %v657 = vpop.f32.mrb[0].mxu0
        %v658 = vadd.f32 0.0, %v657
        %v659 = vpop.f32.mrb[0].mxu0
        %v660 = vpop.f32.mrb[0].mxu0
        %v661 = vadd.f32 0.0, %v660
        %v662 = vpop.f32.mrb[0].mxu0
        %663 = vmatprep.mubr.bf16.mxu0 0
        %664 = vmatmul.mubr.bf16.gmra.mrb[0].mxu0 %v539
        %v665 = vpop.f32.mrb[0].mxu0
        %v666 = vadd.f32 0.0, %v665
        %v667 = vpop.f32.mrb[0].mxu0
        %v668 = vpop.f32.mrb[0].mxu0
        %v669 = vadd.f32 0.0, %v668
        %v670 = vpop.f32.mrb[0].mxu0
        %671 = vmatprep.mubr.bf16.mxu0 0
        %672 = vmatmul.mubr.bf16.gmra.mrb[0].mxu0 %v542
        %v673 = vpop.f32.mrb[0].mxu0
        %v674 = vadd.f32 0.0, %v673
        %v675 = vpop.f32.mrb[0].mxu0
        %v676 = vpop.f32.mrb[0].mxu0
        %v677 = vadd.f32 0.0, %v676
        %v678 = vpop.f32.mrb[0].mxu0
        %679 = vmatprep.mubr.bf16.mxu0 0
        %680 = vmatmul.mubr.bf16.gmra.mrb[0].mxu0 %v545
        %v681 = vpop.f32.mrb[0].mxu0
        %v682 = vadd.f32 0.0, %v681
        %v683 = vpop.f32.mrb[0].mxu0
        %v684 = vpop.f32.mrb[0].mxu0
        %v685 = vadd.f32 0.0, %v684
        %v686 = vpop.f32.mrb[0].mxu0
        %687 = vmatprep.mubr.bf16.mxu0 0
        %688 = vmatmul.mubr.bf16.gmra.mrb[0].mxu0 %v548
        %v689 = vpop.f32.mrb[0].mxu0
        %v690 = vadd.f32 0.0, %v689
        %v691 = vpop.f32.mrb[0].mxu0
        %v692 = vpop.f32.mrb[0].mxu0
        %v693 = vadd.f32 0.0, %v692
        %v694 = vpop.f32.mrb[0].mxu0
        %695 = vmatprep.mubr.bf16.mxu0 0
        %696 = vmatmul.mubr.bf16.gmra.mrb[0].mxu0 %v551
        %v697 = vpop.f32.mrb[0].mxu0
        %v698 = vadd.f32 0.0, %v697
        %v699 = vpop.f32.mrb[0].mxu0
        %v700 = vpop.f32.mrb[0].mxu0
        %v701 = vadd.f32 0.0, %v700
        %v702 = vpop.f32.mrb[0].mxu0
        %703 = vmatprep.mubr.bf16.mxu0 0
        %704 = vmatmul.mubr.bf16.gmra.mrb[0].mxu0 %v554
        %v705 = vpop.f32.mrb[0].mxu0
        %v706 = vadd.f32 0.0, %v705
        %v707 = vpop.f32.mrb[0].mxu0
        %v708 = vpop.f32.mrb[0].mxu0
        %v709 = vadd.f32 0.0, %v708
        %v710 = vpop.f32.mrb[0].mxu0
        %711 = vmatprep.mubr.bf16.mxu0 0
        %712 = vmatmul.mubr.bf16.gmra.mrb[0].mxu0 %v557
        %v713 = vpop.f32.mrb[0].mxu0
        %v714 = vadd.f32 0.0, %v713
        %v715 = vpop.f32.mrb[0].mxu0
        %v716 = vpop.f32.mrb[0].mxu0
        %v717 = vadd.f32 0.0, %v716
        %v718 = vpop.f32.mrb[0].mxu0
        %719 = vdwg.mxu0
        %v720 = vadd.f32 %v342, %v594
        %v721 = vadd.f32 %v343, %v597
        %v722 = vadd.f32 %v344, %v602
        %v723 = vadd.f32 %v345, %v605
        %v724 = vadd.f32 %v346, %v610
        %v725 = vadd.f32 %v347, %v613
        %v726 = vadd.f32 %v348, %v618
        %v727 = vadd.f32 %v349, %v621
        %v728 = vadd.f32 %v350, %v626
        %v729 = vadd.f32 %v351, %v629
        %v730 = vadd.f32 %v352, %v634
        %v731 = vadd.f32 %v353, %v637
        %v732 = vadd.f32 %v354, %v642
        %v733 = vadd.f32 %v355, %v645
        %v734 = vadd.f32 %v356, %v650
        %v735 = vadd.f32 %v357, %v653
        %v736 = vadd.f32 %v358, %v658
        %v737 = vadd.f32 %v359, %v661
        %v738 = vadd.f32 %v360, %v666
        %v739 = vadd.f32 %v361, %v669
        %v740 = vadd.f32 %v362, %v674
        %v741 = vadd.f32 %v363, %v677
        %v742 = vadd.f32 %v364, %v682
        %v743 = vadd.f32 %v365, %v685
        %v744 = vadd.f32 %v366, %v690
        %v745 = vadd.f32 %v367, %v693
        %v746 = vadd.f32 %v368, %v698
        %v747 = vadd.f32 %v369, %v701
        %v748 = vadd.f32 %v370, %v706
        %v749 = vadd.f32 %v371, %v709
        %v750 = vadd.f32 %v372, %v714
        %v751 = vadd.f32 %v373, %v717
        %752 = vst [vmem:[#allocation2] sm:$0xff] %v720
        %753 = vst [vmem:[#allocation2 + $0x8] sm:$0xff] %v721
        %754 = vst [vmem:[#allocation2 + $0x10] sm:$0xff] %v722
        %755 = vst [vmem:[#allocation2 + $0x18] sm:$0xff] %v723
        %756 = vst [vmem:[#allocation2 + $0x20] sm:$0xff] %v724
        %757 = vst [vmem:[#allocation2 + $0x28] sm:$0xff] %v725
        %758 = vst [vmem:[#allocation2 + $0x30] sm:$0xff] %v726
        %759 = vst [vmem:[#allocation2 + $0x38] sm:$0xff] %v727
        %760 = vst [vmem:[#allocation2 + $0x40] sm:$0xff] %v728
        %761 = vst [vmem:[#allocation2 + $0x48] sm:$0xff] %v729
        %762 = vst [vmem:[#allocation2 + $0x50] sm:$0xff] %v730
        %763 = vst [vmem:[#allocation2 + $0x58] sm:$0xff] %v731
        %764 = vst [vmem:[#allocation2 + $0x60] sm:$0xff] %v732
        %765 = vst [vmem:[#allocation2 + $0x68] sm:$0xff] %v733
        %766 = vst [vmem:[#allocation2 + $0x70] sm:$0xff] %v734
        %767 = vst [vmem:[#allocation2 + $0x78] sm:$0xff] %v735
        %768 = vst [vmem:[#allocation2 + $0x80] sm:$0xff] %v736
        %769 = vst [vmem:[#allocation2 + $0x88] sm:$0xff] %v737
        %770 = vst [vmem:[#allocation2 + $0x90] sm:$0xff] %v738
        %771 = vst [vmem:[#allocation2 + $0x98] sm:$0xff] %v739
        %772 = vst [vmem:[#allocation2 + $0xa0] sm:$0xff] %v740
        %773 = vst [vmem:[#allocation2 + $0xa8] sm:$0xff] %v741
        %774 = vst [vmem:[#allocation2 + $0xb0] sm:$0xff] %v742
        %775 = vst [vmem:[#allocation2 + $0xb8] sm:$0xff] %v743
        %776 = vst [vmem:[#allocation2 + $0xc0] sm:$0xff] %v744
        %777 = vst [vmem:[#allocation2 + $0xc8] sm:$0xff] %v745
        %778 = vst [vmem:[#allocation2 + $0xd0] sm:$0xff] %v746
        %779 = vst [vmem:[#allocation2 + $0xd8] sm:$0xff] %v747
        %780 = vst [vmem:[#allocation2 + $0xe0] sm:$0xff] %v748
        %781 = vst [vmem:[#allocation2 + $0xe8] sm:$0xff] %v749
        %782 = vst [vmem:[#allocation2 + $0xf0] sm:$0xff] %v750
        %783 = vst [vmem:[#allocation2 + $0xf8] sm:$0xff] %v751
        // Predicated region
        $region53: #{forward.5} parent=35 // pred_check
          %p784 = pneg %p306
        $region54: #{forward.5} parent=35 // pred_check_branch
          %786 = sbr.rel (%p784) target = $region56
        $region55: #{forward.5} parent=35 // pred_region
          %v787 = vld [vmem:[#allocation2] sm:$0xff]
          %v788 = vld [vmem:[#allocation2 + $0x8] sm:$0xff]
          %v789 = vld [vmem:[#allocation2 + $0x10] sm:$0xff]
          %v790 = vld [vmem:[#allocation2 + $0x18] sm:$0xff]
          %v791 = vld [vmem:[#allocation2 + $0x20] sm:$0xff]
          %v792 = vld [vmem:[#allocation2 + $0x28] sm:$0xff]
          %v793 = vld [vmem:[#allocation2 + $0x30] sm:$0xff]
          %v794 = vld [vmem:[#allocation2 + $0x38] sm:$0xff]
          %v795 = vld [vmem:[#allocation2 + $0x40] sm:$0xff]
          %v796 = vld [vmem:[#allocation2 + $0x48] sm:$0xff]
          %v797 = vld [vmem:[#allocation2 + $0x50] sm:$0xff]
          %v798 = vld [vmem:[#allocation2 + $0x58] sm:$0xff]
          %v799 = vld [vmem:[#allocation2 + $0x60] sm:$0xff]
          %v800 = vld [vmem:[#allocation2 + $0x68] sm:$0xff]
          %v801 = vld [vmem:[#allocation2 + $0x70] sm:$0xff]
          %v802 = vld [vmem:[#allocation2 + $0x78] sm:$0xff]
          %v803 = vld [vmem:[#allocation2 + $0x80] sm:$0xff]
          %v804 = vld [vmem:[#allocation2 + $0x88] sm:$0xff]
          %v805 = vld [vmem:[#allocation2 + $0x90] sm:$0xff]
          %v806 = vld [vmem:[#allocation2 + $0x98] sm:$0xff]
          %v807 = vld [vmem:[#allocation2 + $0xa0] sm:$0xff]
          %v808 = vld [vmem:[#allocation2 + $0xa8] sm:$0xff]
          %v809 = vld [vmem:[#allocation2 + $0xb0] sm:$0xff]
          %v810 = vld [vmem:[#allocation2 + $0xb8] sm:$0xff]
          %v811 = vld [vmem:[#allocation2 + $0xc0] sm:$0xff]
          %v812 = vld [vmem:[#allocation2 + $0xc8] sm:$0xff]
          %v813 = vld [vmem:[#allocation2 + $0xd0] sm:$0xff]
          %v814 = vld [vmem:[#allocation2 + $0xd8] sm:$0xff]
          %v815 = vld [vmem:[#allocation2 + $0xe0] sm:$0xff]
          %v816 = vld [vmem:[#allocation2 + $0xe8] sm:$0xff]
          %v817 = vld [vmem:[#allocation2 + $0xf0] sm:$0xff]
          %v818 = vld [vmem:[#allocation2 + $0xf8] sm:$0xff]
          %v819 = vld [vmem:[#allocation5] sm:$0x1]
          %v821 = vlaneseq
          %v822 = vshrl.u32 %v821, 7
          %v823 = vsub.s32 0, %v822
          %v824 = vrot.slane %v819, %v823
          %v826 = vmul.f32 %v787, %v824
          %v827 = vmul.f32 %v788, %v824
          %v828 = vmul.f32 %v789, %v824
          %v829 = vmul.f32 %v790, %v824
          %v830 = vmul.f32 %v791, %v824
          %v831 = vmul.f32 %v792, %v824
          %v832 = vmul.f32 %v793, %v824
          %v833 = vmul.f32 %v794, %v824
          %v834 = vmul.f32 %v795, %v824
          %v835 = vmul.f32 %v796, %v824
          %v836 = vmul.f32 %v797, %v824
          %v837 = vmul.f32 %v798, %v824
          %v838 = vmul.f32 %v799, %v824
          %v839 = vmul.f32 %v800, %v824
          %v840 = vmul.f32 %v801, %v824
          %v841 = vmul.f32 %v802, %v824
          %v842 = vmul.f32 %v803, %v824
          %v843 = vmul.f32 %v804, %v824
          %v844 = vmul.f32 %v805, %v824
          %v845 = vmul.f32 %v806, %v824
          %v846 = vmul.f32 %v807, %v824
          %v847 = vmul.f32 %v808, %v824
          %v848 = vmul.f32 %v809, %v824
          %v849 = vmul.f32 %v810, %v824
          %v850 = vmul.f32 %v811, %v824
          %v851 = vmul.f32 %v812, %v824
          %v852 = vmul.f32 %v813, %v824
          %v853 = vmul.f32 %v814, %v824
          %v854 = vmul.f32 %v815, %v824
          %v855 = vmul.f32 %v816, %v824
          %v856 = vmul.f32 %v817, %v824
          %v857 = vmul.f32 %v818, %v824
          %v858 = vld [vmem:[#allocation7] sm:$0x1]
          %v860 = vlaneseq
          %v861 = vshrl.u32 %v860, 7
          %v862 = vsub.s32 0, %v861
          %v863 = vrot.slane %v858, %v862
          %v865 = vadd.f32 %v826, %v863
          %v866 = vadd.f32 %v827, %v863
          %v867 = vadd.f32 %v828, %v863
          %v868 = vadd.f32 %v829, %v863
          %v869 = vadd.f32 %v830, %v863
          %v870 = vadd.f32 %v831, %v863
          %v871 = vadd.f32 %v832, %v863
          %v872 = vadd.f32 %v833, %v863
          %v873 = vadd.f32 %v834, %v863
          %v874 = vadd.f32 %v835, %v863
          %v875 = vadd.f32 %v836, %v863
          %v876 = vadd.f32 %v837, %v863
          %v877 = vadd.f32 %v838, %v863
          %v878 = vadd.f32 %v839, %v863
          %v879 = vadd.f32 %v840, %v863
          %v880 = vadd.f32 %v841, %v863
          %v881 = vadd.f32 %v842, %v863
          %v882 = vadd.f32 %v843, %v863
          %v883 = vadd.f32 %v844, %v863
          %v884 = vadd.f32 %v845, %v863
          %v885 = vadd.f32 %v846, %v863
          %v886 = vadd.f32 %v847, %v863
          %v887 = vadd.f32 %v848, %v863
          %v888 = vadd.f32 %v849, %v863
          %v889 = vadd.f32 %v850, %v863
          %v890 = vadd.f32 %v851, %v863
          %v891 = vadd.f32 %v852, %v863
          %v892 = vadd.f32 %v853, %v863
          %v893 = vadd.f32 %v854, %v863
          %v894 = vadd.f32 %v855, %v863
          %v895 = vadd.f32 %v856, %v863
          %v896 = vadd.f32 %v857, %v863
          %vm897 = vcmp.ge.f32.partialorder %v865, 0.0
          %vm898 = vcmp.ge.f32.partialorder %v866, 0.0
          %vm899 = vcmp.ge.f32.partialorder %v867, 0.0
          %vm900 = vcmp.ge.f32.partialorder %v868, 0.0
          %vm901 = vcmp.ge.f32.partialorder %v869, 0.0
          %vm902 = vcmp.ge.f32.partialorder %v870, 0.0
          %vm903 = vcmp.ge.f32.partialorder %v871, 0.0
          %vm904 = vcmp.ge.f32.partialorder %v872, 0.0
          %vm905 = vcmp.ge.f32.partialorder %v873, 0.0
          %vm906 = vcmp.ge.f32.partialorder %v874, 0.0
          %vm907 = vcmp.ge.f32.partialorder %v875, 0.0
          %vm908 = vcmp.ge.f32.partialorder %v876, 0.0
          %vm909 = vcmp.ge.f32.partialorder %v877, 0.0
          %vm910 = vcmp.ge.f32.partialorder %v878, 0.0
          %vm911 = vcmp.ge.f32.partialorder %v879, 0.0
          %vm912 = vcmp.ge.f32.partialorder %v880, 0.0
          %vm913 = vcmp.ge.f32.partialorder %v881, 0.0
          %vm914 = vcmp.ge.f32.partialorder %v882, 0.0
          %vm915 = vcmp.ge.f32.partialorder %v883, 0.0
          %vm916 = vcmp.ge.f32.partialorder %v884, 0.0
          %vm917 = vcmp.ge.f32.partialorder %v885, 0.0
          %vm918 = vcmp.ge.f32.partialorder %v886, 0.0
          %vm919 = vcmp.ge.f32.partialorder %v887, 0.0
          %vm920 = vcmp.ge.f32.partialorder %v888, 0.0
          %vm921 = vcmp.ge.f32.partialorder %v889, 0.0
          %vm922 = vcmp.ge.f32.partialorder %v890, 0.0
          %vm923 = vcmp.ge.f32.partialorder %v891, 0.0
          %vm924 = vcmp.ge.f32.partialorder %v892, 0.0
          %vm925 = vcmp.ge.f32.partialorder %v893, 0.0
          %vm926 = vcmp.ge.f32.partialorder %v894, 0.0
          %vm927 = vcmp.ge.f32.partialorder %v895, 0.0
          %vm928 = vcmp.ge.f32.partialorder %v896, 0.0
          %v929 = vmul.f32 %v865, 0.2
          %v930 = vmul.f32 %v866, 0.2
          %v931 = vmul.f32 %v867, 0.2
          %v932 = vmul.f32 %v868, 0.2
          %v933 = vmul.f32 %v869, 0.2
          %v934 = vmul.f32 %v870, 0.2
          %v935 = vmul.f32 %v871, 0.2
          %v936 = vmul.f32 %v872, 0.2
          %v937 = vmul.f32 %v873, 0.2
          %v938 = vmul.f32 %v874, 0.2
          %v939 = vmul.f32 %v875, 0.2
          %v940 = vmul.f32 %v876, 0.2
          %v941 = vmul.f32 %v877, 0.2
          %v942 = vmul.f32 %v878, 0.2
          %v943 = vmul.f32 %v879, 0.2
          %v944 = vmul.f32 %v880, 0.2
          %v945 = vmul.f32 %v881, 0.2
          %v946 = vmul.f32 %v882, 0.2
          %v947 = vmul.f32 %v883, 0.2
          %v948 = vmul.f32 %v884, 0.2
          %v949 = vmul.f32 %v885, 0.2
          %v950 = vmul.f32 %v886, 0.2
          %v951 = vmul.f32 %v887, 0.2
          %v952 = vmul.f32 %v888, 0.2
          %v953 = vmul.f32 %v889, 0.2
          %v954 = vmul.f32 %v890, 0.2
          %v955 = vmul.f32 %v891, 0.2
          %v956 = vmul.f32 %v892, 0.2
          %v957 = vmul.f32 %v893, 0.2
          %v958 = vmul.f32 %v894, 0.2
          %v959 = vmul.f32 %v895, 0.2
          %v960 = vmul.f32 %v896, 0.2
          %v961 = vsel %vm897, %v865, %v929
          %v962 = vsel %vm898, %v866, %v930
          %v963 = vsel %vm899, %v867, %v931
          %v964 = vsel %vm900, %v868, %v932
          %v965 = vsel %vm901, %v869, %v933
          %v966 = vsel %vm902, %v870, %v934
          %v967 = vsel %vm903, %v871, %v935
          %v968 = vsel %vm904, %v872, %v936
          %v969 = vsel %vm905, %v873, %v937
          %v970 = vsel %vm906, %v874, %v938
          %v971 = vsel %vm907, %v875, %v939
          %v972 = vsel %vm908, %v876, %v940
          %v973 = vsel %vm909, %v877, %v941
          %v974 = vsel %vm910, %v878, %v942
          %v975 = vsel %vm911, %v879, %v943
          %v976 = vsel %vm912, %v880, %v944
          %v977 = vsel %vm913, %v881, %v945
          %v978 = vsel %vm914, %v882, %v946
          %v979 = vsel %vm915, %v883, %v947
          %v980 = vsel %vm916, %v884, %v948
          %v981 = vsel %vm917, %v885, %v949
          %v982 = vsel %vm918, %v886, %v950
          %v983 = vsel %vm919, %v887, %v951
          %v984 = vsel %vm920, %v888, %v952
          %v985 = vsel %vm921, %v889, %v953
          %v986 = vsel %vm922, %v890, %v954
          %v987 = vsel %vm923, %v891, %v955
          %v988 = vsel %vm924, %v892, %v956
          %v989 = vsel %vm925, %v893, %v957
          %v990 = vsel %vm926, %v894, %v958
          %v991 = vsel %vm927, %v895, %v959
          %v992 = vsel %vm928, %v896, %v960
          %993 = vst [vmem:[%s303] sm:$0xff] %v961
          %994 = vst [vmem:[%s303 + $0x8] sm:$0xff] %v962
          %995 = vst [vmem:[%s303 + $0x10] sm:$0xff] %v963
          %996 = vst [vmem:[%s303 + $0x18] sm:$0xff] %v964
          %997 = vst [vmem:[%s303 + $0x20] sm:$0xff] %v965
          %998 = vst [vmem:[%s303 + $0x28] sm:$0xff] %v966
          %999 = vst [vmem:[%s303 + $0x30] sm:$0xff] %v967
          %1000 = vst [vmem:[%s303 + $0x38] sm:$0xff] %v968
          %1001 = vst [vmem:[%s303 + $0x40] sm:$0xff] %v969
          %1002 = vst [vmem:[%s303 + $0x48] sm:$0xff] %v970
          %1003 = vst [vmem:[%s303 + $0x50] sm:$0xff] %v971
          %1004 = vst [vmem:[%s303 + $0x58] sm:$0xff] %v972
          %1005 = vst [vmem:[%s303 + $0x60] sm:$0xff] %v973
          %1006 = vst [vmem:[%s303 + $0x68] sm:$0xff] %v974
          %1007 = vst [vmem:[%s303 + $0x70] sm:$0xff] %v975
          %1008 = vst [vmem:[%s303 + $0x78] sm:$0xff] %v976
          %1009 = vst [vmem:[%s303 + $0x80] sm:$0xff] %v977
          %1010 = vst [vmem:[%s303 + $0x88] sm:$0xff] %v978
          %1011 = vst [vmem:[%s303 + $0x90] sm:$0xff] %v979
          %1012 = vst [vmem:[%s303 + $0x98] sm:$0xff] %v980
          %1013 = vst [vmem:[%s303 + $0xa0] sm:$0xff] %v981
          %1014 = vst [vmem:[%s303 + $0xa8] sm:$0xff] %v982
          %1015 = vst [vmem:[%s303 + $0xb0] sm:$0xff] %v983
          %1016 = vst [vmem:[%s303 + $0xb8] sm:$0xff] %v984
          %1017 = vst [vmem:[%s303 + $0xc0] sm:$0xff] %v985
          %1018 = vst [vmem:[%s303 + $0xc8] sm:$0xff] %v986
          %1019 = vst [vmem:[%s303 + $0xd0] sm:$0xff] %v987
          %1020 = vst [vmem:[%s303 + $0xd8] sm:$0xff] %v988
          %1021 = vst [vmem:[%s303 + $0xe0] sm:$0xff] %v989
          %1022 = vst [vmem:[%s303 + $0xe8] sm:$0xff] %v990
          %1023 = vst [vmem:[%s303 + $0xf0] sm:$0xff] %v991
          %1024 = vst [vmem:[%s303 + $0xf8] sm:$0xff] %v992
        $region56: #{forward.5} parent=35 // pred_fallthru
          _
        %s1025 = smul.u32 32, %s22
        %p1026 = scmp.lt.s32.totalorder %s1025, 63
        %s1027 = scalar_select %p1026, %s1025, 63
        %p1028 = scmp.lt.s32.totalorder %s23, 0
        %s1029 = scalar_select %p1028, %s23, 0
        %s1030 = sadd.s32 %s1029, %s1027
        %s1031 = smul.addr %s1030, 8
        %s1032 = scalar_lea.vmem %s4, %s1031
        // Predicated region
        $region57: #{forward.5} parent=35 // pred_check
          %p1033 = pneg %p164
        $region58: #{forward.5} parent=35 // pred_check_branch
          %1035 = sbr.rel (%p1033) target = $region60
        $region59: #{forward.5} parent=35 // pred_region
          %s1036 = smul.u32 32, %s22
        $region60: #{forward.5} parent=35 // pred_fallthru
          _
      $region36: #{forward.5} parent=5 // pred_fallthru
        _
      %p1037 = scmp.le.s32.totalorder 2, %s12
      // Predicated region
      $region61: #{forward.5} parent=5 // pred_check
        %p1038 = pneg %p1037
      $region62: #{forward.5} parent=5 // pred_check_branch
        %1040 = sbr.rel (%p1038) target = $region64
      $region63: #{forward.5} parent=5 // pred_region
        %s1041 = ssub.s32 %s12, 2
        // Predicated region
        $region65: #{forward.5} parent=63 // pred_check
          %p1042 = pneg %p170
        $region66: #{forward.5} parent=63 // pred_check_branch
          %1044 = sbr.rel (%p1042) target = $region68
        $region67: #{forward.5} parent=63 // pred_region
          %s1045 = smul.u32 32, %s25
          %p1046 = scmp.lt.s32.totalorder %s1045, 63
          %s1047 = scalar_select %p1046, %s1045, 63
          %p1048 = scmp.lt.s32.totalorder %s26, 0
          %s1049 = scalar_select %p1048, %s26, 0
          %s1050 = sadd.s32 %s1049, %s1047
          %s1051 = smul.addr %s1050, 8
          %s1052 = scalar_lea.vmem %s4, %s1051
        $region68: #{forward.5} parent=63 // pred_fallthru
          _
      $region64: #{forward.5} parent=5 // pred_fallthru
        _
    $region6: #{forward.5} parent=1 // loop_footer
      %s16 = sadd.s32 1, %s12
    $region7: #{forward.5} parent=1 // loop_footer_branch
      %11 = sbr.rel target = $region3
    $region8: #{forward.5} parent=1 // loop_exit
      _
    %1053 = vsyncpa [#allocation4], 1
    %s1054 = scalar_lea.sflag [#allocation4], 1
    %1055 = vsyncpa %s1054, 1
    %1056 = vsyncpa [#allocation6], 1

// kernel: forward.6
$region0: #{forward.6}
  #allocation0 [shape = 'u32[]', space=smem, size = 0x4, offset = 0x4, fixed_abs, tag = 'smem constant byte address 0x4 - core index']
  #allocation1 [shape = 'u32[144,128]{1,0:T(1,128)}', space=vmem, size = 0x12000, scoped, tag = 'internal scratch']
  #allocation2 [shape = 'f32[128,128]{1,0:T(8,128)}', space=vmem, size = 0x10000, scoped, tag = 'scratch operand']
  %s0 = inlined_call_operand.vmem [shape: bf16[128,1024], index: 0, kind: input, shape index: {}]
  %s1 = inlined_call_operand.vmem [shape: bf16[1024,128], index: 1, kind: input, shape index: {}]
  %s2 = inlined_call_operand.vmem [shape: f32[1,128], index: 2, kind: input, shape index: {}]
  %s3 = inlined_call_operand.vmem [shape: f32[1,128], index: 3, kind: input, shape index: {}]
  %s4 = inlined_call_operand.vmem [shape: f32[128,128], index: 4, kind: output, shape index: {}]
  %s5 = sld [smem:[#allocation0]]
  $region34: #{forward.6} parent=0
    _
  %s7 = ssub.s32 1, %s5
  %s8 = scalar_select 0, %s7, %s5
  // Predicated region
  $region2: #{forward.6} parent=0 // pred_check
    _
  $region3: #{forward.6} parent=0 // pred_check_branch
    %10 = sbr.rel (0) target = $region5
  $region4: #{forward.6} parent=0 // pred_region
    _
  $region5: #{forward.6} parent=0 // pred_fallthru
    _
  // Predicated region
  $region6: #{forward.6} parent=0 // pred_check
    _
  $region7: #{forward.6} parent=0 // pred_check_branch
    %12 = sbr.rel (0) target = $region9
  $region8: #{forward.6} parent=0 // pred_region
    _
  $region9: #{forward.6} parent=0 // pred_fallthru
    _
  // Predicated region
  $region10: #{forward.6} parent=0 // pred_check
    _
  $region11: #{forward.6} parent=0 // pred_check_branch
    %14 = sbr.rel (0) target = $region13
  $region12: #{forward.6} parent=0 // pred_region
    _
  $region13: #{forward.6} parent=0 // pred_fallthru
    _
  // Predicated region
  $region14: #{forward.6} parent=0 // pred_check
    _
  $region15: #{forward.6} parent=0 // pred_check_branch
    %16 = sbr.rel (0) target = $region17
  $region16: #{forward.6} parent=0 // pred_region
    _
  $region17: #{forward.6} parent=0 // pred_fallthru
    _
  %p18 = scmp.eq.s32.totalorder 0, 0
  // Predicated region
  $region18: #{forward.6} parent=0 // pred_check
    %p19 = pneg %p18
  $region19: #{forward.6} parent=0 // pred_check_branch
    %21 = sbr.rel (%p19) target = $region21
  $region20: #{forward.6} parent=0 // pred_region
    %22 = vst [vmem:[#allocation2] sm:$0xff] 0.0
    %23 = vst [vmem:[#allocation2 + $0x8] sm:$0xff] 0.0
    %24 = vst [vmem:[#allocation2 + $0x10] sm:$0xff] 0.0
    %25 = vst [vmem:[#allocation2 + $0x18] sm:$0xff] 0.0
    %26 = vst [vmem:[#allocation2 + $0x20] sm:$0xff] 0.0
    %27 = vst [vmem:[#allocation2 + $0x28] sm:$0xff] 0.0
    %28 = vst [vmem:[#allocation2 + $0x30] sm:$0xff] 0.0
    %29 = vst [vmem:[#allocation2 + $0x38] sm:$0xff] 0.0
    %30 = vst [vmem:[#allocation2 + $0x40] sm:$0xff] 0.0
    %31 = vst [vmem:[#allocation2 + $0x48] sm:$0xff] 0.0
    %32 = vst [vmem:[#allocation2 + $0x50] sm:$0xff] 0.0
    %33 = vst [vmem:[#allocation2 + $0x58] sm:$0xff] 0.0
    %34 = vst [vmem:[#allocation2 + $0x60] sm:$0xff] 0.0
    %35 = vst [vmem:[#allocation2 + $0x68] sm:$0xff] 0.0
    %36 = vst [vmem:[#allocation2 + $0x70] sm:$0xff] 0.0
    %37 = vst [vmem:[#allocation2 + $0x78] sm:$0xff] 0.0
  $region21: #{forward.6} parent=0 // pred_fallthru
    _
  %v38 = vld [vmem:[#allocation2] sm:$0xff]
  %v39 = vld [vmem:[#allocation2 + $0x8] sm:$0xff]
  %v40 = vld [vmem:[#allocation2 + $0x10] sm:$0xff]
  %v41 = vld [vmem:[#allocation2 + $0x18] sm:$0xff]
  %v42 = vld [vmem:[#allocation2 + $0x20] sm:$0xff]
  %v43 = vld [vmem:[#allocation2 + $0x28] sm:$0xff]
  %v44 = vld [vmem:[#allocation2 + $0x30] sm:$0xff]
  %v45 = vld [vmem:[#allocation2 + $0x38] sm:$0xff]
  %v46 = vld [vmem:[#allocation2 + $0x40] sm:$0xff]
  %v47 = vld [vmem:[#allocation2 + $0x48] sm:$0xff]
  %v48 = vld [vmem:[#allocation2 + $0x50] sm:$0xff]
  %v49 = vld [vmem:[#allocation2 + $0x58] sm:$0xff]
  %v50 = vld [vmem:[#allocation2 + $0x60] sm:$0xff]
  %v51 = vld [vmem:[#allocation2 + $0x68] sm:$0xff]
  %v52 = vld [vmem:[#allocation2 + $0x70] sm:$0xff]
  %v53 = vld [vmem:[#allocation2 + $0x78] sm:$0xff]
  %v54 = vld [vmem:[%s0] sm:$0xff]
  %v55 = vld [vmem:[%s0 + $0x8] sm:$0xff]
  %v56 = vld [vmem:[%s0 + $0x10] sm:$0xff]
  %v57 = vld [vmem:[%s0 + $0x18] sm:$0xff]
  %v58 = vld [vmem:[%s0 + $0x20] sm:$0xff]
  %v59 = vld [vmem:[%s0 + $0x28] sm:$0xff]
  %v60 = vld [vmem:[%s0 + $0x30] sm:$0xff]
  %v61 = vld [vmem:[%s0 + $0x38] sm:$0xff]
  %v62 = vld [vmem:[%s0 + $0x40] sm:$0xff]
  %v63 = vld [vmem:[%s0 + $0x48] sm:$0xff]
  %v64 = vld [vmem:[%s0 + $0x50] sm:$0xff]
  %v65 = vld [vmem:[%s0 + $0x58] sm:$0xff]
  %v66 = vld [vmem:[%s0 + $0x60] sm:$0xff]
  %v67 = vld [vmem:[%s0 + $0x68] sm:$0xff]
  %v68 = vld [vmem:[%s0 + $0x70] sm:$0xff]
  %v69 = vld [vmem:[%s0 + $0x78] sm:$0xff]
  %v70 = vld [vmem:[%s0 + $0x80] sm:$0xff]
  %v71 = vld [vmem:[%s0 + $0x88] sm:$0xff]
  %v72 = vld [vmem:[%s0 + $0x90] sm:$0xff]
  %v73 = vld [vmem:[%s0 + $0x98] sm:$0xff]
  %v74 = vld [vmem:[%s0 + $0xa0] sm:$0xff]
  %v75 = vld [vmem:[%s0 + $0xa8] sm:$0xff]
  %v76 = vld [vmem:[%s0 + $0xb0] sm:$0xff]
  %v77 = vld [vmem:[%s0 + $0xb8] sm:$0xff]
  %v78 = vld [vmem:[%s0 + $0xc0] sm:$0xff]
  %v79 = vld [vmem:[%s0 + $0xc8] sm:$0xff]
  %v80 = vld [vmem:[%s0 + $0xd0] sm:$0xff]
  %v81 = vld [vmem:[%s0 + $0xd8] sm:$0xff]
  %v82 = vld [vmem:[%s0 + $0xe0] sm:$0xff]
  %v83 = vld [vmem:[%s0 + $0xe8] sm:$0xff]
  %v84 = vld [vmem:[%s0 + $0xf0] sm:$0xff]
  %v85 = vld [vmem:[%s0 + $0xf8] sm:$0xff]
  %v86 = vld [vmem:[%s0 + $0x100] sm:$0xff]
  %v87 = vld [vmem:[%s0 + $0x108] sm:$0xff]
  %v88 = vld [vmem:[%s0 + $0x110] sm:$0xff]
  %v89 = vld [vmem:[%s0 + $0x118] sm:$0xff]
  %v90 = vld [vmem:[%s0 + $0x120] sm:$0xff]
  %v91 = vld [vmem:[%s0 + $0x128] sm:$0xff]
  %v92 = vld [vmem:[%s0 + $0x130] sm:$0xff]
  %v93 = vld [vmem:[%s0 + $0x138] sm:$0xff]
  %v94 = vld [vmem:[%s0 + $0x140] sm:$0xff]
  %v95 = vld [vmem:[%s0 + $0x148] sm:$0xff]
  %v96 = vld [vmem:[%s0 + $0x150] sm:$0xff]
  %v97 = vld [vmem:[%s0 + $0x158] sm:$0xff]
  %v98 = vld [vmem:[%s0 + $0x160] sm:$0xff]
  %v99 = vld [vmem:[%s0 + $0x168] sm:$0xff]
  %v100 = vld [vmem:[%s0 + $0x170] sm:$0xff]
  %v101 = vld [vmem:[%s0 + $0x178] sm:$0xff]
  %v102 = vld [vmem:[%s0 + $0x180] sm:$0xff]
  %v103 = vld [vmem:[%s0 + $0x188] sm:$0xff]
  %v104 = vld [vmem:[%s0 + $0x190] sm:$0xff]
  %v105 = vld [vmem:[%s0 + $0x198] sm:$0xff]
  %v106 = vld [vmem:[%s0 + $0x1a0] sm:$0xff]
  %v107 = vld [vmem:[%s0 + $0x1a8] sm:$0xff]
  %v108 = vld [vmem:[%s0 + $0x1b0] sm:$0xff]
  %v109 = vld [vmem:[%s0 + $0x1b8] sm:$0xff]
  %v110 = vld [vmem:[%s0 + $0x1c0] sm:$0xff]
  %v111 = vld [vmem:[%s0 + $0x1c8] sm:$0xff]
  %v112 = vld [vmem:[%s0 + $0x1d0] sm:$0xff]
  %v113 = vld [vmem:[%s0 + $0x1d8] sm:$0xff]
  %v114 = vld [vmem:[%s0 + $0x1e0] sm:$0xff]
  %v115 = vld [vmem:[%s0 + $0x1e8] sm:$0xff]
  %v116 = vld [vmem:[%s0 + $0x1f0] sm:$0xff]
  %v117 = vld [vmem:[%s0 + $0x1f8] sm:$0xff]
  %v118 = vld [vmem:[%s1] sm:$0xf]
  %v119 = vld [vmem:[%s1 + $0x4] sm:$0xf]
  %v120 = vld [vmem:[%s1 + $0x8] sm:$0xf]
  %v121 = vld [vmem:[%s1 + $0xc] sm:$0xf]
  %v122 = vld [vmem:[%s1 + $0x10] sm:$0xf]
  %v123 = vld [vmem:[%s1 + $0x14] sm:$0xf]
  %v124 = vld [vmem:[%s1 + $0x18] sm:$0xf]
  %v125 = vld [vmem:[%s1 + $0x1c] sm:$0xf]
  %v126 = vld [vmem:[%s1 + $0x20] sm:$0xf]
  %v127 = vld [vmem:[%s1 + $0x24] sm:$0xf]
  %v128 = vld [vmem:[%s1 + $0x28] sm:$0xf]
  %v129 = vld [vmem:[%s1 + $0x2c] sm:$0xf]
  %v130 = vld [vmem:[%s1 + $0x30] sm:$0xf]
  %v131 = vld [vmem:[%s1 + $0x34] sm:$0xf]
  %v132 = vld [vmem:[%s1 + $0x38] sm:$0xf]
  %v133 = vld [vmem:[%s1 + $0x3c] sm:$0xf]
  %v134 = vld [vmem:[%s1 + $0x40] sm:$0xf]
  %v135 = vld [vmem:[%s1 + $0x44] sm:$0xf]
  %v136 = vld [vmem:[%s1 + $0x48] sm:$0xf]
  %v137 = vld [vmem:[%s1 + $0x4c] sm:$0xf]
  %v138 = vld [vmem:[%s1 + $0x50] sm:$0xf]
  %v139 = vld [vmem:[%s1 + $0x54] sm:$0xf]
  %v140 = vld [vmem:[%s1 + $0x58] sm:$0xf]
  %v141 = vld [vmem:[%s1 + $0x5c] sm:$0xf]
  %v142 = vld [vmem:[%s1 + $0x60] sm:$0xf]
  %v143 = vld [vmem:[%s1 + $0x64] sm:$0xf]
  %v144 = vld [vmem:[%s1 + $0x68] sm:$0xf]
  %v145 = vld [vmem:[%s1 + $0x6c] sm:$0xf]
  %v146 = vld [vmem:[%s1 + $0x70] sm:$0xf]
  %v147 = vld [vmem:[%s1 + $0x74] sm:$0xf]
  %v148 = vld [vmem:[%s1 + $0x78] sm:$0xf]
  %v149 = vld [vmem:[%s1 + $0x7c] sm:$0xf]
  %v150 = vld [vmem:[%s1 + $0x80] sm:$0xf]
  %v151 = vld [vmem:[%s1 + $0x84] sm:$0xf]
  %v152 = vld [vmem:[%s1 + $0x88] sm:$0xf]
  %v153 = vld [vmem:[%s1 + $0x8c] sm:$0xf]
  %v154 = vld [vmem:[%s1 + $0x90] sm:$0xf]
  %v155 = vld [vmem:[%s1 + $0x94] sm:$0xf]
  %v156 = vld [vmem:[%s1 + $0x98] sm:$0xf]
  %v157 = vld [vmem:[%s1 + $0x9c] sm:$0xf]
  %v158 = vld [vmem:[%s1 + $0xa0] sm:$0xf]
  %v159 = vld [vmem:[%s1 + $0xa4] sm:$0xf]
  %v160 = vld [vmem:[%s1 + $0xa8] sm:$0xf]
  %v161 = vld [vmem:[%s1 + $0xac] sm:$0xf]
  %v162 = vld [vmem:[%s1 + $0xb0] sm:$0xf]
  %v163 = vld [vmem:[%s1 + $0xb4] sm:$0xf]
  %v164 = vld [vmem:[%s1 + $0xb8] sm:$0xf]
  %v165 = vld [vmem:[%s1 + $0xbc] sm:$0xf]
  %v166 = vld [vmem:[%s1 + $0xc0] sm:$0xf]
  %v167 = vld [vmem:[%s1 + $0xc4] sm:$0xf]
  %v168 = vld [vmem:[%s1 + $0xc8] sm:$0xf]
  %v169 = vld [vmem:[%s1 + $0xcc] sm:$0xf]
  %v170 = vld [vmem:[%s1 + $0xd0] sm:$0xf]
  %v171 = vld [vmem:[%s1 + $0xd4] sm:$0xf]
  %v172 = vld [vmem:[%s1 + $0xd8] sm:$0xf]
  %v173 = vld [vmem:[%s1 + $0xdc] sm:$0xf]
  %v174 = vld [vmem:[%s1 + $0xe0] sm:$0xf]
  %v175 = vld [vmem:[%s1 + $0xe4] sm:$0xf]
  %v176 = vld [vmem:[%s1 + $0xe8] sm:$0xf]
  %v177 = vld [vmem:[%s1 + $0xec] sm:$0xf]
  %v178 = vld [vmem:[%s1 + $0xf0] sm:$0xf]
  %v179 = vld [vmem:[%s1 + $0xf4] sm:$0xf]
  %v180 = vld [vmem:[%s1 + $0xf8] sm:$0xf]
  %v181 = vld [vmem:[%s1 + $0xfc] sm:$0xf]
  %v182 = vld [vmem:[%s1 + $0x100] sm:$0xf]
  %v183 = vld [vmem:[%s1 + $0x104] sm:$0xf]
  %v184 = vld [vmem:[%s1 + $0x108] sm:$0xf]
  %v185 = vld [vmem:[%s1 + $0x10c] sm:$0xf]
  %v186 = vld [vmem:[%s1 + $0x110] sm:$0xf]
  %v187 = vld [vmem:[%s1 + $0x114] sm:$0xf]
  %v188 = vld [vmem:[%s1 + $0x118] sm:$0xf]
  %v189 = vld [vmem:[%s1 + $0x11c] sm:$0xf]
  %v190 = vld [vmem:[%s1 + $0x120] sm:$0xf]
  %v191 = vld [vmem:[%s1 + $0x124] sm:$0xf]
  %v192 = vld [vmem:[%s1 + $0x128] sm:$0xf]
  %v193 = vld [vmem:[%s1 + $0x12c] sm:$0xf]
  %v194 = vld [vmem:[%s1 + $0x130] sm:$0xf]
  %v195 = vld [vmem:[%s1 + $0x134] sm:$0xf]
  %v196 = vld [vmem:[%s1 + $0x138] sm:$0xf]
  %v197 = vld [vmem:[%s1 + $0x13c] sm:$0xf]
  %v198 = vld [vmem:[%s1 + $0x140] sm:$0xf]
  %v199 = vld [vmem:[%s1 + $0x144] sm:$0xf]
  %v200 = vld [vmem:[%s1 + $0x148] sm:$0xf]
  %v201 = vld [vmem:[%s1 + $0x14c] sm:$0xf]
  %v202 = vld [vmem:[%s1 + $0x150] sm:$0xf]
  %v203 = vld [vmem:[%s1 + $0x154] sm:$0xf]
  %v204 = vld [vmem:[%s1 + $0x158] sm:$0xf]
  %v205 = vld [vmem:[%s1 + $0x15c] sm:$0xf]
  %v206 = vld [vmem:[%s1 + $0x160] sm:$0xf]
  %v207 = vld [vmem:[%s1 + $0x164] sm:$0xf]
  %v208 = vld [vmem:[%s1 + $0x168] sm:$0xf]
  %v209 = vld [vmem:[%s1 + $0x16c] sm:$0xf]
  %v210 = vld [vmem:[%s1 + $0x170] sm:$0xf]
  %v211 = vld [vmem:[%s1 + $0x174] sm:$0xf]
  %v212 = vld [vmem:[%s1 + $0x178] sm:$0xf]
  %v213 = vld [vmem:[%s1 + $0x17c] sm:$0xf]
  %v214 = vld [vmem:[%s1 + $0x180] sm:$0xf]
  %v215 = vld [vmem:[%s1 + $0x184] sm:$0xf]
  %v216 = vld [vmem:[%s1 + $0x188] sm:$0xf]
  %v217 = vld [vmem:[%s1 + $0x18c] sm:$0xf]
  %v218 = vld [vmem:[%s1 + $0x190] sm:$0xf]
  %v219 = vld [vmem:[%s1 + $0x194] sm:$0xf]
  %v220 = vld [vmem:[%s1 + $0x198] sm:$0xf]
  %v221 = vld [vmem:[%s1 + $0x19c] sm:$0xf]
  %v222 = vld [vmem:[%s1 + $0x1a0] sm:$0xf]
  %v223 = vld [vmem:[%s1 + $0x1a4] sm:$0xf]
  %v224 = vld [vmem:[%s1 + $0x1a8] sm:$0xf]
  %v225 = vld [vmem:[%s1 + $0x1ac] sm:$0xf]
  %v226 = vld [vmem:[%s1 + $0x1b0] sm:$0xf]
  %v227 = vld [vmem:[%s1 + $0x1b4] sm:$0xf]
  %v228 = vld [vmem:[%s1 + $0x1b8] sm:$0xf]
  %v229 = vld [vmem:[%s1 + $0x1bc] sm:$0xf]
  %v230 = vld [vmem:[%s1 + $0x1c0] sm:$0xf]
  %v231 = vld [vmem:[%s1 + $0x1c4] sm:$0xf]
  %v232 = vld [vmem:[%s1 + $0x1c8] sm:$0xf]
  %v233 = vld [vmem:[%s1 + $0x1cc] sm:$0xf]
  %v234 = vld [vmem:[%s1 + $0x1d0] sm:$0xf]
  %v235 = vld [vmem:[%s1 + $0x1d4] sm:$0xf]
  %v236 = vld [vmem:[%s1 + $0x1d8] sm:$0xf]
  %v237 = vld [vmem:[%s1 + $0x1dc] sm:$0xf]
  %v238 = vld [vmem:[%s1 + $0x1e0] sm:$0xf]
  %v239 = vld [vmem:[%s1 + $0x1e4] sm:$0xf]
  %v240 = vld [vmem:[%s1 + $0x1e8] sm:$0xf]
  %v241 = vld [vmem:[%s1 + $0x1ec] sm:$0xf]
  %v242 = vld [vmem:[%s1 + $0x1f0] sm:$0xf]
  %v243 = vld [vmem:[%s1 + $0x1f4] sm:$0xf]
  %v244 = vld [vmem:[%s1 + $0x1f8] sm:$0xf]
  %v245 = vld [vmem:[%s1 + $0x1fc] sm:$0xf]
  %v310 = vunpack.c.l.b16 %v54
  %v311 = vunpack.c.h.b16 %v54
  %v312 = vunpack.c.l.b16 %v55
  %v313 = vunpack.c.h.b16 %v55
  %v314 = vunpack.c.l.b16 %v56
  %v315 = vunpack.c.h.b16 %v56
  %v316 = vunpack.c.l.b16 %v57
  %v317 = vunpack.c.h.b16 %v57
  %v318 = vunpack.c.l.b16 %v58
  %v319 = vunpack.c.h.b16 %v58
  %v320 = vunpack.c.l.b16 %v59
  %v321 = vunpack.c.h.b16 %v59
  %v322 = vunpack.c.l.b16 %v60
  %v323 = vunpack.c.h.b16 %v60
  %v324 = vunpack.c.l.b16 %v61
  %v325 = vunpack.c.h.b16 %v61
  %v326 = vunpack.c.l.b16 %v62
  %v327 = vunpack.c.h.b16 %v62
  %v328 = vunpack.c.l.b16 %v63
  %v329 = vunpack.c.h.b16 %v63
  %v330 = vunpack.c.l.b16 %v64
  %v331 = vunpack.c.h.b16 %v64
  %v332 = vunpack.c.l.b16 %v65
  %v333 = vunpack.c.h.b16 %v65
  %v334 = vunpack.c.l.b16 %v66
  %v335 = vunpack.c.h.b16 %v66
  %v336 = vunpack.c.l.b16 %v67
  %v337 = vunpack.c.h.b16 %v67
  %v338 = vunpack.c.l.b16 %v68
  %v339 = vunpack.c.h.b16 %v68
  %v340 = vunpack.c.l.b16 %v69
  %v341 = vunpack.c.h.b16 %v69
  %v342 = vunpack.c.l.b16 %v70
  %v343 = vunpack.c.h.b16 %v70
  %v344 = vunpack.c.l.b16 %v71
  %v345 = vunpack.c.h.b16 %v71
  %v346 = vunpack.c.l.b16 %v72
  %v347 = vunpack.c.h.b16 %v72
  %v348 = vunpack.c.l.b16 %v73
  %v349 = vunpack.c.h.b16 %v73
  %v350 = vunpack.c.l.b16 %v74
  %v351 = vunpack.c.h.b16 %v74
  %v352 = vunpack.c.l.b16 %v75
  %v353 = vunpack.c.h.b16 %v75
  %v354 = vunpack.c.l.b16 %v76
  %v355 = vunpack.c.h.b16 %v76
  %v356 = vunpack.c.l.b16 %v77
  %v357 = vunpack.c.h.b16 %v77
  %v358 = vunpack.c.l.b16 %v78
  %v359 = vunpack.c.h.b16 %v78
  %v360 = vunpack.c.l.b16 %v79
  %v361 = vunpack.c.h.b16 %v79
  %v362 = vunpack.c.l.b16 %v80
  %v363 = vunpack.c.h.b16 %v80
  %v364 = vunpack.c.l.b16 %v81
  %v365 = vunpack.c.h.b16 %v81
  %v366 = vunpack.c.l.b16 %v82
  %v367 = vunpack.c.h.b16 %v82
  %v368 = vunpack.c.l.b16 %v83
  %v369 = vunpack.c.h.b16 %v83
  %v370 = vunpack.c.l.b16 %v84
  %v371 = vunpack.c.h.b16 %v84
  %v372 = vunpack.c.l.b16 %v85
  %v373 = vunpack.c.h.b16 %v85
  %v374 = vunpack.c.l.b16 %v86
  %v375 = vunpack.c.h.b16 %v86
  %v376 = vunpack.c.l.b16 %v87
  %v377 = vunpack.c.h.b16 %v87
  %v378 = vunpack.c.l.b16 %v88
  %v379 = vunpack.c.h.b16 %v88
  %v380 = vunpack.c.l.b16 %v89
  %v381 = vunpack.c.h.b16 %v89
  %v382 = vunpack.c.l.b16 %v90
  %v383 = vunpack.c.h.b16 %v90
  %v384 = vunpack.c.l.b16 %v91
  %v385 = vunpack.c.h.b16 %v91
  %v386 = vunpack.c.l.b16 %v92
  %v387 = vunpack.c.h.b16 %v92
  %v388 = vunpack.c.l.b16 %v93
  %v389 = vunpack.c.h.b16 %v93
  %v390 = vunpack.c.l.b16 %v94
  %v391 = vunpack.c.h.b16 %v94
  %v392 = vunpack.c.l.b16 %v95
  %v393 = vunpack.c.h.b16 %v95
  %v394 = vunpack.c.l.b16 %v96
  %v395 = vunpack.c.h.b16 %v96
  %v396 = vunpack.c.l.b16 %v97
  %v397 = vunpack.c.h.b16 %v97
  %v398 = vunpack.c.l.b16 %v98
  %v399 = vunpack.c.h.b16 %v98
  %v400 = vunpack.c.l.b16 %v99
  %v401 = vunpack.c.h.b16 %v99
  %v402 = vunpack.c.l.b16 %v100
  %v403 = vunpack.c.h.b16 %v100
  %v404 = vunpack.c.l.b16 %v101
  %v405 = vunpack.c.h.b16 %v101
  %v406 = vunpack.c.l.b16 %v102
  %v407 = vunpack.c.h.b16 %v102
  %v408 = vunpack.c.l.b16 %v103
  %v409 = vunpack.c.h.b16 %v103
  %v410 = vunpack.c.l.b16 %v104
  %v411 = vunpack.c.h.b16 %v104
  %v412 = vunpack.c.l.b16 %v105
  %v413 = vunpack.c.h.b16 %v105
  %v414 = vunpack.c.l.b16 %v106
  %v415 = vunpack.c.h.b16 %v106
  %v416 = vunpack.c.l.b16 %v107
  %v417 = vunpack.c.h.b16 %v107
  %v418 = vunpack.c.l.b16 %v108
  %v419 = vunpack.c.h.b16 %v108
  %v420 = vunpack.c.l.b16 %v109
  %v421 = vunpack.c.h.b16 %v109
  %v422 = vunpack.c.l.b16 %v110
  %v423 = vunpack.c.h.b16 %v110
  %v424 = vunpack.c.l.b16 %v111
  %v425 = vunpack.c.h.b16 %v111
  %v426 = vunpack.c.l.b16 %v112
  %v427 = vunpack.c.h.b16 %v112
  %v428 = vunpack.c.l.b16 %v113
  %v429 = vunpack.c.h.b16 %v113
  %v430 = vunpack.c.l.b16 %v114
  %v431 = vunpack.c.h.b16 %v114
  %v432 = vunpack.c.l.b16 %v115
  %v433 = vunpack.c.h.b16 %v115
  %v434 = vunpack.c.l.b16 %v116
  %v435 = vunpack.c.h.b16 %v116
  %v436 = vunpack.c.l.b16 %v117
  %v437 = vunpack.c.h.b16 %v117
  %v438 = vpack.c.b16 %v318, %v310
  %v439 = vpack.c.b16 %v319, %v311
  %v440 = vpack.c.b16 %v320, %v312
  %v441 = vpack.c.b16 %v321, %v313
  %v442 = vpack.c.b16 %v322, %v314
  %v443 = vpack.c.b16 %v323, %v315
  %v444 = vpack.c.b16 %v324, %v316
  %v445 = vpack.c.b16 %v325, %v317
  %v446 = vpack.c.b16 %v334, %v326
  %v447 = vpack.c.b16 %v335, %v327
  %v448 = vpack.c.b16 %v336, %v328
  %v449 = vpack.c.b16 %v337, %v329
  %v450 = vpack.c.b16 %v338, %v330
  %v451 = vpack.c.b16 %v339, %v331
  %v452 = vpack.c.b16 %v340, %v332
  %v453 = vpack.c.b16 %v341, %v333
  %v454 = vpack.c.b16 %v350, %v342
  %v455 = vpack.c.b16 %v351, %v343
  %v456 = vpack.c.b16 %v352, %v344
  %v457 = vpack.c.b16 %v353, %v345
  %v458 = vpack.c.b16 %v354, %v346
  %v459 = vpack.c.b16 %v355, %v347
  %v460 = vpack.c.b16 %v356, %v348
  %v461 = vpack.c.b16 %v357, %v349
  %v462 = vpack.c.b16 %v366, %v358
  %v463 = vpack.c.b16 %v367, %v359
  %v464 = vpack.c.b16 %v368, %v360
  %v465 = vpack.c.b16 %v369, %v361
  %v466 = vpack.c.b16 %v370, %v362
  %v467 = vpack.c.b16 %v371, %v363
  %v468 = vpack.c.b16 %v372, %v364
  %v469 = vpack.c.b16 %v373, %v365
  %v470 = vpack.c.b16 %v382, %v374
  %v471 = vpack.c.b16 %v383, %v375
  %v472 = vpack.c.b16 %v384, %v376
  %v473 = vpack.c.b16 %v385, %v377
  %v474 = vpack.c.b16 %v386, %v378
  %v475 = vpack.c.b16 %v387, %v379
  %v476 = vpack.c.b16 %v388, %v380
  %v477 = vpack.c.b16 %v389, %v381
  %v478 = vpack.c.b16 %v398, %v390
  %v479 = vpack.c.b16 %v399, %v391
  %v480 = vpack.c.b16 %v400, %v392
  %v481 = vpack.c.b16 %v401, %v393
  %v482 = vpack.c.b16 %v402, %v394
  %v483 = vpack.c.b16 %v403, %v395
  %v484 = vpack.c.b16 %v404, %v396
  %v485 = vpack.c.b16 %v405, %v397
  %v486 = vpack.c.b16 %v414, %v406
  %v487 = vpack.c.b16 %v415, %v407
  %v488 = vpack.c.b16 %v416, %v408
  %v489 = vpack.c.b16 %v417, %v409
  %v490 = vpack.c.b16 %v418, %v410
  %v491 = vpack.c.b16 %v419, %v411
  %v492 = vpack.c.b16 %v420, %v412
  %v493 = vpack.c.b16 %v421, %v413
  %v494 = vpack.c.b16 %v430, %v422
  %v495 = vpack.c.b16 %v431, %v423
  %v496 = vpack.c.b16 %v432, %v424
  %v497 = vpack.c.b16 %v433, %v425
  %v498 = vpack.c.b16 %v434, %v426
  %v499 = vpack.c.b16 %v435, %v427
  %v500 = vpack.c.b16 %v436, %v428
  %v501 = vpack.c.b16 %v437, %v429
  %v694 = vunpack.c.l.b16 %v118
  %v695 = vunpack.c.l.b16 %v119
  %v696 = vunpack.c.l.b16 %v120
  %v697 = vunpack.c.l.b16 %v121
  %v698 = vunpack.c.l.b16 %v122
  %v699 = vunpack.c.l.b16 %v123
  %v700 = vunpack.c.l.b16 %v124
  %v701 = vunpack.c.l.b16 %v125
  %v702 = vunpack.c.l.b16 %v126
  %v703 = vunpack.c.l.b16 %v127
  %v704 = vunpack.c.l.b16 %v128
  %v705 = vunpack.c.l.b16 %v129
  %v706 = vunpack.c.l.b16 %v130
  %v707 = vunpack.c.l.b16 %v131
  %v708 = vunpack.c.l.b16 %v132
  %v709 = vunpack.c.l.b16 %v133
  %v710 = vunpack.c.l.b16 %v134
  %v711 = vunpack.c.l.b16 %v135
  %v712 = vunpack.c.l.b16 %v136
  %v713 = vunpack.c.l.b16 %v137
  %v714 = vunpack.c.l.b16 %v138
  %v715 = vunpack.c.l.b16 %v139
  %v716 = vunpack.c.l.b16 %v140
  %v717 = vunpack.c.l.b16 %v141
  %v718 = vunpack.c.l.b16 %v142
  %v719 = vunpack.c.l.b16 %v143
  %v720 = vunpack.c.l.b16 %v144
  %v721 = vunpack.c.l.b16 %v145
  %v722 = vunpack.c.l.b16 %v146
  %v723 = vunpack.c.l.b16 %v147
  %v724 = vunpack.c.l.b16 %v148
  %v725 = vunpack.c.l.b16 %v149
  %v726 = vunpack.c.l.b16 %v150
  %v727 = vunpack.c.l.b16 %v151
  %v728 = vunpack.c.l.b16 %v152
  %v729 = vunpack.c.l.b16 %v153
  %v730 = vunpack.c.l.b16 %v154
  %v731 = vunpack.c.l.b16 %v155
  %v732 = vunpack.c.l.b16 %v156
  %v733 = vunpack.c.l.b16 %v157
  %v734 = vunpack.c.l.b16 %v158
  %v735 = vunpack.c.l.b16 %v159
  %v736 = vunpack.c.l.b16 %v160
  %v737 = vunpack.c.l.b16 %v161
  %v738 = vunpack.c.l.b16 %v162
  %v739 = vunpack.c.l.b16 %v163
  %v740 = vunpack.c.l.b16 %v164
  %v741 = vunpack.c.l.b16 %v165
  %v742 = vunpack.c.l.b16 %v166
  %v743 = vunpack.c.l.b16 %v167
  %v744 = vunpack.c.l.b16 %v168
  %v745 = vunpack.c.l.b16 %v169
  %v746 = vunpack.c.l.b16 %v170
  %v747 = vunpack.c.l.b16 %v171
  %v748 = vunpack.c.l.b16 %v172
  %v749 = vunpack.c.l.b16 %v173
  %v750 = vunpack.c.l.b16 %v174
  %v751 = vunpack.c.l.b16 %v175
  %v752 = vunpack.c.l.b16 %v176
  %v753 = vunpack.c.l.b16 %v177
  %v754 = vunpack.c.l.b16 %v178
  %v755 = vunpack.c.l.b16 %v179
  %v756 = vunpack.c.l.b16 %v180
  %v757 = vunpack.c.l.b16 %v181
  %v758 = vunpack.c.l.b16 %v182
  %v759 = vunpack.c.l.b16 %v183
  %v760 = vunpack.c.l.b16 %v184
  %v761 = vunpack.c.l.b16 %v185
  %v762 = vunpack.c.l.b16 %v186
  %v763 = vunpack.c.l.b16 %v187
  %v764 = vunpack.c.l.b16 %v188
  %v765 = vunpack.c.l.b16 %v189
  %v766 = vunpack.c.l.b16 %v190
  %v767 = vunpack.c.l.b16 %v191
  %v768 = vunpack.c.l.b16 %v192
  %v769 = vunpack.c.l.b16 %v193
  %v770 = vunpack.c.l.b16 %v194
  %v771 = vunpack.c.l.b16 %v195
  %v772 = vunpack.c.l.b16 %v196
  %v773 = vunpack.c.l.b16 %v197
  %v774 = vunpack.c.l.b16 %v198
  %v775 = vunpack.c.l.b16 %v199
  %v776 = vunpack.c.l.b16 %v200
  %v777 = vunpack.c.l.b16 %v201
  %v778 = vunpack.c.l.b16 %v202
  %v779 = vunpack.c.l.b16 %v203
  %v780 = vunpack.c.l.b16 %v204
  %v781 = vunpack.c.l.b16 %v205
  %v782 = vunpack.c.l.b16 %v206
  %v783 = vunpack.c.l.b16 %v207
  %v784 = vunpack.c.l.b16 %v208
  %v785 = vunpack.c.l.b16 %v209
  %v786 = vunpack.c.l.b16 %v210
  %v787 = vunpack.c.l.b16 %v211
  %v788 = vunpack.c.l.b16 %v212
  %v789 = vunpack.c.l.b16 %v213
  %v790 = vunpack.c.l.b16 %v214
  %v791 = vunpack.c.l.b16 %v215
  %v792 = vunpack.c.l.b16 %v216
  %v793 = vunpack.c.l.b16 %v217
  %v794 = vunpack.c.l.b16 %v218
  %v795 = vunpack.c.l.b16 %v219
  %v796 = vunpack.c.l.b16 %v220
  %v797 = vunpack.c.l.b16 %v221
  %v798 = vunpack.c.l.b16 %v222
  %v799 = vunpack.c.l.b16 %v223
  %v800 = vunpack.c.l.b16 %v224
  %v801 = vunpack.c.l.b16 %v225
  %v802 = vunpack.c.l.b16 %v226
  %v803 = vunpack.c.l.b16 %v227
  %v804 = vunpack.c.l.b16 %v228
  %v805 = vunpack.c.l.b16 %v229
  %v806 = vunpack.c.l.b16 %v230
  %v807 = vunpack.c.l.b16 %v231
  %v808 = vunpack.c.l.b16 %v232
  %v809 = vunpack.c.l.b16 %v233
  %v810 = vunpack.c.l.b16 %v234
  %v811 = vunpack.c.l.b16 %v235
  %v812 = vunpack.c.l.b16 %v236
  %v813 = vunpack.c.l.b16 %v237
  %v814 = vunpack.c.l.b16 %v238
  %v815 = vunpack.c.l.b16 %v239
  %v816 = vunpack.c.l.b16 %v240
  %v817 = vunpack.c.l.b16 %v241
  %v818 = vunpack.c.l.b16 %v242
  %v819 = vunpack.c.l.b16 %v243
  %v820 = vunpack.c.l.b16 %v244
  %v821 = vunpack.c.l.b16 %v245
  %v822 = vpack.c.b16 %v695, %v694
  %v823 = vpack.c.b16 %v697, %v696
  %v824 = vpack.c.b16 %v699, %v698
  %v825 = vpack.c.b16 %v701, %v700
  %v826 = vpack.c.b16 %v703, %v702
  %v827 = vpack.c.b16 %v705, %v704
  %v828 = vpack.c.b16 %v707, %v706
  %v829 = vpack.c.b16 %v709, %v708
  %v830 = vpack.c.b16 %v711, %v710
  %v831 = vpack.c.b16 %v713, %v712
  %v832 = vpack.c.b16 %v715, %v714
  %v833 = vpack.c.b16 %v717, %v716
  %v834 = vpack.c.b16 %v719, %v718
  %v835 = vpack.c.b16 %v721, %v720
  %v836 = vpack.c.b16 %v723, %v722
  %v837 = vpack.c.b16 %v725, %v724
  %v838 = vpack.c.b16 %v727, %v726
  %v839 = vpack.c.b16 %v729, %v728
  %v840 = vpack.c.b16 %v731, %v730
  %v841 = vpack.c.b16 %v733, %v732
  %v842 = vpack.c.b16 %v735, %v734
  %v843 = vpack.c.b16 %v737, %v736
  %v844 = vpack.c.b16 %v739, %v738
  %v845 = vpack.c.b16 %v741, %v740
  %v846 = vpack.c.b16 %v743, %v742
  %v847 = vpack.c.b16 %v745, %v744
  %v848 = vpack.c.b16 %v747, %v746
  %v849 = vpack.c.b16 %v749, %v748
  %v850 = vpack.c.b16 %v751, %v750
  %v851 = vpack.c.b16 %v753, %v752
  %v852 = vpack.c.b16 %v755, %v754
  %v853 = vpack.c.b16 %v757, %v756
  %v854 = vpack.c.b16 %v759, %v758
  %v855 = vpack.c.b16 %v761, %v760
  %v856 = vpack.c.b16 %v763, %v762
  %v857 = vpack.c.b16 %v765, %v764
  %v858 = vpack.c.b16 %v767, %v766
  %v859 = vpack.c.b16 %v769, %v768
  %v860 = vpack.c.b16 %v771, %v770
  %v861 = vpack.c.b16 %v773, %v772
  %v862 = vpack.c.b16 %v775, %v774
  %v863 = vpack.c.b16 %v777, %v776
  %v864 = vpack.c.b16 %v779, %v778
  %v865 = vpack.c.b16 %v781, %v780
  %v866 = vpack.c.b16 %v783, %v782
  %v867 = vpack.c.b16 %v785, %v784
  %v868 = vpack.c.b16 %v787, %v786
  %v869 = vpack.c.b16 %v789, %v788
  %v870 = vpack.c.b16 %v791, %v790
  %v871 = vpack.c.b16 %v793, %v792
  %v872 = vpack.c.b16 %v795, %v794
  %v873 = vpack.c.b16 %v797, %v796
  %v874 = vpack.c.b16 %v799, %v798
  %v875 = vpack.c.b16 %v801, %v800
  %v876 = vpack.c.b16 %v803, %v802
  %v877 = vpack.c.b16 %v805, %v804
  %v878 = vpack.c.b16 %v807, %v806
  %v879 = vpack.c.b16 %v809, %v808
  %v880 = vpack.c.b16 %v811, %v810
  %v881 = vpack.c.b16 %v813, %v812
  %v882 = vpack.c.b16 %v815, %v814
  %v883 = vpack.c.b16 %v817, %v816
  %v884 = vpack.c.b16 %v819, %v818
  %v885 = vpack.c.b16 %v821, %v820
  %950 = vmatprep.subr.bf16.mxu0 0
  %951 = vmatpush1.bf16.msra.mxu0 %v822
  %952 = vmatprep.subr.bf16.mxu0 0
  %953 = vmatpush1.bf16.msra.mxu0 %v823
  %954 = vmatprep.subr.bf16.mxu0 0
  %955 = vmatpush1.bf16.msra.mxu0 %v824
  %956 = vmatprep.subr.bf16.mxu0 0
  %957 = vmatpush1.bf16.msra.mxu0 %v825
  %958 = vmatprep.subr.bf16.mxu0 0
  %959 = vmatpush1.bf16.msra.mxu0 %v826
  %960 = vmatprep.subr.bf16.mxu0 0
  %961 = vmatpush1.bf16.msra.mxu0 %v827
  %962 = vmatprep.subr.bf16.mxu0 0
  %963 = vmatpush1.bf16.msra.mxu0 %v828
  %964 = vmatprep.subr.bf16.mxu0 0
  %965 = vmatpush1.bf16.msra.mxu0 %v829
  %966 = vmatprep.subr.bf16.mxu0 0
  %967 = vmatpush1.bf16.msra.mxu0 %v830
  %968 = vmatprep.subr.bf16.mxu0 0
  %969 = vmatpush1.bf16.msra.mxu0 %v831
  %970 = vmatprep.subr.bf16.mxu0 0
  %971 = vmatpush1.bf16.msra.mxu0 %v832
  %972 = vmatprep.subr.bf16.mxu0 0
  %973 = vmatpush1.bf16.msra.mxu0 %v833
  %974 = vmatprep.subr.bf16.mxu0 0
  %975 = vmatpush1.bf16.msra.mxu0 %v834
  %976 = vmatprep.subr.bf16.mxu0 0
  %977 = vmatpush1.bf16.msra.mxu0 %v835
  %978 = vmatprep.subr.bf16.mxu0 0
  %979 = vmatpush1.bf16.msra.mxu0 %v836
  %980 = vmatprep.subr.bf16.mxu0 0
  %981 = vmatpush1.bf16.msra.mxu0 %v837
  %982 = vmatprep.mubr.bf16.mxu0 %v439
  %983 = vmatmul.mubr.bf16.gmra.mrb[0].mxu0 %v438
  %v984 = vpop.f32.mrb[0].mxu0
  %v985 = vadd.f32 0.0, %v984
  %v986 = vpop.f32.mrb[0].mxu0
  %v987 = vpop.f32.mrb[0].mxu0
  %v988 = vadd.f32 0.0, %v987
  %v989 = vpop.f32.mrb[0].mxu0
  %990 = vmatprep.mubr.bf16.mxu0 %v447
  %991 = vmatmul.mubr.bf16.gmra.mrb[0].mxu0 %v446
  %v992 = vpop.f32.mrb[0].mxu0
  %v993 = vadd.f32 0.0, %v992
  %v994 = vpop.f32.mrb[0].mxu0
  %v995 = vpop.f32.mrb[0].mxu0
  %v996 = vadd.f32 0.0, %v995
  %v997 = vpop.f32.mrb[0].mxu0
  %998 = vmatprep.mubr.bf16.mxu0 %v455
  %999 = vmatmul.mubr.bf16.gmra.mrb[0].mxu0 %v454
  %v1000 = vpop.f32.mrb[0].mxu0
  %v1001 = vadd.f32 0.0, %v1000
  %v1002 = vpop.f32.mrb[0].mxu0
  %v1003 = vpop.f32.mrb[0].mxu0
  %v1004 = vadd.f32 0.0, %v1003
  %v1005 = vpop.f32.mrb[0].mxu0
  %1006 = vmatprep.mubr.bf16.mxu0 %v463
  %1007 = vmatmul.mubr.bf16.gmra.mrb[0].mxu0 %v462
  %v1008 = vpop.f32.mrb[0].mxu0
  %v1009 = vadd.f32 0.0, %v1008
  %v1010 = vpop.f32.mrb[0].mxu0
  %v1011 = vpop.f32.mrb[0].mxu0
  %v1012 = vadd.f32 0.0, %v1011
  %v1013 = vpop.f32.mrb[0].mxu0
  %1014 = vmatprep.mubr.bf16.mxu0 %v471
  %1015 = vmatmul.mubr.bf16.gmra.mrb[0].mxu0 %v470
  %v1016 = vpop.f32.mrb[0].mxu0
  %v1017 = vadd.f32 0.0, %v1016
  %v1018 = vpop.f32.mrb[0].mxu0
  %v1019 = vpop.f32.mrb[0].mxu0
  %v1020 = vadd.f32 0.0, %v1019
  %v1021 = vpop.f32.mrb[0].mxu0
  %1022 = vmatprep.mubr.bf16.mxu0 %v479
  %1023 = vmatmul.mubr.bf16.gmra.mrb[0].mxu0 %v478
  %v1024 = vpop.f32.mrb[0].mxu0
  %v1025 = vadd.f32 0.0, %v1024
  %v1026 = vpop.f32.mrb[0].mxu0
  %v1027 = vpop.f32.mrb[0].mxu0
  %v1028 = vadd.f32 0.0, %v1027
  %v1029 = vpop.f32.mrb[0].mxu0
  %1030 = vmatprep.mubr.bf16.mxu0 %v487
  %1031 = vmatmul.mubr.bf16.gmra.mrb[0].mxu0 %v486
  %v1032 = vpop.f32.mrb[0].mxu0
  %v1033 = vadd.f32 0.0, %v1032
  %v1034 = vpop.f32.mrb[0].mxu0
  %v1035 = vpop.f32.mrb[0].mxu0
  %v1036 = vadd.f32 0.0, %v1035
  %v1037 = vpop.f32.mrb[0].mxu0
  %1038 = vmatprep.mubr.bf16.mxu0 %v495
  %1039 = vmatmul.mubr.bf16.gmra.mrb[0].mxu0 %v494
  %v1040 = vpop.f32.mrb[0].mxu0
  %v1041 = vadd.f32 0.0, %v1040
  %v1042 = vpop.f32.mrb[0].mxu0
  %v1043 = vpop.f32.mrb[0].mxu0
  %v1044 = vadd.f32 0.0, %v1043
  %v1045 = vpop.f32.mrb[0].mxu0
  %1046 = vdwg.mxu0
  %1047 = vmatprep.subr.bf16.mxu0 0
  %1048 = vmatpush1.bf16.msra.mxu0 %v838
  %1049 = vmatprep.subr.bf16.mxu0 0
  %1050 = vmatpush1.bf16.msra.mxu0 %v839
  %1051 = vmatprep.subr.bf16.mxu0 0
  %1052 = vmatpush1.bf16.msra.mxu0 %v840
  %1053 = vmatprep.subr.bf16.mxu0 0
  %1054 = vmatpush1.bf16.msra.mxu0 %v841
  %1055 = vmatprep.subr.bf16.mxu0 0
  %1056 = vmatpush1.bf16.msra.mxu0 %v842
  %1057 = vmatprep.subr.bf16.mxu0 0
  %1058 = vmatpush1.bf16.msra.mxu0 %v843
  %1059 = vmatprep.subr.bf16.mxu0 0
  %1060 = vmatpush1.bf16.msra.mxu0 %v844
  %1061 = vmatprep.subr.bf16.mxu0 0
  %1062 = vmatpush1.bf16.msra.mxu0 %v845
  %1063 = vmatprep.subr.bf16.mxu0 0
  %1064 = vmatpush1.bf16.msra.mxu0 %v846
  %1065 = vmatprep.subr.bf16.mxu0 0
  %1066 = vmatpush1.bf16.msra.mxu0 %v847
  %1067 = vmatprep.subr.bf16.mxu0 0
  %1068 = vmatpush1.bf16.msra.mxu0 %v848
  %1069 = vmatprep.subr.bf16.mxu0 0
  %1070 = vmatpush1.bf16.msra.mxu0 %v849
  %1071 = vmatprep.subr.bf16.mxu0 0
  %1072 = vmatpush1.bf16.msra.mxu0 %v850
  %1073 = vmatprep.subr.bf16.mxu0 0
  %1074 = vmatpush1.bf16.msra.mxu0 %v851
  %1075 = vmatprep.subr.bf16.mxu0 0
  %1076 = vmatpush1.bf16.msra.mxu0 %v852
  %1077 = vmatprep.subr.bf16.mxu0 0
  %1078 = vmatpush1.bf16.msra.mxu0 %v853
  %1079 = vmatprep.mubr.bf16.mxu0 %v441
  %1080 = vmatmul.mubr.bf16.gmra.mrb[0].mxu0 %v440
  %v1081 = vpop.f32.mrb[0].mxu0
  %v1082 = vadd.f32 %v985, %v1081
  %v1083 = vpop.f32.mrb[0].mxu0
  %v1084 = vpop.f32.mrb[0].mxu0
  %v1085 = vadd.f32 %v988, %v1084
  %v1086 = vpop.f32.mrb[0].mxu0
  %1087 = vmatprep.mubr.bf16.mxu0 %v449
  %1088 = vmatmul.mubr.bf16.gmra.mrb[0].mxu0 %v448
  %v1089 = vpop.f32.mrb[0].mxu0
  %v1090 = vadd.f32 %v993, %v1089
  %v1091 = vpop.f32.mrb[0].mxu0
  %v1092 = vpop.f32.mrb[0].mxu0
  %v1093 = vadd.f32 %v996, %v1092
  %v1094 = vpop.f32.mrb[0].mxu0
  %1095 = vmatprep.mubr.bf16.mxu0 %v457
  %1096 = vmatmul.mubr.bf16.gmra.mrb[0].mxu0 %v456
  %v1097 = vpop.f32.mrb[0].mxu0
  %v1098 = vadd.f32 %v1001, %v1097
  %v1099 = vpop.f32.mrb[0].mxu0
  %v1100 = vpop.f32.mrb[0].mxu0
  %v1101 = vadd.f32 %v1004, %v1100
  %v1102 = vpop.f32.mrb[0].mxu0
  %1103 = vmatprep.mubr.bf16.mxu0 %v465
  %1104 = vmatmul.mubr.bf16.gmra.mrb[0].mxu0 %v464
  %v1105 = vpop.f32.mrb[0].mxu0
  %v1106 = vadd.f32 %v1009, %v1105
  %v1107 = vpop.f32.mrb[0].mxu0
  %v1108 = vpop.f32.mrb[0].mxu0
  %v1109 = vadd.f32 %v1012, %v1108
  %v1110 = vpop.f32.mrb[0].mxu0
  %1111 = vmatprep.mubr.bf16.mxu0 %v473
  %1112 = vmatmul.mubr.bf16.gmra.mrb[0].mxu0 %v472
  %v1113 = vpop.f32.mrb[0].mxu0
  %v1114 = vadd.f32 %v1017, %v1113
  %v1115 = vpop.f32.mrb[0].mxu0
  %v1116 = vpop.f32.mrb[0].mxu0
  %v1117 = vadd.f32 %v1020, %v1116
  %v1118 = vpop.f32.mrb[0].mxu0
  %1119 = vmatprep.mubr.bf16.mxu0 %v481
  %1120 = vmatmul.mubr.bf16.gmra.mrb[0].mxu0 %v480
  %v1121 = vpop.f32.mrb[0].mxu0
  %v1122 = vadd.f32 %v1025, %v1121
  %v1123 = vpop.f32.mrb[0].mxu0
  %v1124 = vpop.f32.mrb[0].mxu0
  %v1125 = vadd.f32 %v1028, %v1124
  %v1126 = vpop.f32.mrb[0].mxu0
  %1127 = vmatprep.mubr.bf16.mxu0 %v489
  %1128 = vmatmul.mubr.bf16.gmra.mrb[0].mxu0 %v488
  %v1129 = vpop.f32.mrb[0].mxu0
  %v1130 = vadd.f32 %v1033, %v1129
  %v1131 = vpop.f32.mrb[0].mxu0
  %v1132 = vpop.f32.mrb[0].mxu0
  %v1133 = vadd.f32 %v1036, %v1132
  %v1134 = vpop.f32.mrb[0].mxu0
  %1135 = vmatprep.mubr.bf16.mxu0 %v497
  %1136 = vmatmul.mubr.bf16.gmra.mrb[0].mxu0 %v496
  %v1137 = vpop.f32.mrb[0].mxu0
  %v1138 = vadd.f32 %v1041, %v1137
  %v1139 = vpop.f32.mrb[0].mxu0
  %v1140 = vpop.f32.mrb[0].mxu0
  %v1141 = vadd.f32 %v1044, %v1140
  %v1142 = vpop.f32.mrb[0].mxu0
  %1143 = vdwg.mxu0
  %1144 = vmatprep.subr.bf16.mxu0 0
  %1145 = vmatpush1.bf16.msra.mxu0 %v854
  %1146 = vmatprep.subr.bf16.mxu0 0
  %1147 = vmatpush1.bf16.msra.mxu0 %v855
  %1148 = vmatprep.subr.bf16.mxu0 0
  %1149 = vmatpush1.bf16.msra.mxu0 %v856
  %1150 = vmatprep.subr.bf16.mxu0 0
  %1151 = vmatpush1.bf16.msra.mxu0 %v857
  %1152 = vmatprep.subr.bf16.mxu0 0
  %1153 = vmatpush1.bf16.msra.mxu0 %v858
  %1154 = vmatprep.subr.bf16.mxu0 0
  %1155 = vmatpush1.bf16.msra.mxu0 %v859
  %1156 = vmatprep.subr.bf16.mxu0 0
  %1157 = vmatpush1.bf16.msra.mxu0 %v860
  %1158 = vmatprep.subr.bf16.mxu0 0
  %1159 = vmatpush1.bf16.msra.mxu0 %v861
  %1160 = vmatprep.subr.bf16.mxu0 0
  %1161 = vmatpush1.bf16.msra.mxu0 %v862
  %1162 = vmatprep.subr.bf16.mxu0 0
  %1163 = vmatpush1.bf16.msra.mxu0 %v863
  %1164 = vmatprep.subr.bf16.mxu0 0
  %1165 = vmatpush1.bf16.msra.mxu0 %v864
  %1166 = vmatprep.subr.bf16.mxu0 0
  %1167 = vmatpush1.bf16.msra.mxu0 %v865
  %1168 = vmatprep.subr.bf16.mxu0 0
  %1169 = vmatpush1.bf16.msra.mxu0 %v866
  %1170 = vmatprep.subr.bf16.mxu0 0
  %1171 = vmatpush1.bf16.msra.mxu0 %v867
  %1172 = vmatprep.subr.bf16.mxu0 0
  %1173 = vmatpush1.bf16.msra.mxu0 %v868
  %1174 = vmatprep.subr.bf16.mxu0 0
  %1175 = vmatpush1.bf16.msra.mxu0 %v869
  %1176 = vmatprep.mubr.bf16.mxu0 %v443
  %1177 = vmatmul.mubr.bf16.gmra.mrb[0].mxu0 %v442
  %v1178 = vpop.f32.mrb[0].mxu0
  %v1179 = vadd.f32 %v1082, %v1178
  %v1180 = vpop.f32.mrb[0].mxu0
  %v1181 = vpop.f32.mrb[0].mxu0
  %v1182 = vadd.f32 %v1085, %v1181
  %v1183 = vpop.f32.mrb[0].mxu0
  %1184 = vmatprep.mubr.bf16.mxu0 %v451
  %1185 = vmatmul.mubr.bf16.gmra.mrb[0].mxu0 %v450
  %v1186 = vpop.f32.mrb[0].mxu0
  %v1187 = vadd.f32 %v1090, %v1186
  %v1188 = vpop.f32.mrb[0].mxu0
  %v1189 = vpop.f32.mrb[0].mxu0
  %v1190 = vadd.f32 %v1093, %v1189
  %v1191 = vpop.f32.mrb[0].mxu0
  %1192 = vmatprep.mubr.bf16.mxu0 %v459
  %1193 = vmatmul.mubr.bf16.gmra.mrb[0].mxu0 %v458
  %v1194 = vpop.f32.mrb[0].mxu0
  %v1195 = vadd.f32 %v1098, %v1194
  %v1196 = vpop.f32.mrb[0].mxu0
  %v1197 = vpop.f32.mrb[0].mxu0
  %v1198 = vadd.f32 %v1101, %v1197
  %v1199 = vpop.f32.mrb[0].mxu0
  %1200 = vmatprep.mubr.bf16.mxu0 %v467
  %1201 = vmatmul.mubr.bf16.gmra.mrb[0].mxu0 %v466
  %v1202 = vpop.f32.mrb[0].mxu0
  %v1203 = vadd.f32 %v1106, %v1202
  %v1204 = vpop.f32.mrb[0].mxu0
  %v1205 = vpop.f32.mrb[0].mxu0
  %v1206 = vadd.f32 %v1109, %v1205
  %v1207 = vpop.f32.mrb[0].mxu0
  %1208 = vmatprep.mubr.bf16.mxu0 %v475
  %1209 = vmatmul.mubr.bf16.gmra.mrb[0].mxu0 %v474
  %v1210 = vpop.f32.mrb[0].mxu0
  %v1211 = vadd.f32 %v1114, %v1210
  %v1212 = vpop.f32.mrb[0].mxu0
  %v1213 = vpop.f32.mrb[0].mxu0
  %v1214 = vadd.f32 %v1117, %v1213
  %v1215 = vpop.f32.mrb[0].mxu0
  %1216 = vmatprep.mubr.bf16.mxu0 %v483
  %1217 = vmatmul.mubr.bf16.gmra.mrb[0].mxu0 %v482
  %v1218 = vpop.f32.mrb[0].mxu0
  %v1219 = vadd.f32 %v1122, %v1218
  %v1220 = vpop.f32.mrb[0].mxu0
  %v1221 = vpop.f32.mrb[0].mxu0
  %v1222 = vadd.f32 %v1125, %v1221
  %v1223 = vpop.f32.mrb[0].mxu0
  %1224 = vmatprep.mubr.bf16.mxu0 %v491
  %1225 = vmatmul.mubr.bf16.gmra.mrb[0].mxu0 %v490
  %v1226 = vpop.f32.mrb[0].mxu0
  %v1227 = vadd.f32 %v1130, %v1226
  %v1228 = vpop.f32.mrb[0].mxu0
  %v1229 = vpop.f32.mrb[0].mxu0
  %v1230 = vadd.f32 %v1133, %v1229
  %v1231 = vpop.f32.mrb[0].mxu0
  %1232 = vmatprep.mubr.bf16.mxu0 %v499
  %1233 = vmatmul.mubr.bf16.gmra.mrb[0].mxu0 %v498
  %v1234 = vpop.f32.mrb[0].mxu0
  %v1235 = vadd.f32 %v1138, %v1234
  %v1236 = vpop.f32.mrb[0].mxu0
  %v1237 = vpop.f32.mrb[0].mxu0
  %v1238 = vadd.f32 %v1141, %v1237
  %v1239 = vpop.f32.mrb[0].mxu0
  %1240 = vdwg.mxu0
  %1241 = vmatprep.subr.bf16.mxu0 0
  %1242 = vmatpush1.bf16.msra.mxu0 %v870
  %1243 = vmatprep.subr.bf16.mxu0 0
  %1244 = vmatpush1.bf16.msra.mxu0 %v871
  %1245 = vmatprep.subr.bf16.mxu0 0
  %1246 = vmatpush1.bf16.msra.mxu0 %v872
  %1247 = vmatprep.subr.bf16.mxu0 0
  %1248 = vmatpush1.bf16.msra.mxu0 %v873
  %1249 = vmatprep.subr.bf16.mxu0 0
  %1250 = vmatpush1.bf16.msra.mxu0 %v874
  %1251 = vmatprep.subr.bf16.mxu0 0
  %1252 = vmatpush1.bf16.msra.mxu0 %v875
  %1253 = vmatprep.subr.bf16.mxu0 0
  %1254 = vmatpush1.bf16.msra.mxu0 %v876
  %1255 = vmatprep.subr.bf16.mxu0 0
  %1256 = vmatpush1.bf16.msra.mxu0 %v877
  %1257 = vmatprep.subr.bf16.mxu0 0
  %1258 = vmatpush1.bf16.msra.mxu0 %v878
  %1259 = vmatprep.subr.bf16.mxu0 0
  %1260 = vmatpush1.bf16.msra.mxu0 %v879
  %1261 = vmatprep.subr.bf16.mxu0 0
  %1262 = vmatpush1.bf16.msra.mxu0 %v880
  %1263 = vmatprep.subr.bf16.mxu0 0
  %1264 = vmatpush1.bf16.msra.mxu0 %v881
  %1265 = vmatprep.subr.bf16.mxu0 0
  %1266 = vmatpush1.bf16.msra.mxu0 %v882
  %1267 = vmatprep.subr.bf16.mxu0 0
  %1268 = vmatpush1.bf16.msra.mxu0 %v883
  %1269 = vmatprep.subr.bf16.mxu0 0
  %1270 = vmatpush1.bf16.msra.mxu0 %v884
  %1271 = vmatprep.subr.bf16.mxu0 0
  %1272 = vmatpush1.bf16.msra.mxu0 %v885
  %1273 = vmatprep.mubr.bf16.mxu0 %v445
  %1274 = vmatmul.mubr.bf16.gmra.mrb[0].mxu0 %v444
  %v1275 = vpop.f32.mrb[0].mxu0
  %v1276 = vadd.f32 %v1179, %v1275
  %v1277 = vpop.f32.mrb[0].mxu0
  %v1278 = vpop.f32.mrb[0].mxu0
  %v1279 = vadd.f32 %v1182, %v1278
  %v1280 = vpop.f32.mrb[0].mxu0
  %1281 = vmatprep.mubr.bf16.mxu0 %v453
  %1282 = vmatmul.mubr.bf16.gmra.mrb[0].mxu0 %v452
  %v1283 = vpop.f32.mrb[0].mxu0
  %v1284 = vadd.f32 %v1187, %v1283
  %v1285 = vpop.f32.mrb[0].mxu0
  %v1286 = vpop.f32.mrb[0].mxu0
  %v1287 = vadd.f32 %v1190, %v1286
  %v1288 = vpop.f32.mrb[0].mxu0
  %1289 = vmatprep.mubr.bf16.mxu0 %v461
  %1290 = vmatmul.mubr.bf16.gmra.mrb[0].mxu0 %v460
  %v1291 = vpop.f32.mrb[0].mxu0
  %v1292 = vadd.f32 %v1195, %v1291
  %v1293 = vpop.f32.mrb[0].mxu0
  %v1294 = vpop.f32.mrb[0].mxu0
  %v1295 = vadd.f32 %v1198, %v1294
  %v1296 = vpop.f32.mrb[0].mxu0
  %1297 = vmatprep.mubr.bf16.mxu0 %v469
  %1298 = vmatmul.mubr.bf16.gmra.mrb[0].mxu0 %v468
  %v1299 = vpop.f32.mrb[0].mxu0
  %v1300 = vadd.f32 %v1203, %v1299
  %v1301 = vpop.f32.mrb[0].mxu0
  %v1302 = vpop.f32.mrb[0].mxu0
  %v1303 = vadd.f32 %v1206, %v1302
  %v1304 = vpop.f32.mrb[0].mxu0
  %1305 = vmatprep.mubr.bf16.mxu0 %v477
  %1306 = vmatmul.mubr.bf16.gmra.mrb[0].mxu0 %v476
  %v1307 = vpop.f32.mrb[0].mxu0
  %v1308 = vadd.f32 %v1211, %v1307
  %v1309 = vpop.f32.mrb[0].mxu0
  %v1310 = vpop.f32.mrb[0].mxu0
  %v1311 = vadd.f32 %v1214, %v1310
  %v1312 = vpop.f32.mrb[0].mxu0
  %1313 = vmatprep.mubr.bf16.mxu0 %v485
  %1314 = vmatmul.mubr.bf16.gmra.mrb[0].mxu0 %v484
  %v1315 = vpop.f32.mrb[0].mxu0
  %v1316 = vadd.f32 %v1219, %v1315
  %v1317 = vpop.f32.mrb[0].mxu0
  %v1318 = vpop.f32.mrb[0].mxu0
  %v1319 = vadd.f32 %v1222, %v1318
  %v1320 = vpop.f32.mrb[0].mxu0
  %1321 = vmatprep.mubr.bf16.mxu0 %v493
  %1322 = vmatmul.mubr.bf16.gmra.mrb[0].mxu0 %v492
  %v1323 = vpop.f32.mrb[0].mxu0
  %v1324 = vadd.f32 %v1227, %v1323
  %v1325 = vpop.f32.mrb[0].mxu0
  %v1326 = vpop.f32.mrb[0].mxu0
  %v1327 = vadd.f32 %v1230, %v1326
  %v1328 = vpop.f32.mrb[0].mxu0
  %1329 = vmatprep.mubr.bf16.mxu0 %v501
  %1330 = vmatmul.mubr.bf16.gmra.mrb[0].mxu0 %v500
  %v1331 = vpop.f32.mrb[0].mxu0
  %v1332 = vadd.f32 %v1235, %v1331
  %v1333 = vpop.f32.mrb[0].mxu0
  %v1334 = vpop.f32.mrb[0].mxu0
  %v1335 = vadd.f32 %v1238, %v1334
  %v1336 = vpop.f32.mrb[0].mxu0
  %1337 = vdwg.mxu0
  %v1338 = vadd.f32 %v38, %v1276
  %v1339 = vadd.f32 %v39, %v1279
  %v1340 = vadd.f32 %v40, %v1284
  %v1341 = vadd.f32 %v41, %v1287
  %v1342 = vadd.f32 %v42, %v1292
  %v1343 = vadd.f32 %v43, %v1295
  %v1344 = vadd.f32 %v44, %v1300
  %v1345 = vadd.f32 %v45, %v1303
  %v1346 = vadd.f32 %v46, %v1308
  %v1347 = vadd.f32 %v47, %v1311
  %v1348 = vadd.f32 %v48, %v1316
  %v1349 = vadd.f32 %v49, %v1319
  %v1350 = vadd.f32 %v50, %v1324
  %v1351 = vadd.f32 %v51, %v1327
  %v1352 = vadd.f32 %v52, %v1332
  %v1353 = vadd.f32 %v53, %v1335
  %1354 = vst [vmem:[#allocation2] sm:$0xff] %v1338
  %1355 = vst [vmem:[#allocation2 + $0x8] sm:$0xff] %v1339
  %1356 = vst [vmem:[#allocation2 + $0x10] sm:$0xff] %v1340
  %1357 = vst [vmem:[#allocation2 + $0x18] sm:$0xff] %v1341
  %1358 = vst [vmem:[#allocation2 + $0x20] sm:$0xff] %v1342
  %1359 = vst [vmem:[#allocation2 + $0x28] sm:$0xff] %v1343
  %1360 = vst [vmem:[#allocation2 + $0x30] sm:$0xff] %v1344
  %1361 = vst [vmem:[#allocation2 + $0x38] sm:$0xff] %v1345
  %1362 = vst [vmem:[#allocation2 + $0x40] sm:$0xff] %v1346
  %1363 = vst [vmem:[#allocation2 + $0x48] sm:$0xff] %v1347
  %1364 = vst [vmem:[#allocation2 + $0x50] sm:$0xff] %v1348
  %1365 = vst [vmem:[#allocation2 + $0x58] sm:$0xff] %v1349
  %1366 = vst [vmem:[#allocation2 + $0x60] sm:$0xff] %v1350
  %1367 = vst [vmem:[#allocation2 + $0x68] sm:$0xff] %v1351
  %1368 = vst [vmem:[#allocation2 + $0x70] sm:$0xff] %v1352
  %1369 = vst [vmem:[#allocation2 + $0x78] sm:$0xff] %v1353
  // Predicated region
  $region22: #{forward.6} parent=0 // pred_check
    %p1370 = pneg %p18
  $region23: #{forward.6} parent=0 // pred_check_branch
    %1372 = sbr.rel (%p1370) target = $region25
  $region24: #{forward.6} parent=0 // pred_region
    %v1373 = vld [vmem:[#allocation2] sm:$0xff]
    %v1374 = vld [vmem:[#allocation2 + $0x8] sm:$0xff]
    %v1375 = vld [vmem:[#allocation2 + $0x10] sm:$0xff]
    %v1376 = vld [vmem:[#allocation2 + $0x18] sm:$0xff]
    %v1377 = vld [vmem:[#allocation2 + $0x20] sm:$0xff]
    %v1378 = vld [vmem:[#allocation2 + $0x28] sm:$0xff]
    %v1379 = vld [vmem:[#allocation2 + $0x30] sm:$0xff]
    %v1380 = vld [vmem:[#allocation2 + $0x38] sm:$0xff]
    %v1381 = vld [vmem:[#allocation2 + $0x40] sm:$0xff]
    %v1382 = vld [vmem:[#allocation2 + $0x48] sm:$0xff]
    %v1383 = vld [vmem:[#allocation2 + $0x50] sm:$0xff]
    %v1384 = vld [vmem:[#allocation2 + $0x58] sm:$0xff]
    %v1385 = vld [vmem:[#allocation2 + $0x60] sm:$0xff]
    %v1386 = vld [vmem:[#allocation2 + $0x68] sm:$0xff]
    %v1387 = vld [vmem:[#allocation2 + $0x70] sm:$0xff]
    %v1388 = vld [vmem:[#allocation2 + $0x78] sm:$0xff]
    %v1389 = vld [vmem:[%s2] sm:$0x1]
    %v1391 = vlaneseq
    %v1392 = vshrl.u32 %v1391, 7
    %v1393 = vsub.s32 0, %v1392
    %v1394 = vrot.slane %v1389, %v1393
    %v1396 = vmul.f32 %v1373, %v1394
    %v1397 = vmul.f32 %v1374, %v1394
    %v1398 = vmul.f32 %v1375, %v1394
    %v1399 = vmul.f32 %v1376, %v1394
    %v1400 = vmul.f32 %v1377, %v1394
    %v1401 = vmul.f32 %v1378, %v1394
    %v1402 = vmul.f32 %v1379, %v1394
    %v1403 = vmul.f32 %v1380, %v1394
    %v1404 = vmul.f32 %v1381, %v1394
    %v1405 = vmul.f32 %v1382, %v1394
    %v1406 = vmul.f32 %v1383, %v1394
    %v1407 = vmul.f32 %v1384, %v1394
    %v1408 = vmul.f32 %v1385, %v1394
    %v1409 = vmul.f32 %v1386, %v1394
    %v1410 = vmul.f32 %v1387, %v1394
    %v1411 = vmul.f32 %v1388, %v1394
    %v1412 = vld [vmem:[%s3] sm:$0x1]
    %v1414 = vlaneseq
    %v1415 = vshrl.u32 %v1414, 7
    %v1416 = vsub.s32 0, %v1415
    %v1417 = vrot.slane %v1412, %v1416
    %v1419 = vadd.f32 %v1396, %v1417
    %v1420 = vadd.f32 %v1397, %v1417
    %v1421 = vadd.f32 %v1398, %v1417
    %v1422 = vadd.f32 %v1399, %v1417
    %v1423 = vadd.f32 %v1400, %v1417
    %v1424 = vadd.f32 %v1401, %v1417
    %v1425 = vadd.f32 %v1402, %v1417
    %v1426 = vadd.f32 %v1403, %v1417
    %v1427 = vadd.f32 %v1404, %v1417
    %v1428 = vadd.f32 %v1405, %v1417
    %v1429 = vadd.f32 %v1406, %v1417
    %v1430 = vadd.f32 %v1407, %v1417
    %v1431 = vadd.f32 %v1408, %v1417
    %v1432 = vadd.f32 %v1409, %v1417
    %v1433 = vadd.f32 %v1410, %v1417
    %v1434 = vadd.f32 %v1411, %v1417
    %vm1435 = vcmp.ge.f32.partialorder %v1419, 0.0
    %vm1436 = vcmp.ge.f32.partialorder %v1420, 0.0
    %vm1437 = vcmp.ge.f32.partialorder %v1421, 0.0
    %vm1438 = vcmp.ge.f32.partialorder %v1422, 0.0
    %vm1439 = vcmp.ge.f32.partialorder %v1423, 0.0
    %vm1440 = vcmp.ge.f32.partialorder %v1424, 0.0
    %vm1441 = vcmp.ge.f32.partialorder %v1425, 0.0
    %vm1442 = vcmp.ge.f32.partialorder %v1426, 0.0
    %vm1443 = vcmp.ge.f32.partialorder %v1427, 0.0
    %vm1444 = vcmp.ge.f32.partialorder %v1428, 0.0
    %vm1445 = vcmp.ge.f32.partialorder %v1429, 0.0
    %vm1446 = vcmp.ge.f32.partialorder %v1430, 0.0
    %vm1447 = vcmp.ge.f32.partialorder %v1431, 0.0
    %vm1448 = vcmp.ge.f32.partialorder %v1432, 0.0
    %vm1449 = vcmp.ge.f32.partialorder %v1433, 0.0
    %vm1450 = vcmp.ge.f32.partialorder %v1434, 0.0
    %v1451 = vmul.f32 %v1419, 0.2
    %v1452 = vmul.f32 %v1420, 0.2
    %v1453 = vmul.f32 %v1421, 0.2
    %v1454 = vmul.f32 %v1422, 0.2
    %v1455 = vmul.f32 %v1423, 0.2
    %v1456 = vmul.f32 %v1424, 0.2
    %v1457 = vmul.f32 %v1425, 0.2
    %v1458 = vmul.f32 %v1426, 0.2
    %v1459 = vmul.f32 %v1427, 0.2
    %v1460 = vmul.f32 %v1428, 0.2
    %v1461 = vmul.f32 %v1429, 0.2
    %v1462 = vmul.f32 %v1430, 0.2
    %v1463 = vmul.f32 %v1431, 0.2
    %v1464 = vmul.f32 %v1432, 0.2
    %v1465 = vmul.f32 %v1433, 0.2
    %v1466 = vmul.f32 %v1434, 0.2
    %v1467 = vsel %vm1435, %v1419, %v1451
    %v1468 = vsel %vm1436, %v1420, %v1452
    %v1469 = vsel %vm1437, %v1421, %v1453
    %v1470 = vsel %vm1438, %v1422, %v1454
    %v1471 = vsel %vm1439, %v1423, %v1455
    %v1472 = vsel %vm1440, %v1424, %v1456
    %v1473 = vsel %vm1441, %v1425, %v1457
    %v1474 = vsel %vm1442, %v1426, %v1458
    %v1475 = vsel %vm1443, %v1427, %v1459
    %v1476 = vsel %vm1444, %v1428, %v1460
    %v1477 = vsel %vm1445, %v1429, %v1461
    %v1478 = vsel %vm1446, %v1430, %v1462
    %v1479 = vsel %vm1447, %v1431, %v1463
    %v1480 = vsel %vm1448, %v1432, %v1464
    %v1481 = vsel %vm1449, %v1433, %v1465
    %v1482 = vsel %vm1450, %v1434, %v1466
    %1483 = vst [vmem:[%s4] sm:$0xff] %v1467
    %1484 = vst [vmem:[%s4 + $0x8] sm:$0xff] %v1468
    %1485 = vst [vmem:[%s4 + $0x10] sm:$0xff] %v1469
    %1486 = vst [vmem:[%s4 + $0x18] sm:$0xff] %v1470
    %1487 = vst [vmem:[%s4 + $0x20] sm:$0xff] %v1471
    %1488 = vst [vmem:[%s4 + $0x28] sm:$0xff] %v1472
    %1489 = vst [vmem:[%s4 + $0x30] sm:$0xff] %v1473
    %1490 = vst [vmem:[%s4 + $0x38] sm:$0xff] %v1474
    %1491 = vst [vmem:[%s4 + $0x40] sm:$0xff] %v1475
    %1492 = vst [vmem:[%s4 + $0x48] sm:$0xff] %v1476
    %1493 = vst [vmem:[%s4 + $0x50] sm:$0xff] %v1477
    %1494 = vst [vmem:[%s4 + $0x58] sm:$0xff] %v1478
    %1495 = vst [vmem:[%s4 + $0x60] sm:$0xff] %v1479
    %1496 = vst [vmem:[%s4 + $0x68] sm:$0xff] %v1480
    %1497 = vst [vmem:[%s4 + $0x70] sm:$0xff] %v1481
    %1498 = vst [vmem:[%s4 + $0x78] sm:$0xff] %v1482
  $region25: #{forward.6} parent=0 // pred_fallthru
    _
  // Predicated region
  $region26: #{forward.6} parent=0 // pred_check
    _
  $region27: #{forward.6} parent=0 // pred_check_branch
    %1500 = sbr.rel (0) target = $region29
  $region28: #{forward.6} parent=0 // pred_region
    _
  $region29: #{forward.6} parent=0 // pred_fallthru
    _
  // Predicated region
  $region30: #{forward.6} parent=0 // pred_check
    _
  $region31: #{forward.6} parent=0 // pred_check_branch
    %1502 = sbr.rel (0) target = $region33
  $region32: #{forward.6} parent=0 // pred_region
    _
  $region33: #{forward.6} parent=0 // pred_fallthru
    _

// kernel: forward.7
$region0: #{forward.7}
  #allocation0 [shape = 'u32[]', space=smem, size = 0x4, offset = 0x4, fixed_abs, tag = 'smem constant byte address 0x4 - core index']
  #allocation1 [shape = 'u32[144,128]{1,0:T(1,128)}', space=vmem, size = 0x12000, scoped, tag = 'internal scratch']
  #allocation2 [shape = 'f32[32,256]{1,0:T(8,128)}', space=vmem, size = 0x8000, scoped, tag = 'scratch operand']
  %s0 = inlined_call_operand.vmem [shape: bf16[32,2048], index: 0, kind: input, shape index: {}]
  %s1 = inlined_call_operand.vmem [shape: bf16[2048,256], index: 1, kind: input, shape index: {}]
  %s2 = inlined_call_operand.vmem [shape: f32[1,256], index: 2, kind: input, shape index: {}]
  %s3 = inlined_call_operand.vmem [shape: f32[1,256], index: 3, kind: input, shape index: {}]
  %s4 = inlined_call_operand.vmem [shape: f32[32,256], index: 4, kind: output, shape index: {}]
  %s5 = sld [smem:[#allocation0]]
  $region80: #{forward.7} parent=0
    _
  %s7 = ssub.s32 1, %s5
  %s8 = scalar_select 0, %s7, %s5
  $region1: #{forward.7} parent=0
    #allocation3 [shape = 'u8[131072]{0}', space=vmem, size = 0x20000, scoped, tag = 'input window, operand 0']
    loop: start=0, step=1, limit=4
    $region2: #{forward.7} parent=1 // loop_pre_header
      _
    $region3: #{forward.7} parent=1 // loop_header
      %s10 = sphi 0, %s14
      %p11 = scmp.ge.s32.totalorder %s10, 4
      %s17 = sphi 0, %s36
      %s18 = sphi 0, %s32
      %s19 = sphi 0, %s28
      %s20 = sphi 0, %s17
      %s21 = sphi 0, %s18
      %s22 = sphi 0, %s19
      %s23 = sphi 0, %s20
      %s24 = sphi 0, %s21
      %s25 = sphi 0, %s22
      %s41 = sphi 0, %s43
      %s44 = sphi 0, %s41
      %s45 = sphi 0, %s44
      %s61 = sphi 0, %s45
      %s69 = sphi 0, %s71
      %s72 = sphi 0, %s69
      %s73 = sphi 0, %s72
      %s89 = sphi 0, %s73
      %s95 = sphi 0, %s97
      %s98 = sphi 0, %s95
      %s99 = sphi 0, %s98
      %s115 = sphi 0, %s99
      %s121 = sphi 0, %s123
      %s124 = sphi 0, %s121
      %s125 = sphi 0, %s124
      %s141 = sphi 0, %s125
      %s149 = sphi 0, %s151
      %s152 = sphi 0, %s149
      %s153 = sphi 0, %s152
      %s169 = sphi 0, %s153
    $region4: #{forward.7} parent=1 // loop_header_branch
      %13 = sbr.rel (%p11) target = $region8
    $region5: #{forward.7} parent=1 // loop_body
      %s15 = ssub.s32 %s10, 1
      %s16 = ssub.s32 %s10, 2
      %s26 = sadd.s32 1, %s19
      %p27 = scmp.ge.s32.totalorder %s26, 2
      %s28 = scalar_select %p27, 0, %s26
      %s29 = sadd.s32 1, %s18
      %s30 = scalar_select %p27, %s29, %s18
      %p31 = scmp.ge.s32.totalorder %s30, 1
      %s32 = scalar_select %p31, 0, %s30
      %s33 = sadd.s32 1, %s17
      %s34 = scalar_select %p31, %s33, %s17
      %p35 = scmp.ge.s32.totalorder %s34, 1
      %s36 = scalar_select %p35, 0, %s34
      %s37 = ssub.s32 %s17, %s36
      %s38 = ssub.s32 %s19, %s28
      %s39 = sor.u32 %s37, %s38
      %p40 = scmp.eq.s32.totalorder %s39, 0
      %s42 = sadd.s32 %s41, 1
      %s43 = scalar_select %p40, %s41, %s42
      %p46 = pneg %p40
      %p47 = scmp.eq.s32.totalorder %s10, 1
      %p48 = por %p46, %p47
      %p49 = scmp.ne.s32.totalorder %s41, %s44
      %p50 = scmp.eq.s32.totalorder %s10, 0
      %p51 = por %p49, %p50
      %p52 = scmp.ne.s32.totalorder %s41, %s44
      %p53 = scmp.eq.s32.totalorder %s15, 1
      %p54 = por %p52, %p53
      %p55 = scmp.ne.s32.totalorder %s44, %s45
      %p56 = scmp.eq.s32.totalorder %s15, 0
      %p57 = por %p55, %p56
      %p58 = scmp.ne.s32.totalorder %s44, %s45
      %p59 = scmp.eq.s32.totalorder %s16, 1
      %p60 = por %p58, %p59
      %p62 = scmp.ne.s32.totalorder %s45, %s61
      %p63 = scmp.eq.s32.totalorder %s16, 0
      %p64 = por %p62, %p63
      %s65 = ssub.s32 %s19, %s28
      %s66 = ssub.s32 %s18, %s32
      %s67 = sor.u32 %s65, %s66
      %p68 = scmp.eq.s32.totalorder %s67, 0
      %s70 = sadd.s32 %s69, 1
      %s71 = scalar_select %p68, %s69, %s70
      %p74 = pneg %p68
      %p75 = scmp.eq.s32.totalorder %s10, 1
      %p76 = por %p74, %p75
      %p77 = scmp.ne.s32.totalorder %s69, %s72
      %p78 = scmp.eq.s32.totalorder %s10, 0
      %p79 = por %p77, %p78
      %p80 = scmp.ne.s32.totalorder %s69, %s72
      %p81 = scmp.eq.s32.totalorder %s15, 1
      %p82 = por %p80, %p81
      %p83 = scmp.ne.s32.totalorder %s72, %s73
      %p84 = scmp.eq.s32.totalorder %s15, 0
      %p85 = por %p83, %p84
      %p86 = scmp.ne.s32.totalorder %s72, %s73
      %p87 = scmp.eq.s32.totalorder %s16, 1
      %p88 = por %p86, %p87
      %p90 = scmp.ne.s32.totalorder %s73, %s89
      %p91 = scmp.eq.s32.totalorder %s16, 0
      %p92 = por %p90, %p91
      %s93 = ssub.s32 %s18, %s32
      %p94 = scmp.eq.s32.totalorder %s93, 0
      %s96 = sadd.s32 %s95, 1
      %s97 = scalar_select %p94, %s95, %s96
      %p100 = pneg %p94
      %p101 = scmp.eq.s32.totalorder %s10, 1
      %p102 = por %p100, %p101
      %p103 = scmp.ne.s32.totalorder %s95, %s98
      %p104 = scmp.eq.s32.totalorder %s10, 0
      %p105 = por %p103, %p104
      %p106 = scmp.ne.s32.totalorder %s95, %s98
      %p107 = scmp.eq.s32.totalorder %s15, 1
      %p108 = por %p106, %p107
      %p109 = scmp.ne.s32.totalorder %s98, %s99
      %p110 = scmp.eq.s32.totalorder %s15, 0
      %p111 = por %p109, %p110
      %p112 = scmp.ne.s32.totalorder %s98, %s99
      %p113 = scmp.eq.s32.totalorder %s16, 1
      %p114 = por %p112, %p113
      %p116 = scmp.ne.s32.totalorder %s99, %s115
      %p117 = scmp.eq.s32.totalorder %s16, 0
      %p118 = por %p116, %p117
      %s119 = ssub.s32 %s18, %s32
      %p120 = scmp.eq.s32.totalorder %s119, 0
      %s122 = sadd.s32 %s121, 1
      %s123 = scalar_select %p120, %s121, %s122
      %p126 = pneg %p120
      %p127 = scmp.eq.s32.totalorder %s10, 1
      %p128 = por %p126, %p127
      %p129 = scmp.ne.s32.totalorder %s121, %s124
      %p130 = scmp.eq.s32.totalorder %s10, 0
      %p131 = por %p129, %p130
      %p132 = scmp.ne.s32.totalorder %s121, %s124
      %p133 = scmp.eq.s32.totalorder %s15, 1
      %p134 = por %p132, %p133
      %p135 = scmp.ne.s32.totalorder %s124, %s125
      %p136 = scmp.eq.s32.totalorder %s15, 0
      %p137 = por %p135, %p136
      %p138 = scmp.ne.s32.totalorder %s124, %s125
      %p139 = scmp.eq.s32.totalorder %s16, 1
      %p140 = por %p138, %p139
      %p142 = scmp.ne.s32.totalorder %s125, %s141
      %p143 = scmp.eq.s32.totalorder %s16, 0
      %p144 = por %p142, %p143
      %s145 = ssub.s32 %s17, %s36
      %s146 = ssub.s32 %s18, %s32
      %s147 = sor.u32 %s145, %s146
      %p148 = scmp.eq.s32.totalorder %s147, 0
      %s150 = sadd.s32 %s149, 1
      %s151 = scalar_select %p148, %s149, %s150
      %p154 = pneg %p148
      %p155 = scmp.eq.s32.totalorder %s10, 1
      %p156 = por %p154, %p155
      %p157 = scmp.ne.s32.totalorder %s149, %s152
      %p158 = scmp.eq.s32.totalorder %s10, 0
      %p159 = por %p157, %p158
      %p160 = scmp.ne.s32.totalorder %s149, %s152
      %p161 = scmp.eq.s32.totalorder %s15, 1
      %p162 = por %p160, %p161
      %p163 = scmp.ne.s32.totalorder %s152, %s153
      %p164 = scmp.eq.s32.totalorder %s15, 0
      %p165 = por %p163, %p164
      %p166 = scmp.ne.s32.totalorder %s152, %s153
      %p167 = scmp.eq.s32.totalorder %s16, 1
      %p168 = por %p166, %p167
      %p170 = scmp.ne.s32.totalorder %s153, %s169
      %p171 = scmp.eq.s32.totalorder %s16, 0
      %p172 = por %p170, %p171
      %p173 = scmp.le.s32.totalorder 1, %s10
      %p174 = scmp.lt.s32.totalorder %s10, 3
      %p175 = pnand %p173, %p174
      %p176 = pneg %p175
      // Predicated region
      $region9: #{forward.7} parent=5 // pred_check
        _
      $region10: #{forward.7} parent=5 // pred_check_branch
        %178 = sbr.rel (%p175) target = $region12
      $region11: #{forward.7} parent=5 // pred_region
        %s179 = ssub.s32 %s10, 1
        // Predicated region
        $region13: #{forward.7} parent=11 // pred_check
          %p180 = pneg %p111
        $region14: #{forward.7} parent=11 // pred_check_branch
          %182 = sbr.rel (%p180) target = $region16
        $region15: #{forward.7} parent=11 // pred_region
          %s183 = smul.u32 2, %s21
          %p184 = scmp.lt.s32.totalorder %s183, 1
          %s185 = scalar_select %p184, %s183, 1
          %s186 = scalar_lea.vmem %s2, %s185
          %s187 = smul.u32 2, %s21
        $region16: #{forward.7} parent=11 // pred_fallthru
          _
        // Predicated region
        $region17: #{forward.7} parent=11 // pred_check
          %p188 = pneg %p137
        $region18: #{forward.7} parent=11 // pred_check_branch
          %190 = sbr.rel (%p188) target = $region20
        $region19: #{forward.7} parent=11 // pred_region
          %s191 = smul.u32 2, %s21
          %p192 = scmp.lt.s32.totalorder %s191, 1
          %s193 = scalar_select %p192, %s191, 1
          %s194 = scalar_lea.vmem %s3, %s193
          %s195 = smul.u32 2, %s21
        $region20: #{forward.7} parent=11 // pred_fallthru
          _
      $region12: #{forward.7} parent=5 // pred_fallthru
        _
      %p196 = scmp.lt.s32.totalorder %s10, 2
      // Predicated region
      $region21: #{forward.7} parent=5 // pred_check
        %p197 = pneg %p196
      $region22: #{forward.7} parent=5 // pred_check_branch
        %199 = sbr.rel (%p197) target = $region24
      $region23: #{forward.7} parent=5 // pred_region
        // Predicated region
        $region25: #{forward.7} parent=23 // pred_check
          %p200 = pneg %p51
        $region26: #{forward.7} parent=23 // pred_check_branch
          %202 = sbr.rel (%p200) target = $region28
        $region27: #{forward.7} parent=23 // pred_region
          %s203 = sand.u32 %s41, 1
          %s204 = sand.u32 %s41, 1
          %s205 = smul.addr %s204, 128
          %s206 = scalar_lea.vmem [#allocation3], %s205
          %s207 = smul.u32 4, %s17
          %s208 = smul.u32 8, %s19
          %s209 = smul.addr %s207, 16
          %s210 = sadd.s32 %s208, %s209
          %s211 = smul.addr %s210, 4
          %s212 = scalar_lea.vmem %s0, %s211
          // Predicated region
          $region29: #{forward.7} parent=27 // pred_check
            _
          $region30: #{forward.7} parent=27 // pred_check_branch
            %214 = sbr.rel (0) target = $region32
          $region31: #{forward.7} parent=27 // pred_region
            // Predicated region
            $region33: #{forward.7} parent=31 // pred_check
              _
            $region34: #{forward.7} parent=31 // pred_check_branch
              %216 = sbr.rel (0) target = $region36
            $region35: #{forward.7} parent=31 // pred_region
              loop: start=0, step=1, limit=1
              $region37: #{forward.7} parent=35 // loop_pre_header
                _
              $region38: #{forward.7} parent=35 // loop_header
                %s218 = sphi 0, %s222
                %p219 = scmp.ge.s32.totalorder %s218, 1
                %s223 = sphi %s212, %s212
                %s224 = sphi %s206, %s206
              $region39: #{forward.7} parent=35 // loop_header_branch
                %221 = sbr.rel (%p219) target = $region43
              $region40: #{forward.7} parent=35 // loop_body
                %v225 = vld [vmem:[%s223] sm:$0xff]
                %226 = vst [vmem:[%s224] sm:$0xff] %v225
                %v227 = vld [vmem:[%s223 + $0x8] sm:$0xff]
                %228 = vst [vmem:[%s224 + $0x8] sm:$0xff] %v227
                %v229 = vld [vmem:[%s223 + $0x10] sm:$0xff]
                %230 = vst [vmem:[%s224 + $0x10] sm:$0xff] %v229
                %v231 = vld [vmem:[%s223 + $0x18] sm:$0xff]
                %232 = vst [vmem:[%s224 + $0x18] sm:$0xff] %v231
                %v233 = vld [vmem:[%s223 + $0x40] sm:$0xff]
                %234 = vst [vmem:[%s224 + $0x20] sm:$0xff] %v233
                %v235 = vld [vmem:[%s223 + $0x48] sm:$0xff]
                %236 = vst [vmem:[%s224 + $0x28] sm:$0xff] %v235
                %v237 = vld [vmem:[%s223 + $0x50] sm:$0xff]
                %238 = vst [vmem:[%s224 + $0x30] sm:$0xff] %v237
                %v239 = vld [vmem:[%s223 + $0x58] sm:$0xff]
                %240 = vst [vmem:[%s224 + $0x38] sm:$0xff] %v239
                %v241 = vld [vmem:[%s223 + $0x80] sm:$0xff]
                %242 = vst [vmem:[%s224 + $0x40] sm:$0xff] %v241
                %v243 = vld [vmem:[%s223 + $0x88] sm:$0xff]
                %244 = vst [vmem:[%s224 + $0x48] sm:$0xff] %v243
                %v245 = vld [vmem:[%s223 + $0x90] sm:$0xff]
                %246 = vst [vmem:[%s224 + $0x50] sm:$0xff] %v245
                %v247 = vld [vmem:[%s223 + $0x98] sm:$0xff]
                %248 = vst [vmem:[%s224 + $0x58] sm:$0xff] %v247
                %v249 = vld [vmem:[%s223 + $0xc0] sm:$0xff]
                %250 = vst [vmem:[%s224 + $0x60] sm:$0xff] %v249
                %v251 = vld [vmem:[%s223 + $0xc8] sm:$0xff]
                %252 = vst [vmem:[%s224 + $0x68] sm:$0xff] %v251
                %v253 = vld [vmem:[%s223 + $0xd0] sm:$0xff]
                %254 = vst [vmem:[%s224 + $0x70] sm:$0xff] %v253
                %v255 = vld [vmem:[%s223 + $0xd8] sm:$0xff]
                %256 = vst [vmem:[%s224 + $0x78] sm:$0xff] %v255
              $region41: #{forward.7} parent=35 // loop_footer
                %s222 = sadd.s32 1, %s218
              $region42: #{forward.7} parent=35 // loop_footer_branch
                %217 = sbr.rel target = $region38
              $region43: #{forward.7} parent=35 // loop_exit
                _
            $region36: #{forward.7} parent=31 // pred_fallthru
              _
            // Predicated region
            $region44: #{forward.7} parent=31 // pred_check
              _
            $region45: #{forward.7} parent=31 // pred_check_branch
              %258 = sbr.rel target = $region47
            $region46: #{forward.7} parent=31 // pred_region
              _
            $region47: #{forward.7} parent=31 // pred_fallthru
              _
          $region32: #{forward.7} parent=27 // pred_fallthru
            _
          %259 = vnop
        $region28: #{forward.7} parent=23 // pred_fallthru
          _
        // Predicated region
        $region48: #{forward.7} parent=23 // pred_check
          %p260 = pneg %p79
        $region49: #{forward.7} parent=23 // pred_check_branch
          %262 = sbr.rel (%p260) target = $region51
        $region50: #{forward.7} parent=23 // pred_region
          %s263 = smul.u32 128, %s19
          %s264 = smul.u32 2, %s18
          %p265 = scmp.lt.s32.totalorder %s263, 255
          %s266 = scalar_select %p265, %s263, 255
          %p267 = scmp.lt.s32.totalorder %s264, 1
          %s268 = scalar_select %p267, %s264, 1
          %s269 = smul.addr %s266, 2
          %s270 = sadd.s32 %s268, %s269
          %s271 = smul.addr %s270, 4
          %s272 = scalar_lea.vmem %s1, %s271
          %s273 = smul.u32 128, %s19
          %s274 = smul.u32 2, %s18
        $region51: #{forward.7} parent=23 // pred_fallthru
          _
      $region24: #{forward.7} parent=5 // pred_fallthru
        _
      %p275 = scmp.le.s32.totalorder 1, %s10
      %p276 = scmp.lt.s32.totalorder %s10, 3
      %p277 = pnand %p275, %p276
      %p278 = pneg %p277
      // Predicated region
      $region52: #{forward.7} parent=5 // pred_check
        _
      $region53: #{forward.7} parent=5 // pred_check_branch
        %280 = sbr.rel (%p277) target = $region55
      $region54: #{forward.7} parent=5 // pred_region
        %s281 = ssub.s32 %s10, 1
        %s282 = sand.u32 %s44, 1
        %s283 = sand.u32 %s44, 1
        %s284 = smul.addr %s283, 128
        %s285 = scalar_lea.vmem [#allocation3], %s284
        // Predicated region
        $region56: #{forward.7} parent=54 // pred_check
          %p286 = pneg %p57
        $region57: #{forward.7} parent=54 // pred_check_branch
          %288 = sbr.rel (%p286) target = $region59
        $region58: #{forward.7} parent=54 // pred_region
          _
        $region59: #{forward.7} parent=54 // pred_fallthru
          _
        %s289 = sand.u32 %s44, 1
        %s290 = sand.u32 %s44, 1
        %s291 = smul.addr %s290, 128
        %s292 = scalar_lea.vmem [#allocation3], %s291
        %p293 = pneg %p57
        %p294 = pneg %p54
        %s295 = smul.u32 128, %s22
        %s296 = smul.u32 2, %s21
        %p297 = scmp.lt.s32.totalorder %s295, 255
        %s298 = scalar_select %p297, %s295, 255
        %p299 = scmp.lt.s32.totalorder %s296, 1
        %s300 = scalar_select %p299, %s296, 1
        %s301 = smul.addr %s298, 2
        %s302 = sadd.s32 %s300, %s301
        %s303 = smul.addr %s302, 4
        %s304 = scalar_lea.vmem %s1, %s303
        %p305 = pneg %p85
        %p306 = pneg %p82
        %s307 = smul.u32 2, %s21
        %p308 = scmp.lt.s32.totalorder %s307, 1
        %s309 = scalar_select %p308, %s307, 1
        %s310 = scalar_lea.vmem %s2, %s309
        %p311 = pneg %p111
        %p312 = pneg %p108
        %s313 = smul.u32 2, %s21
        %p314 = scmp.lt.s32.totalorder %s313, 1
        %s315 = scalar_select %p314, %s313, 1
        %s316 = scalar_lea.vmem %s3, %s315
        %p317 = pneg %p137
        %p318 = pneg %p134
        %p319 = pneg %p165
        %p320 = pneg %p162
        %s321 = smul.u32 4, %s20
        %s322 = smul.u32 2, %s21
        %p323 = scmp.lt.s32.totalorder %s321, 3
        %s324 = scalar_select %p323, %s321, 3
        %p325 = scmp.lt.s32.totalorder %s322, 1
        %s326 = scalar_select %p325, %s322, 1
        %s327 = smul.addr %s324, 2
        %s328 = sadd.s32 %s326, %s327
        %s329 = smul.addr %s328, 8
        %s330 = scalar_lea.vmem %s4, %s329
        %s331 = smul.u32 4, %s20
        %s332 = smul.u32 8, %s22
        %s333 = smul.u32 128, %s22
        %s334 = smul.u32 2, %s21
        %p335 = scmp.lt.s32.totalorder %s333, 255
        %s336 = scalar_select %p335, %s333, 255
        %p337 = scmp.lt.s32.totalorder %s334, 1
        %s338 = scalar_select %p337, %s334, 1
        %s339 = smul.addr %s336, 2
        %s340 = sadd.s32 %s338, %s339
        %s341 = smul.addr %s340, 4
        %s342 = scalar_lea.vmem %s1, %s341
        %s343 = smul.u32 128, %s22
        %s344 = smul.u32 2, %s21
        %s345 = smul.u32 2, %s21
        %p346 = scmp.lt.s32.totalorder %s345, 1
        %s347 = scalar_select %p346, %s345, 1
        %s348 = scalar_lea.vmem %s2, %s347
        %s349 = smul.u32 2, %s21
        %s350 = smul.u32 2, %s21
        %p351 = scmp.lt.s32.totalorder %s350, 1
        %s352 = scalar_select %p351, %s350, 1
        %s353 = scalar_lea.vmem %s3, %s352
        %s354 = smul.u32 2, %s21
        %s355 = smul.u32 4, %s20
        %s356 = smul.u32 2, %s21
        %p357 = scmp.lt.s32.totalorder %s355, 3
        %s358 = scalar_select %p357, %s355, 3
        %p359 = scmp.lt.s32.totalorder %s356, 1
        %s360 = scalar_select %p359, %s356, 1
        %s361 = smul.addr %s358, 2
        %s362 = sadd.s32 %s360, %s361
        %s363 = smul.addr %s362, 8
        %s364 = scalar_lea.vmem %s4, %s363
        %s365 = smul.u32 4, %s20
        %s366 = smul.u32 2, %s21
        %p367 = scmp.eq.s32.totalorder %s22, 0
        // Predicated region
        $region60: #{forward.7} parent=54 // pred_check
          %p368 = pneg %p367
        $region61: #{forward.7} parent=54 // pred_check_branch
          %370 = sbr.rel (%p368) target = $region63
        $region62: #{forward.7} parent=54 // pred_region
          %371 = vst [vmem:[#allocation2] sm:$0xff] 0.0
          %372 = vst [vmem:[#allocation2 + $0x8] sm:$0xff] 0.0
          %373 = vst [vmem:[#allocation2 + $0x10] sm:$0xff] 0.0
          %374 = vst [vmem:[#allocation2 + $0x18] sm:$0xff] 0.0
          %375 = vst [vmem:[#allocation2 + $0x20] sm:$0xff] 0.0
          %376 = vst [vmem:[#allocation2 + $0x28] sm:$0xff] 0.0
          %377 = vst [vmem:[#allocation2 + $0x30] sm:$0xff] 0.0
          %378 = vst [vmem:[#allocation2 + $0x38] sm:$0xff] 0.0
        $region63: #{forward.7} parent=54 // pred_fallthru
          _
        %v379 = vld [vmem:[#allocation2] sm:$0xff]
        %v380 = vld [vmem:[#allocation2 + $0x8] sm:$0xff]
        %v381 = vld [vmem:[#allocation2 + $0x10] sm:$0xff]
        %v382 = vld [vmem:[#allocation2 + $0x18] sm:$0xff]
        %v383 = vld [vmem:[#allocation2 + $0x20] sm:$0xff]
        %v384 = vld [vmem:[#allocation2 + $0x28] sm:$0xff]
        %v385 = vld [vmem:[#allocation2 + $0x30] sm:$0xff]
        %v386 = vld [vmem:[#allocation2 + $0x38] sm:$0xff]
        %v387 = vld [vmem:[%s285] sm:$0xff]
        %v388 = vld [vmem:[%s285 + $0x8] sm:$0xff]
        %v389 = vld [vmem:[%s285 + $0x10] sm:$0xff]
        %v390 = vld [vmem:[%s285 + $0x18] sm:$0xff]
        %v391 = vld [vmem:[%s285 + $0x20] sm:$0xff]
        %v392 = vld [vmem:[%s285 + $0x28] sm:$0xff]
        %v393 = vld [vmem:[%s285 + $0x30] sm:$0xff]
        %v394 = vld [vmem:[%s285 + $0x38] sm:$0xff]
        %v395 = vld [vmem:[%s285 + $0x40] sm:$0xff]
        %v396 = vld [vmem:[%s285 + $0x48] sm:$0xff]
        %v397 = vld [vmem:[%s285 + $0x50] sm:$0xff]
        %v398 = vld [vmem:[%s285 + $0x58] sm:$0xff]
        %v399 = vld [vmem:[%s285 + $0x60] sm:$0xff]
        %v400 = vld [vmem:[%s285 + $0x68] sm:$0xff]
        %v401 = vld [vmem:[%s285 + $0x70] sm:$0xff]
        %v402 = vld [vmem:[%s285 + $0x78] sm:$0xff]
        %v403 = vld [vmem:[%s342] sm:$0xff]
        %v404 = vld [vmem:[%s342 + $0x8] sm:$0xff]
        %v405 = vld [vmem:[%s342 + $0x10] sm:$0xff]
        %v406 = vld [vmem:[%s342 + $0x18] sm:$0xff]
        %v407 = vld [vmem:[%s342 + $0x20] sm:$0xff]
        %v408 = vld [vmem:[%s342 + $0x28] sm:$0xff]
        %v409 = vld [vmem:[%s342 + $0x30] sm:$0xff]
        %v410 = vld [vmem:[%s342 + $0x38] sm:$0xff]
        %v411 = vld [vmem:[%s342 + $0x40] sm:$0xff]
        %v412 = vld [vmem:[%s342 + $0x48] sm:$0xff]
        %v413 = vld [vmem:[%s342 + $0x50] sm:$0xff]
        %v414 = vld [vmem:[%s342 + $0x58] sm:$0xff]
        %v415 = vld [vmem:[%s342 + $0x60] sm:$0xff]
        %v416 = vld [vmem:[%s342 + $0x68] sm:$0xff]
        %v417 = vld [vmem:[%s342 + $0x70] sm:$0xff]
        %v418 = vld [vmem:[%s342 + $0x78] sm:$0xff]
        %v419 = vld [vmem:[%s342 + $0x80] sm:$0xff]
        %v420 = vld [vmem:[%s342 + $0x88] sm:$0xff]
        %v421 = vld [vmem:[%s342 + $0x90] sm:$0xff]
        %v422 = vld [vmem:[%s342 + $0x98] sm:$0xff]
        %v423 = vld [vmem:[%s342 + $0xa0] sm:$0xff]
        %v424 = vld [vmem:[%s342 + $0xa8] sm:$0xff]
        %v425 = vld [vmem:[%s342 + $0xb0] sm:$0xff]
        %v426 = vld [vmem:[%s342 + $0xb8] sm:$0xff]
        %v427 = vld [vmem:[%s342 + $0xc0] sm:$0xff]
        %v428 = vld [vmem:[%s342 + $0xc8] sm:$0xff]
        %v429 = vld [vmem:[%s342 + $0xd0] sm:$0xff]
        %v430 = vld [vmem:[%s342 + $0xd8] sm:$0xff]
        %v431 = vld [vmem:[%s342 + $0xe0] sm:$0xff]
        %v432 = vld [vmem:[%s342 + $0xe8] sm:$0xff]
        %v433 = vld [vmem:[%s342 + $0xf0] sm:$0xff]
        %v434 = vld [vmem:[%s342 + $0xf8] sm:$0xff]
        %v435 = vld [vmem:[%s342 + $0x100] sm:$0xff]
        %v436 = vld [vmem:[%s342 + $0x108] sm:$0xff]
        %v437 = vld [vmem:[%s342 + $0x110] sm:$0xff]
        %v438 = vld [vmem:[%s342 + $0x118] sm:$0xff]
        %v439 = vld [vmem:[%s342 + $0x120] sm:$0xff]
        %v440 = vld [vmem:[%s342 + $0x128] sm:$0xff]
        %v441 = vld [vmem:[%s342 + $0x130] sm:$0xff]
        %v442 = vld [vmem:[%s342 + $0x138] sm:$0xff]
        %v443 = vld [vmem:[%s342 + $0x140] sm:$0xff]
        %v444 = vld [vmem:[%s342 + $0x148] sm:$0xff]
        %v445 = vld [vmem:[%s342 + $0x150] sm:$0xff]
        %v446 = vld [vmem:[%s342 + $0x158] sm:$0xff]
        %v447 = vld [vmem:[%s342 + $0x160] sm:$0xff]
        %v448 = vld [vmem:[%s342 + $0x168] sm:$0xff]
        %v449 = vld [vmem:[%s342 + $0x170] sm:$0xff]
        %v450 = vld [vmem:[%s342 + $0x178] sm:$0xff]
        %v451 = vld [vmem:[%s342 + $0x180] sm:$0xff]
        %v452 = vld [vmem:[%s342 + $0x188] sm:$0xff]
        %v453 = vld [vmem:[%s342 + $0x190] sm:$0xff]
        %v454 = vld [vmem:[%s342 + $0x198] sm:$0xff]
        %v455 = vld [vmem:[%s342 + $0x1a0] sm:$0xff]
        %v456 = vld [vmem:[%s342 + $0x1a8] sm:$0xff]
        %v457 = vld [vmem:[%s342 + $0x1b0] sm:$0xff]
        %v458 = vld [vmem:[%s342 + $0x1b8] sm:$0xff]
        %v459 = vld [vmem:[%s342 + $0x1c0] sm:$0xff]
        %v460 = vld [vmem:[%s342 + $0x1c8] sm:$0xff]
        %v461 = vld [vmem:[%s342 + $0x1d0] sm:$0xff]
        %v462 = vld [vmem:[%s342 + $0x1d8] sm:$0xff]
        %v463 = vld [vmem:[%s342 + $0x1e0] sm:$0xff]
        %v464 = vld [vmem:[%s342 + $0x1e8] sm:$0xff]
        %v465 = vld [vmem:[%s342 + $0x1f0] sm:$0xff]
        %v466 = vld [vmem:[%s342 + $0x1f8] sm:$0xff]
        %v467 = vld [vmem:[%s342 + $0x200] sm:$0xff]
        %v468 = vld [vmem:[%s342 + $0x208] sm:$0xff]
        %v469 = vld [vmem:[%s342 + $0x210] sm:$0xff]
        %v470 = vld [vmem:[%s342 + $0x218] sm:$0xff]
        %v471 = vld [vmem:[%s342 + $0x220] sm:$0xff]
        %v472 = vld [vmem:[%s342 + $0x228] sm:$0xff]
        %v473 = vld [vmem:[%s342 + $0x230] sm:$0xff]
        %v474 = vld [vmem:[%s342 + $0x238] sm:$0xff]
        %v475 = vld [vmem:[%s342 + $0x240] sm:$0xff]
        %v476 = vld [vmem:[%s342 + $0x248] sm:$0xff]
        %v477 = vld [vmem:[%s342 + $0x250] sm:$0xff]
        %v478 = vld [vmem:[%s342 + $0x258] sm:$0xff]
        %v479 = vld [vmem:[%s342 + $0x260] sm:$0xff]
        %v480 = vld [vmem:[%s342 + $0x268] sm:$0xff]
        %v481 = vld [vmem:[%s342 + $0x270] sm:$0xff]
        %v482 = vld [vmem:[%s342 + $0x278] sm:$0xff]
        %v483 = vld [vmem:[%s342 + $0x280] sm:$0xff]
        %v484 = vld [vmem:[%s342 + $0x288] sm:$0xff]
        %v485 = vld [vmem:[%s342 + $0x290] sm:$0xff]
        %v486 = vld [vmem:[%s342 + $0x298] sm:$0xff]
        %v487 = vld [vmem:[%s342 + $0x2a0] sm:$0xff]
        %v488 = vld [vmem:[%s342 + $0x2a8] sm:$0xff]
        %v489 = vld [vmem:[%s342 + $0x2b0] sm:$0xff]
        %v490 = vld [vmem:[%s342 + $0x2b8] sm:$0xff]
        %v491 = vld [vmem:[%s342 + $0x2c0] sm:$0xff]
        %v492 = vld [vmem:[%s342 + $0x2c8] sm:$0xff]
        %v493 = vld [vmem:[%s342 + $0x2d0] sm:$0xff]
        %v494 = vld [vmem:[%s342 + $0x2d8] sm:$0xff]
        %v495 = vld [vmem:[%s342 + $0x2e0] sm:$0xff]
        %v496 = vld [vmem:[%s342 + $0x2e8] sm:$0xff]
        %v497 = vld [vmem:[%s342 + $0x2f0] sm:$0xff]
        %v498 = vld [vmem:[%s342 + $0x2f8] sm:$0xff]
        %v499 = vld [vmem:[%s342 + $0x300] sm:$0xff]
        %v500 = vld [vmem:[%s342 + $0x308] sm:$0xff]
        %v501 = vld [vmem:[%s342 + $0x310] sm:$0xff]
        %v502 = vld [vmem:[%s342 + $0x318] sm:$0xff]
        %v503 = vld [vmem:[%s342 + $0x320] sm:$0xff]
        %v504 = vld [vmem:[%s342 + $0x328] sm:$0xff]
        %v505 = vld [vmem:[%s342 + $0x330] sm:$0xff]
        %v506 = vld [vmem:[%s342 + $0x338] sm:$0xff]
        %v507 = vld [vmem:[%s342 + $0x340] sm:$0xff]
        %v508 = vld [vmem:[%s342 + $0x348] sm:$0xff]
        %v509 = vld [vmem:[%s342 + $0x350] sm:$0xff]
        %v510 = vld [vmem:[%s342 + $0x358] sm:$0xff]
        %v511 = vld [vmem:[%s342 + $0x360] sm:$0xff]
        %v512 = vld [vmem:[%s342 + $0x368] sm:$0xff]
        %v513 = vld [vmem:[%s342 + $0x370] sm:$0xff]
        %v514 = vld [vmem:[%s342 + $0x378] sm:$0xff]
        %v515 = vld [vmem:[%s342 + $0x380] sm:$0xff]
        %v516 = vld [vmem:[%s342 + $0x388] sm:$0xff]
        %v517 = vld [vmem:[%s342 + $0x390] sm:$0xff]
        %v518 = vld [vmem:[%s342 + $0x398] sm:$0xff]
        %v519 = vld [vmem:[%s342 + $0x3a0] sm:$0xff]
        %v520 = vld [vmem:[%s342 + $0x3a8] sm:$0xff]
        %v521 = vld [vmem:[%s342 + $0x3b0] sm:$0xff]
        %v522 = vld [vmem:[%s342 + $0x3b8] sm:$0xff]
        %v523 = vld [vmem:[%s342 + $0x3c0] sm:$0xff]
        %v524 = vld [vmem:[%s342 + $0x3c8] sm:$0xff]
        %v525 = vld [vmem:[%s342 + $0x3d0] sm:$0xff]
        %v526 = vld [vmem:[%s342 + $0x3d8] sm:$0xff]
        %v527 = vld [vmem:[%s342 + $0x3e0] sm:$0xff]
        %v528 = vld [vmem:[%s342 + $0x3e8] sm:$0xff]
        %v529 = vld [vmem:[%s342 + $0x3f0] sm:$0xff]
        %v530 = vld [vmem:[%s342 + $0x3f8] sm:$0xff]
        %v547 = vunpack.c.l.b16 %v387
        %v548 = vunpack.c.h.b16 %v387
        %v549 = vunpack.c.l.b16 %v388
        %v550 = vunpack.c.h.b16 %v388
        %v551 = vunpack.c.l.b16 %v389
        %v552 = vunpack.c.h.b16 %v389
        %v553 = vunpack.c.l.b16 %v390
        %v554 = vunpack.c.h.b16 %v390
        %v555 = vunpack.c.l.b16 %v391
        %v556 = vunpack.c.h.b16 %v391
        %v557 = vunpack.c.l.b16 %v392
        %v558 = vunpack.c.h.b16 %v392
        %v559 = vunpack.c.l.b16 %v393
        %v560 = vunpack.c.h.b16 %v393
        %v561 = vunpack.c.l.b16 %v394
        %v562 = vunpack.c.h.b16 %v394
        %v563 = vunpack.c.l.b16 %v395
        %v564 = vunpack.c.h.b16 %v395
        %v565 = vunpack.c.l.b16 %v396
        %v566 = vunpack.c.h.b16 %v396
        %v567 = vunpack.c.l.b16 %v397
        %v568 = vunpack.c.h.b16 %v397
        %v569 = vunpack.c.l.b16 %v398
        %v570 = vunpack.c.h.b16 %v398
        %v571 = vunpack.c.l.b16 %v399
        %v572 = vunpack.c.h.b16 %v399
        %v573 = vunpack.c.l.b16 %v400
        %v574 = vunpack.c.h.b16 %v400
        %v575 = vunpack.c.l.b16 %v401
        %v576 = vunpack.c.h.b16 %v401
        %v577 = vunpack.c.l.b16 %v402
        %v578 = vunpack.c.h.b16 %v402
        %v579 = vpack.c.b16 %v555, %v547
        %v580 = vpack.c.b16 %v556, %v548
        %v581 = vpack.c.b16 %v557, %v549
        %v582 = vpack.c.b16 %v558, %v550
        %v583 = vpack.c.b16 %v559, %v551
        %v584 = vpack.c.b16 %v560, %v552
        %v585 = vpack.c.b16 %v561, %v553
        %v586 = vpack.c.b16 %v562, %v554
        %v587 = vpack.c.b16 %v571, %v563
        %v588 = vpack.c.b16 %v572, %v564
        %v589 = vpack.c.b16 %v573, %v565
        %v590 = vpack.c.b16 %v574, %v566
        %v591 = vpack.c.b16 %v575, %v567
        %v592 = vpack.c.b16 %v576, %v568
        %v593 = vpack.c.b16 %v577, %v569
        %v594 = vpack.c.b16 %v578, %v570
        %v739 = vunpack.c.l.b16 %v403
        %v740 = vunpack.c.h.b16 %v403
        %v741 = vunpack.c.l.b16 %v404
        %v742 = vunpack.c.h.b16 %v404
        %v743 = vunpack.c.l.b16 %v405
        %v744 = vunpack.c.h.b16 %v405
        %v745 = vunpack.c.l.b16 %v406
        %v746 = vunpack.c.h.b16 %v406
        %v747 = vunpack.c.l.b16 %v407
        %v748 = vunpack.c.h.b16 %v407
        %v749 = vunpack.c.l.b16 %v408
        %v750 = vunpack.c.h.b16 %v408
        %v751 = vunpack.c.l.b16 %v409
        %v752 = vunpack.c.h.b16 %v409
        %v753 = vunpack.c.l.b16 %v410
        %v754 = vunpack.c.h.b16 %v410
        %v755 = vunpack.c.l.b16 %v411
        %v756 = vunpack.c.h.b16 %v411
        %v757 = vunpack.c.l.b16 %v412
        %v758 = vunpack.c.h.b16 %v412
        %v759 = vunpack.c.l.b16 %v413
        %v760 = vunpack.c.h.b16 %v413
        %v761 = vunpack.c.l.b16 %v414
        %v762 = vunpack.c.h.b16 %v414
        %v763 = vunpack.c.l.b16 %v415
        %v764 = vunpack.c.h.b16 %v415
        %v765 = vunpack.c.l.b16 %v416
        %v766 = vunpack.c.h.b16 %v416
        %v767 = vunpack.c.l.b16 %v417
        %v768 = vunpack.c.h.b16 %v417
        %v769 = vunpack.c.l.b16 %v418
        %v770 = vunpack.c.h.b16 %v418
        %v771 = vunpack.c.l.b16 %v419
        %v772 = vunpack.c.h.b16 %v419
        %v773 = vunpack.c.l.b16 %v420
        %v774 = vunpack.c.h.b16 %v420
        %v775 = vunpack.c.l.b16 %v421
        %v776 = vunpack.c.h.b16 %v421
        %v777 = vunpack.c.l.b16 %v422
        %v778 = vunpack.c.h.b16 %v422
        %v779 = vunpack.c.l.b16 %v423
        %v780 = vunpack.c.h.b16 %v423
        %v781 = vunpack.c.l.b16 %v424
        %v782 = vunpack.c.h.b16 %v424
        %v783 = vunpack.c.l.b16 %v425
        %v784 = vunpack.c.h.b16 %v425
        %v785 = vunpack.c.l.b16 %v426
        %v786 = vunpack.c.h.b16 %v426
        %v787 = vunpack.c.l.b16 %v427
        %v788 = vunpack.c.h.b16 %v427
        %v789 = vunpack.c.l.b16 %v428
        %v790 = vunpack.c.h.b16 %v428
        %v791 = vunpack.c.l.b16 %v429
        %v792 = vunpack.c.h.b16 %v429
        %v793 = vunpack.c.l.b16 %v430
        %v794 = vunpack.c.h.b16 %v430
        %v795 = vunpack.c.l.b16 %v431
        %v796 = vunpack.c.h.b16 %v431
        %v797 = vunpack.c.l.b16 %v432
        %v798 = vunpack.c.h.b16 %v432
        %v799 = vunpack.c.l.b16 %v433
        %v800 = vunpack.c.h.b16 %v433
        %v801 = vunpack.c.l.b16 %v434
        %v802 = vunpack.c.h.b16 %v434
        %v803 = vunpack.c.l.b16 %v435
        %v804 = vunpack.c.h.b16 %v435
        %v805 = vunpack.c.l.b16 %v436
        %v806 = vunpack.c.h.b16 %v436
        %v807 = vunpack.c.l.b16 %v437
        %v808 = vunpack.c.h.b16 %v437
        %v809 = vunpack.c.l.b16 %v438
        %v810 = vunpack.c.h.b16 %v438
        %v811 = vunpack.c.l.b16 %v439
        %v812 = vunpack.c.h.b16 %v439
        %v813 = vunpack.c.l.b16 %v440
        %v814 = vunpack.c.h.b16 %v440
        %v815 = vunpack.c.l.b16 %v441
        %v816 = vunpack.c.h.b16 %v441
        %v817 = vunpack.c.l.b16 %v442
        %v818 = vunpack.c.h.b16 %v442
        %v819 = vunpack.c.l.b16 %v443
        %v820 = vunpack.c.h.b16 %v443
        %v821 = vunpack.c.l.b16 %v444
        %v822 = vunpack.c.h.b16 %v444
        %v823 = vunpack.c.l.b16 %v445
        %v824 = vunpack.c.h.b16 %v445
        %v825 = vunpack.c.l.b16 %v446
        %v826 = vunpack.c.h.b16 %v446
        %v827 = vunpack.c.l.b16 %v447
        %v828 = vunpack.c.h.b16 %v447
        %v829 = vunpack.c.l.b16 %v448
        %v830 = vunpack.c.h.b16 %v448
        %v831 = vunpack.c.l.b16 %v449
        %v832 = vunpack.c.h.b16 %v449
        %v833 = vunpack.c.l.b16 %v450
        %v834 = vunpack.c.h.b16 %v450
        %v835 = vunpack.c.l.b16 %v451
        %v836 = vunpack.c.h.b16 %v451
        %v837 = vunpack.c.l.b16 %v452
        %v838 = vunpack.c.h.b16 %v452
        %v839 = vunpack.c.l.b16 %v453
        %v840 = vunpack.c.h.b16 %v453
        %v841 = vunpack.c.l.b16 %v454
        %v842 = vunpack.c.h.b16 %v454
        %v843 = vunpack.c.l.b16 %v455
        %v844 = vunpack.c.h.b16 %v455
        %v845 = vunpack.c.l.b16 %v456
        %v846 = vunpack.c.h.b16 %v456
        %v847 = vunpack.c.l.b16 %v457
        %v848 = vunpack.c.h.b16 %v457
        %v849 = vunpack.c.l.b16 %v458
        %v850 = vunpack.c.h.b16 %v458
        %v851 = vunpack.c.l.b16 %v459
        %v852 = vunpack.c.h.b16 %v459
        %v853 = vunpack.c.l.b16 %v460
        %v854 = vunpack.c.h.b16 %v460
        %v855 = vunpack.c.l.b16 %v461
        %v856 = vunpack.c.h.b16 %v461
        %v857 = vunpack.c.l.b16 %v462
        %v858 = vunpack.c.h.b16 %v462
        %v859 = vunpack.c.l.b16 %v463
        %v860 = vunpack.c.h.b16 %v463
        %v861 = vunpack.c.l.b16 %v464
        %v862 = vunpack.c.h.b16 %v464
        %v863 = vunpack.c.l.b16 %v465
        %v864 = vunpack.c.h.b16 %v465
        %v865 = vunpack.c.l.b16 %v466
        %v866 = vunpack.c.h.b16 %v466
        %v867 = vunpack.c.l.b16 %v467
        %v868 = vunpack.c.h.b16 %v467
        %v869 = vunpack.c.l.b16 %v468
        %v870 = vunpack.c.h.b16 %v468
        %v871 = vunpack.c.l.b16 %v469
        %v872 = vunpack.c.h.b16 %v469
        %v873 = vunpack.c.l.b16 %v470
        %v874 = vunpack.c.h.b16 %v470
        %v875 = vunpack.c.l.b16 %v471
        %v876 = vunpack.c.h.b16 %v471
        %v877 = vunpack.c.l.b16 %v472
        %v878 = vunpack.c.h.b16 %v472
        %v879 = vunpack.c.l.b16 %v473
        %v880 = vunpack.c.h.b16 %v473
        %v881 = vunpack.c.l.b16 %v474
        %v882 = vunpack.c.h.b16 %v474
        %v883 = vunpack.c.l.b16 %v475
        %v884 = vunpack.c.h.b16 %v475
        %v885 = vunpack.c.l.b16 %v476
        %v886 = vunpack.c.h.b16 %v476
        %v887 = vunpack.c.l.b16 %v477
        %v888 = vunpack.c.h.b16 %v477
        %v889 = vunpack.c.l.b16 %v478
        %v890 = vunpack.c.h.b16 %v478
        %v891 = vunpack.c.l.b16 %v479
        %v892 = vunpack.c.h.b16 %v479
        %v893 = vunpack.c.l.b16 %v480
        %v894 = vunpack.c.h.b16 %v480
        %v895 = vunpack.c.l.b16 %v481
        %v896 = vunpack.c.h.b16 %v481
        %v897 = vunpack.c.l.b16 %v482
        %v898 = vunpack.c.h.b16 %v482
        %v899 = vunpack.c.l.b16 %v483
        %v900 = vunpack.c.h.b16 %v483
        %v901 = vunpack.c.l.b16 %v484
        %v902 = vunpack.c.h.b16 %v484
        %v903 = vunpack.c.l.b16 %v485
        %v904 = vunpack.c.h.b16 %v485
        %v905 = vunpack.c.l.b16 %v486
        %v906 = vunpack.c.h.b16 %v486
        %v907 = vunpack.c.l.b16 %v487
        %v908 = vunpack.c.h.b16 %v487
        %v909 = vunpack.c.l.b16 %v488
        %v910 = vunpack.c.h.b16 %v488
        %v911 = vunpack.c.l.b16 %v489
        %v912 = vunpack.c.h.b16 %v489
        %v913 = vunpack.c.l.b16 %v490
        %v914 = vunpack.c.h.b16 %v490
        %v915 = vunpack.c.l.b16 %v491
        %v916 = vunpack.c.h.b16 %v491
        %v917 = vunpack.c.l.b16 %v492
        %v918 = vunpack.c.h.b16 %v492
        %v919 = vunpack.c.l.b16 %v493
        %v920 = vunpack.c.h.b16 %v493
        %v921 = vunpack.c.l.b16 %v494
        %v922 = vunpack.c.h.b16 %v494
        %v923 = vunpack.c.l.b16 %v495
        %v924 = vunpack.c.h.b16 %v495
        %v925 = vunpack.c.l.b16 %v496
        %v926 = vunpack.c.h.b16 %v496
        %v927 = vunpack.c.l.b16 %v497
        %v928 = vunpack.c.h.b16 %v497
        %v929 = vunpack.c.l.b16 %v498
        %v930 = vunpack.c.h.b16 %v498
        %v931 = vunpack.c.l.b16 %v499
        %v932 = vunpack.c.h.b16 %v499
        %v933 = vunpack.c.l.b16 %v500
        %v934 = vunpack.c.h.b16 %v500
        %v935 = vunpack.c.l.b16 %v501
        %v936 = vunpack.c.h.b16 %v501
        %v937 = vunpack.c.l.b16 %v502
        %v938 = vunpack.c.h.b16 %v502
        %v939 = vunpack.c.l.b16 %v503
        %v940 = vunpack.c.h.b16 %v503
        %v941 = vunpack.c.l.b16 %v504
        %v942 = vunpack.c.h.b16 %v504
        %v943 = vunpack.c.l.b16 %v505
        %v944 = vunpack.c.h.b16 %v505
        %v945 = vunpack.c.l.b16 %v506
        %v946 = vunpack.c.h.b16 %v506
        %v947 = vunpack.c.l.b16 %v507
        %v948 = vunpack.c.h.b16 %v507
        %v949 = vunpack.c.l.b16 %v508
        %v950 = vunpack.c.h.b16 %v508
        %v951 = vunpack.c.l.b16 %v509
        %v952 = vunpack.c.h.b16 %v509
        %v953 = vunpack.c.l.b16 %v510
        %v954 = vunpack.c.h.b16 %v510
        %v955 = vunpack.c.l.b16 %v511
        %v956 = vunpack.c.h.b16 %v511
        %v957 = vunpack.c.l.b16 %v512
        %v958 = vunpack.c.h.b16 %v512
        %v959 = vunpack.c.l.b16 %v513
        %v960 = vunpack.c.h.b16 %v513
        %v961 = vunpack.c.l.b16 %v514
        %v962 = vunpack.c.h.b16 %v514
        %v963 = vunpack.c.l.b16 %v515
        %v964 = vunpack.c.h.b16 %v515
        %v965 = vunpack.c.l.b16 %v516
        %v966 = vunpack.c.h.b16 %v516
        %v967 = vunpack.c.l.b16 %v517
        %v968 = vunpack.c.h.b16 %v517
        %v969 = vunpack.c.l.b16 %v518
        %v970 = vunpack.c.h.b16 %v518
        %v971 = vunpack.c.l.b16 %v519
        %v972 = vunpack.c.h.b16 %v519
        %v973 = vunpack.c.l.b16 %v520
        %v974 = vunpack.c.h.b16 %v520
        %v975 = vunpack.c.l.b16 %v521
        %v976 = vunpack.c.h.b16 %v521
        %v977 = vunpack.c.l.b16 %v522
        %v978 = vunpack.c.h.b16 %v522
        %v979 = vunpack.c.l.b16 %v523
        %v980 = vunpack.c.h.b16 %v523
        %v981 = vunpack.c.l.b16 %v524
        %v982 = vunpack.c.h.b16 %v524
        %v983 = vunpack.c.l.b16 %v525
        %v984 = vunpack.c.h.b16 %v525
        %v985 = vunpack.c.l.b16 %v526
        %v986 = vunpack.c.h.b16 %v526
        %v987 = vunpack.c.l.b16 %v527
        %v988 = vunpack.c.h.b16 %v527
        %v989 = vunpack.c.l.b16 %v528
        %v990 = vunpack.c.h.b16 %v528
        %v991 = vunpack.c.l.b16 %v529
        %v992 = vunpack.c.h.b16 %v529
        %v993 = vunpack.c.l.b16 %v530
        %v994 = vunpack.c.h.b16 %v530
        %v995 = vpack.c.b16 %v741, %v739
        %v996 = vpack.c.b16 %v742, %v740
        %v997 = vpack.c.b16 %v745, %v743
        %v998 = vpack.c.b16 %v746, %v744
        %v999 = vpack.c.b16 %v749, %v747
        %v1000 = vpack.c.b16 %v750, %v748
        %v1001 = vpack.c.b16 %v753, %v751
        %v1002 = vpack.c.b16 %v754, %v752
        %v1003 = vpack.c.b16 %v757, %v755
        %v1004 = vpack.c.b16 %v758, %v756
        %v1005 = vpack.c.b16 %v761, %v759
        %v1006 = vpack.c.b16 %v762, %v760
        %v1007 = vpack.c.b16 %v765, %v763
        %v1008 = vpack.c.b16 %v766, %v764
        %v1009 = vpack.c.b16 %v769, %v767
        %v1010 = vpack.c.b16 %v770, %v768
        %v1011 = vpack.c.b16 %v773, %v771
        %v1012 = vpack.c.b16 %v774, %v772
        %v1013 = vpack.c.b16 %v777, %v775
        %v1014 = vpack.c.b16 %v778, %v776
        %v1015 = vpack.c.b16 %v781, %v779
        %v1016 = vpack.c.b16 %v782, %v780
        %v1017 = vpack.c.b16 %v785, %v783
        %v1018 = vpack.c.b16 %v786, %v784
        %v1019 = vpack.c.b16 %v789, %v787
        %v1020 = vpack.c.b16 %v790, %v788
        %v1021 = vpack.c.b16 %v793, %v791
        %v1022 = vpack.c.b16 %v794, %v792
        %v1023 = vpack.c.b16 %v797, %v795
        %v1024 = vpack.c.b16 %v798, %v796
        %v1025 = vpack.c.b16 %v801, %v799
        %v1026 = vpack.c.b16 %v802, %v800
        %v1027 = vpack.c.b16 %v805, %v803
        %v1028 = vpack.c.b16 %v806, %v804
        %v1029 = vpack.c.b16 %v809, %v807
        %v1030 = vpack.c.b16 %v810, %v808
        %v1031 = vpack.c.b16 %v813, %v811
        %v1032 = vpack.c.b16 %v814, %v812
        %v1033 = vpack.c.b16 %v817, %v815
        %v1034 = vpack.c.b16 %v818, %v816
        %v1035 = vpack.c.b16 %v821, %v819
        %v1036 = vpack.c.b16 %v822, %v820
        %v1037 = vpack.c.b16 %v825, %v823
        %v1038 = vpack.c.b16 %v826, %v824
        %v1039 = vpack.c.b16 %v829, %v827
        %v1040 = vpack.c.b16 %v830, %v828
        %v1041 = vpack.c.b16 %v833, %v831
        %v1042 = vpack.c.b16 %v834, %v832
        %v1043 = vpack.c.b16 %v837, %v835
        %v1044 = vpack.c.b16 %v838, %v836
        %v1045 = vpack.c.b16 %v841, %v839
        %v1046 = vpack.c.b16 %v842, %v840
        %v1047 = vpack.c.b16 %v845, %v843
        %v1048 = vpack.c.b16 %v846, %v844
        %v1049 = vpack.c.b16 %v849, %v847
        %v1050 = vpack.c.b16 %v850, %v848
        %v1051 = vpack.c.b16 %v853, %v851
        %v1052 = vpack.c.b16 %v854, %v852
        %v1053 = vpack.c.b16 %v857, %v855
        %v1054 = vpack.c.b16 %v858, %v856
        %v1055 = vpack.c.b16 %v861, %v859
        %v1056 = vpack.c.b16 %v862, %v860
        %v1057 = vpack.c.b16 %v865, %v863
        %v1058 = vpack.c.b16 %v866, %v864
        %v1059 = vpack.c.b16 %v869, %v867
        %v1060 = vpack.c.b16 %v870, %v868
        %v1061 = vpack.c.b16 %v873, %v871
        %v1062 = vpack.c.b16 %v874, %v872
        %v1063 = vpack.c.b16 %v877, %v875
        %v1064 = vpack.c.b16 %v878, %v876
        %v1065 = vpack.c.b16 %v881, %v879
        %v1066 = vpack.c.b16 %v882, %v880
        %v1067 = vpack.c.b16 %v885, %v883
        %v1068 = vpack.c.b16 %v886, %v884
        %v1069 = vpack.c.b16 %v889, %v887
        %v1070 = vpack.c.b16 %v890, %v888
        %v1071 = vpack.c.b16 %v893, %v891
        %v1072 = vpack.c.b16 %v894, %v892
        %v1073 = vpack.c.b16 %v897, %v895
        %v1074 = vpack.c.b16 %v898, %v896
        %v1075 = vpack.c.b16 %v901, %v899
        %v1076 = vpack.c.b16 %v902, %v900
        %v1077 = vpack.c.b16 %v905, %v903
        %v1078 = vpack.c.b16 %v906, %v904
        %v1079 = vpack.c.b16 %v909, %v907
        %v1080 = vpack.c.b16 %v910, %v908
        %v1081 = vpack.c.b16 %v913, %v911
        %v1082 = vpack.c.b16 %v914, %v912
        %v1083 = vpack.c.b16 %v917, %v915
        %v1084 = vpack.c.b16 %v918, %v916
        %v1085 = vpack.c.b16 %v921, %v919
        %v1086 = vpack.c.b16 %v922, %v920
        %v1087 = vpack.c.b16 %v925, %v923
        %v1088 = vpack.c.b16 %v926, %v924
        %v1089 = vpack.c.b16 %v929, %v927
        %v1090 = vpack.c.b16 %v930, %v928
        %v1091 = vpack.c.b16 %v933, %v931
        %v1092 = vpack.c.b16 %v934, %v932
        %v1093 = vpack.c.b16 %v937, %v935
        %v1094 = vpack.c.b16 %v938, %v936
        %v1095 = vpack.c.b16 %v941, %v939
        %v1096 = vpack.c.b16 %v942, %v940
        %v1097 = vpack.c.b16 %v945, %v943
        %v1098 = vpack.c.b16 %v946, %v944
        %v1099 = vpack.c.b16 %v949, %v947
        %v1100 = vpack.c.b16 %v950, %v948
        %v1101 = vpack.c.b16 %v953, %v951
        %v1102 = vpack.c.b16 %v954, %v952
        %v1103 = vpack.c.b16 %v957, %v955
        %v1104 = vpack.c.b16 %v958, %v956
        %v1105 = vpack.c.b16 %v961, %v959
        %v1106 = vpack.c.b16 %v962, %v960
        %v1107 = vpack.c.b16 %v965, %v963
        %v1108 = vpack.c.b16 %v966, %v964
        %v1109 = vpack.c.b16 %v969, %v967
        %v1110 = vpack.c.b16 %v970, %v968
        %v1111 = vpack.c.b16 %v973, %v971
        %v1112 = vpack.c.b16 %v974, %v972
        %v1113 = vpack.c.b16 %v977, %v975
        %v1114 = vpack.c.b16 %v978, %v976
        %v1115 = vpack.c.b16 %v981, %v979
        %v1116 = vpack.c.b16 %v982, %v980
        %v1117 = vpack.c.b16 %v985, %v983
        %v1118 = vpack.c.b16 %v986, %v984
        %v1119 = vpack.c.b16 %v989, %v987
        %v1120 = vpack.c.b16 %v990, %v988
        %v1121 = vpack.c.b16 %v993, %v991
        %v1122 = vpack.c.b16 %v994, %v992
        %1251 = vmatprep.subr.bf16.mxu0 %v996
        %1252 = vmatpush1.bf16.msra.mxu0 %v995
        %1253 = vmatprep.subr.bf16.mxu0 %v998
        %1254 = vmatpush1.bf16.msra.mxu0 %v997
        %1255 = vmatprep.subr.bf16.mxu0 %v1000
        %1256 = vmatpush1.bf16.msra.mxu0 %v999
        %1257 = vmatprep.subr.bf16.mxu0 %v1002
        %1258 = vmatpush1.bf16.msra.mxu0 %v1001
        %1259 = vmatprep.subr.bf16.mxu0 %v1004
        %1260 = vmatpush1.bf16.msra.mxu0 %v1003
        %1261 = vmatprep.subr.bf16.mxu0 %v1006
        %1262 = vmatpush1.bf16.msra.mxu0 %v1005
        %1263 = vmatprep.subr.bf16.mxu0 %v1008
        %1264 = vmatpush1.bf16.msra.mxu0 %v1007
        %1265 = vmatprep.subr.bf16.mxu0 %v1010
        %1266 = vmatpush1.bf16.msra.mxu0 %v1009
        %1267 = vmatprep.subr.bf16.mxu0 %v1012
        %1268 = vmatpush1.bf16.msra.mxu0 %v1011
        %1269 = vmatprep.subr.bf16.mxu0 %v1014
        %1270 = vmatpush1.bf16.msra.mxu0 %v1013
        %1271 = vmatprep.subr.bf16.mxu0 %v1016
        %1272 = vmatpush1.bf16.msra.mxu0 %v1015
        %1273 = vmatprep.subr.bf16.mxu0 %v1018
        %1274 = vmatpush1.bf16.msra.mxu0 %v1017
        %1275 = vmatprep.subr.bf16.mxu0 %v1020
        %1276 = vmatpush1.bf16.msra.mxu0 %v1019
        %1277 = vmatprep.subr.bf16.mxu0 %v1022
        %1278 = vmatpush1.bf16.msra.mxu0 %v1021
        %1279 = vmatprep.subr.bf16.mxu0 %v1024
        %1280 = vmatpush1.bf16.msra.mxu0 %v1023
        %1281 = vmatprep.subr.bf16.mxu0 %v1026
        %1282 = vmatpush1.bf16.msra.mxu0 %v1025
        %1283 = vmatprep.mubr.bf16.mxu0 %v580
        %1284 = vmatmul.mubr.bf16.gmra.mrb[0].mxu0 %v579
        %v1285 = vpop.f32.mrb[0].mxu0
        %v1286 = vadd.f32 0.0, %v1285
        %v1287 = vpop.f32.mrb[0].mxu0
        %v1288 = vadd.f32 0.0, %v1287
        %v1289 = vpop.f32.mrb[0].mxu0
        %v1290 = vadd.f32 0.0, %v1289
        %v1291 = vpop.f32.mrb[0].mxu0
        %v1292 = vadd.f32 0.0, %v1291
        %1293 = vmatprep.mubr.bf16.mxu0 %v588
        %1294 = vmatmul.mubr.bf16.gmra.mrb[0].mxu0 %v587
        %v1295 = vpop.f32.mrb[0].mxu0
        %v1296 = vadd.f32 0.0, %v1295
        %v1297 = vpop.f32.mrb[0].mxu0
        %v1298 = vadd.f32 0.0, %v1297
        %v1299 = vpop.f32.mrb[0].mxu0
        %v1300 = vadd.f32 0.0, %v1299
        %v1301 = vpop.f32.mrb[0].mxu0
        %v1302 = vadd.f32 0.0, %v1301
        %1303 = vdwg.mxu0
        %1304 = vmatprep.subr.bf16.mxu0 %v1028
        %1305 = vmatpush1.bf16.msra.mxu0 %v1027
        %1306 = vmatprep.subr.bf16.mxu0 %v1030
        %1307 = vmatpush1.bf16.msra.mxu0 %v1029
        %1308 = vmatprep.subr.bf16.mxu0 %v1032
        %1309 = vmatpush1.bf16.msra.mxu0 %v1031
        %1310 = vmatprep.subr.bf16.mxu0 %v1034
        %1311 = vmatpush1.bf16.msra.mxu0 %v1033
        %1312 = vmatprep.subr.bf16.mxu0 %v1036
        %1313 = vmatpush1.bf16.msra.mxu0 %v1035
        %1314 = vmatprep.subr.bf16.mxu0 %v1038
        %1315 = vmatpush1.bf16.msra.mxu0 %v1037
        %1316 = vmatprep.subr.bf16.mxu0 %v1040
        %1317 = vmatpush1.bf16.msra.mxu0 %v1039
        %1318 = vmatprep.subr.bf16.mxu0 %v1042
        %1319 = vmatpush1.bf16.msra.mxu0 %v1041
        %1320 = vmatprep.subr.bf16.mxu0 %v1044
        %1321 = vmatpush1.bf16.msra.mxu0 %v1043
        %1322 = vmatprep.subr.bf16.mxu0 %v1046
        %1323 = vmatpush1.bf16.msra.mxu0 %v1045
        %1324 = vmatprep.subr.bf16.mxu0 %v1048
        %1325 = vmatpush1.bf16.msra.mxu0 %v1047
        %1326 = vmatprep.subr.bf16.mxu0 %v1050
        %1327 = vmatpush1.bf16.msra.mxu0 %v1049
        %1328 = vmatprep.subr.bf16.mxu0 %v1052
        %1329 = vmatpush1.bf16.msra.mxu0 %v1051
        %1330 = vmatprep.subr.bf16.mxu0 %v1054
        %1331 = vmatpush1.bf16.msra.mxu0 %v1053
        %1332 = vmatprep.subr.bf16.mxu0 %v1056
        %1333 = vmatpush1.bf16.msra.mxu0 %v1055
        %1334 = vmatprep.subr.bf16.mxu0 %v1058
        %1335 = vmatpush1.bf16.msra.mxu0 %v1057
        %1336 = vmatprep.mubr.bf16.mxu0 %v582
        %1337 = vmatmul.mubr.bf16.gmra.mrb[0].mxu0 %v581
        %v1338 = vpop.f32.mrb[0].mxu0
        %v1339 = vadd.f32 %v1286, %v1338
        %v1340 = vpop.f32.mrb[0].mxu0
        %v1341 = vadd.f32 %v1288, %v1340
        %v1342 = vpop.f32.mrb[0].mxu0
        %v1343 = vadd.f32 %v1290, %v1342
        %v1344 = vpop.f32.mrb[0].mxu0
        %v1345 = vadd.f32 %v1292, %v1344
        %1346 = vmatprep.mubr.bf16.mxu0 %v590
        %1347 = vmatmul.mubr.bf16.gmra.mrb[0].mxu0 %v589
        %v1348 = vpop.f32.mrb[0].mxu0
        %v1349 = vadd.f32 %v1296, %v1348
        %v1350 = vpop.f32.mrb[0].mxu0
        %v1351 = vadd.f32 %v1298, %v1350
        %v1352 = vpop.f32.mrb[0].mxu0
        %v1353 = vadd.f32 %v1300, %v1352
        %v1354 = vpop.f32.mrb[0].mxu0
        %v1355 = vadd.f32 %v1302, %v1354
        %1356 = vdwg.mxu0
        %1357 = vmatprep.subr.bf16.mxu0 %v1060
        %1358 = vmatpush1.bf16.msra.mxu0 %v1059
        %1359 = vmatprep.subr.bf16.mxu0 %v1062
        %1360 = vmatpush1.bf16.msra.mxu0 %v1061
        %1361 = vmatprep.subr.bf16.mxu0 %v1064
        %1362 = vmatpush1.bf16.msra.mxu0 %v1063
        %1363 = vmatprep.subr.bf16.mxu0 %v1066
        %1364 = vmatpush1.bf16.msra.mxu0 %v1065
        %1365 = vmatprep.subr.bf16.mxu0 %v1068
        %1366 = vmatpush1.bf16.msra.mxu0 %v1067
        %1367 = vmatprep.subr.bf16.mxu0 %v1070
        %1368 = vmatpush1.bf16.msra.mxu0 %v1069
        %1369 = vmatprep.subr.bf16.mxu0 %v1072
        %1370 = vmatpush1.bf16.msra.mxu0 %v1071
        %1371 = vmatprep.subr.bf16.mxu0 %v1074
        %1372 = vmatpush1.bf16.msra.mxu0 %v1073
        %1373 = vmatprep.subr.bf16.mxu0 %v1076
        %1374 = vmatpush1.bf16.msra.mxu0 %v1075
        %1375 = vmatprep.subr.bf16.mxu0 %v1078
        %1376 = vmatpush1.bf16.msra.mxu0 %v1077
        %1377 = vmatprep.subr.bf16.mxu0 %v1080
        %1378 = vmatpush1.bf16.msra.mxu0 %v1079
        %1379 = vmatprep.subr.bf16.mxu0 %v1082
        %1380 = vmatpush1.bf16.msra.mxu0 %v1081
        %1381 = vmatprep.subr.bf16.mxu0 %v1084
        %1382 = vmatpush1.bf16.msra.mxu0 %v1083
        %1383 = vmatprep.subr.bf16.mxu0 %v1086
        %1384 = vmatpush1.bf16.msra.mxu0 %v1085
        %1385 = vmatprep.subr.bf16.mxu0 %v1088
        %1386 = vmatpush1.bf16.msra.mxu0 %v1087
        %1387 = vmatprep.subr.bf16.mxu0 %v1090
        %1388 = vmatpush1.bf16.msra.mxu0 %v1089
        %1389 = vmatprep.mubr.bf16.mxu0 %v584
        %1390 = vmatmul.mubr.bf16.gmra.mrb[0].mxu0 %v583
        %v1391 = vpop.f32.mrb[0].mxu0
        %v1392 = vadd.f32 %v1339, %v1391
        %v1393 = vpop.f32.mrb[0].mxu0
        %v1394 = vadd.f32 %v1341, %v1393
        %v1395 = vpop.f32.mrb[0].mxu0
        %v1396 = vadd.f32 %v1343, %v1395
        %v1397 = vpop.f32.mrb[0].mxu0
        %v1398 = vadd.f32 %v1345, %v1397
        %1399 = vmatprep.mubr.bf16.mxu0 %v592
        %1400 = vmatmul.mubr.bf16.gmra.mrb[0].mxu0 %v591
        %v1401 = vpop.f32.mrb[0].mxu0
        %v1402 = vadd.f32 %v1349, %v1401
        %v1403 = vpop.f32.mrb[0].mxu0
        %v1404 = vadd.f32 %v1351, %v1403
        %v1405 = vpop.f32.mrb[0].mxu0
        %v1406 = vadd.f32 %v1353, %v1405
        %v1407 = vpop.f32.mrb[0].mxu0
        %v1408 = vadd.f32 %v1355, %v1407
        %1409 = vdwg.mxu0
        %1410 = vmatprep.subr.bf16.mxu0 %v1092
        %1411 = vmatpush1.bf16.msra.mxu0 %v1091
        %1412 = vmatprep.subr.bf16.mxu0 %v1094
        %1413 = vmatpush1.bf16.msra.mxu0 %v1093
        %1414 = vmatprep.subr.bf16.mxu0 %v1096
        %1415 = vmatpush1.bf16.msra.mxu0 %v1095
        %1416 = vmatprep.subr.bf16.mxu0 %v1098
        %1417 = vmatpush1.bf16.msra.mxu0 %v1097
        %1418 = vmatprep.subr.bf16.mxu0 %v1100
        %1419 = vmatpush1.bf16.msra.mxu0 %v1099
        %1420 = vmatprep.subr.bf16.mxu0 %v1102
        %1421 = vmatpush1.bf16.msra.mxu0 %v1101
        %1422 = vmatprep.subr.bf16.mxu0 %v1104
        %1423 = vmatpush1.bf16.msra.mxu0 %v1103
        %1424 = vmatprep.subr.bf16.mxu0 %v1106
        %1425 = vmatpush1.bf16.msra.mxu0 %v1105
        %1426 = vmatprep.subr.bf16.mxu0 %v1108
        %1427 = vmatpush1.bf16.msra.mxu0 %v1107
        %1428 = vmatprep.subr.bf16.mxu0 %v1110
        %1429 = vmatpush1.bf16.msra.mxu0 %v1109
        %1430 = vmatprep.subr.bf16.mxu0 %v1112
        %1431 = vmatpush1.bf16.msra.mxu0 %v1111
        %1432 = vmatprep.subr.bf16.mxu0 %v1114
        %1433 = vmatpush1.bf16.msra.mxu0 %v1113
        %1434 = vmatprep.subr.bf16.mxu0 %v1116
        %1435 = vmatpush1.bf16.msra.mxu0 %v1115
        %1436 = vmatprep.subr.bf16.mxu0 %v1118
        %1437 = vmatpush1.bf16.msra.mxu0 %v1117
        %1438 = vmatprep.subr.bf16.mxu0 %v1120
        %1439 = vmatpush1.bf16.msra.mxu0 %v1119
        %1440 = vmatprep.subr.bf16.mxu0 %v1122
        %1441 = vmatpush1.bf16.msra.mxu0 %v1121
        %1442 = vmatprep.mubr.bf16.mxu0 %v586
        %1443 = vmatmul.mubr.bf16.gmra.mrb[0].mxu0 %v585
        %v1444 = vpop.f32.mrb[0].mxu0
        %v1445 = vadd.f32 %v1392, %v1444
        %v1446 = vpop.f32.mrb[0].mxu0
        %v1447 = vadd.f32 %v1394, %v1446
        %v1448 = vpop.f32.mrb[0].mxu0
        %v1449 = vadd.f32 %v1396, %v1448
        %v1450 = vpop.f32.mrb[0].mxu0
        %v1451 = vadd.f32 %v1398, %v1450
        %1452 = vmatprep.mubr.bf16.mxu0 %v594
        %1453 = vmatmul.mubr.bf16.gmra.mrb[0].mxu0 %v593
        %v1454 = vpop.f32.mrb[0].mxu0
        %v1455 = vadd.f32 %v1402, %v1454
        %v1456 = vpop.f32.mrb[0].mxu0
        %v1457 = vadd.f32 %v1404, %v1456
        %v1458 = vpop.f32.mrb[0].mxu0
        %v1459 = vadd.f32 %v1406, %v1458
        %v1460 = vpop.f32.mrb[0].mxu0
        %v1461 = vadd.f32 %v1408, %v1460
        %1462 = vdwg.mxu0
        %v1463 = vadd.f32 %v379, %v1445
        %v1464 = vadd.f32 %v380, %v1447
        %v1465 = vadd.f32 %v381, %v1449
        %v1466 = vadd.f32 %v382, %v1451
        %v1467 = vadd.f32 %v383, %v1455
        %v1468 = vadd.f32 %v384, %v1457
        %v1469 = vadd.f32 %v385, %v1459
        %v1470 = vadd.f32 %v386, %v1461
        %1471 = vst [vmem:[#allocation2] sm:$0xff] %v1463
        %1472 = vst [vmem:[#allocation2 + $0x8] sm:$0xff] %v1464
        %1473 = vst [vmem:[#allocation2 + $0x10] sm:$0xff] %v1465
        %1474 = vst [vmem:[#allocation2 + $0x18] sm:$0xff] %v1466
        %1475 = vst [vmem:[#allocation2 + $0x20] sm:$0xff] %v1467
        %1476 = vst [vmem:[#allocation2 + $0x28] sm:$0xff] %v1468
        %1477 = vst [vmem:[#allocation2 + $0x30] sm:$0xff] %v1469
        %1478 = vst [vmem:[#allocation2 + $0x38] sm:$0xff] %v1470
        %p1479 = scmp.eq.s32.totalorder %s22, 1
        // Predicated region
        $region64: #{forward.7} parent=54 // pred_check
          %p1480 = pneg %p1479
        $region65: #{forward.7} parent=54 // pred_check_branch
          %1482 = sbr.rel (%p1480) target = $region67
        $region66: #{forward.7} parent=54 // pred_region
          %v1483 = vld [vmem:[#allocation2] sm:$0xff]
          %v1484 = vld [vmem:[#allocation2 + $0x8] sm:$0xff]
          %v1485 = vld [vmem:[#allocation2 + $0x10] sm:$0xff]
          %v1486 = vld [vmem:[#allocation2 + $0x18] sm:$0xff]
          %v1487 = vld [vmem:[#allocation2 + $0x20] sm:$0xff]
          %v1488 = vld [vmem:[#allocation2 + $0x28] sm:$0xff]
          %v1489 = vld [vmem:[#allocation2 + $0x30] sm:$0xff]
          %v1490 = vld [vmem:[#allocation2 + $0x38] sm:$0xff]
          %v1491 = vld [vmem:[%s348] sm:$0x3]
          %v1493 = vlaneseq
          %v1494 = vshrl.u32 %v1493, 7
          %v1495 = vsub.s32 0, %v1494
          %v1496 = vrot.slane %v1491, %v1495
          %v1497 = vlaneseq
          %v1498 = vshrl.u32 %v1497, 7
          %v1499 = vsub.s32 1, %v1498
          %v1500 = vrot.slane %v1491, %v1499
          %v1503 = vmul.f32 %v1483, %v1496
          %v1504 = vmul.f32 %v1484, %v1500
          %v1505 = vmul.f32 %v1485, %v1496
          %v1506 = vmul.f32 %v1486, %v1500
          %v1507 = vmul.f32 %v1487, %v1496
          %v1508 = vmul.f32 %v1488, %v1500
          %v1509 = vmul.f32 %v1489, %v1496
          %v1510 = vmul.f32 %v1490, %v1500
          %v1511 = vld [vmem:[%s353] sm:$0x3]
          %v1513 = vlaneseq
          %v1514 = vshrl.u32 %v1513, 7
          %v1515 = vsub.s32 0, %v1514
          %v1516 = vrot.slane %v1511, %v1515
          %v1517 = vlaneseq
          %v1518 = vshrl.u32 %v1517, 7
          %v1519 = vsub.s32 1, %v1518
          %v1520 = vrot.slane %v1511, %v1519
          %v1523 = vadd.f32 %v1503, %v1516
          %v1524 = vadd.f32 %v1504, %v1520
          %v1525 = vadd.f32 %v1505, %v1516
          %v1526 = vadd.f32 %v1506, %v1520
          %v1527 = vadd.f32 %v1507, %v1516
          %v1528 = vadd.f32 %v1508, %v1520
          %v1529 = vadd.f32 %v1509, %v1516
          %v1530 = vadd.f32 %v1510, %v1520
          %vm1531 = vcmp.ge.f32.partialorder %v1523, 0.0
          %vm1532 = vcmp.ge.f32.partialorder %v1524, 0.0
          %vm1533 = vcmp.ge.f32.partialorder %v1525, 0.0
          %vm1534 = vcmp.ge.f32.partialorder %v1526, 0.0
          %vm1535 = vcmp.ge.f32.partialorder %v1527, 0.0
          %vm1536 = vcmp.ge.f32.partialorder %v1528, 0.0
          %vm1537 = vcmp.ge.f32.partialorder %v1529, 0.0
          %vm1538 = vcmp.ge.f32.partialorder %v1530, 0.0
          %v1539 = vmul.f32 %v1523, 0.2
          %v1540 = vmul.f32 %v1524, 0.2
          %v1541 = vmul.f32 %v1525, 0.2
          %v1542 = vmul.f32 %v1526, 0.2
          %v1543 = vmul.f32 %v1527, 0.2
          %v1544 = vmul.f32 %v1528, 0.2
          %v1545 = vmul.f32 %v1529, 0.2
          %v1546 = vmul.f32 %v1530, 0.2
          %v1547 = vsel %vm1531, %v1523, %v1539
          %v1548 = vsel %vm1532, %v1524, %v1540
          %v1549 = vsel %vm1533, %v1525, %v1541
          %v1550 = vsel %vm1534, %v1526, %v1542
          %v1551 = vsel %vm1535, %v1527, %v1543
          %v1552 = vsel %vm1536, %v1528, %v1544
          %v1553 = vsel %vm1537, %v1529, %v1545
          %v1554 = vsel %vm1538, %v1530, %v1546
          %1555 = vst [vmem:[%s364] sm:$0xff] %v1547
          %1556 = vst [vmem:[%s364 + $0x8] sm:$0xff] %v1548
          %1557 = vst [vmem:[%s364 + $0x10] sm:$0xff] %v1549
          %1558 = vst [vmem:[%s364 + $0x18] sm:$0xff] %v1550
          %1559 = vst [vmem:[%s364 + $0x20] sm:$0xff] %v1551
          %1560 = vst [vmem:[%s364 + $0x28] sm:$0xff] %v1552
          %1561 = vst [vmem:[%s364 + $0x30] sm:$0xff] %v1553
          %1562 = vst [vmem:[%s364 + $0x38] sm:$0xff] %v1554
        $region67: #{forward.7} parent=54 // pred_fallthru
          _
        %s1563 = smul.u32 4, %s20
        %s1564 = smul.u32 2, %s21
        %p1565 = scmp.lt.s32.totalorder %s1563, 3
        %s1566 = scalar_select %p1565, %s1563, 3
        %p1567 = scmp.lt.s32.totalorder %s1564, 1
        %s1568 = scalar_select %p1567, %s1564, 1
        %s1569 = smul.addr %s1566, 2
        %s1570 = sadd.s32 %s1568, %s1569
        %s1571 = smul.addr %s1570, 8
        %s1572 = scalar_lea.vmem %s4, %s1571
        // Predicated region
        $region68: #{forward.7} parent=54 // pred_check
          %p1573 = pneg %p162
        $region69: #{forward.7} parent=54 // pred_check_branch
          %1575 = sbr.rel (%p1573) target = $region71
        $region70: #{forward.7} parent=54 // pred_region
          %s1576 = smul.u32 4, %s20
          %s1577 = smul.u32 2, %s21
        $region71: #{forward.7} parent=54 // pred_fallthru
          _
        // Predicated region
        $region72: #{forward.7} parent=54 // pred_check
          %p1578 = pneg %p162
        $region73: #{forward.7} parent=54 // pred_check_branch
          %1580 = sbr.rel (%p1578) target = $region75
        $region74: #{forward.7} parent=54 // pred_region
          %s1581 = smul.u32 4, %s20
          %s1582 = smul.u32 2, %s21
          %p1583 = scmp.lt.s32.totalorder %s1581, 3
          %s1584 = scalar_select %p1583, %s1581, 3
          %p1585 = scmp.lt.s32.totalorder %s1582, 1
          %s1586 = scalar_select %p1585, %s1582, 1
          %s1587 = smul.addr %s1584, 2
          %s1588 = sadd.s32 %s1586, %s1587
          %s1589 = smul.addr %s1588, 8
          %s1590 = scalar_lea.vmem %s4, %s1589
        $region75: #{forward.7} parent=54 // pred_fallthru
          _
      $region55: #{forward.7} parent=5 // pred_fallthru
        _
      %p1591 = scmp.le.s32.totalorder 2, %s10
      // Predicated region
      $region76: #{forward.7} parent=5 // pred_check
        %p1592 = pneg %p1591
      $region77: #{forward.7} parent=5 // pred_check_branch
        %1594 = sbr.rel (%p1592) target = $region79
      $region78: #{forward.7} parent=5 // pred_region
        %s1595 = ssub.s32 %s10, 2
      $region79: #{forward.7} parent=5 // pred_fallthru
        _
    $region6: #{forward.7} parent=1 // loop_footer
      %s14 = sadd.s32 1, %s10
    $region7: #{forward.7} parent=1 // loop_footer_branch
      %9 = sbr.rel target = $region3
    $region8: #{forward.7} parent=1 // loop_exit
      _

// kernel: forward.8
$region0: #{forward.8}
  #allocation0 [shape = 'u32[]', space=smem, size = 0x4, offset = 0x4, fixed_abs, tag = 'smem constant byte address 0x4 - core index']
  #allocation1 [shape = 'u32[144,128]{1,0:T(1,128)}', space=vmem, size = 0x12000, scoped, tag = 'internal scratch']
  #allocation2 [shape = 'f32[32,256]{1,0:T(8,128)}', space=vmem, size = 0x8000, scoped, tag = 'scratch operand']
  %s0 = inlined_call_operand.vmem [shape: bf16[32,4096], index: 0, kind: input, shape index: {}]
  %s1 = inlined_call_operand.vmem [shape: bf16[4096,512], index: 1, kind: input, shape index: {}]
  %s2 = inlined_call_operand.vmem [shape: f32[1,512], index: 2, kind: input, shape index: {}]
  %s3 = inlined_call_operand.vmem [shape: f32[1,512], index: 3, kind: input, shape index: {}]
  %s4 = inlined_call_operand.vmem [shape: f32[32,512], index: 4, kind: output, shape index: {}]
  %s5 = sld [smem:[#allocation0]]
  $region137: #{forward.8} parent=0
    _
  %s7 = ssub.s32 1, %s5
  %s8 = scalar_select 0, %s7, %s5
  $region1: #{forward.8} parent=0
    #allocation3 [shape = 'u8[131072]{0}', space=vmem, size = 0x20000, scoped, tag = 'input window, operand 0']
    #allocation4 [shape = 'u8[1048576]{0}', space=vmem, size = 0x100000, scoped, tag = 'input window, operand 1']
    #allocation5 [shape = 'u8[65536]{0}', space=vmem, size = 0x10000, scoped, tag = 'output window, operand 0']
    loop: start=0, step=1, limit=10
    $region2: #{forward.8} parent=1 // loop_pre_header
      _
    $region3: #{forward.8} parent=1 // loop_header
      %s10 = sphi 0, %s14
      %p11 = scmp.ge.s32.totalorder %s10, 10
      %s17 = sphi 0, %s36
      %s18 = sphi 0, %s32
      %s19 = sphi 0, %s28
      %s20 = sphi 0, %s17
      %s21 = sphi 0, %s18
      %s22 = sphi 0, %s19
      %s23 = sphi 0, %s20
      %s24 = sphi 0, %s21
      %s25 = sphi 0, %s22
      %s41 = sphi 0, %s43
      %s44 = sphi 0, %s41
      %s45 = sphi 0, %s44
      %s61 = sphi 0, %s45
      %s69 = sphi 0, %s71
      %s72 = sphi 0, %s69
      %s73 = sphi 0, %s72
      %s89 = sphi 0, %s73
      %s95 = sphi 0, %s97
      %s98 = sphi 0, %s95
      %s99 = sphi 0, %s98
      %s115 = sphi 0, %s99
      %s121 = sphi 0, %s123
      %s124 = sphi 0, %s121
      %s125 = sphi 0, %s124
      %s141 = sphi 0, %s125
      %s149 = sphi 0, %s151
      %s152 = sphi 0, %s149
      %s153 = sphi 0, %s152
      %s169 = sphi 0, %s153
    $region4: #{forward.8} parent=1 // loop_header_branch
      %13 = sbr.rel (%p11) target = $region8
    $region5: #{forward.8} parent=1 // loop_body
      %s15 = ssub.s32 %s10, 1
      %s16 = ssub.s32 %s10, 2
      %s26 = sadd.s32 1, %s19
      %p27 = scmp.ge.s32.totalorder %s26, 4
      %s28 = scalar_select %p27, 0, %s26
      %s29 = sadd.s32 1, %s18
      %s30 = scalar_select %p27, %s29, %s18
      %p31 = scmp.ge.s32.totalorder %s30, 2
      %s32 = scalar_select %p31, 0, %s30
      %s33 = sadd.s32 1, %s17
      %s34 = scalar_select %p31, %s33, %s17
      %p35 = scmp.ge.s32.totalorder %s34, 1
      %s36 = scalar_select %p35, 0, %s34
      %s37 = ssub.s32 %s17, %s36
      %s38 = ssub.s32 %s19, %s28
      %s39 = sor.u32 %s37, %s38
      %p40 = scmp.eq.s32.totalorder %s39, 0
      %s42 = sadd.s32 %s41, 1
      %s43 = scalar_select %p40, %s41, %s42
      %p46 = pneg %p40
      %p47 = scmp.eq.s32.totalorder %s10, 7
      %p48 = por %p46, %p47
      %p49 = scmp.ne.s32.totalorder %s41, %s44
      %p50 = scmp.eq.s32.totalorder %s10, 0
      %p51 = por %p49, %p50
      %p52 = scmp.ne.s32.totalorder %s41, %s44
      %p53 = scmp.eq.s32.totalorder %s15, 7
      %p54 = por %p52, %p53
      %p55 = scmp.ne.s32.totalorder %s44, %s45
      %p56 = scmp.eq.s32.totalorder %s15, 0
      %p57 = por %p55, %p56
      %p58 = scmp.ne.s32.totalorder %s44, %s45
      %p59 = scmp.eq.s32.totalorder %s16, 7
      %p60 = por %p58, %p59
      %p62 = scmp.ne.s32.totalorder %s45, %s61
      %p63 = scmp.eq.s32.totalorder %s16, 0
      %p64 = por %p62, %p63
      %s65 = ssub.s32 %s19, %s28
      %s66 = ssub.s32 %s18, %s32
      %s67 = sor.u32 %s65, %s66
      %p68 = scmp.eq.s32.totalorder %s67, 0
      %s70 = sadd.s32 %s69, 1
      %s71 = scalar_select %p68, %s69, %s70
      %p74 = pneg %p68
      %p75 = scmp.eq.s32.totalorder %s10, 7
      %p76 = por %p74, %p75
      %p77 = scmp.ne.s32.totalorder %s69, %s72
      %p78 = scmp.eq.s32.totalorder %s10, 0
      %p79 = por %p77, %p78
      %p80 = scmp.ne.s32.totalorder %s69, %s72
      %p81 = scmp.eq.s32.totalorder %s15, 7
      %p82 = por %p80, %p81
      %p83 = scmp.ne.s32.totalorder %s72, %s73
      %p84 = scmp.eq.s32.totalorder %s15, 0
      %p85 = por %p83, %p84
      %p86 = scmp.ne.s32.totalorder %s72, %s73
      %p87 = scmp.eq.s32.totalorder %s16, 7
      %p88 = por %p86, %p87
      %p90 = scmp.ne.s32.totalorder %s73, %s89
      %p91 = scmp.eq.s32.totalorder %s16, 0
      %p92 = por %p90, %p91
      %s93 = ssub.s32 %s18, %s32
      %p94 = scmp.eq.s32.totalorder %s93, 0
      %s96 = sadd.s32 %s95, 1
      %s97 = scalar_select %p94, %s95, %s96
      %p100 = pneg %p94
      %p101 = scmp.eq.s32.totalorder %s10, 7
      %p102 = por %p100, %p101
      %p103 = scmp.ne.s32.totalorder %s95, %s98
      %p104 = scmp.eq.s32.totalorder %s10, 0
      %p105 = por %p103, %p104
      %p106 = scmp.ne.s32.totalorder %s95, %s98
      %p107 = scmp.eq.s32.totalorder %s15, 7
      %p108 = por %p106, %p107
      %p109 = scmp.ne.s32.totalorder %s98, %s99
      %p110 = scmp.eq.s32.totalorder %s15, 0
      %p111 = por %p109, %p110
      %p112 = scmp.ne.s32.totalorder %s98, %s99
      %p113 = scmp.eq.s32.totalorder %s16, 7
      %p114 = por %p112, %p113
      %p116 = scmp.ne.s32.totalorder %s99, %s115
      %p117 = scmp.eq.s32.totalorder %s16, 0
      %p118 = por %p116, %p117
      %s119 = ssub.s32 %s18, %s32
      %p120 = scmp.eq.s32.totalorder %s119, 0
      %s122 = sadd.s32 %s121, 1
      %s123 = scalar_select %p120, %s121, %s122
      %p126 = pneg %p120
      %p127 = scmp.eq.s32.totalorder %s10, 7
      %p128 = por %p126, %p127
      %p129 = scmp.ne.s32.totalorder %s121, %s124
      %p130 = scmp.eq.s32.totalorder %s10, 0
      %p131 = por %p129, %p130
      %p132 = scmp.ne.s32.totalorder %s121, %s124
      %p133 = scmp.eq.s32.totalorder %s15, 7
      %p134 = por %p132, %p133
      %p135 = scmp.ne.s32.totalorder %s124, %s125
      %p136 = scmp.eq.s32.totalorder %s15, 0
      %p137 = por %p135, %p136
      %p138 = scmp.ne.s32.totalorder %s124, %s125
      %p139 = scmp.eq.s32.totalorder %s16, 7
      %p140 = por %p138, %p139
      %p142 = scmp.ne.s32.totalorder %s125, %s141
      %p143 = scmp.eq.s32.totalorder %s16, 0
      %p144 = por %p142, %p143
      %s145 = ssub.s32 %s17, %s36
      %s146 = ssub.s32 %s18, %s32
      %s147 = sor.u32 %s145, %s146
      %p148 = scmp.eq.s32.totalorder %s147, 0
      %s150 = sadd.s32 %s149, 1
      %s151 = scalar_select %p148, %s149, %s150
      %p154 = pneg %p148
      %p155 = scmp.eq.s32.totalorder %s10, 7
      %p156 = por %p154, %p155
      %p157 = scmp.ne.s32.totalorder %s149, %s152
      %p158 = scmp.eq.s32.totalorder %s10, 0
      %p159 = por %p157, %p158
      %p160 = scmp.ne.s32.totalorder %s149, %s152
      %p161 = scmp.eq.s32.totalorder %s15, 7
      %p162 = por %p160, %p161
      %p163 = scmp.ne.s32.totalorder %s152, %s153
      %p164 = scmp.eq.s32.totalorder %s15, 0
      %p165 = por %p163, %p164
      %p166 = scmp.ne.s32.totalorder %s152, %s153
      %p167 = scmp.eq.s32.totalorder %s16, 7
      %p168 = por %p166, %p167
      %p170 = scmp.ne.s32.totalorder %s153, %s169
      %p171 = scmp.eq.s32.totalorder %s16, 0
      %p172 = por %p170, %p171
      %p173 = scmp.le.s32.totalorder 1, %s10
      %p174 = scmp.lt.s32.totalorder %s10, 9
      %p175 = pnand %p173, %p174
      %p176 = pneg %p175
      // Predicated region
      $region9: #{forward.8} parent=5 // pred_check
        _
      $region10: #{forward.8} parent=5 // pred_check_branch
        %178 = sbr.rel (%p175) target = $region12
      $region11: #{forward.8} parent=5 // pred_region
        %s179 = ssub.s32 %s10, 1
      $region12: #{forward.8} parent=5 // pred_fallthru
        _
      %p180 = scmp.lt.s32.totalorder %s10, 8
      // Predicated region
      $region13: #{forward.8} parent=5 // pred_check
        %p181 = pneg %p180
      $region14: #{forward.8} parent=5 // pred_check_branch
        %183 = sbr.rel (%p181) target = $region16
      $region15: #{forward.8} parent=5 // pred_region
        // Predicated region
        $region17: #{forward.8} parent=15 // pred_check
          %p184 = pneg %p51
        $region18: #{forward.8} parent=15 // pred_check_branch
          %186 = sbr.rel (%p184) target = $region20
        $region19: #{forward.8} parent=15 // pred_region
          %s187 = sand.u32 %s41, 1
          %s188 = sand.u32 %s41, 1
          %s189 = smul.addr %s188, 128
          %s190 = scalar_lea.vmem [#allocation3], %s189
          %s191 = smul.u32 4, %s17
          %s192 = smul.u32 8, %s19
          %s193 = smul.addr %s191, 32
          %s194 = sadd.s32 %s192, %s193
          %s195 = smul.addr %s194, 4
          %s196 = scalar_lea.vmem %s0, %s195
          // Predicated region
          $region21: #{forward.8} parent=19 // pred_check
            _
          $region22: #{forward.8} parent=19 // pred_check_branch
            %198 = sbr.rel (0) target = $region24
          $region23: #{forward.8} parent=19 // pred_region
            // Predicated region
            $region25: #{forward.8} parent=23 // pred_check
              _
            $region26: #{forward.8} parent=23 // pred_check_branch
              %200 = sbr.rel (0) target = $region28
            $region27: #{forward.8} parent=23 // pred_region
              loop: start=0, step=1, limit=1
              $region29: #{forward.8} parent=27 // loop_pre_header
                _
              $region30: #{forward.8} parent=27 // loop_header
                %s202 = sphi 0, %s206
                %p203 = scmp.ge.s32.totalorder %s202, 1
                %s207 = sphi %s196, %s196
                %s208 = sphi %s190, %s190
              $region31: #{forward.8} parent=27 // loop_header_branch
                %205 = sbr.rel (%p203) target = $region35
              $region32: #{forward.8} parent=27 // loop_body
                %v209 = vld [vmem:[%s207] sm:$0xff]
                %210 = vst [vmem:[%s208] sm:$0xff] %v209
                %v211 = vld [vmem:[%s207 + $0x8] sm:$0xff]
                %212 = vst [vmem:[%s208 + $0x8] sm:$0xff] %v211
                %v213 = vld [vmem:[%s207 + $0x10] sm:$0xff]
                %214 = vst [vmem:[%s208 + $0x10] sm:$0xff] %v213
                %v215 = vld [vmem:[%s207 + $0x18] sm:$0xff]
                %216 = vst [vmem:[%s208 + $0x18] sm:$0xff] %v215
                %v217 = vld [vmem:[%s207 + $0x80] sm:$0xff]
                %218 = vst [vmem:[%s208 + $0x20] sm:$0xff] %v217
                %v219 = vld [vmem:[%s207 + $0x88] sm:$0xff]
                %220 = vst [vmem:[%s208 + $0x28] sm:$0xff] %v219
                %v221 = vld [vmem:[%s207 + $0x90] sm:$0xff]
                %222 = vst [vmem:[%s208 + $0x30] sm:$0xff] %v221
                %v223 = vld [vmem:[%s207 + $0x98] sm:$0xff]
                %224 = vst [vmem:[%s208 + $0x38] sm:$0xff] %v223
                %v225 = vld [vmem:[%s207 + $0x100] sm:$0xff]
                %226 = vst [vmem:[%s208 + $0x40] sm:$0xff] %v225
                %v227 = vld [vmem:[%s207 + $0x108] sm:$0xff]
                %228 = vst [vmem:[%s208 + $0x48] sm:$0xff] %v227
                %v229 = vld [vmem:[%s207 + $0x110] sm:$0xff]
                %230 = vst [vmem:[%s208 + $0x50] sm:$0xff] %v229
                %v231 = vld [vmem:[%s207 + $0x118] sm:$0xff]
                %232 = vst [vmem:[%s208 + $0x58] sm:$0xff] %v231
                %v233 = vld [vmem:[%s207 + $0x180] sm:$0xff]
                %234 = vst [vmem:[%s208 + $0x60] sm:$0xff] %v233
                %v235 = vld [vmem:[%s207 + $0x188] sm:$0xff]
                %236 = vst [vmem:[%s208 + $0x68] sm:$0xff] %v235
                %v237 = vld [vmem:[%s207 + $0x190] sm:$0xff]
                %238 = vst [vmem:[%s208 + $0x70] sm:$0xff] %v237
                %v239 = vld [vmem:[%s207 + $0x198] sm:$0xff]
                %240 = vst [vmem:[%s208 + $0x78] sm:$0xff] %v239
              $region33: #{forward.8} parent=27 // loop_footer
                %s206 = sadd.s32 1, %s202
              $region34: #{forward.8} parent=27 // loop_footer_branch
                %201 = sbr.rel target = $region30
              $region35: #{forward.8} parent=27 // loop_exit
                _
            $region28: #{forward.8} parent=23 // pred_fallthru
              _
            // Predicated region
            $region36: #{forward.8} parent=23 // pred_check
              _
            $region37: #{forward.8} parent=23 // pred_check_branch
              %242 = sbr.rel target = $region39
            $region38: #{forward.8} parent=23 // pred_region
              _
            $region39: #{forward.8} parent=23 // pred_fallthru
              _
          $region24: #{forward.8} parent=19 // pred_fallthru
            _
          %243 = vnop
        $region20: #{forward.8} parent=15 // pred_fallthru
          _
        // Predicated region
        $region40: #{forward.8} parent=15 // pred_check
          %p244 = pneg %p79
        $region41: #{forward.8} parent=15 // pred_check_branch
          %246 = sbr.rel (%p244) target = $region43
        $region42: #{forward.8} parent=15 // pred_region
          %s247 = sand.u32 %s69, 1
          %s248 = sand.u32 %s69, 1
          %s249 = smul.addr %s248, 1024
          %s250 = scalar_lea.vmem [#allocation4], %s249
          %s251 = smul.u32 128, %s19
          %s252 = smul.u32 2, %s18
          %s253 = smul.addr %s251, 4
          %s254 = sadd.s32 %s252, %s253
          %s255 = smul.addr %s254, 4
          %s256 = scalar_lea.vmem %s1, %s255
          // Predicated region
          $region44: #{forward.8} parent=42 // pred_check
            _
          $region45: #{forward.8} parent=42 // pred_check_branch
            %258 = sbr.rel (0) target = $region47
          $region46: #{forward.8} parent=42 // pred_region
            // Predicated region
            $region48: #{forward.8} parent=46 // pred_check
              _
            $region49: #{forward.8} parent=46 // pred_check_branch
              %260 = sbr.rel (0) target = $region51
            $region50: #{forward.8} parent=46 // pred_region
              // Predicated region
              $region63: #{forward.8} parent=50 // pred_check
                _
              $region64: #{forward.8} parent=50 // pred_check_branch
                %529 = sbr.rel (0) target = $region66
              $region65: #{forward.8} parent=50 // pred_region
                loop: start=0, step=1, limit=1
                $region67: #{forward.8} parent=65 // loop_pre_header
                  _
                $region68: #{forward.8} parent=65 // loop_header
                  %s531 = sphi 0, %s535
                  %p532 = scmp.ge.s32.totalorder %s531, 1
                  %s536 = sphi %s256, %s256
                  %s537 = sphi %s250, %s250
                $region69: #{forward.8} parent=65 // loop_header_branch
                  %534 = sbr.rel (%p532) target = $region73
                $region70: #{forward.8} parent=65 // loop_body
                  %v538 = vld [vmem:[%s536] sm:$0xff]
                  %539 = vst [vmem:[%s537] sm:$0xff] %v538
                  %v540 = vld [vmem:[%s536 + $0x10] sm:$0xff]
                  %541 = vst [vmem:[%s537 + $0x8] sm:$0xff] %v540
                  %v542 = vld [vmem:[%s536 + $0x20] sm:$0xff]
                  %543 = vst [vmem:[%s537 + $0x10] sm:$0xff] %v542
                  %v544 = vld [vmem:[%s536 + $0x30] sm:$0xff]
                  %545 = vst [vmem:[%s537 + $0x18] sm:$0xff] %v544
                  %v546 = vld [vmem:[%s536 + $0x40] sm:$0xff]
                  %547 = vst [vmem:[%s537 + $0x20] sm:$0xff] %v546
                  %v548 = vld [vmem:[%s536 + $0x50] sm:$0xff]
                  %549 = vst [vmem:[%s537 + $0x28] sm:$0xff] %v548
                  %v550 = vld [vmem:[%s536 + $0x60] sm:$0xff]
                  %551 = vst [vmem:[%s537 + $0x30] sm:$0xff] %v550
                  %v552 = vld [vmem:[%s536 + $0x70] sm:$0xff]
                  %553 = vst [vmem:[%s537 + $0x38] sm:$0xff] %v552
                  %v554 = vld [vmem:[%s536 + $0x80] sm:$0xff]
                  %555 = vst [vmem:[%s537 + $0x40] sm:$0xff] %v554
                  %v556 = vld [vmem:[%s536 + $0x90] sm:$0xff]
                  %557 = vst [vmem:[%s537 + $0x48] sm:$0xff] %v556
                  %v558 = vld [vmem:[%s536 + $0xa0] sm:$0xff]
                  %559 = vst [vmem:[%s537 + $0x50] sm:$0xff] %v558
                  %v560 = vld [vmem:[%s536 + $0xb0] sm:$0xff]
                  %561 = vst [vmem:[%s537 + $0x58] sm:$0xff] %v560
                  %v562 = vld [vmem:[%s536 + $0xc0] sm:$0xff]
                  %563 = vst [vmem:[%s537 + $0x60] sm:$0xff] %v562
                  %v564 = vld [vmem:[%s536 + $0xd0] sm:$0xff]
                  %565 = vst [vmem:[%s537 + $0x68] sm:$0xff] %v564
                  %v566 = vld [vmem:[%s536 + $0xe0] sm:$0xff]
                  %567 = vst [vmem:[%s537 + $0x70] sm:$0xff] %v566
                  %v568 = vld [vmem:[%s536 + $0xf0] sm:$0xff]
                  %569 = vst [vmem:[%s537 + $0x78] sm:$0xff] %v568
                  %v570 = vld [vmem:[%s536 + $0x100] sm:$0xff]
                  %571 = vst [vmem:[%s537 + $0x80] sm:$0xff] %v570
                  %v572 = vld [vmem:[%s536 + $0x110] sm:$0xff]
                  %573 = vst [vmem:[%s537 + $0x88] sm:$0xff] %v572
                  %v574 = vld [vmem:[%s536 + $0x120] sm:$0xff]
                  %575 = vst [vmem:[%s537 + $0x90] sm:$0xff] %v574
                  %v576 = vld [vmem:[%s536 + $0x130] sm:$0xff]
                  %577 = vst [vmem:[%s537 + $0x98] sm:$0xff] %v576
                  %v578 = vld [vmem:[%s536 + $0x140] sm:$0xff]
                  %579 = vst [vmem:[%s537 + $0xa0] sm:$0xff] %v578
                  %v580 = vld [vmem:[%s536 + $0x150] sm:$0xff]
                  %581 = vst [vmem:[%s537 + $0xa8] sm:$0xff] %v580
                  %v582 = vld [vmem:[%s536 + $0x160] sm:$0xff]
                  %583 = vst [vmem:[%s537 + $0xb0] sm:$0xff] %v582
                  %v584 = vld [vmem:[%s536 + $0x170] sm:$0xff]
                  %585 = vst [vmem:[%s537 + $0xb8] sm:$0xff] %v584
                  %v586 = vld [vmem:[%s536 + $0x180] sm:$0xff]
                  %587 = vst [vmem:[%s537 + $0xc0] sm:$0xff] %v586
                  %v588 = vld [vmem:[%s536 + $0x190] sm:$0xff]
                  %589 = vst [vmem:[%s537 + $0xc8] sm:$0xff] %v588
                  %v590 = vld [vmem:[%s536 + $0x1a0] sm:$0xff]
                  %591 = vst [vmem:[%s537 + $0xd0] sm:$0xff] %v590
                  %v592 = vld [vmem:[%s536 + $0x1b0] sm:$0xff]
                  %593 = vst [vmem:[%s537 + $0xd8] sm:$0xff] %v592
                  %v594 = vld [vmem:[%s536 + $0x1c0] sm:$0xff]
                  %595 = vst [vmem:[%s537 + $0xe0] sm:$0xff] %v594
                  %v596 = vld [vmem:[%s536 + $0x1d0] sm:$0xff]
                  %597 = vst [vmem:[%s537 + $0xe8] sm:$0xff] %v596
                  %v598 = vld [vmem:[%s536 + $0x1e0] sm:$0xff]
                  %599 = vst [vmem:[%s537 + $0xf0] sm:$0xff] %v598
                  %v600 = vld [vmem:[%s536 + $0x1f0] sm:$0xff]
                  %601 = vst [vmem:[%s537 + $0xf8] sm:$0xff] %v600
                  %v602 = vld [vmem:[%s536 + $0x200] sm:$0xff]
                  %603 = vst [vmem:[%s537 + $0x100] sm:$0xff] %v602
                  %v604 = vld [vmem:[%s536 + $0x210] sm:$0xff]
                  %605 = vst [vmem:[%s537 + $0x108] sm:$0xff] %v604
                  %v606 = vld [vmem:[%s536 + $0x220] sm:$0xff]
                  %607 = vst [vmem:[%s537 + $0x110] sm:$0xff] %v606
                  %v608 = vld [vmem:[%s536 + $0x230] sm:$0xff]
                  %609 = vst [vmem:[%s537 + $0x118] sm:$0xff] %v608
                  %v610 = vld [vmem:[%s536 + $0x240] sm:$0xff]
                  %611 = vst [vmem:[%s537 + $0x120] sm:$0xff] %v610
                  %v612 = vld [vmem:[%s536 + $0x250] sm:$0xff]
                  %613 = vst [vmem:[%s537 + $0x128] sm:$0xff] %v612
                  %v614 = vld [vmem:[%s536 + $0x260] sm:$0xff]
                  %615 = vst [vmem:[%s537 + $0x130] sm:$0xff] %v614
                  %v616 = vld [vmem:[%s536 + $0x270] sm:$0xff]
                  %617 = vst [vmem:[%s537 + $0x138] sm:$0xff] %v616
                  %v618 = vld [vmem:[%s536 + $0x280] sm:$0xff]
                  %619 = vst [vmem:[%s537 + $0x140] sm:$0xff] %v618
                  %v620 = vld [vmem:[%s536 + $0x290] sm:$0xff]
                  %621 = vst [vmem:[%s537 + $0x148] sm:$0xff] %v620
                  %v622 = vld [vmem:[%s536 + $0x2a0] sm:$0xff]
                  %623 = vst [vmem:[%s537 + $0x150] sm:$0xff] %v622
                  %v624 = vld [vmem:[%s536 + $0x2b0] sm:$0xff]
                  %625 = vst [vmem:[%s537 + $0x158] sm:$0xff] %v624
                  %v626 = vld [vmem:[%s536 + $0x2c0] sm:$0xff]
                  %627 = vst [vmem:[%s537 + $0x160] sm:$0xff] %v626
                  %v628 = vld [vmem:[%s536 + $0x2d0] sm:$0xff]
                  %629 = vst [vmem:[%s537 + $0x168] sm:$0xff] %v628
                  %v630 = vld [vmem:[%s536 + $0x2e0] sm:$0xff]
                  %631 = vst [vmem:[%s537 + $0x170] sm:$0xff] %v630
                  %v632 = vld [vmem:[%s536 + $0x2f0] sm:$0xff]
                  %633 = vst [vmem:[%s537 + $0x178] sm:$0xff] %v632
                  %v634 = vld [vmem:[%s536 + $0x300] sm:$0xff]
                  %635 = vst [vmem:[%s537 + $0x180] sm:$0xff] %v634
                  %v636 = vld [vmem:[%s536 + $0x310] sm:$0xff]
                  %637 = vst [vmem:[%s537 + $0x188] sm:$0xff] %v636
                  %v638 = vld [vmem:[%s536 + $0x320] sm:$0xff]
                  %639 = vst [vmem:[%s537 + $0x190] sm:$0xff] %v638
                  %v640 = vld [vmem:[%s536 + $0x330] sm:$0xff]
                  %641 = vst [vmem:[%s537 + $0x198] sm:$0xff] %v640
                  %v642 = vld [vmem:[%s536 + $0x340] sm:$0xff]
                  %643 = vst [vmem:[%s537 + $0x1a0] sm:$0xff] %v642
                  %v644 = vld [vmem:[%s536 + $0x350] sm:$0xff]
                  %645 = vst [vmem:[%s537 + $0x1a8] sm:$0xff] %v644
                  %v646 = vld [vmem:[%s536 + $0x360] sm:$0xff]
                  %647 = vst [vmem:[%s537 + $0x1b0] sm:$0xff] %v646
                  %v648 = vld [vmem:[%s536 + $0x370] sm:$0xff]
                  %649 = vst [vmem:[%s537 + $0x1b8] sm:$0xff] %v648
                  %v650 = vld [vmem:[%s536 + $0x380] sm:$0xff]
                  %651 = vst [vmem:[%s537 + $0x1c0] sm:$0xff] %v650
                  %v652 = vld [vmem:[%s536 + $0x390] sm:$0xff]
                  %653 = vst [vmem:[%s537 + $0x1c8] sm:$0xff] %v652
                  %v654 = vld [vmem:[%s536 + $0x3a0] sm:$0xff]
                  %655 = vst [vmem:[%s537 + $0x1d0] sm:$0xff] %v654
                  %v656 = vld [vmem:[%s536 + $0x3b0] sm:$0xff]
                  %657 = vst [vmem:[%s537 + $0x1d8] sm:$0xff] %v656
                  %v658 = vld [vmem:[%s536 + $0x3c0] sm:$0xff]
                  %659 = vst [vmem:[%s537 + $0x1e0] sm:$0xff] %v658
                  %v660 = vld [vmem:[%s536 + $0x3d0] sm:$0xff]
                  %661 = vst [vmem:[%s537 + $0x1e8] sm:$0xff] %v660
                  %v662 = vld [vmem:[%s536 + $0x3e0] sm:$0xff]
                  %663 = vst [vmem:[%s537 + $0x1f0] sm:$0xff] %v662
                  %v664 = vld [vmem:[%s536 + $0x3f0] sm:$0xff]
                  %665 = vst [vmem:[%s537 + $0x1f8] sm:$0xff] %v664
                  %v666 = vld [vmem:[%s536 + $0x400] sm:$0xff]
                  %667 = vst [vmem:[%s537 + $0x200] sm:$0xff] %v666
                  %v668 = vld [vmem:[%s536 + $0x410] sm:$0xff]
                  %669 = vst [vmem:[%s537 + $0x208] sm:$0xff] %v668
                  %v670 = vld [vmem:[%s536 + $0x420] sm:$0xff]
                  %671 = vst [vmem:[%s537 + $0x210] sm:$0xff] %v670
                  %v672 = vld [vmem:[%s536 + $0x430] sm:$0xff]
                  %673 = vst [vmem:[%s537 + $0x218] sm:$0xff] %v672
                  %v674 = vld [vmem:[%s536 + $0x440] sm:$0xff]
                  %675 = vst [vmem:[%s537 + $0x220] sm:$0xff] %v674
                  %v676 = vld [vmem:[%s536 + $0x450] sm:$0xff]
                  %677 = vst [vmem:[%s537 + $0x228] sm:$0xff] %v676
                  %v678 = vld [vmem:[%s536 + $0x460] sm:$0xff]
                  %679 = vst [vmem:[%s537 + $0x230] sm:$0xff] %v678
                  %v680 = vld [vmem:[%s536 + $0x470] sm:$0xff]
                  %681 = vst [vmem:[%s537 + $0x238] sm:$0xff] %v680
                  %v682 = vld [vmem:[%s536 + $0x480] sm:$0xff]
                  %683 = vst [vmem:[%s537 + $0x240] sm:$0xff] %v682
                  %v684 = vld [vmem:[%s536 + $0x490] sm:$0xff]
                  %685 = vst [vmem:[%s537 + $0x248] sm:$0xff] %v684
                  %v686 = vld [vmem:[%s536 + $0x4a0] sm:$0xff]
                  %687 = vst [vmem:[%s537 + $0x250] sm:$0xff] %v686
                  %v688 = vld [vmem:[%s536 + $0x4b0] sm:$0xff]
                  %689 = vst [vmem:[%s537 + $0x258] sm:$0xff] %v688
                  %v690 = vld [vmem:[%s536 + $0x4c0] sm:$0xff]
                  %691 = vst [vmem:[%s537 + $0x260] sm:$0xff] %v690
                  %v692 = vld [vmem:[%s536 + $0x4d0] sm:$0xff]
                  %693 = vst [vmem:[%s537 + $0x268] sm:$0xff] %v692
                  %v694 = vld [vmem:[%s536 + $0x4e0] sm:$0xff]
                  %695 = vst [vmem:[%s537 + $0x270] sm:$0xff] %v694
                  %v696 = vld [vmem:[%s536 + $0x4f0] sm:$0xff]
                  %697 = vst [vmem:[%s537 + $0x278] sm:$0xff] %v696
                  %v698 = vld [vmem:[%s536 + $0x500] sm:$0xff]
                  %699 = vst [vmem:[%s537 + $0x280] sm:$0xff] %v698
                  %v700 = vld [vmem:[%s536 + $0x510] sm:$0xff]
                  %701 = vst [vmem:[%s537 + $0x288] sm:$0xff] %v700
                  %v702 = vld [vmem:[%s536 + $0x520] sm:$0xff]
                  %703 = vst [vmem:[%s537 + $0x290] sm:$0xff] %v702
                  %v704 = vld [vmem:[%s536 + $0x530] sm:$0xff]
                  %705 = vst [vmem:[%s537 + $0x298] sm:$0xff] %v704
                  %v706 = vld [vmem:[%s536 + $0x540] sm:$0xff]
                  %707 = vst [vmem:[%s537 + $0x2a0] sm:$0xff] %v706
                  %v708 = vld [vmem:[%s536 + $0x550] sm:$0xff]
                  %709 = vst [vmem:[%s537 + $0x2a8] sm:$0xff] %v708
                  %v710 = vld [vmem:[%s536 + $0x560] sm:$0xff]
                  %711 = vst [vmem:[%s537 + $0x2b0] sm:$0xff] %v710
                  %v712 = vld [vmem:[%s536 + $0x570] sm:$0xff]
                  %713 = vst [vmem:[%s537 + $0x2b8] sm:$0xff] %v712
                  %v714 = vld [vmem:[%s536 + $0x580] sm:$0xff]
                  %715 = vst [vmem:[%s537 + $0x2c0] sm:$0xff] %v714
                  %v716 = vld [vmem:[%s536 + $0x590] sm:$0xff]
                  %717 = vst [vmem:[%s537 + $0x2c8] sm:$0xff] %v716
                  %v718 = vld [vmem:[%s536 + $0x5a0] sm:$0xff]
                  %719 = vst [vmem:[%s537 + $0x2d0] sm:$0xff] %v718
                  %v720 = vld [vmem:[%s536 + $0x5b0] sm:$0xff]
                  %721 = vst [vmem:[%s537 + $0x2d8] sm:$0xff] %v720
                  %v722 = vld [vmem:[%s536 + $0x5c0] sm:$0xff]
                  %723 = vst [vmem:[%s537 + $0x2e0] sm:$0xff] %v722
                  %v724 = vld [vmem:[%s536 + $0x5d0] sm:$0xff]
                  %725 = vst [vmem:[%s537 + $0x2e8] sm:$0xff] %v724
                  %v726 = vld [vmem:[%s536 + $0x5e0] sm:$0xff]
                  %727 = vst [vmem:[%s537 + $0x2f0] sm:$0xff] %v726
                  %v728 = vld [vmem:[%s536 + $0x5f0] sm:$0xff]
                  %729 = vst [vmem:[%s537 + $0x2f8] sm:$0xff] %v728
                  %v730 = vld [vmem:[%s536 + $0x600] sm:$0xff]
                  %731 = vst [vmem:[%s537 + $0x300] sm:$0xff] %v730
                  %v732 = vld [vmem:[%s536 + $0x610] sm:$0xff]
                  %733 = vst [vmem:[%s537 + $0x308] sm:$0xff] %v732
                  %v734 = vld [vmem:[%s536 + $0x620] sm:$0xff]
                  %735 = vst [vmem:[%s537 + $0x310] sm:$0xff] %v734
                  %v736 = vld [vmem:[%s536 + $0x630] sm:$0xff]
                  %737 = vst [vmem:[%s537 + $0x318] sm:$0xff] %v736
                  %v738 = vld [vmem:[%s536 + $0x640] sm:$0xff]
                  %739 = vst [vmem:[%s537 + $0x320] sm:$0xff] %v738
                  %v740 = vld [vmem:[%s536 + $0x650] sm:$0xff]
                  %741 = vst [vmem:[%s537 + $0x328] sm:$0xff] %v740
                  %v742 = vld [vmem:[%s536 + $0x660] sm:$0xff]
                  %743 = vst [vmem:[%s537 + $0x330] sm:$0xff] %v742
                  %v744 = vld [vmem:[%s536 + $0x670] sm:$0xff]
                  %745 = vst [vmem:[%s537 + $0x338] sm:$0xff] %v744
                  %v746 = vld [vmem:[%s536 + $0x680] sm:$0xff]
                  %747 = vst [vmem:[%s537 + $0x340] sm:$0xff] %v746
                  %v748 = vld [vmem:[%s536 + $0x690] sm:$0xff]
                  %749 = vst [vmem:[%s537 + $0x348] sm:$0xff] %v748
                  %v750 = vld [vmem:[%s536 + $0x6a0] sm:$0xff]
                  %751 = vst [vmem:[%s537 + $0x350] sm:$0xff] %v750
                  %v752 = vld [vmem:[%s536 + $0x6b0] sm:$0xff]
                  %753 = vst [vmem:[%s537 + $0x358] sm:$0xff] %v752
                  %v754 = vld [vmem:[%s536 + $0x6c0] sm:$0xff]
                  %755 = vst [vmem:[%s537 + $0x360] sm:$0xff] %v754
                  %v756 = vld [vmem:[%s536 + $0x6d0] sm:$0xff]
                  %757 = vst [vmem:[%s537 + $0x368] sm:$0xff] %v756
                  %v758 = vld [vmem:[%s536 + $0x6e0] sm:$0xff]
                  %759 = vst [vmem:[%s537 + $0x370] sm:$0xff] %v758
                  %v760 = vld [vmem:[%s536 + $0x6f0] sm:$0xff]
                  %761 = vst [vmem:[%s537 + $0x378] sm:$0xff] %v760
                  %v762 = vld [vmem:[%s536 + $0x700] sm:$0xff]
                  %763 = vst [vmem:[%s537 + $0x380] sm:$0xff] %v762
                  %v764 = vld [vmem:[%s536 + $0x710] sm:$0xff]
                  %765 = vst [vmem:[%s537 + $0x388] sm:$0xff] %v764
                  %v766 = vld [vmem:[%s536 + $0x720] sm:$0xff]
                  %767 = vst [vmem:[%s537 + $0x390] sm:$0xff] %v766
                  %v768 = vld [vmem:[%s536 + $0x730] sm:$0xff]
                  %769 = vst [vmem:[%s537 + $0x398] sm:$0xff] %v768
                  %v770 = vld [vmem:[%s536 + $0x740] sm:$0xff]
                  %771 = vst [vmem:[%s537 + $0x3a0] sm:$0xff] %v770
                  %v772 = vld [vmem:[%s536 + $0x750] sm:$0xff]
                  %773 = vst [vmem:[%s537 + $0x3a8] sm:$0xff] %v772
                  %v774 = vld [vmem:[%s536 + $0x760] sm:$0xff]
                  %775 = vst [vmem:[%s537 + $0x3b0] sm:$0xff] %v774
                  %v776 = vld [vmem:[%s536 + $0x770] sm:$0xff]
                  %777 = vst [vmem:[%s537 + $0x3b8] sm:$0xff] %v776
                  %v778 = vld [vmem:[%s536 + $0x780] sm:$0xff]
                  %779 = vst [vmem:[%s537 + $0x3c0] sm:$0xff] %v778
                  %v780 = vld [vmem:[%s536 + $0x790] sm:$0xff]
                  %781 = vst [vmem:[%s537 + $0x3c8] sm:$0xff] %v780
                  %v782 = vld [vmem:[%s536 + $0x7a0] sm:$0xff]
                  %783 = vst [vmem:[%s537 + $0x3d0] sm:$0xff] %v782
                  %v784 = vld [vmem:[%s536 + $0x7b0] sm:$0xff]
                  %785 = vst [vmem:[%s537 + $0x3d8] sm:$0xff] %v784
                  %v786 = vld [vmem:[%s536 + $0x7c0] sm:$0xff]
                  %787 = vst [vmem:[%s537 + $0x3e0] sm:$0xff] %v786
                  %v788 = vld [vmem:[%s536 + $0x7d0] sm:$0xff]
                  %789 = vst [vmem:[%s537 + $0x3e8] sm:$0xff] %v788
                  %v790 = vld [vmem:[%s536 + $0x7e0] sm:$0xff]
                  %791 = vst [vmem:[%s537 + $0x3f0] sm:$0xff] %v790
                  %v792 = vld [vmem:[%s536 + $0x7f0] sm:$0xff]
                  %793 = vst [vmem:[%s537 + $0x3f8] sm:$0xff] %v792
                $region71: #{forward.8} parent=65 // loop_footer
                  %s535 = sadd.s32 1, %s531
                $region72: #{forward.8} parent=65 // loop_footer_branch
                  %530 = sbr.rel target = $region68
                $region73: #{forward.8} parent=65 // loop_exit
                  _
              $region66: #{forward.8} parent=50 // pred_fallthru
                _
              // Predicated region
              $region74: #{forward.8} parent=50 // pred_check
                _
              $region75: #{forward.8} parent=50 // pred_check_branch
                %795 = sbr.rel target = $region77
              $region76: #{forward.8} parent=50 // pred_region
                _
              $region77: #{forward.8} parent=50 // pred_fallthru
                _
            $region51: #{forward.8} parent=46 // pred_fallthru
              _
            // Predicated region
            $region52: #{forward.8} parent=46 // pred_check
              _
            $region53: #{forward.8} parent=46 // pred_check_branch
              %262 = sbr.rel target = $region55
            $region54: #{forward.8} parent=46 // pred_region
              loop: start=0, step=1, limit=1
              $region56: #{forward.8} parent=54 // loop_pre_header
                _
              $region57: #{forward.8} parent=54 // loop_header
                %s265 = sphi 0, %s269
                %p266 = scmp.ge.s32.totalorder %s265, 1
                %s270 = sphi %s256, %s256
                %s271 = sphi %s250, %s250
              $region58: #{forward.8} parent=54 // loop_header_branch
                %268 = sbr.rel (%p266) target = $region62
              $region59: #{forward.8} parent=54 // loop_body
                %v272 = vld [vmem:[%s270] sm:$0xff]
                %273 = vst [vmem:[%s271] sm:$0xff] %v272
                %v274 = vld [vmem:[%s270 + $0x10] sm:$0xff]
                %275 = vst [vmem:[%s271 + $0x8] sm:$0xff] %v274
                %v276 = vld [vmem:[%s270 + $0x20] sm:$0xff]
                %277 = vst [vmem:[%s271 + $0x10] sm:$0xff] %v276
                %v278 = vld [vmem:[%s270 + $0x30] sm:$0xff]
                %279 = vst [vmem:[%s271 + $0x18] sm:$0xff] %v278
                %v280 = vld [vmem:[%s270 + $0x40] sm:$0xff]
                %281 = vst [vmem:[%s271 + $0x20] sm:$0xff] %v280
                %v282 = vld [vmem:[%s270 + $0x50] sm:$0xff]
                %283 = vst [vmem:[%s271 + $0x28] sm:$0xff] %v282
                %v284 = vld [vmem:[%s270 + $0x60] sm:$0xff]
                %285 = vst [vmem:[%s271 + $0x30] sm:$0xff] %v284
                %v286 = vld [vmem:[%s270 + $0x70] sm:$0xff]
                %287 = vst [vmem:[%s271 + $0x38] sm:$0xff] %v286
                %v288 = vld [vmem:[%s270 + $0x80] sm:$0xff]
                %289 = vst [vmem:[%s271 + $0x40] sm:$0xff] %v288
                %v290 = vld [vmem:[%s270 + $0x90] sm:$0xff]
                %291 = vst [vmem:[%s271 + $0x48] sm:$0xff] %v290
                %v292 = vld [vmem:[%s270 + $0xa0] sm:$0xff]
                %293 = vst [vmem:[%s271 + $0x50] sm:$0xff] %v292
                %v294 = vld [vmem:[%s270 + $0xb0] sm:$0xff]
                %295 = vst [vmem:[%s271 + $0x58] sm:$0xff] %v294
                %v296 = vld [vmem:[%s270 + $0xc0] sm:$0xff]
                %297 = vst [vmem:[%s271 + $0x60] sm:$0xff] %v296
                %v298 = vld [vmem:[%s270 + $0xd0] sm:$0xff]
                %299 = vst [vmem:[%s271 + $0x68] sm:$0xff] %v298
                %v300 = vld [vmem:[%s270 + $0xe0] sm:$0xff]
                %301 = vst [vmem:[%s271 + $0x70] sm:$0xff] %v300
                %v302 = vld [vmem:[%s270 + $0xf0] sm:$0xff]
                %303 = vst [vmem:[%s271 + $0x78] sm:$0xff] %v302
                %v304 = vld [vmem:[%s270 + $0x100] sm:$0xff]
                %305 = vst [vmem:[%s271 + $0x80] sm:$0xff] %v304
                %v306 = vld [vmem:[%s270 + $0x110] sm:$0xff]
                %307 = vst [vmem:[%s271 + $0x88] sm:$0xff] %v306
                %v308 = vld [vmem:[%s270 + $0x120] sm:$0xff]
                %309 = vst [vmem:[%s271 + $0x90] sm:$0xff] %v308
                %v310 = vld [vmem:[%s270 + $0x130] sm:$0xff]
                %311 = vst [vmem:[%s271 + $0x98] sm:$0xff] %v310
                %v312 = vld [vmem:[%s270 + $0x140] sm:$0xff]
                %313 = vst [vmem:[%s271 + $0xa0] sm:$0xff] %v312
                %v314 = vld [vmem:[%s270 + $0x150] sm:$0xff]
                %315 = vst [vmem:[%s271 + $0xa8] sm:$0xff] %v314
                %v316 = vld [vmem:[%s270 + $0x160] sm:$0xff]
                %317 = vst [vmem:[%s271 + $0xb0] sm:$0xff] %v316
                %v318 = vld [vmem:[%s270 + $0x170] sm:$0xff]
                %319 = vst [vmem:[%s271 + $0xb8] sm:$0xff] %v318
                %v320 = vld [vmem:[%s270 + $0x180] sm:$0xff]
                %321 = vst [vmem:[%s271 + $0xc0] sm:$0xff] %v320
                %v322 = vld [vmem:[%s270 + $0x190] sm:$0xff]
                %323 = vst [vmem:[%s271 + $0xc8] sm:$0xff] %v322
                %v324 = vld [vmem:[%s270 + $0x1a0] sm:$0xff]
                %325 = vst [vmem:[%s271 + $0xd0] sm:$0xff] %v324
                %v326 = vld [vmem:[%s270 + $0x1b0] sm:$0xff]
                %327 = vst [vmem:[%s271 + $0xd8] sm:$0xff] %v326
                %v328 = vld [vmem:[%s270 + $0x1c0] sm:$0xff]
                %329 = vst [vmem:[%s271 + $0xe0] sm:$0xff] %v328
                %v330 = vld [vmem:[%s270 + $0x1d0] sm:$0xff]
                %331 = vst [vmem:[%s271 + $0xe8] sm:$0xff] %v330
                %v332 = vld [vmem:[%s270 + $0x1e0] sm:$0xff]
                %333 = vst [vmem:[%s271 + $0xf0] sm:$0xff] %v332
                %v334 = vld [vmem:[%s270 + $0x1f0] sm:$0xff]
                %335 = vst [vmem:[%s271 + $0xf8] sm:$0xff] %v334
                %v336 = vld [vmem:[%s270 + $0x200] sm:$0xff]
                %337 = vst [vmem:[%s271 + $0x100] sm:$0xff] %v336
                %v338 = vld [vmem:[%s270 + $0x210] sm:$0xff]
                %339 = vst [vmem:[%s271 + $0x108] sm:$0xff] %v338
                %v340 = vld [vmem:[%s270 + $0x220] sm:$0xff]
                %341 = vst [vmem:[%s271 + $0x110] sm:$0xff] %v340
                %v342 = vld [vmem:[%s270 + $0x230] sm:$0xff]
                %343 = vst [vmem:[%s271 + $0x118] sm:$0xff] %v342
                %v344 = vld [vmem:[%s270 + $0x240] sm:$0xff]
                %345 = vst [vmem:[%s271 + $0x120] sm:$0xff] %v344
                %v346 = vld [vmem:[%s270 + $0x250] sm:$0xff]
                %347 = vst [vmem:[%s271 + $0x128] sm:$0xff] %v346
                %v348 = vld [vmem:[%s270 + $0x260] sm:$0xff]
                %349 = vst [vmem:[%s271 + $0x130] sm:$0xff] %v348
                %v350 = vld [vmem:[%s270 + $0x270] sm:$0xff]
                %351 = vst [vmem:[%s271 + $0x138] sm:$0xff] %v350
                %v352 = vld [vmem:[%s270 + $0x280] sm:$0xff]
                %353 = vst [vmem:[%s271 + $0x140] sm:$0xff] %v352
                %v354 = vld [vmem:[%s270 + $0x290] sm:$0xff]
                %355 = vst [vmem:[%s271 + $0x148] sm:$0xff] %v354
                %v356 = vld [vmem:[%s270 + $0x2a0] sm:$0xff]
                %357 = vst [vmem:[%s271 + $0x150] sm:$0xff] %v356
                %v358 = vld [vmem:[%s270 + $0x2b0] sm:$0xff]
                %359 = vst [vmem:[%s271 + $0x158] sm:$0xff] %v358
                %v360 = vld [vmem:[%s270 + $0x2c0] sm:$0xff]
                %361 = vst [vmem:[%s271 + $0x160] sm:$0xff] %v360
                %v362 = vld [vmem:[%s270 + $0x2d0] sm:$0xff]
                %363 = vst [vmem:[%s271 + $0x168] sm:$0xff] %v362
                %v364 = vld [vmem:[%s270 + $0x2e0] sm:$0xff]
                %365 = vst [vmem:[%s271 + $0x170] sm:$0xff] %v364
                %v366 = vld [vmem:[%s270 + $0x2f0] sm:$0xff]
                %367 = vst [vmem:[%s271 + $0x178] sm:$0xff] %v366
                %v368 = vld [vmem:[%s270 + $0x300] sm:$0xff]
                %369 = vst [vmem:[%s271 + $0x180] sm:$0xff] %v368
                %v370 = vld [vmem:[%s270 + $0x310] sm:$0xff]
                %371 = vst [vmem:[%s271 + $0x188] sm:$0xff] %v370
                %v372 = vld [vmem:[%s270 + $0x320] sm:$0xff]
                %373 = vst [vmem:[%s271 + $0x190] sm:$0xff] %v372
                %v374 = vld [vmem:[%s270 + $0x330] sm:$0xff]
                %375 = vst [vmem:[%s271 + $0x198] sm:$0xff] %v374
                %v376 = vld [vmem:[%s270 + $0x340] sm:$0xff]
                %377 = vst [vmem:[%s271 + $0x1a0] sm:$0xff] %v376
                %v378 = vld [vmem:[%s270 + $0x350] sm:$0xff]
                %379 = vst [vmem:[%s271 + $0x1a8] sm:$0xff] %v378
                %v380 = vld [vmem:[%s270 + $0x360] sm:$0xff]
                %381 = vst [vmem:[%s271 + $0x1b0] sm:$0xff] %v380
                %v382 = vld [vmem:[%s270 + $0x370] sm:$0xff]
                %383 = vst [vmem:[%s271 + $0x1b8] sm:$0xff] %v382
                %v384 = vld [vmem:[%s270 + $0x380] sm:$0xff]
                %385 = vst [vmem:[%s271 + $0x1c0] sm:$0xff] %v384
                %v386 = vld [vmem:[%s270 + $0x390] sm:$0xff]
                %387 = vst [vmem:[%s271 + $0x1c8] sm:$0xff] %v386
                %v388 = vld [vmem:[%s270 + $0x3a0] sm:$0xff]
                %389 = vst [vmem:[%s271 + $0x1d0] sm:$0xff] %v388
                %v390 = vld [vmem:[%s270 + $0x3b0] sm:$0xff]
                %391 = vst [vmem:[%s271 + $0x1d8] sm:$0xff] %v390
                %v392 = vld [vmem:[%s270 + $0x3c0] sm:$0xff]
                %393 = vst [vmem:[%s271 + $0x1e0] sm:$0xff] %v392
                %v394 = vld [vmem:[%s270 + $0x3d0] sm:$0xff]
                %395 = vst [vmem:[%s271 + $0x1e8] sm:$0xff] %v394
                %v396 = vld [vmem:[%s270 + $0x3e0] sm:$0xff]
                %397 = vst [vmem:[%s271 + $0x1f0] sm:$0xff] %v396
                %v398 = vld [vmem:[%s270 + $0x3f0] sm:$0xff]
                %399 = vst [vmem:[%s271 + $0x1f8] sm:$0xff] %v398
                %v400 = vld [vmem:[%s270 + $0x400] sm:$0xff]
                %401 = vst [vmem:[%s271 + $0x200] sm:$0xff] %v400
                %v402 = vld [vmem:[%s270 + $0x410] sm:$0xff]
                %403 = vst [vmem:[%s271 + $0x208] sm:$0xff] %v402
                %v404 = vld [vmem:[%s270 + $0x420] sm:$0xff]
                %405 = vst [vmem:[%s271 + $0x210] sm:$0xff] %v404
                %v406 = vld [vmem:[%s270 + $0x430] sm:$0xff]
                %407 = vst [vmem:[%s271 + $0x218] sm:$0xff] %v406
                %v408 = vld [vmem:[%s270 + $0x440] sm:$0xff]
                %409 = vst [vmem:[%s271 + $0x220] sm:$0xff] %v408
                %v410 = vld [vmem:[%s270 + $0x450] sm:$0xff]
                %411 = vst [vmem:[%s271 + $0x228] sm:$0xff] %v410
                %v412 = vld [vmem:[%s270 + $0x460] sm:$0xff]
                %413 = vst [vmem:[%s271 + $0x230] sm:$0xff] %v412
                %v414 = vld [vmem:[%s270 + $0x470] sm:$0xff]
                %415 = vst [vmem:[%s271 + $0x238] sm:$0xff] %v414
                %v416 = vld [vmem:[%s270 + $0x480] sm:$0xff]
                %417 = vst [vmem:[%s271 + $0x240] sm:$0xff] %v416
                %v418 = vld [vmem:[%s270 + $0x490] sm:$0xff]
                %419 = vst [vmem:[%s271 + $0x248] sm:$0xff] %v418
                %v420 = vld [vmem:[%s270 + $0x4a0] sm:$0xff]
                %421 = vst [vmem:[%s271 + $0x250] sm:$0xff] %v420
                %v422 = vld [vmem:[%s270 + $0x4b0] sm:$0xff]
                %423 = vst [vmem:[%s271 + $0x258] sm:$0xff] %v422
                %v424 = vld [vmem:[%s270 + $0x4c0] sm:$0xff]
                %425 = vst [vmem:[%s271 + $0x260] sm:$0xff] %v424
                %v426 = vld [vmem:[%s270 + $0x4d0] sm:$0xff]
                %427 = vst [vmem:[%s271 + $0x268] sm:$0xff] %v426
                %v428 = vld [vmem:[%s270 + $0x4e0] sm:$0xff]
                %429 = vst [vmem:[%s271 + $0x270] sm:$0xff] %v428
                %v430 = vld [vmem:[%s270 + $0x4f0] sm:$0xff]
                %431 = vst [vmem:[%s271 + $0x278] sm:$0xff] %v430
                %v432 = vld [vmem:[%s270 + $0x500] sm:$0xff]
                %433 = vst [vmem:[%s271 + $0x280] sm:$0xff] %v432
                %v434 = vld [vmem:[%s270 + $0x510] sm:$0xff]
                %435 = vst [vmem:[%s271 + $0x288] sm:$0xff] %v434
                %v436 = vld [vmem:[%s270 + $0x520] sm:$0xff]
                %437 = vst [vmem:[%s271 + $0x290] sm:$0xff] %v436
                %v438 = vld [vmem:[%s270 + $0x530] sm:$0xff]
                %439 = vst [vmem:[%s271 + $0x298] sm:$0xff] %v438
                %v440 = vld [vmem:[%s270 + $0x540] sm:$0xff]
                %441 = vst [vmem:[%s271 + $0x2a0] sm:$0xff] %v440
                %v442 = vld [vmem:[%s270 + $0x550] sm:$0xff]
                %443 = vst [vmem:[%s271 + $0x2a8] sm:$0xff] %v442
                %v444 = vld [vmem:[%s270 + $0x560] sm:$0xff]
                %445 = vst [vmem:[%s271 + $0x2b0] sm:$0xff] %v444
                %v446 = vld [vmem:[%s270 + $0x570] sm:$0xff]
                %447 = vst [vmem:[%s271 + $0x2b8] sm:$0xff] %v446
                %v448 = vld [vmem:[%s270 + $0x580] sm:$0xff]
                %449 = vst [vmem:[%s271 + $0x2c0] sm:$0xff] %v448
                %v450 = vld [vmem:[%s270 + $0x590] sm:$0xff]
                %451 = vst [vmem:[%s271 + $0x2c8] sm:$0xff] %v450
                %v452 = vld [vmem:[%s270 + $0x5a0] sm:$0xff]
                %453 = vst [vmem:[%s271 + $0x2d0] sm:$0xff] %v452
                %v454 = vld [vmem:[%s270 + $0x5b0] sm:$0xff]
                %455 = vst [vmem:[%s271 + $0x2d8] sm:$0xff] %v454
                %v456 = vld [vmem:[%s270 + $0x5c0] sm:$0xff]
                %457 = vst [vmem:[%s271 + $0x2e0] sm:$0xff] %v456
                %v458 = vld [vmem:[%s270 + $0x5d0] sm:$0xff]
                %459 = vst [vmem:[%s271 + $0x2e8] sm:$0xff] %v458
                %v460 = vld [vmem:[%s270 + $0x5e0] sm:$0xff]
                %461 = vst [vmem:[%s271 + $0x2f0] sm:$0xff] %v460
                %v462 = vld [vmem:[%s270 + $0x5f0] sm:$0xff]
                %463 = vst [vmem:[%s271 + $0x2f8] sm:$0xff] %v462
                %v464 = vld [vmem:[%s270 + $0x600] sm:$0xff]
                %465 = vst [vmem:[%s271 + $0x300] sm:$0xff] %v464
                %v466 = vld [vmem:[%s270 + $0x610] sm:$0xff]
                %467 = vst [vmem:[%s271 + $0x308] sm:$0xff] %v466
                %v468 = vld [vmem:[%s270 + $0x620] sm:$0xff]
                %469 = vst [vmem:[%s271 + $0x310] sm:$0xff] %v468
                %v470 = vld [vmem:[%s270 + $0x630] sm:$0xff]
                %471 = vst [vmem:[%s271 + $0x318] sm:$0xff] %v470
                %v472 = vld [vmem:[%s270 + $0x640] sm:$0xff]
                %473 = vst [vmem:[%s271 + $0x320] sm:$0xff] %v472
                %v474 = vld [vmem:[%s270 + $0x650] sm:$0xff]
                %475 = vst [vmem:[%s271 + $0x328] sm:$0xff] %v474
                %v476 = vld [vmem:[%s270 + $0x660] sm:$0xff]
                %477 = vst [vmem:[%s271 + $0x330] sm:$0xff] %v476
                %v478 = vld [vmem:[%s270 + $0x670] sm:$0xff]
                %479 = vst [vmem:[%s271 + $0x338] sm:$0xff] %v478
                %v480 = vld [vmem:[%s270 + $0x680] sm:$0xff]
                %481 = vst [vmem:[%s271 + $0x340] sm:$0xff] %v480
                %v482 = vld [vmem:[%s270 + $0x690] sm:$0xff]
                %483 = vst [vmem:[%s271 + $0x348] sm:$0xff] %v482
                %v484 = vld [vmem:[%s270 + $0x6a0] sm:$0xff]
                %485 = vst [vmem:[%s271 + $0x350] sm:$0xff] %v484
                %v486 = vld [vmem:[%s270 + $0x6b0] sm:$0xff]
                %487 = vst [vmem:[%s271 + $0x358] sm:$0xff] %v486
                %v488 = vld [vmem:[%s270 + $0x6c0] sm:$0xff]
                %489 = vst [vmem:[%s271 + $0x360] sm:$0xff] %v488
                %v490 = vld [vmem:[%s270 + $0x6d0] sm:$0xff]
                %491 = vst [vmem:[%s271 + $0x368] sm:$0xff] %v490
                %v492 = vld [vmem:[%s270 + $0x6e0] sm:$0xff]
                %493 = vst [vmem:[%s271 + $0x370] sm:$0xff] %v492
                %v494 = vld [vmem:[%s270 + $0x6f0] sm:$0xff]
                %495 = vst [vmem:[%s271 + $0x378] sm:$0xff] %v494
                %v496 = vld [vmem:[%s270 + $0x700] sm:$0xff]
                %497 = vst [vmem:[%s271 + $0x380] sm:$0xff] %v496
                %v498 = vld [vmem:[%s270 + $0x710] sm:$0xff]
                %499 = vst [vmem:[%s271 + $0x388] sm:$0xff] %v498
                %v500 = vld [vmem:[%s270 + $0x720] sm:$0xff]
                %501 = vst [vmem:[%s271 + $0x390] sm:$0xff] %v500
                %v502 = vld [vmem:[%s270 + $0x730] sm:$0xff]
                %503 = vst [vmem:[%s271 + $0x398] sm:$0xff] %v502
                %v504 = vld [vmem:[%s270 + $0x740] sm:$0xff]
                %505 = vst [vmem:[%s271 + $0x3a0] sm:$0xff] %v504
                %v506 = vld [vmem:[%s270 + $0x750] sm:$0xff]
                %507 = vst [vmem:[%s271 + $0x3a8] sm:$0xff] %v506
                %v508 = vld [vmem:[%s270 + $0x760] sm:$0xff]
                %509 = vst [vmem:[%s271 + $0x3b0] sm:$0xff] %v508
                %v510 = vld [vmem:[%s270 + $0x770] sm:$0xff]
                %511 = vst [vmem:[%s271 + $0x3b8] sm:$0xff] %v510
                %v512 = vld [vmem:[%s270 + $0x780] sm:$0xff]
                %513 = vst [vmem:[%s271 + $0x3c0] sm:$0xff] %v512
                %v514 = vld [vmem:[%s270 + $0x790] sm:$0xff]
                %515 = vst [vmem:[%s271 + $0x3c8] sm:$0xff] %v514
                %v516 = vld [vmem:[%s270 + $0x7a0] sm:$0xff]
                %517 = vst [vmem:[%s271 + $0x3d0] sm:$0xff] %v516
                %v518 = vld [vmem:[%s270 + $0x7b0] sm:$0xff]
                %519 = vst [vmem:[%s271 + $0x3d8] sm:$0xff] %v518
                %v520 = vld [vmem:[%s270 + $0x7c0] sm:$0xff]
                %521 = vst [vmem:[%s271 + $0x3e0] sm:$0xff] %v520
                %v522 = vld [vmem:[%s270 + $0x7d0] sm:$0xff]
                %523 = vst [vmem:[%s271 + $0x3e8] sm:$0xff] %v522
                %v524 = vld [vmem:[%s270 + $0x7e0] sm:$0xff]
                %525 = vst [vmem:[%s271 + $0x3f0] sm:$0xff] %v524
                %v526 = vld [vmem:[%s270 + $0x7f0] sm:$0xff]
                %527 = vst [vmem:[%s271 + $0x3f8] sm:$0xff] %v526
              $region60: #{forward.8} parent=54 // loop_footer
                %s269 = sadd.s32 1, %s265
              $region61: #{forward.8} parent=54 // loop_footer_branch
                %264 = sbr.rel target = $region57
              $region62: #{forward.8} parent=54 // loop_exit
                _
            $region55: #{forward.8} parent=46 // pred_fallthru
              _
          $region47: #{forward.8} parent=42 // pred_fallthru
            _
          %796 = vnop
        $region43: #{forward.8} parent=15 // pred_fallthru
          _
        // Predicated region
        $region78: #{forward.8} parent=15 // pred_check
          %p797 = pneg %p105
        $region79: #{forward.8} parent=15 // pred_check_branch
          %799 = sbr.rel (%p797) target = $region81
        $region80: #{forward.8} parent=15 // pred_region
          %s800 = smul.u32 2, %s18
          %p801 = scmp.lt.s32.totalorder %s800, 3
          %s802 = scalar_select %p801, %s800, 3
          %s803 = scalar_lea.vmem %s2, %s802
          %s804 = smul.u32 2, %s18
        $region81: #{forward.8} parent=15 // pred_fallthru
          _
        // Predicated region
        $region82: #{forward.8} parent=15 // pred_check
          %p805 = pneg %p131
        $region83: #{forward.8} parent=15 // pred_check_branch
          %807 = sbr.rel (%p805) target = $region85
        $region84: #{forward.8} parent=15 // pred_region
          %s808 = smul.u32 2, %s18
          %p809 = scmp.lt.s32.totalorder %s808, 3
          %s810 = scalar_select %p809, %s808, 3
          %s811 = scalar_lea.vmem %s3, %s810
          %s812 = smul.u32 2, %s18
        $region85: #{forward.8} parent=15 // pred_fallthru
          _
      $region16: #{forward.8} parent=5 // pred_fallthru
        _
      %p813 = scmp.le.s32.totalorder 1, %s10
      %p814 = scmp.lt.s32.totalorder %s10, 9
      %p815 = pnand %p813, %p814
      %p816 = pneg %p815
      // Predicated region
      $region86: #{forward.8} parent=5 // pred_check
        _
      $region87: #{forward.8} parent=5 // pred_check_branch
        %818 = sbr.rel (%p815) target = $region89
      $region88: #{forward.8} parent=5 // pred_region
        %s819 = ssub.s32 %s10, 1
        %s820 = sand.u32 %s44, 1
        %s821 = sand.u32 %s44, 1
        %s822 = smul.addr %s821, 128
        %s823 = scalar_lea.vmem [#allocation3], %s822
        // Predicated region
        $region90: #{forward.8} parent=88 // pred_check
          %p824 = pneg %p57
        $region91: #{forward.8} parent=88 // pred_check_branch
          %826 = sbr.rel (%p824) target = $region93
        $region92: #{forward.8} parent=88 // pred_region
          _
        $region93: #{forward.8} parent=88 // pred_fallthru
          _
        %s827 = sand.u32 %s72, 1
        %s828 = sand.u32 %s72, 1
        %s829 = smul.addr %s828, 1024
        %s830 = scalar_lea.vmem [#allocation4], %s829
        // Predicated region
        $region94: #{forward.8} parent=88 // pred_check
          %p831 = pneg %p85
        $region95: #{forward.8} parent=88 // pred_check_branch
          %833 = sbr.rel (%p831) target = $region97
        $region96: #{forward.8} parent=88 // pred_region
          _
        $region97: #{forward.8} parent=88 // pred_fallthru
          _
        %s834 = sand.u32 %s44, 1
        %s835 = sand.u32 %s44, 1
        %s836 = smul.addr %s835, 128
        %s837 = scalar_lea.vmem [#allocation3], %s836
        %p838 = pneg %p57
        %p839 = pneg %p54
        %s840 = sand.u32 %s72, 1
        %s841 = sand.u32 %s72, 1
        %s842 = smul.addr %s841, 1024
        %s843 = scalar_lea.vmem [#allocation4], %s842
        %p844 = pneg %p85
        %p845 = pneg %p82
        %s846 = smul.u32 2, %s21
        %p847 = scmp.lt.s32.totalorder %s846, 3
        %s848 = scalar_select %p847, %s846, 3
        %s849 = scalar_lea.vmem %s2, %s848
        %p850 = pneg %p111
        %p851 = pneg %p108
        %s852 = smul.u32 2, %s21
        %p853 = scmp.lt.s32.totalorder %s852, 3
        %s854 = scalar_select %p853, %s852, 3
        %s855 = scalar_lea.vmem %s3, %s854
        %p856 = pneg %p137
        %p857 = pneg %p134
        %p858 = pneg %p165
        %p859 = pneg %p162
        %s860 = sand.u32 %s152, 1
        %s861 = sand.u32 %s152, 1
        %s862 = smul.addr %s861, 64
        %s863 = scalar_lea.vmem [#allocation5], %s862
        %s864 = smul.u32 4, %s20
        %s865 = smul.u32 8, %s22
        %s866 = smul.u32 128, %s22
        %s867 = smul.u32 2, %s21
        %s868 = smul.u32 2, %s21
        %p869 = scmp.lt.s32.totalorder %s868, 3
        %s870 = scalar_select %p869, %s868, 3
        %s871 = scalar_lea.vmem %s2, %s870
        %s872 = smul.u32 2, %s21
        %s873 = smul.u32 2, %s21
        %p874 = scmp.lt.s32.totalorder %s873, 3
        %s875 = scalar_select %p874, %s873, 3
        %s876 = scalar_lea.vmem %s3, %s875
        %s877 = smul.u32 2, %s21
        %s878 = smul.u32 4, %s20
        %s879 = smul.u32 2, %s21
        %p880 = scmp.eq.s32.totalorder %s22, 0
        // Predicated region
        $region98: #{forward.8} parent=88 // pred_check
          %p881 = pneg %p880
        $region99: #{forward.8} parent=88 // pred_check_branch
          %883 = sbr.rel (%p881) target = $region101
        $region100: #{forward.8} parent=88 // pred_region
          %884 = vst [vmem:[#allocation2] sm:$0xff] 0.0
          %885 = vst [vmem:[#allocation2 + $0x8] sm:$0xff] 0.0
          %886 = vst [vmem:[#allocation2 + $0x10] sm:$0xff] 0.0
          %887 = vst [vmem:[#allocation2 + $0x18] sm:$0xff] 0.0
          %888 = vst [vmem:[#allocation2 + $0x20] sm:$0xff] 0.0
          %889 = vst [vmem:[#allocation2 + $0x28] sm:$0xff] 0.0
          %890 = vst [vmem:[#allocation2 + $0x30] sm:$0xff] 0.0
          %891 = vst [vmem:[#allocation2 + $0x38] sm:$0xff] 0.0
        $region101: #{forward.8} parent=88 // pred_fallthru
          _
        %v892 = vld [vmem:[#allocation2] sm:$0xff]
        %v893 = vld [vmem:[#allocation2 + $0x8] sm:$0xff]
        %v894 = vld [vmem:[#allocation2 + $0x10] sm:$0xff]
        %v895 = vld [vmem:[#allocation2 + $0x18] sm:$0xff]
        %v896 = vld [vmem:[#allocation2 + $0x20] sm:$0xff]
        %v897 = vld [vmem:[#allocation2 + $0x28] sm:$0xff]
        %v898 = vld [vmem:[#allocation2 + $0x30] sm:$0xff]
        %v899 = vld [vmem:[#allocation2 + $0x38] sm:$0xff]
        %v900 = vld [vmem:[%s823] sm:$0xff]
        %v901 = vld [vmem:[%s823 + $0x8] sm:$0xff]
        %v902 = vld [vmem:[%s823 + $0x10] sm:$0xff]
        %v903 = vld [vmem:[%s823 + $0x18] sm:$0xff]
        %v904 = vld [vmem:[%s823 + $0x20] sm:$0xff]
        %v905 = vld [vmem:[%s823 + $0x28] sm:$0xff]
        %v906 = vld [vmem:[%s823 + $0x30] sm:$0xff]
        %v907 = vld [vmem:[%s823 + $0x38] sm:$0xff]
        %v908 = vld [vmem:[%s823 + $0x40] sm:$0xff]
        %v909 = vld [vmem:[%s823 + $0x48] sm:$0xff]
        %v910 = vld [vmem:[%s823 + $0x50] sm:$0xff]
        %v911 = vld [vmem:[%s823 + $0x58] sm:$0xff]
        %v912 = vld [vmem:[%s823 + $0x60] sm:$0xff]
        %v913 = vld [vmem:[%s823 + $0x68] sm:$0xff]
        %v914 = vld [vmem:[%s823 + $0x70] sm:$0xff]
        %v915 = vld [vmem:[%s823 + $0x78] sm:$0xff]
        %v916 = vld [vmem:[%s830] sm:$0xff]
        %v917 = vld [vmem:[%s830 + $0x8] sm:$0xff]
        %v918 = vld [vmem:[%s830 + $0x10] sm:$0xff]
        %v919 = vld [vmem:[%s830 + $0x18] sm:$0xff]
        %v920 = vld [vmem:[%s830 + $0x20] sm:$0xff]
        %v921 = vld [vmem:[%s830 + $0x28] sm:$0xff]
        %v922 = vld [vmem:[%s830 + $0x30] sm:$0xff]
        %v923 = vld [vmem:[%s830 + $0x38] sm:$0xff]
        %v924 = vld [vmem:[%s830 + $0x40] sm:$0xff]
        %v925 = vld [vmem:[%s830 + $0x48] sm:$0xff]
        %v926 = vld [vmem:[%s830 + $0x50] sm:$0xff]
        %v927 = vld [vmem:[%s830 + $0x58] sm:$0xff]
        %v928 = vld [vmem:[%s830 + $0x60] sm:$0xff]
        %v929 = vld [vmem:[%s830 + $0x68] sm:$0xff]
        %v930 = vld [vmem:[%s830 + $0x70] sm:$0xff]
        %v931 = vld [vmem:[%s830 + $0x78] sm:$0xff]
        %v932 = vld [vmem:[%s830 + $0x80] sm:$0xff]
        %v933 = vld [vmem:[%s830 + $0x88] sm:$0xff]
        %v934 = vld [vmem:[%s830 + $0x90] sm:$0xff]
        %v935 = vld [vmem:[%s830 + $0x98] sm:$0xff]
        %v936 = vld [vmem:[%s830 + $0xa0] sm:$0xff]
        %v937 = vld [vmem:[%s830 + $0xa8] sm:$0xff]
        %v938 = vld [vmem:[%s830 + $0xb0] sm:$0xff]
        %v939 = vld [vmem:[%s830 + $0xb8] sm:$0xff]
        %v940 = vld [vmem:[%s830 + $0xc0] sm:$0xff]
        %v941 = vld [vmem:[%s830 + $0xc8] sm:$0xff]
        %v942 = vld [vmem:[%s830 + $0xd0] sm:$0xff]
        %v943 = vld [vmem:[%s830 + $0xd8] sm:$0xff]
        %v944 = vld [vmem:[%s830 + $0xe0] sm:$0xff]
        %v945 = vld [vmem:[%s830 + $0xe8] sm:$0xff]
        %v946 = vld [vmem:[%s830 + $0xf0] sm:$0xff]
        %v947 = vld [vmem:[%s830 + $0xf8] sm:$0xff]
        %v948 = vld [vmem:[%s830 + $0x100] sm:$0xff]
        %v949 = vld [vmem:[%s830 + $0x108] sm:$0xff]
        %v950 = vld [vmem:[%s830 + $0x110] sm:$0xff]
        %v951 = vld [vmem:[%s830 + $0x118] sm:$0xff]
        %v952 = vld [vmem:[%s830 + $0x120] sm:$0xff]
        %v953 = vld [vmem:[%s830 + $0x128] sm:$0xff]
        %v954 = vld [vmem:[%s830 + $0x130] sm:$0xff]
        %v955 = vld [vmem:[%s830 + $0x138] sm:$0xff]
        %v956 = vld [vmem:[%s830 + $0x140] sm:$0xff]
        %v957 = vld [vmem:[%s830 + $0x148] sm:$0xff]
        %v958 = vld [vmem:[%s830 + $0x150] sm:$0xff]
        %v959 = vld [vmem:[%s830 + $0x158] sm:$0xff]
        %v960 = vld [vmem:[%s830 + $0x160] sm:$0xff]
        %v961 = vld [vmem:[%s830 + $0x168] sm:$0xff]
        %v962 = vld [vmem:[%s830 + $0x170] sm:$0xff]
        %v963 = vld [vmem:[%s830 + $0x178] sm:$0xff]
        %v964 = vld [vmem:[%s830 + $0x180] sm:$0xff]
        %v965 = vld [vmem:[%s830 + $0x188] sm:$0xff]
        %v966 = vld [vmem:[%s830 + $0x190] sm:$0xff]
        %v967 = vld [vmem:[%s830 + $0x198] sm:$0xff]
        %v968 = vld [vmem:[%s830 + $0x1a0] sm:$0xff]
        %v969 = vld [vmem:[%s830 + $0x1a8] sm:$0xff]
        %v970 = vld [vmem:[%s830 + $0x1b0] sm:$0xff]
        %v971 = vld [vmem:[%s830 + $0x1b8] sm:$0xff]
        %v972 = vld [vmem:[%s830 + $0x1c0] sm:$0xff]
        %v973 = vld [vmem:[%s830 + $0x1c8] sm:$0xff]
        %v974 = vld [vmem:[%s830 + $0x1d0] sm:$0xff]
        %v975 = vld [vmem:[%s830 + $0x1d8] sm:$0xff]
        %v976 = vld [vmem:[%s830 + $0x1e0] sm:$0xff]
        %v977 = vld [vmem:[%s830 + $0x1e8] sm:$0xff]
        %v978 = vld [vmem:[%s830 + $0x1f0] sm:$0xff]
        %v979 = vld [vmem:[%s830 + $0x1f8] sm:$0xff]
        %v980 = vld [vmem:[%s830 + $0x200] sm:$0xff]
        %v981 = vld [vmem:[%s830 + $0x208] sm:$0xff]
        %v982 = vld [vmem:[%s830 + $0x210] sm:$0xff]
        %v983 = vld [vmem:[%s830 + $0x218] sm:$0xff]
        %v984 = vld [vmem:[%s830 + $0x220] sm:$0xff]
        %v985 = vld [vmem:[%s830 + $0x228] sm:$0xff]
        %v986 = vld [vmem:[%s830 + $0x230] sm:$0xff]
        %v987 = vld [vmem:[%s830 + $0x238] sm:$0xff]
        %v988 = vld [vmem:[%s830 + $0x240] sm:$0xff]
        %v989 = vld [vmem:[%s830 + $0x248] sm:$0xff]
        %v990 = vld [vmem:[%s830 + $0x250] sm:$0xff]
        %v991 = vld [vmem:[%s830 + $0x258] sm:$0xff]
        %v992 = vld [vmem:[%s830 + $0x260] sm:$0xff]
        %v993 = vld [vmem:[%s830 + $0x268] sm:$0xff]
        %v994 = vld [vmem:[%s830 + $0x270] sm:$0xff]
        %v995 = vld [vmem:[%s830 + $0x278] sm:$0xff]
        %v996 = vld [vmem:[%s830 + $0x280] sm:$0xff]
        %v997 = vld [vmem:[%s830 + $0x288] sm:$0xff]
        %v998 = vld [vmem:[%s830 + $0x290] sm:$0xff]
        %v999 = vld [vmem:[%s830 + $0x298] sm:$0xff]
        %v1000 = vld [vmem:[%s830 + $0x2a0] sm:$0xff]
        %v1001 = vld [vmem:[%s830 + $0x2a8] sm:$0xff]
        %v1002 = vld [vmem:[%s830 + $0x2b0] sm:$0xff]
        %v1003 = vld [vmem:[%s830 + $0x2b8] sm:$0xff]
        %v1004 = vld [vmem:[%s830 + $0x2c0] sm:$0xff]
        %v1005 = vld [vmem:[%s830 + $0x2c8] sm:$0xff]
        %v1006 = vld [vmem:[%s830 + $0x2d0] sm:$0xff]
        %v1007 = vld [vmem:[%s830 + $0x2d8] sm:$0xff]
        %v1008 = vld [vmem:[%s830 + $0x2e0] sm:$0xff]
        %v1009 = vld [vmem:[%s830 + $0x2e8] sm:$0xff]
        %v1010 = vld [vmem:[%s830 + $0x2f0] sm:$0xff]
        %v1011 = vld [vmem:[%s830 + $0x2f8] sm:$0xff]
        %v1012 = vld [vmem:[%s830 + $0x300] sm:$0xff]
        %v1013 = vld [vmem:[%s830 + $0x308] sm:$0xff]
        %v1014 = vld [vmem:[%s830 + $0x310] sm:$0xff]
        %v1015 = vld [vmem:[%s830 + $0x318] sm:$0xff]
        %v1016 = vld [vmem:[%s830 + $0x320] sm:$0xff]
        %v1017 = vld [vmem:[%s830 + $0x328] sm:$0xff]
        %v1018 = vld [vmem:[%s830 + $0x330] sm:$0xff]
        %v1019 = vld [vmem:[%s830 + $0x338] sm:$0xff]
        %v1020 = vld [vmem:[%s830 + $0x340] sm:$0xff]
        %v1021 = vld [vmem:[%s830 + $0x348] sm:$0xff]
        %v1022 = vld [vmem:[%s830 + $0x350] sm:$0xff]
        %v1023 = vld [vmem:[%s830 + $0x358] sm:$0xff]
        %v1024 = vld [vmem:[%s830 + $0x360] sm:$0xff]
        %v1025 = vld [vmem:[%s830 + $0x368] sm:$0xff]
        %v1026 = vld [vmem:[%s830 + $0x370] sm:$0xff]
        %v1027 = vld [vmem:[%s830 + $0x378] sm:$0xff]
        %v1028 = vld [vmem:[%s830 + $0x380] sm:$0xff]
        %v1029 = vld [vmem:[%s830 + $0x388] sm:$0xff]
        %v1030 = vld [vmem:[%s830 + $0x390] sm:$0xff]
        %v1031 = vld [vmem:[%s830 + $0x398] sm:$0xff]
        %v1032 = vld [vmem:[%s830 + $0x3a0] sm:$0xff]
        %v1033 = vld [vmem:[%s830 + $0x3a8] sm:$0xff]
        %v1034 = vld [vmem:[%s830 + $0x3b0] sm:$0xff]
        %v1035 = vld [vmem:[%s830 + $0x3b8] sm:$0xff]
        %v1036 = vld [vmem:[%s830 + $0x3c0] sm:$0xff]
        %v1037 = vld [vmem:[%s830 + $0x3c8] sm:$0xff]
        %v1038 = vld [vmem:[%s830 + $0x3d0] sm:$0xff]
        %v1039 = vld [vmem:[%s830 + $0x3d8] sm:$0xff]
        %v1040 = vld [vmem:[%s830 + $0x3e0] sm:$0xff]
        %v1041 = vld [vmem:[%s830 + $0x3e8] sm:$0xff]
        %v1042 = vld [vmem:[%s830 + $0x3f0] sm:$0xff]
        %v1043 = vld [vmem:[%s830 + $0x3f8] sm:$0xff]
        %v1060 = vunpack.c.l.b16 %v900
        %v1061 = vunpack.c.h.b16 %v900
        %v1062 = vunpack.c.l.b16 %v901
        %v1063 = vunpack.c.h.b16 %v901
        %v1064 = vunpack.c.l.b16 %v902
        %v1065 = vunpack.c.h.b16 %v902
        %v1066 = vunpack.c.l.b16 %v903
        %v1067 = vunpack.c.h.b16 %v903
        %v1068 = vunpack.c.l.b16 %v904
        %v1069 = vunpack.c.h.b16 %v904
        %v1070 = vunpack.c.l.b16 %v905
        %v1071 = vunpack.c.h.b16 %v905
        %v1072 = vunpack.c.l.b16 %v906
        %v1073 = vunpack.c.h.b16 %v906
        %v1074 = vunpack.c.l.b16 %v907
        %v1075 = vunpack.c.h.b16 %v907
        %v1076 = vunpack.c.l.b16 %v908
        %v1077 = vunpack.c.h.b16 %v908
        %v1078 = vunpack.c.l.b16 %v909
        %v1079 = vunpack.c.h.b16 %v909
        %v1080 = vunpack.c.l.b16 %v910
        %v1081 = vunpack.c.h.b16 %v910
        %v1082 = vunpack.c.l.b16 %v911
        %v1083 = vunpack.c.h.b16 %v911
        %v1084 = vunpack.c.l.b16 %v912
        %v1085 = vunpack.c.h.b16 %v912
        %v1086 = vunpack.c.l.b16 %v913
        %v1087 = vunpack.c.h.b16 %v913
        %v1088 = vunpack.c.l.b16 %v914
        %v1089 = vunpack.c.h.b16 %v914
        %v1090 = vunpack.c.l.b16 %v915
        %v1091 = vunpack.c.h.b16 %v915
        %v1092 = vpack.c.b16 %v1068, %v1060
        %v1093 = vpack.c.b16 %v1069, %v1061
        %v1094 = vpack.c.b16 %v1070, %v1062
        %v1095 = vpack.c.b16 %v1071, %v1063
        %v1096 = vpack.c.b16 %v1072, %v1064
        %v1097 = vpack.c.b16 %v1073, %v1065
        %v1098 = vpack.c.b16 %v1074, %v1066
        %v1099 = vpack.c.b16 %v1075, %v1067
        %v1100 = vpack.c.b16 %v1084, %v1076
        %v1101 = vpack.c.b16 %v1085, %v1077
        %v1102 = vpack.c.b16 %v1086, %v1078
        %v1103 = vpack.c.b16 %v1087, %v1079
        %v1104 = vpack.c.b16 %v1088, %v1080
        %v1105 = vpack.c.b16 %v1089, %v1081
        %v1106 = vpack.c.b16 %v1090, %v1082
        %v1107 = vpack.c.b16 %v1091, %v1083
        %v1252 = vunpack.c.l.b16 %v916
        %v1253 = vunpack.c.h.b16 %v916
        %v1254 = vunpack.c.l.b16 %v917
        %v1255 = vunpack.c.h.b16 %v917
        %v1256 = vunpack.c.l.b16 %v918
        %v1257 = vunpack.c.h.b16 %v918
        %v1258 = vunpack.c.l.b16 %v919
        %v1259 = vunpack.c.h.b16 %v919
        %v1260 = vunpack.c.l.b16 %v920
        %v1261 = vunpack.c.h.b16 %v920
        %v1262 = vunpack.c.l.b16 %v921
        %v1263 = vunpack.c.h.b16 %v921
        %v1264 = vunpack.c.l.b16 %v922
        %v1265 = vunpack.c.h.b16 %v922
        %v1266 = vunpack.c.l.b16 %v923
        %v1267 = vunpack.c.h.b16 %v923
        %v1268 = vunpack.c.l.b16 %v924
        %v1269 = vunpack.c.h.b16 %v924
        %v1270 = vunpack.c.l.b16 %v925
        %v1271 = vunpack.c.h.b16 %v925
        %v1272 = vunpack.c.l.b16 %v926
        %v1273 = vunpack.c.h.b16 %v926
        %v1274 = vunpack.c.l.b16 %v927
        %v1275 = vunpack.c.h.b16 %v927
        %v1276 = vunpack.c.l.b16 %v928
        %v1277 = vunpack.c.h.b16 %v928
        %v1278 = vunpack.c.l.b16 %v929
        %v1279 = vunpack.c.h.b16 %v929
        %v1280 = vunpack.c.l.b16 %v930
        %v1281 = vunpack.c.h.b16 %v930
        %v1282 = vunpack.c.l.b16 %v931
        %v1283 = vunpack.c.h.b16 %v931
        %v1284 = vunpack.c.l.b16 %v932
        %v1285 = vunpack.c.h.b16 %v932
        %v1286 = vunpack.c.l.b16 %v933
        %v1287 = vunpack.c.h.b16 %v933
        %v1288 = vunpack.c.l.b16 %v934
        %v1289 = vunpack.c.h.b16 %v934
        %v1290 = vunpack.c.l.b16 %v935
        %v1291 = vunpack.c.h.b16 %v935
        %v1292 = vunpack.c.l.b16 %v936
        %v1293 = vunpack.c.h.b16 %v936
        %v1294 = vunpack.c.l.b16 %v937
        %v1295 = vunpack.c.h.b16 %v937
        %v1296 = vunpack.c.l.b16 %v938
        %v1297 = vunpack.c.h.b16 %v938
        %v1298 = vunpack.c.l.b16 %v939
        %v1299 = vunpack.c.h.b16 %v939
        %v1300 = vunpack.c.l.b16 %v940
        %v1301 = vunpack.c.h.b16 %v940
        %v1302 = vunpack.c.l.b16 %v941
        %v1303 = vunpack.c.h.b16 %v941
        %v1304 = vunpack.c.l.b16 %v942
        %v1305 = vunpack.c.h.b16 %v942
        %v1306 = vunpack.c.l.b16 %v943
        %v1307 = vunpack.c.h.b16 %v943
        %v1308 = vunpack.c.l.b16 %v944
        %v1309 = vunpack.c.h.b16 %v944
        %v1310 = vunpack.c.l.b16 %v945
        %v1311 = vunpack.c.h.b16 %v945
        %v1312 = vunpack.c.l.b16 %v946
        %v1313 = vunpack.c.h.b16 %v946
        %v1314 = vunpack.c.l.b16 %v947
        %v1315 = vunpack.c.h.b16 %v947
        %v1316 = vunpack.c.l.b16 %v948
        %v1317 = vunpack.c.h.b16 %v948
        %v1318 = vunpack.c.l.b16 %v949
        %v1319 = vunpack.c.h.b16 %v949
        %v1320 = vunpack.c.l.b16 %v950
        %v1321 = vunpack.c.h.b16 %v950
        %v1322 = vunpack.c.l.b16 %v951
        %v1323 = vunpack.c.h.b16 %v951
        %v1324 = vunpack.c.l.b16 %v952
        %v1325 = vunpack.c.h.b16 %v952
        %v1326 = vunpack.c.l.b16 %v953
        %v1327 = vunpack.c.h.b16 %v953
        %v1328 = vunpack.c.l.b16 %v954
        %v1329 = vunpack.c.h.b16 %v954
        %v1330 = vunpack.c.l.b16 %v955
        %v1331 = vunpack.c.h.b16 %v955
        %v1332 = vunpack.c.l.b16 %v956
        %v1333 = vunpack.c.h.b16 %v956
        %v1334 = vunpack.c.l.b16 %v957
        %v1335 = vunpack.c.h.b16 %v957
        %v1336 = vunpack.c.l.b16 %v958
        %v1337 = vunpack.c.h.b16 %v958
        %v1338 = vunpack.c.l.b16 %v959
        %v1339 = vunpack.c.h.b16 %v959
        %v1340 = vunpack.c.l.b16 %v960
        %v1341 = vunpack.c.h.b16 %v960
        %v1342 = vunpack.c.l.b16 %v961
        %v1343 = vunpack.c.h.b16 %v961
        %v1344 = vunpack.c.l.b16 %v962
        %v1345 = vunpack.c.h.b16 %v962
        %v1346 = vunpack.c.l.b16 %v963
        %v1347 = vunpack.c.h.b16 %v963
        %v1348 = vunpack.c.l.b16 %v964
        %v1349 = vunpack.c.h.b16 %v964
        %v1350 = vunpack.c.l.b16 %v965
        %v1351 = vunpack.c.h.b16 %v965
        %v1352 = vunpack.c.l.b16 %v966
        %v1353 = vunpack.c.h.b16 %v966
        %v1354 = vunpack.c.l.b16 %v967
        %v1355 = vunpack.c.h.b16 %v967
        %v1356 = vunpack.c.l.b16 %v968
        %v1357 = vunpack.c.h.b16 %v968
        %v1358 = vunpack.c.l.b16 %v969
        %v1359 = vunpack.c.h.b16 %v969
        %v1360 = vunpack.c.l.b16 %v970
        %v1361 = vunpack.c.h.b16 %v970
        %v1362 = vunpack.c.l.b16 %v971
        %v1363 = vunpack.c.h.b16 %v971
        %v1364 = vunpack.c.l.b16 %v972
        %v1365 = vunpack.c.h.b16 %v972
        %v1366 = vunpack.c.l.b16 %v973
        %v1367 = vunpack.c.h.b16 %v973
        %v1368 = vunpack.c.l.b16 %v974
        %v1369 = vunpack.c.h.b16 %v974
        %v1370 = vunpack.c.l.b16 %v975
        %v1371 = vunpack.c.h.b16 %v975
        %v1372 = vunpack.c.l.b16 %v976
        %v1373 = vunpack.c.h.b16 %v976
        %v1374 = vunpack.c.l.b16 %v977
        %v1375 = vunpack.c.h.b16 %v977
        %v1376 = vunpack.c.l.b16 %v978
        %v1377 = vunpack.c.h.b16 %v978
        %v1378 = vunpack.c.l.b16 %v979
        %v1379 = vunpack.c.h.b16 %v979
        %v1380 = vunpack.c.l.b16 %v980
        %v1381 = vunpack.c.h.b16 %v980
        %v1382 = vunpack.c.l.b16 %v981
        %v1383 = vunpack.c.h.b16 %v981
        %v1384 = vunpack.c.l.b16 %v982
        %v1385 = vunpack.c.h.b16 %v982
        %v1386 = vunpack.c.l.b16 %v983
        %v1387 = vunpack.c.h.b16 %v983
        %v1388 = vunpack.c.l.b16 %v984
        %v1389 = vunpack.c.h.b16 %v984
        %v1390 = vunpack.c.l.b16 %v985
        %v1391 = vunpack.c.h.b16 %v985
        %v1392 = vunpack.c.l.b16 %v986
        %v1393 = vunpack.c.h.b16 %v986
        %v1394 = vunpack.c.l.b16 %v987
        %v1395 = vunpack.c.h.b16 %v987
        %v1396 = vunpack.c.l.b16 %v988
        %v1397 = vunpack.c.h.b16 %v988
        %v1398 = vunpack.c.l.b16 %v989
        %v1399 = vunpack.c.h.b16 %v989
        %v1400 = vunpack.c.l.b16 %v990
        %v1401 = vunpack.c.h.b16 %v990
        %v1402 = vunpack.c.l.b16 %v991
        %v1403 = vunpack.c.h.b16 %v991
        %v1404 = vunpack.c.l.b16 %v992
        %v1405 = vunpack.c.h.b16 %v992
        %v1406 = vunpack.c.l.b16 %v993
        %v1407 = vunpack.c.h.b16 %v993
        %v1408 = vunpack.c.l.b16 %v994
        %v1409 = vunpack.c.h.b16 %v994
        %v1410 = vunpack.c.l.b16 %v995
        %v1411 = vunpack.c.h.b16 %v995
        %v1412 = vunpack.c.l.b16 %v996
        %v1413 = vunpack.c.h.b16 %v996
        %v1414 = vunpack.c.l.b16 %v997
        %v1415 = vunpack.c.h.b16 %v997
        %v1416 = vunpack.c.l.b16 %v998
        %v1417 = vunpack.c.h.b16 %v998
        %v1418 = vunpack.c.l.b16 %v999
        %v1419 = vunpack.c.h.b16 %v999
        %v1420 = vunpack.c.l.b16 %v1000
        %v1421 = vunpack.c.h.b16 %v1000
        %v1422 = vunpack.c.l.b16 %v1001
        %v1423 = vunpack.c.h.b16 %v1001
        %v1424 = vunpack.c.l.b16 %v1002
        %v1425 = vunpack.c.h.b16 %v1002
        %v1426 = vunpack.c.l.b16 %v1003
        %v1427 = vunpack.c.h.b16 %v1003
        %v1428 = vunpack.c.l.b16 %v1004
        %v1429 = vunpack.c.h.b16 %v1004
        %v1430 = vunpack.c.l.b16 %v1005
        %v1431 = vunpack.c.h.b16 %v1005
        %v1432 = vunpack.c.l.b16 %v1006
        %v1433 = vunpack.c.h.b16 %v1006
        %v1434 = vunpack.c.l.b16 %v1007
        %v1435 = vunpack.c.h.b16 %v1007
        %v1436 = vunpack.c.l.b16 %v1008
        %v1437 = vunpack.c.h.b16 %v1008
        %v1438 = vunpack.c.l.b16 %v1009
        %v1439 = vunpack.c.h.b16 %v1009
        %v1440 = vunpack.c.l.b16 %v1010
        %v1441 = vunpack.c.h.b16 %v1010
        %v1442 = vunpack.c.l.b16 %v1011
        %v1443 = vunpack.c.h.b16 %v1011
        %v1444 = vunpack.c.l.b16 %v1012
        %v1445 = vunpack.c.h.b16 %v1012
        %v1446 = vunpack.c.l.b16 %v1013
        %v1447 = vunpack.c.h.b16 %v1013
        %v1448 = vunpack.c.l.b16 %v1014
        %v1449 = vunpack.c.h.b16 %v1014
        %v1450 = vunpack.c.l.b16 %v1015
        %v1451 = vunpack.c.h.b16 %v1015
        %v1452 = vunpack.c.l.b16 %v1016
        %v1453 = vunpack.c.h.b16 %v1016
        %v1454 = vunpack.c.l.b16 %v1017
        %v1455 = vunpack.c.h.b16 %v1017
        %v1456 = vunpack.c.l.b16 %v1018
        %v1457 = vunpack.c.h.b16 %v1018
        %v1458 = vunpack.c.l.b16 %v1019
        %v1459 = vunpack.c.h.b16 %v1019
        %v1460 = vunpack.c.l.b16 %v1020
        %v1461 = vunpack.c.h.b16 %v1020
        %v1462 = vunpack.c.l.b16 %v1021
        %v1463 = vunpack.c.h.b16 %v1021
        %v1464 = vunpack.c.l.b16 %v1022
        %v1465 = vunpack.c.h.b16 %v1022
        %v1466 = vunpack.c.l.b16 %v1023
        %v1467 = vunpack.c.h.b16 %v1023
        %v1468 = vunpack.c.l.b16 %v1024
        %v1469 = vunpack.c.h.b16 %v1024
        %v1470 = vunpack.c.l.b16 %v1025
        %v1471 = vunpack.c.h.b16 %v1025
        %v1472 = vunpack.c.l.b16 %v1026
        %v1473 = vunpack.c.h.b16 %v1026
        %v1474 = vunpack.c.l.b16 %v1027
        %v1475 = vunpack.c.h.b16 %v1027
        %v1476 = vunpack.c.l.b16 %v1028
        %v1477 = vunpack.c.h.b16 %v1028
        %v1478 = vunpack.c.l.b16 %v1029
        %v1479 = vunpack.c.h.b16 %v1029
        %v1480 = vunpack.c.l.b16 %v1030
        %v1481 = vunpack.c.h.b16 %v1030
        %v1482 = vunpack.c.l.b16 %v1031
        %v1483 = vunpack.c.h.b16 %v1031
        %v1484 = vunpack.c.l.b16 %v1032
        %v1485 = vunpack.c.h.b16 %v1032
        %v1486 = vunpack.c.l.b16 %v1033
        %v1487 = vunpack.c.h.b16 %v1033
        %v1488 = vunpack.c.l.b16 %v1034
        %v1489 = vunpack.c.h.b16 %v1034
        %v1490 = vunpack.c.l.b16 %v1035
        %v1491 = vunpack.c.h.b16 %v1035
        %v1492 = vunpack.c.l.b16 %v1036
        %v1493 = vunpack.c.h.b16 %v1036
        %v1494 = vunpack.c.l.b16 %v1037
        %v1495 = vunpack.c.h.b16 %v1037
        %v1496 = vunpack.c.l.b16 %v1038
        %v1497 = vunpack.c.h.b16 %v1038
        %v1498 = vunpack.c.l.b16 %v1039
        %v1499 = vunpack.c.h.b16 %v1039
        %v1500 = vunpack.c.l.b16 %v1040
        %v1501 = vunpack.c.h.b16 %v1040
        %v1502 = vunpack.c.l.b16 %v1041
        %v1503 = vunpack.c.h.b16 %v1041
        %v1504 = vunpack.c.l.b16 %v1042
        %v1505 = vunpack.c.h.b16 %v1042
        %v1506 = vunpack.c.l.b16 %v1043
        %v1507 = vunpack.c.h.b16 %v1043
        %v1508 = vpack.c.b16 %v1254, %v1252
        %v1509 = vpack.c.b16 %v1255, %v1253
        %v1510 = vpack.c.b16 %v1258, %v1256
        %v1511 = vpack.c.b16 %v1259, %v1257
        %v1512 = vpack.c.b16 %v1262, %v1260
        %v1513 = vpack.c.b16 %v1263, %v1261
        %v1514 = vpack.c.b16 %v1266, %v1264
        %v1515 = vpack.c.b16 %v1267, %v1265
        %v1516 = vpack.c.b16 %v1270, %v1268
        %v1517 = vpack.c.b16 %v1271, %v1269
        %v1518 = vpack.c.b16 %v1274, %v1272
        %v1519 = vpack.c.b16 %v1275, %v1273
        %v1520 = vpack.c.b16 %v1278, %v1276
        %v1521 = vpack.c.b16 %v1279, %v1277
        %v1522 = vpack.c.b16 %v1282, %v1280
        %v1523 = vpack.c.b16 %v1283, %v1281
        %v1524 = vpack.c.b16 %v1286, %v1284
        %v1525 = vpack.c.b16 %v1287, %v1285
        %v1526 = vpack.c.b16 %v1290, %v1288
        %v1527 = vpack.c.b16 %v1291, %v1289
        %v1528 = vpack.c.b16 %v1294, %v1292
        %v1529 = vpack.c.b16 %v1295, %v1293
        %v1530 = vpack.c.b16 %v1298, %v1296
        %v1531 = vpack.c.b16 %v1299, %v1297
        %v1532 = vpack.c.b16 %v1302, %v1300
        %v1533 = vpack.c.b16 %v1303, %v1301
        %v1534 = vpack.c.b16 %v1306, %v1304
        %v1535 = vpack.c.b16 %v1307, %v1305
        %v1536 = vpack.c.b16 %v1310, %v1308
        %v1537 = vpack.c.b16 %v1311, %v1309
        %v1538 = vpack.c.b16 %v1314, %v1312
        %v1539 = vpack.c.b16 %v1315, %v1313
        %v1540 = vpack.c.b16 %v1318, %v1316
        %v1541 = vpack.c.b16 %v1319, %v1317
        %v1542 = vpack.c.b16 %v1322, %v1320
        %v1543 = vpack.c.b16 %v1323, %v1321
        %v1544 = vpack.c.b16 %v1326, %v1324
        %v1545 = vpack.c.b16 %v1327, %v1325
        %v1546 = vpack.c.b16 %v1330, %v1328
        %v1547 = vpack.c.b16 %v1331, %v1329
        %v1548 = vpack.c.b16 %v1334, %v1332
        %v1549 = vpack.c.b16 %v1335, %v1333
        %v1550 = vpack.c.b16 %v1338, %v1336
        %v1551 = vpack.c.b16 %v1339, %v1337
        %v1552 = vpack.c.b16 %v1342, %v1340
        %v1553 = vpack.c.b16 %v1343, %v1341
        %v1554 = vpack.c.b16 %v1346, %v1344
        %v1555 = vpack.c.b16 %v1347, %v1345
        %v1556 = vpack.c.b16 %v1350, %v1348
        %v1557 = vpack.c.b16 %v1351, %v1349
        %v1558 = vpack.c.b16 %v1354, %v1352
        %v1559 = vpack.c.b16 %v1355, %v1353
        %v1560 = vpack.c.b16 %v1358, %v1356
        %v1561 = vpack.c.b16 %v1359, %v1357
        %v1562 = vpack.c.b16 %v1362, %v1360
        %v1563 = vpack.c.b16 %v1363, %v1361
        %v1564 = vpack.c.b16 %v1366, %v1364
        %v1565 = vpack.c.b16 %v1367, %v1365
        %v1566 = vpack.c.b16 %v1370, %v1368
        %v1567 = vpack.c.b16 %v1371, %v1369
        %v1568 = vpack.c.b16 %v1374, %v1372
        %v1569 = vpack.c.b16 %v1375, %v1373
        %v1570 = vpack.c.b16 %v1378, %v1376
        %v1571 = vpack.c.b16 %v1379, %v1377
        %v1572 = vpack.c.b16 %v1382, %v1380
        %v1573 = vpack.c.b16 %v1383, %v1381
        %v1574 = vpack.c.b16 %v1386, %v1384
        %v1575 = vpack.c.b16 %v1387, %v1385
        %v1576 = vpack.c.b16 %v1390, %v1388
        %v1577 = vpack.c.b16 %v1391, %v1389
        %v1578 = vpack.c.b16 %v1394, %v1392
        %v1579 = vpack.c.b16 %v1395, %v1393
        %v1580 = vpack.c.b16 %v1398, %v1396
        %v1581 = vpack.c.b16 %v1399, %v1397
        %v1582 = vpack.c.b16 %v1402, %v1400
        %v1583 = vpack.c.b16 %v1403, %v1401
        %v1584 = vpack.c.b16 %v1406, %v1404
        %v1585 = vpack.c.b16 %v1407, %v1405
        %v1586 = vpack.c.b16 %v1410, %v1408
        %v1587 = vpack.c.b16 %v1411, %v1409
        %v1588 = vpack.c.b16 %v1414, %v1412
        %v1589 = vpack.c.b16 %v1415, %v1413
        %v1590 = vpack.c.b16 %v1418, %v1416
        %v1591 = vpack.c.b16 %v1419, %v1417
        %v1592 = vpack.c.b16 %v1422, %v1420
        %v1593 = vpack.c.b16 %v1423, %v1421
        %v1594 = vpack.c.b16 %v1426, %v1424
        %v1595 = vpack.c.b16 %v1427, %v1425
        %v1596 = vpack.c.b16 %v1430, %v1428
        %v1597 = vpack.c.b16 %v1431, %v1429
        %v1598 = vpack.c.b16 %v1434, %v1432
        %v1599 = vpack.c.b16 %v1435, %v1433
        %v1600 = vpack.c.b16 %v1438, %v1436
        %v1601 = vpack.c.b16 %v1439, %v1437
        %v1602 = vpack.c.b16 %v1442, %v1440
        %v1603 = vpack.c.b16 %v1443, %v1441
        %v1604 = vpack.c.b16 %v1446, %v1444
        %v1605 = vpack.c.b16 %v1447, %v1445
        %v1606 = vpack.c.b16 %v1450, %v1448
        %v1607 = vpack.c.b16 %v1451, %v1449
        %v1608 = vpack.c.b16 %v1454, %v1452
        %v1609 = vpack.c.b16 %v1455, %v1453
        %v1610 = vpack.c.b16 %v1458, %v1456
        %v1611 = vpack.c.b16 %v1459, %v1457
        %v1612 = vpack.c.b16 %v1462, %v1460
        %v1613 = vpack.c.b16 %v1463, %v1461
        %v1614 = vpack.c.b16 %v1466, %v1464
        %v1615 = vpack.c.b16 %v1467, %v1465
        %v1616 = vpack.c.b16 %v1470, %v1468
        %v1617 = vpack.c.b16 %v1471, %v1469
        %v1618 = vpack.c.b16 %v1474, %v1472
        %v1619 = vpack.c.b16 %v1475, %v1473
        %v1620 = vpack.c.b16 %v1478, %v1476
        %v1621 = vpack.c.b16 %v1479, %v1477
        %v1622 = vpack.c.b16 %v1482, %v1480
        %v1623 = vpack.c.b16 %v1483, %v1481
        %v1624 = vpack.c.b16 %v1486, %v1484
        %v1625 = vpack.c.b16 %v1487, %v1485
        %v1626 = vpack.c.b16 %v1490, %v1488
        %v1627 = vpack.c.b16 %v1491, %v1489
        %v1628 = vpack.c.b16 %v1494, %v1492
        %v1629 = vpack.c.b16 %v1495, %v1493
        %v1630 = vpack.c.b16 %v1498, %v1496
        %v1631 = vpack.c.b16 %v1499, %v1497
        %v1632 = vpack.c.b16 %v1502, %v1500
        %v1633 = vpack.c.b16 %v1503, %v1501
        %v1634 = vpack.c.b16 %v1506, %v1504
        %v1635 = vpack.c.b16 %v1507, %v1505
        %1764 = vmatprep.subr.bf16.mxu0 %v1509
        %1765 = vmatpush1.bf16.msra.mxu0 %v1508
        %1766 = vmatprep.subr.bf16.mxu0 %v1511
        %1767 = vmatpush1.bf16.msra.mxu0 %v1510
        %1768 = vmatprep.subr.bf16.mxu0 %v1513
        %1769 = vmatpush1.bf16.msra.mxu0 %v1512
        %1770 = vmatprep.subr.bf16.mxu0 %v1515
        %1771 = vmatpush1.bf16.msra.mxu0 %v1514
        %1772 = vmatprep.subr.bf16.mxu0 %v1517
        %1773 = vmatpush1.bf16.msra.mxu0 %v1516
        %1774 = vmatprep.subr.bf16.mxu0 %v1519
        %1775 = vmatpush1.bf16.msra.mxu0 %v1518
        %1776 = vmatprep.subr.bf16.mxu0 %v1521
        %1777 = vmatpush1.bf16.msra.mxu0 %v1520
        %1778 = vmatprep.subr.bf16.mxu0 %v1523
        %1779 = vmatpush1.bf16.msra.mxu0 %v1522
        %1780 = vmatprep.subr.bf16.mxu0 %v1525
        %1781 = vmatpush1.bf16.msra.mxu0 %v1524
        %1782 = vmatprep.subr.bf16.mxu0 %v1527
        %1783 = vmatpush1.bf16.msra.mxu0 %v1526
        %1784 = vmatprep.subr.bf16.mxu0 %v1529
        %1785 = vmatpush1.bf16.msra.mxu0 %v1528
        %1786 = vmatprep.subr.bf16.mxu0 %v1531
        %1787 = vmatpush1.bf16.msra.mxu0 %v1530
        %1788 = vmatprep.subr.bf16.mxu0 %v1533
        %1789 = vmatpush1.bf16.msra.mxu0 %v1532
        %1790 = vmatprep.subr.bf16.mxu0 %v1535
        %1791 = vmatpush1.bf16.msra.mxu0 %v1534
        %1792 = vmatprep.subr.bf16.mxu0 %v1537
        %1793 = vmatpush1.bf16.msra.mxu0 %v1536
        %1794 = vmatprep.subr.bf16.mxu0 %v1539
        %1795 = vmatpush1.bf16.msra.mxu0 %v1538
        %1796 = vmatprep.mubr.bf16.mxu0 %v1093
        %1797 = vmatmul.mubr.bf16.gmra.mrb[0].mxu0 %v1092
        %v1798 = vpop.f32.mrb[0].mxu0
        %v1799 = vadd.f32 0.0, %v1798
        %v1800 = vpop.f32.mrb[0].mxu0
        %v1801 = vadd.f32 0.0, %v1800
        %v1802 = vpop.f32.mrb[0].mxu0
        %v1803 = vadd.f32 0.0, %v1802
        %v1804 = vpop.f32.mrb[0].mxu0
        %v1805 = vadd.f32 0.0, %v1804
        %1806 = vmatprep.mubr.bf16.mxu0 %v1101
        %1807 = vmatmul.mubr.bf16.gmra.mrb[0].mxu0 %v1100
        %v1808 = vpop.f32.mrb[0].mxu0
        %v1809 = vadd.f32 0.0, %v1808
        %v1810 = vpop.f32.mrb[0].mxu0
        %v1811 = vadd.f32 0.0, %v1810
        %v1812 = vpop.f32.mrb[0].mxu0
        %v1813 = vadd.f32 0.0, %v1812
        %v1814 = vpop.f32.mrb[0].mxu0
        %v1815 = vadd.f32 0.0, %v1814
        %1816 = vdwg.mxu0
        %1817 = vmatprep.subr.bf16.mxu0 %v1541
        %1818 = vmatpush1.bf16.msra.mxu0 %v1540
        %1819 = vmatprep.subr.bf16.mxu0 %v1543
        %1820 = vmatpush1.bf16.msra.mxu0 %v1542
        %1821 = vmatprep.subr.bf16.mxu0 %v1545
        %1822 = vmatpush1.bf16.msra.mxu0 %v1544
        %1823 = vmatprep.subr.bf16.mxu0 %v1547
        %1824 = vmatpush1.bf16.msra.mxu0 %v1546
        %1825 = vmatprep.subr.bf16.mxu0 %v1549
        %1826 = vmatpush1.bf16.msra.mxu0 %v1548
        %1827 = vmatprep.subr.bf16.mxu0 %v1551
        %1828 = vmatpush1.bf16.msra.mxu0 %v1550
        %1829 = vmatprep.subr.bf16.mxu0 %v1553
        %1830 = vmatpush1.bf16.msra.mxu0 %v1552
        %1831 = vmatprep.subr.bf16.mxu0 %v1555
        %1832 = vmatpush1.bf16.msra.mxu0 %v1554
        %1833 = vmatprep.subr.bf16.mxu0 %v1557
        %1834 = vmatpush1.bf16.msra.mxu0 %v1556
        %1835 = vmatprep.subr.bf16.mxu0 %v1559
        %1836 = vmatpush1.bf16.msra.mxu0 %v1558
        %1837 = vmatprep.subr.bf16.mxu0 %v1561
        %1838 = vmatpush1.bf16.msra.mxu0 %v1560
        %1839 = vmatprep.subr.bf16.mxu0 %v1563
        %1840 = vmatpush1.bf16.msra.mxu0 %v1562
        %1841 = vmatprep.subr.bf16.mxu0 %v1565
        %1842 = vmatpush1.bf16.msra.mxu0 %v1564
        %1843 = vmatprep.subr.bf16.mxu0 %v1567
        %1844 = vmatpush1.bf16.msra.mxu0 %v1566
        %1845 = vmatprep.subr.bf16.mxu0 %v1569
        %1846 = vmatpush1.bf16.msra.mxu0 %v1568
        %1847 = vmatprep.subr.bf16.mxu0 %v1571
        %1848 = vmatpush1.bf16.msra.mxu0 %v1570
        %1849 = vmatprep.mubr.bf16.mxu0 %v1095
        %1850 = vmatmul.mubr.bf16.gmra.mrb[0].mxu0 %v1094
        %v1851 = vpop.f32.mrb[0].mxu0
        %v1852 = vadd.f32 %v1799, %v1851
        %v1853 = vpop.f32.mrb[0].mxu0
        %v1854 = vadd.f32 %v1801, %v1853
        %v1855 = vpop.f32.mrb[0].mxu0
        %v1856 = vadd.f32 %v1803, %v1855
        %v1857 = vpop.f32.mrb[0].mxu0
        %v1858 = vadd.f32 %v1805, %v1857
        %1859 = vmatprep.mubr.bf16.mxu0 %v1103
        %1860 = vmatmul.mubr.bf16.gmra.mrb[0].mxu0 %v1102
        %v1861 = vpop.f32.mrb[0].mxu0
        %v1862 = vadd.f32 %v1809, %v1861
        %v1863 = vpop.f32.mrb[0].mxu0
        %v1864 = vadd.f32 %v1811, %v1863
        %v1865 = vpop.f32.mrb[0].mxu0
        %v1866 = vadd.f32 %v1813, %v1865
        %v1867 = vpop.f32.mrb[0].mxu0
        %v1868 = vadd.f32 %v1815, %v1867
        %1869 = vdwg.mxu0
        %1870 = vmatprep.subr.bf16.mxu0 %v1573
        %1871 = vmatpush1.bf16.msra.mxu0 %v1572
        %1872 = vmatprep.subr.bf16.mxu0 %v1575
        %1873 = vmatpush1.bf16.msra.mxu0 %v1574
        %1874 = vmatprep.subr.bf16.mxu0 %v1577
        %1875 = vmatpush1.bf16.msra.mxu0 %v1576
        %1876 = vmatprep.subr.bf16.mxu0 %v1579
        %1877 = vmatpush1.bf16.msra.mxu0 %v1578
        %1878 = vmatprep.subr.bf16.mxu0 %v1581
        %1879 = vmatpush1.bf16.msra.mxu0 %v1580
        %1880 = vmatprep.subr.bf16.mxu0 %v1583
        %1881 = vmatpush1.bf16.msra.mxu0 %v1582
        %1882 = vmatprep.subr.bf16.mxu0 %v1585
        %1883 = vmatpush1.bf16.msra.mxu0 %v1584
        %1884 = vmatprep.subr.bf16.mxu0 %v1587
        %1885 = vmatpush1.bf16.msra.mxu0 %v1586
        %1886 = vmatprep.subr.bf16.mxu0 %v1589
        %1887 = vmatpush1.bf16.msra.mxu0 %v1588
        %1888 = vmatprep.subr.bf16.mxu0 %v1591
        %1889 = vmatpush1.bf16.msra.mxu0 %v1590
        %1890 = vmatprep.subr.bf16.mxu0 %v1593
        %1891 = vmatpush1.bf16.msra.mxu0 %v1592
        %1892 = vmatprep.subr.bf16.mxu0 %v1595
        %1893 = vmatpush1.bf16.msra.mxu0 %v1594
        %1894 = vmatprep.subr.bf16.mxu0 %v1597
        %1895 = vmatpush1.bf16.msra.mxu0 %v1596
        %1896 = vmatprep.subr.bf16.mxu0 %v1599
        %1897 = vmatpush1.bf16.msra.mxu0 %v1598
        %1898 = vmatprep.subr.bf16.mxu0 %v1601
        %1899 = vmatpush1.bf16.msra.mxu0 %v1600
        %1900 = vmatprep.subr.bf16.mxu0 %v1603
        %1901 = vmatpush1.bf16.msra.mxu0 %v1602
        %1902 = vmatprep.mubr.bf16.mxu0 %v1097
        %1903 = vmatmul.mubr.bf16.gmra.mrb[0].mxu0 %v1096
        %v1904 = vpop.f32.mrb[0].mxu0
        %v1905 = vadd.f32 %v1852, %v1904
        %v1906 = vpop.f32.mrb[0].mxu0
        %v1907 = vadd.f32 %v1854, %v1906
        %v1908 = vpop.f32.mrb[0].mxu0
        %v1909 = vadd.f32 %v1856, %v1908
        %v1910 = vpop.f32.mrb[0].mxu0
        %v1911 = vadd.f32 %v1858, %v1910
        %1912 = vmatprep.mubr.bf16.mxu0 %v1105
        %1913 = vmatmul.mubr.bf16.gmra.mrb[0].mxu0 %v1104
        %v1914 = vpop.f32.mrb[0].mxu0
        %v1915 = vadd.f32 %v1862, %v1914
        %v1916 = vpop.f32.mrb[0].mxu0
        %v1917 = vadd.f32 %v1864, %v1916
        %v1918 = vpop.f32.mrb[0].mxu0
        %v1919 = vadd.f32 %v1866, %v1918
        %v1920 = vpop.f32.mrb[0].mxu0
        %v1921 = vadd.f32 %v1868, %v1920
        %1922 = vdwg.mxu0
        %1923 = vmatprep.subr.bf16.mxu0 %v1605
        %1924 = vmatpush1.bf16.msra.mxu0 %v1604
        %1925 = vmatprep.subr.bf16.mxu0 %v1607
        %1926 = vmatpush1.bf16.msra.mxu0 %v1606
        %1927 = vmatprep.subr.bf16.mxu0 %v1609
        %1928 = vmatpush1.bf16.msra.mxu0 %v1608
        %1929 = vmatprep.subr.bf16.mxu0 %v1611
        %1930 = vmatpush1.bf16.msra.mxu0 %v1610
        %1931 = vmatprep.subr.bf16.mxu0 %v1613
        %1932 = vmatpush1.bf16.msra.mxu0 %v1612
        %1933 = vmatprep.subr.bf16.mxu0 %v1615
        %1934 = vmatpush1.bf16.msra.mxu0 %v1614
        %1935 = vmatprep.subr.bf16.mxu0 %v1617
        %1936 = vmatpush1.bf16.msra.mxu0 %v1616
        %1937 = vmatprep.subr.bf16.mxu0 %v1619
        %1938 = vmatpush1.bf16.msra.mxu0 %v1618
        %1939 = vmatprep.subr.bf16.mxu0 %v1621
        %1940 = vmatpush1.bf16.msra.mxu0 %v1620
        %1941 = vmatprep.subr.bf16.mxu0 %v1623
        %1942 = vmatpush1.bf16.msra.mxu0 %v1622
        %1943 = vmatprep.subr.bf16.mxu0 %v1625
        %1944 = vmatpush1.bf16.msra.mxu0 %v1624
        %1945 = vmatprep.subr.bf16.mxu0 %v1627
        %1946 = vmatpush1.bf16.msra.mxu0 %v1626
        %1947 = vmatprep.subr.bf16.mxu0 %v1629
        %1948 = vmatpush1.bf16.msra.mxu0 %v1628
        %1949 = vmatprep.subr.bf16.mxu0 %v1631
        %1950 = vmatpush1.bf16.msra.mxu0 %v1630
        %1951 = vmatprep.subr.bf16.mxu0 %v1633
        %1952 = vmatpush1.bf16.msra.mxu0 %v1632
        %1953 = vmatprep.subr.bf16.mxu0 %v1635
        %1954 = vmatpush1.bf16.msra.mxu0 %v1634
        %1955 = vmatprep.mubr.bf16.mxu0 %v1099
        %1956 = vmatmul.mubr.bf16.gmra.mrb[0].mxu0 %v1098
        %v1957 = vpop.f32.mrb[0].mxu0
        %v1958 = vadd.f32 %v1905, %v1957
        %v1959 = vpop.f32.mrb[0].mxu0
        %v1960 = vadd.f32 %v1907, %v1959
        %v1961 = vpop.f32.mrb[0].mxu0
        %v1962 = vadd.f32 %v1909, %v1961
        %v1963 = vpop.f32.mrb[0].mxu0
        %v1964 = vadd.f32 %v1911, %v1963
        %1965 = vmatprep.mubr.bf16.mxu0 %v1107
        %1966 = vmatmul.mubr.bf16.gmra.mrb[0].mxu0 %v1106
        %v1967 = vpop.f32.mrb[0].mxu0
        %v1968 = vadd.f32 %v1915, %v1967
        %v1969 = vpop.f32.mrb[0].mxu0
        %v1970 = vadd.f32 %v1917, %v1969
        %v1971 = vpop.f32.mrb[0].mxu0
        %v1972 = vadd.f32 %v1919, %v1971
        %v1973 = vpop.f32.mrb[0].mxu0
        %v1974 = vadd.f32 %v1921, %v1973
        %1975 = vdwg.mxu0
        %v1976 = vadd.f32 %v892, %v1958
        %v1977 = vadd.f32 %v893, %v1960
        %v1978 = vadd.f32 %v894, %v1962
        %v1979 = vadd.f32 %v895, %v1964
        %v1980 = vadd.f32 %v896, %v1968
        %v1981 = vadd.f32 %v897, %v1970
        %v1982 = vadd.f32 %v898, %v1972
        %v1983 = vadd.f32 %v899, %v1974
        %1984 = vst [vmem:[#allocation2] sm:$0xff] %v1976
        %1985 = vst [vmem:[#allocation2 + $0x8] sm:$0xff] %v1977
        %1986 = vst [vmem:[#allocation2 + $0x10] sm:$0xff] %v1978
        %1987 = vst [vmem:[#allocation2 + $0x18] sm:$0xff] %v1979
        %1988 = vst [vmem:[#allocation2 + $0x20] sm:$0xff] %v1980
        %1989 = vst [vmem:[#allocation2 + $0x28] sm:$0xff] %v1981
        %1990 = vst [vmem:[#allocation2 + $0x30] sm:$0xff] %v1982
        %1991 = vst [vmem:[#allocation2 + $0x38] sm:$0xff] %v1983
        %p1992 = scmp.eq.s32.totalorder %s22, 3
        // Predicated region
        $region102: #{forward.8} parent=88 // pred_check
          %p1993 = pneg %p1992
        $region103: #{forward.8} parent=88 // pred_check_branch
          %1995 = sbr.rel (%p1993) target = $region105
        $region104: #{forward.8} parent=88 // pred_region
          %v1996 = vld [vmem:[#allocation2] sm:$0xff]
          %v1997 = vld [vmem:[#allocation2 + $0x8] sm:$0xff]
          %v1998 = vld [vmem:[#allocation2 + $0x10] sm:$0xff]
          %v1999 = vld [vmem:[#allocation2 + $0x18] sm:$0xff]
          %v2000 = vld [vmem:[#allocation2 + $0x20] sm:$0xff]
          %v2001 = vld [vmem:[#allocation2 + $0x28] sm:$0xff]
          %v2002 = vld [vmem:[#allocation2 + $0x30] sm:$0xff]
          %v2003 = vld [vmem:[#allocation2 + $0x38] sm:$0xff]
          %v2004 = vld [vmem:[%s871] sm:$0x3]
          %v2006 = vlaneseq
          %v2007 = vshrl.u32 %v2006, 7
          %v2008 = vsub.s32 0, %v2007
          %v2009 = vrot.slane %v2004, %v2008
          %v2010 = vlaneseq
          %v2011 = vshrl.u32 %v2010, 7
          %v2012 = vsub.s32 1, %v2011
          %v2013 = vrot.slane %v2004, %v2012
          %v2016 = vmul.f32 %v1996, %v2009
          %v2017 = vmul.f32 %v1997, %v2013
          %v2018 = vmul.f32 %v1998, %v2009
          %v2019 = vmul.f32 %v1999, %v2013
          %v2020 = vmul.f32 %v2000, %v2009
          %v2021 = vmul.f32 %v2001, %v2013
          %v2022 = vmul.f32 %v2002, %v2009
          %v2023 = vmul.f32 %v2003, %v2013
          %v2024 = vld [vmem:[%s876] sm:$0x3]
          %v2026 = vlaneseq
          %v2027 = vshrl.u32 %v2026, 7
          %v2028 = vsub.s32 0, %v2027
          %v2029 = vrot.slane %v2024, %v2028
          %v2030 = vlaneseq
          %v2031 = vshrl.u32 %v2030, 7
          %v2032 = vsub.s32 1, %v2031
          %v2033 = vrot.slane %v2024, %v2032
          %v2036 = vadd.f32 %v2016, %v2029
          %v2037 = vadd.f32 %v2017, %v2033
          %v2038 = vadd.f32 %v2018, %v2029
          %v2039 = vadd.f32 %v2019, %v2033
          %v2040 = vadd.f32 %v2020, %v2029
          %v2041 = vadd.f32 %v2021, %v2033
          %v2042 = vadd.f32 %v2022, %v2029
          %v2043 = vadd.f32 %v2023, %v2033
          %vm2044 = vcmp.ge.f32.partialorder %v2036, 0.0
          %vm2045 = vcmp.ge.f32.partialorder %v2037, 0.0
          %vm2046 = vcmp.ge.f32.partialorder %v2038, 0.0
          %vm2047 = vcmp.ge.f32.partialorder %v2039, 0.0
          %vm2048 = vcmp.ge.f32.partialorder %v2040, 0.0
          %vm2049 = vcmp.ge.f32.partialorder %v2041, 0.0
          %vm2050 = vcmp.ge.f32.partialorder %v2042, 0.0
          %vm2051 = vcmp.ge.f32.partialorder %v2043, 0.0
          %v2052 = vmul.f32 %v2036, 0.2
          %v2053 = vmul.f32 %v2037, 0.2
          %v2054 = vmul.f32 %v2038, 0.2
          %v2055 = vmul.f32 %v2039, 0.2
          %v2056 = vmul.f32 %v2040, 0.2
          %v2057 = vmul.f32 %v2041, 0.2
          %v2058 = vmul.f32 %v2042, 0.2
          %v2059 = vmul.f32 %v2043, 0.2
          %v2060 = vsel %vm2044, %v2036, %v2052
          %v2061 = vsel %vm2045, %v2037, %v2053
          %v2062 = vsel %vm2046, %v2038, %v2054
          %v2063 = vsel %vm2047, %v2039, %v2055
          %v2064 = vsel %vm2048, %v2040, %v2056
          %v2065 = vsel %vm2049, %v2041, %v2057
          %v2066 = vsel %vm2050, %v2042, %v2058
          %v2067 = vsel %vm2051, %v2043, %v2059
          %2068 = vst [vmem:[%s863] sm:$0xff] %v2060
          %2069 = vst [vmem:[%s863 + $0x8] sm:$0xff] %v2061
          %2070 = vst [vmem:[%s863 + $0x10] sm:$0xff] %v2062
          %2071 = vst [vmem:[%s863 + $0x18] sm:$0xff] %v2063
          %2072 = vst [vmem:[%s863 + $0x20] sm:$0xff] %v2064
          %2073 = vst [vmem:[%s863 + $0x28] sm:$0xff] %v2065
          %2074 = vst [vmem:[%s863 + $0x30] sm:$0xff] %v2066
          %2075 = vst [vmem:[%s863 + $0x38] sm:$0xff] %v2067
        $region105: #{forward.8} parent=88 // pred_fallthru
          _
        %s2076 = sand.u32 %s152, 1
        %s2077 = sand.u32 %s152, 1
        %s2078 = smul.addr %s2077, 64
        %s2079 = scalar_lea.vmem [#allocation5], %s2078
        // Predicated region
        $region106: #{forward.8} parent=88 // pred_check
          %p2080 = pneg %p162
        $region107: #{forward.8} parent=88 // pred_check_branch
          %2082 = sbr.rel (%p2080) target = $region109
        $region108: #{forward.8} parent=88 // pred_region
          %s2083 = smul.u32 4, %s20
          %s2084 = smul.u32 2, %s21
          %s2085 = smul.addr %s2083, 4
          %s2086 = sadd.s32 %s2084, %s2085
          %s2087 = smul.addr %s2086, 8
          %s2088 = scalar_lea.vmem %s4, %s2087
          // Predicated region
          $region110: #{forward.8} parent=108 // pred_check
            _
          $region111: #{forward.8} parent=108 // pred_check_branch
            %2090 = sbr.rel (0) target = $region113
          $region112: #{forward.8} parent=108 // pred_region
            // Predicated region
            $region114: #{forward.8} parent=112 // pred_check
              _
            $region115: #{forward.8} parent=112 // pred_check_branch
              %2092 = sbr.rel (0) target = $region117
            $region116: #{forward.8} parent=112 // pred_region
              loop: start=0, step=1, limit=1
              $region118: #{forward.8} parent=116 // loop_pre_header
                _
              $region119: #{forward.8} parent=116 // loop_header
                %s2094 = sphi 0, %s2098
                %p2095 = scmp.ge.s32.totalorder %s2094, 1
                %s2099 = sphi %s2079, %s2079
                %s2100 = sphi %s2088, %s2088
              $region120: #{forward.8} parent=116 // loop_header_branch
                %2097 = sbr.rel (%p2095) target = $region124
              $region121: #{forward.8} parent=116 // loop_body
                %v2101 = vld [vmem:[%s2099] sm:$0xff]
                %2102 = vst [vmem:[%s2100] sm:$0xff] %v2101
                %v2103 = vld [vmem:[%s2099 + $0x8] sm:$0xff]
                %2104 = vst [vmem:[%s2100 + $0x8] sm:$0xff] %v2103
                %v2105 = vld [vmem:[%s2099 + $0x10] sm:$0xff]
                %2106 = vst [vmem:[%s2100 + $0x20] sm:$0xff] %v2105
                %v2107 = vld [vmem:[%s2099 + $0x18] sm:$0xff]
                %2108 = vst [vmem:[%s2100 + $0x28] sm:$0xff] %v2107
                %v2109 = vld [vmem:[%s2099 + $0x20] sm:$0xff]
                %2110 = vst [vmem:[%s2100 + $0x40] sm:$0xff] %v2109
                %v2111 = vld [vmem:[%s2099 + $0x28] sm:$0xff]
                %2112 = vst [vmem:[%s2100 + $0x48] sm:$0xff] %v2111
                %v2113 = vld [vmem:[%s2099 + $0x30] sm:$0xff]
                %2114 = vst [vmem:[%s2100 + $0x60] sm:$0xff] %v2113
                %v2115 = vld [vmem:[%s2099 + $0x38] sm:$0xff]
                %2116 = vst [vmem:[%s2100 + $0x68] sm:$0xff] %v2115
              $region122: #{forward.8} parent=116 // loop_footer
                %s2098 = sadd.s32 1, %s2094
              $region123: #{forward.8} parent=116 // loop_footer_branch
                %2093 = sbr.rel target = $region119
              $region124: #{forward.8} parent=116 // loop_exit
                _
            $region117: #{forward.8} parent=112 // pred_fallthru
              _
            // Predicated region
            $region125: #{forward.8} parent=112 // pred_check
              _
            $region126: #{forward.8} parent=112 // pred_check_branch
              %2118 = sbr.rel target = $region128
            $region127: #{forward.8} parent=112 // pred_region
              _
            $region128: #{forward.8} parent=112 // pred_fallthru
              _
          $region113: #{forward.8} parent=108 // pred_fallthru
            _
          %2119 = vnop
        $region109: #{forward.8} parent=88 // pred_fallthru
          _
      $region89: #{forward.8} parent=5 // pred_fallthru
        _
      %p2120 = scmp.le.s32.totalorder 2, %s10
      // Predicated region
      $region129: #{forward.8} parent=5 // pred_check
        %p2121 = pneg %p2120
      $region130: #{forward.8} parent=5 // pred_check_branch
        %2123 = sbr.rel (%p2121) target = $region132
      $region131: #{forward.8} parent=5 // pred_region
        %s2124 = ssub.s32 %s10, 2
        // Predicated region
        $region133: #{forward.8} parent=131 // pred_check
          %p2125 = pneg %p168
        $region134: #{forward.8} parent=131 // pred_check_branch
          %2127 = sbr.rel (%p2125) target = $region136
        $region135: #{forward.8} parent=131 // pred_region
          %s2128 = sand.u32 %s153, 1
          %s2129 = sand.u32 %s153, 1
          %s2130 = smul.addr %s2129, 64
          %s2131 = scalar_lea.vmem [#allocation5], %s2130
        $region136: #{forward.8} parent=131 // pred_fallthru
          _
      $region132: #{forward.8} parent=5 // pred_fallthru
        _
    $region6: #{forward.8} parent=1 // loop_footer
      %s14 = sadd.s32 1, %s10
    $region7: #{forward.8} parent=1 // loop_footer_branch
      %9 = sbr.rel target = $region3
    $region8: #{forward.8} parent=1 // loop_exit
      _

// kernel: forward.9
$region0: #{forward.9}
  #allocation0 [shape = 'u32[]', space=smem, size = 0x4, offset = 0x4, fixed_abs, tag = 'smem constant byte address 0x4 - core index']
  #allocation1 [shape = 'u32[144,128]{1,0:T(1,128)}', space=vmem, size = 0x12000, scoped, tag = 'internal scratch']
  #allocation2 [shape = 'f32[16,128]{1,0:T(8,128)}', space=vmem, size = 0x2000, scoped, tag = 'scratch operand']
  %s0 = inlined_call_operand.vmem [shape: bf16[16,8192], index: 0, kind: input, shape index: {}]
  %s1 = inlined_call_operand.vmem [shape: bf16[8192,128], index: 1, kind: input, shape index: {}]
  %s2 = inlined_call_operand.vmem [shape: f32[1,128], index: 2, kind: input, shape index: {}]
  %s3 = inlined_call_operand.vmem [shape: f32[1,128], index: 3, kind: input, shape index: {}]
  %s4 = inlined_call_operand.vmem [shape: f32[16,128], index: 4, kind: output, shape index: {}]
  %s5 = sld [smem:[#allocation0]]
  $region80: #{forward.9} parent=0
    _
  %s7 = ssub.s32 1, %s5
  %s8 = scalar_select 0, %s7, %s5
  $region1: #{forward.9} parent=0
    #allocation3 [shape = 'u8[65536]{0}', space=vmem, size = 0x10000, scoped, tag = 'input window, operand 0']
    loop: start=0, step=1, limit=10
    $region2: #{forward.9} parent=1 // loop_pre_header
      _
    $region3: #{forward.9} parent=1 // loop_header
      %s10 = sphi 0, %s14
      %p11 = scmp.ge.s32.totalorder %s10, 10
      %s17 = sphi 0, %s36
      %s18 = sphi 0, %s32
      %s19 = sphi 0, %s28
      %s20 = sphi 0, %s17
      %s21 = sphi 0, %s18
      %s22 = sphi 0, %s19
      %s23 = sphi 0, %s20
      %s24 = sphi 0, %s21
      %s25 = sphi 0, %s22
      %s41 = sphi 0, %s43
      %s44 = sphi 0, %s41
      %s45 = sphi 0, %s44
      %s61 = sphi 0, %s45
      %s69 = sphi 0, %s71
      %s72 = sphi 0, %s69
      %s73 = sphi 0, %s72
      %s89 = sphi 0, %s73
      %s95 = sphi 0, %s97
      %s98 = sphi 0, %s95
      %s99 = sphi 0, %s98
      %s115 = sphi 0, %s99
      %s121 = sphi 0, %s123
      %s124 = sphi 0, %s121
      %s125 = sphi 0, %s124
      %s141 = sphi 0, %s125
      %s149 = sphi 0, %s151
      %s152 = sphi 0, %s149
      %s153 = sphi 0, %s152
      %s169 = sphi 0, %s153
    $region4: #{forward.9} parent=1 // loop_header_branch
      %13 = sbr.rel (%p11) target = $region8
    $region5: #{forward.9} parent=1 // loop_body
      %s15 = ssub.s32 %s10, 1
      %s16 = ssub.s32 %s10, 2
      %s26 = sadd.s32 1, %s19
      %p27 = scmp.ge.s32.totalorder %s26, 8
      %s28 = scalar_select %p27, 0, %s26
      %s29 = sadd.s32 1, %s18
      %s30 = scalar_select %p27, %s29, %s18
      %p31 = scmp.ge.s32.totalorder %s30, 1
      %s32 = scalar_select %p31, 0, %s30
      %s33 = sadd.s32 1, %s17
      %s34 = scalar_select %p31, %s33, %s17
      %p35 = scmp.ge.s32.totalorder %s34, 1
      %s36 = scalar_select %p35, 0, %s34
      %s37 = ssub.s32 %s17, %s36
      %s38 = ssub.s32 %s19, %s28
      %s39 = sor.u32 %s37, %s38
      %p40 = scmp.eq.s32.totalorder %s39, 0
      %s42 = sadd.s32 %s41, 1
      %s43 = scalar_select %p40, %s41, %s42
      %p46 = pneg %p40
      %p47 = scmp.eq.s32.totalorder %s10, 7
      %p48 = por %p46, %p47
      %p49 = scmp.ne.s32.totalorder %s41, %s44
      %p50 = scmp.eq.s32.totalorder %s10, 0
      %p51 = por %p49, %p50
      %p52 = scmp.ne.s32.totalorder %s41, %s44
      %p53 = scmp.eq.s32.totalorder %s15, 7
      %p54 = por %p52, %p53
      %p55 = scmp.ne.s32.totalorder %s44, %s45
      %p56 = scmp.eq.s32.totalorder %s15, 0
      %p57 = por %p55, %p56
      %p58 = scmp.ne.s32.totalorder %s44, %s45
      %p59 = scmp.eq.s32.totalorder %s16, 7
      %p60 = por %p58, %p59
      %p62 = scmp.ne.s32.totalorder %s45, %s61
      %p63 = scmp.eq.s32.totalorder %s16, 0
      %p64 = por %p62, %p63
      %s65 = ssub.s32 %s19, %s28
      %s66 = ssub.s32 %s18, %s32
      %s67 = sor.u32 %s65, %s66
      %p68 = scmp.eq.s32.totalorder %s67, 0
      %s70 = sadd.s32 %s69, 1
      %s71 = scalar_select %p68, %s69, %s70
      %p74 = pneg %p68
      %p75 = scmp.eq.s32.totalorder %s10, 7
      %p76 = por %p74, %p75
      %p77 = scmp.ne.s32.totalorder %s69, %s72
      %p78 = scmp.eq.s32.totalorder %s10, 0
      %p79 = por %p77, %p78
      %p80 = scmp.ne.s32.totalorder %s69, %s72
      %p81 = scmp.eq.s32.totalorder %s15, 7
      %p82 = por %p80, %p81
      %p83 = scmp.ne.s32.totalorder %s72, %s73
      %p84 = scmp.eq.s32.totalorder %s15, 0
      %p85 = por %p83, %p84
      %p86 = scmp.ne.s32.totalorder %s72, %s73
      %p87 = scmp.eq.s32.totalorder %s16, 7
      %p88 = por %p86, %p87
      %p90 = scmp.ne.s32.totalorder %s73, %s89
      %p91 = scmp.eq.s32.totalorder %s16, 0
      %p92 = por %p90, %p91
      %s93 = ssub.s32 %s18, %s32
      %p94 = scmp.eq.s32.totalorder %s93, 0
      %s96 = sadd.s32 %s95, 1
      %s97 = scalar_select %p94, %s95, %s96
      %p100 = pneg %p94
      %p101 = scmp.eq.s32.totalorder %s10, 7
      %p102 = por %p100, %p101
      %p103 = scmp.ne.s32.totalorder %s95, %s98
      %p104 = scmp.eq.s32.totalorder %s10, 0
      %p105 = por %p103, %p104
      %p106 = scmp.ne.s32.totalorder %s95, %s98
      %p107 = scmp.eq.s32.totalorder %s15, 7
      %p108 = por %p106, %p107
      %p109 = scmp.ne.s32.totalorder %s98, %s99
      %p110 = scmp.eq.s32.totalorder %s15, 0
      %p111 = por %p109, %p110
      %p112 = scmp.ne.s32.totalorder %s98, %s99
      %p113 = scmp.eq.s32.totalorder %s16, 7
      %p114 = por %p112, %p113
      %p116 = scmp.ne.s32.totalorder %s99, %s115
      %p117 = scmp.eq.s32.totalorder %s16, 0
      %p118 = por %p116, %p117
      %s119 = ssub.s32 %s18, %s32
      %p120 = scmp.eq.s32.totalorder %s119, 0
      %s122 = sadd.s32 %s121, 1
      %s123 = scalar_select %p120, %s121, %s122
      %p126 = pneg %p120
      %p127 = scmp.eq.s32.totalorder %s10, 7
      %p128 = por %p126, %p127
      %p129 = scmp.ne.s32.totalorder %s121, %s124
      %p130 = scmp.eq.s32.totalorder %s10, 0
      %p131 = por %p129, %p130
      %p132 = scmp.ne.s32.totalorder %s121, %s124
      %p133 = scmp.eq.s32.totalorder %s15, 7
      %p134 = por %p132, %p133
      %p135 = scmp.ne.s32.totalorder %s124, %s125
      %p136 = scmp.eq.s32.totalorder %s15, 0
      %p137 = por %p135, %p136
      %p138 = scmp.ne.s32.totalorder %s124, %s125
      %p139 = scmp.eq.s32.totalorder %s16, 7
      %p140 = por %p138, %p139
      %p142 = scmp.ne.s32.totalorder %s125, %s141
      %p143 = scmp.eq.s32.totalorder %s16, 0
      %p144 = por %p142, %p143
      %s145 = ssub.s32 %s17, %s36
      %s146 = ssub.s32 %s18, %s32
      %s147 = sor.u32 %s145, %s146
      %p148 = scmp.eq.s32.totalorder %s147, 0
      %s150 = sadd.s32 %s149, 1
      %s151 = scalar_select %p148, %s149, %s150
      %p154 = pneg %p148
      %p155 = scmp.eq.s32.totalorder %s10, 7
      %p156 = por %p154, %p155
      %p157 = scmp.ne.s32.totalorder %s149, %s152
      %p158 = scmp.eq.s32.totalorder %s10, 0
      %p159 = por %p157, %p158
      %p160 = scmp.ne.s32.totalorder %s149, %s152
      %p161 = scmp.eq.s32.totalorder %s15, 7
      %p162 = por %p160, %p161
      %p163 = scmp.ne.s32.totalorder %s152, %s153
      %p164 = scmp.eq.s32.totalorder %s15, 0
      %p165 = por %p163, %p164
      %p166 = scmp.ne.s32.totalorder %s152, %s153
      %p167 = scmp.eq.s32.totalorder %s16, 7
      %p168 = por %p166, %p167
      %p170 = scmp.ne.s32.totalorder %s153, %s169
      %p171 = scmp.eq.s32.totalorder %s16, 0
      %p172 = por %p170, %p171
      %p173 = scmp.le.s32.totalorder 1, %s10
      %p174 = scmp.lt.s32.totalorder %s10, 9
      %p175 = pnand %p173, %p174
      %p176 = pneg %p175
      // Predicated region
      $region9: #{forward.9} parent=5 // pred_check
        _
      $region10: #{forward.9} parent=5 // pred_check_branch
        %178 = sbr.rel (%p175) target = $region12
      $region11: #{forward.9} parent=5 // pred_region
        %s179 = ssub.s32 %s10, 1
        // Predicated region
        $region13: #{forward.9} parent=11 // pred_check
          %p180 = pneg %p111
        $region14: #{forward.9} parent=11 // pred_check_branch
          %182 = sbr.rel (%p180) target = $region16
        $region15: #{forward.9} parent=11 // pred_region
          %p183 = scmp.lt.s32.totalorder %s21, 0
          %s184 = scalar_select %p183, %s21, 0
          %s185 = scalar_lea.vmem %s2, %s184
        $region16: #{forward.9} parent=11 // pred_fallthru
          _
        // Predicated region
        $region17: #{forward.9} parent=11 // pred_check
          %p186 = pneg %p137
        $region18: #{forward.9} parent=11 // pred_check_branch
          %188 = sbr.rel (%p186) target = $region20
        $region19: #{forward.9} parent=11 // pred_region
          %p189 = scmp.lt.s32.totalorder %s21, 0
          %s190 = scalar_select %p189, %s21, 0
          %s191 = scalar_lea.vmem %s3, %s190
        $region20: #{forward.9} parent=11 // pred_fallthru
          _
      $region12: #{forward.9} parent=5 // pred_fallthru
        _
      %p192 = scmp.lt.s32.totalorder %s10, 8
      // Predicated region
      $region21: #{forward.9} parent=5 // pred_check
        %p193 = pneg %p192
      $region22: #{forward.9} parent=5 // pred_check_branch
        %195 = sbr.rel (%p193) target = $region24
      $region23: #{forward.9} parent=5 // pred_region
        // Predicated region
        $region25: #{forward.9} parent=23 // pred_check
          %p196 = pneg %p51
        $region26: #{forward.9} parent=23 // pred_check_branch
          %198 = sbr.rel (%p196) target = $region28
        $region27: #{forward.9} parent=23 // pred_region
          %s199 = sand.u32 %s41, 1
          %s200 = sand.u32 %s41, 1
          %s201 = smul.addr %s200, 64
          %s202 = scalar_lea.vmem [#allocation3], %s201
          %s203 = smul.u32 2, %s17
          %s204 = smul.u32 8, %s19
          %s205 = smul.addr %s203, 64
          %s206 = sadd.s32 %s204, %s205
          %s207 = smul.addr %s206, 4
          %s208 = scalar_lea.vmem %s0, %s207
          // Predicated region
          $region29: #{forward.9} parent=27 // pred_check
            _
          $region30: #{forward.9} parent=27 // pred_check_branch
            %210 = sbr.rel (0) target = $region32
          $region31: #{forward.9} parent=27 // pred_region
            // Predicated region
            $region33: #{forward.9} parent=31 // pred_check
              _
            $region34: #{forward.9} parent=31 // pred_check_branch
              %212 = sbr.rel (0) target = $region36
            $region35: #{forward.9} parent=31 // pred_region
              loop: start=0, step=1, limit=1
              $region37: #{forward.9} parent=35 // loop_pre_header
                _
              $region38: #{forward.9} parent=35 // loop_header
                %s214 = sphi 0, %s218
                %p215 = scmp.ge.s32.totalorder %s214, 1
                %s219 = sphi %s208, %s208
                %s220 = sphi %s202, %s202
              $region39: #{forward.9} parent=35 // loop_header_branch
                %217 = sbr.rel (%p215) target = $region43
              $region40: #{forward.9} parent=35 // loop_body
                %v221 = vld [vmem:[%s219] sm:$0xff]
                %222 = vst [vmem:[%s220] sm:$0xff] %v221
                %v223 = vld [vmem:[%s219 + $0x8] sm:$0xff]
                %224 = vst [vmem:[%s220 + $0x8] sm:$0xff] %v223
                %v225 = vld [vmem:[%s219 + $0x10] sm:$0xff]
                %226 = vst [vmem:[%s220 + $0x10] sm:$0xff] %v225
                %v227 = vld [vmem:[%s219 + $0x18] sm:$0xff]
                %228 = vst [vmem:[%s220 + $0x18] sm:$0xff] %v227
                %v229 = vld [vmem:[%s219 + $0x100] sm:$0xff]
                %230 = vst [vmem:[%s220 + $0x20] sm:$0xff] %v229
                %v231 = vld [vmem:[%s219 + $0x108] sm:$0xff]
                %232 = vst [vmem:[%s220 + $0x28] sm:$0xff] %v231
                %v233 = vld [vmem:[%s219 + $0x110] sm:$0xff]
                %234 = vst [vmem:[%s220 + $0x30] sm:$0xff] %v233
                %v235 = vld [vmem:[%s219 + $0x118] sm:$0xff]
                %236 = vst [vmem:[%s220 + $0x38] sm:$0xff] %v235
              $region41: #{forward.9} parent=35 // loop_footer
                %s218 = sadd.s32 1, %s214
              $region42: #{forward.9} parent=35 // loop_footer_branch
                %213 = sbr.rel target = $region38
              $region43: #{forward.9} parent=35 // loop_exit
                _
            $region36: #{forward.9} parent=31 // pred_fallthru
              _
            // Predicated region
            $region44: #{forward.9} parent=31 // pred_check
              _
            $region45: #{forward.9} parent=31 // pred_check_branch
              %238 = sbr.rel target = $region47
            $region46: #{forward.9} parent=31 // pred_region
              _
            $region47: #{forward.9} parent=31 // pred_fallthru
              _
          $region32: #{forward.9} parent=27 // pred_fallthru
            _
          %239 = vnop
        $region28: #{forward.9} parent=23 // pred_fallthru
          _
        // Predicated region
        $region48: #{forward.9} parent=23 // pred_check
          %p240 = pneg %p79
        $region49: #{forward.9} parent=23 // pred_check_branch
          %242 = sbr.rel (%p240) target = $region51
        $region50: #{forward.9} parent=23 // pred_region
          %s243 = smul.u32 128, %s19
          %p244 = scmp.lt.s32.totalorder %s243, 1023
          %s245 = scalar_select %p244, %s243, 1023
          %p246 = scmp.lt.s32.totalorder %s18, 0
          %s247 = scalar_select %p246, %s18, 0
          %s248 = sadd.s32 %s247, %s245
          %s249 = smul.addr %s248, 4
          %s250 = scalar_lea.vmem %s1, %s249
          %s251 = smul.u32 128, %s19
        $region51: #{forward.9} parent=23 // pred_fallthru
          _
      $region24: #{forward.9} parent=5 // pred_fallthru
        _
      %p252 = scmp.le.s32.totalorder 1, %s10
      %p253 = scmp.lt.s32.totalorder %s10, 9
      %p254 = pnand %p252, %p253
      %p255 = pneg %p254
      // Predicated region
      $region52: #{forward.9} parent=5 // pred_check
        _
      $region53: #{forward.9} parent=5 // pred_check_branch
        %257 = sbr.rel (%p254) target = $region55
      $region54: #{forward.9} parent=5 // pred_region
        %s258 = ssub.s32 %s10, 1
        %s259 = sand.u32 %s44, 1
        %s260 = sand.u32 %s44, 1
        %s261 = smul.addr %s260, 64
        %s262 = scalar_lea.vmem [#allocation3], %s261
        // Predicated region
        $region56: #{forward.9} parent=54 // pred_check
          %p263 = pneg %p57
        $region57: #{forward.9} parent=54 // pred_check_branch
          %265 = sbr.rel (%p263) target = $region59
        $region58: #{forward.9} parent=54 // pred_region
          _
        $region59: #{forward.9} parent=54 // pred_fallthru
          _
        %s266 = sand.u32 %s44, 1
        %s267 = sand.u32 %s44, 1
        %s268 = smul.addr %s267, 64
        %s269 = scalar_lea.vmem [#allocation3], %s268
        %p270 = pneg %p57
        %p271 = pneg %p54
        %s272 = smul.u32 128, %s22
        %p273 = scmp.lt.s32.totalorder %s272, 1023
        %s274 = scalar_select %p273, %s272, 1023
        %p275 = scmp.lt.s32.totalorder %s21, 0
        %s276 = scalar_select %p275, %s21, 0
        %s277 = sadd.s32 %s276, %s274
        %s278 = smul.addr %s277, 4
        %s279 = scalar_lea.vmem %s1, %s278
        %p280 = pneg %p85
        %p281 = pneg %p82
        %p282 = scmp.lt.s32.totalorder %s21, 0
        %s283 = scalar_select %p282, %s21, 0
        %s284 = scalar_lea.vmem %s2, %s283
        %p285 = pneg %p111
        %p286 = pneg %p108
        %p287 = scmp.lt.s32.totalorder %s21, 0
        %s288 = scalar_select %p287, %s21, 0
        %s289 = scalar_lea.vmem %s3, %s288
        %p290 = pneg %p137
        %p291 = pneg %p134
        %p292 = pneg %p165
        %p293 = pneg %p162
        %s294 = smul.u32 2, %s20
        %p295 = scmp.lt.s32.totalorder %s294, 1
        %s296 = scalar_select %p295, %s294, 1
        %p297 = scmp.lt.s32.totalorder %s21, 0
        %s298 = scalar_select %p297, %s21, 0
        %s299 = sadd.s32 %s298, %s296
        %s300 = smul.addr %s299, 8
        %s301 = scalar_lea.vmem %s4, %s300
        %s302 = smul.u32 2, %s20
        %s303 = smul.u32 8, %s22
        %s304 = smul.u32 128, %s22
        %p305 = scmp.lt.s32.totalorder %s304, 1023
        %s306 = scalar_select %p305, %s304, 1023
        %p307 = scmp.lt.s32.totalorder %s21, 0
        %s308 = scalar_select %p307, %s21, 0
        %s309 = sadd.s32 %s308, %s306
        %s310 = smul.addr %s309, 4
        %s311 = scalar_lea.vmem %s1, %s310
        %s312 = smul.u32 128, %s22
        %p313 = scmp.lt.s32.totalorder %s21, 0
        %s314 = scalar_select %p313, %s21, 0
        %s315 = scalar_lea.vmem %s2, %s314
        %p316 = scmp.lt.s32.totalorder %s21, 0
        %s317 = scalar_select %p316, %s21, 0
        %s318 = scalar_lea.vmem %s3, %s317
        %s319 = smul.u32 2, %s20
        %p320 = scmp.lt.s32.totalorder %s319, 1
        %s321 = scalar_select %p320, %s319, 1
        %p322 = scmp.lt.s32.totalorder %s21, 0
        %s323 = scalar_select %p322, %s21, 0
        %s324 = sadd.s32 %s323, %s321
        %s325 = smul.addr %s324, 8
        %s326 = scalar_lea.vmem %s4, %s325
        %s327 = smul.u32 2, %s20
        %p329 = scmp.eq.s32.totalorder %s22, 0
        // Predicated region
        $region60: #{forward.9} parent=54 // pred_check
          %p330 = pneg %p329
        $region61: #{forward.9} parent=54 // pred_check_branch
          %332 = sbr.rel (%p330) target = $region63
        $region62: #{forward.9} parent=54 // pred_region
          %333 = vst [vmem:[#allocation2] sm:$0xff] 0.0
          %334 = vst [vmem:[#allocation2 + $0x8] sm:$0xff] 0.0
        $region63: #{forward.9} parent=54 // pred_fallthru
          _
        %v335 = vld [vmem:[#allocation2] sm:$0xff]
        %v336 = vld [vmem:[#allocation2 + $0x8] sm:$0xff]
        %v337 = vld [vmem:[%s262] sm:$0xff]
        %v338 = vld [vmem:[%s262 + $0x8] sm:$0xff]
        %v339 = vld [vmem:[%s262 + $0x10] sm:$0xff]
        %v340 = vld [vmem:[%s262 + $0x18] sm:$0xff]
        %v341 = vld [vmem:[%s262 + $0x20] sm:$0xff]
        %v342 = vld [vmem:[%s262 + $0x28] sm:$0xff]
        %v343 = vld [vmem:[%s262 + $0x30] sm:$0xff]
        %v344 = vld [vmem:[%s262 + $0x38] sm:$0xff]
        %v345 = vld [vmem:[%s311] sm:$0xf]
        %v346 = vld [vmem:[%s311 + $0x4] sm:$0xf]
        %v347 = vld [vmem:[%s311 + $0x8] sm:$0xf]
        %v348 = vld [vmem:[%s311 + $0xc] sm:$0xf]
        %v349 = vld [vmem:[%s311 + $0x10] sm:$0xf]
        %v350 = vld [vmem:[%s311 + $0x14] sm:$0xf]
        %v351 = vld [vmem:[%s311 + $0x18] sm:$0xf]
        %v352 = vld [vmem:[%s311 + $0x1c] sm:$0xf]
        %v353 = vld [vmem:[%s311 + $0x20] sm:$0xf]
        %v354 = vld [vmem:[%s311 + $0x24] sm:$0xf]
        %v355 = vld [vmem:[%s311 + $0x28] sm:$0xf]
        %v356 = vld [vmem:[%s311 + $0x2c] sm:$0xf]
        %v357 = vld [vmem:[%s311 + $0x30] sm:$0xf]
        %v358 = vld [vmem:[%s311 + $0x34] sm:$0xf]
        %v359 = vld [vmem:[%s311 + $0x38] sm:$0xf]
        %v360 = vld [vmem:[%s311 + $0x3c] sm:$0xf]
        %v361 = vld [vmem:[%s311 + $0x40] sm:$0xf]
        %v362 = vld [vmem:[%s311 + $0x44] sm:$0xf]
        %v363 = vld [vmem:[%s311 + $0x48] sm:$0xf]
        %v364 = vld [vmem:[%s311 + $0x4c] sm:$0xf]
        %v365 = vld [vmem:[%s311 + $0x50] sm:$0xf]
        %v366 = vld [vmem:[%s311 + $0x54] sm:$0xf]
        %v367 = vld [vmem:[%s311 + $0x58] sm:$0xf]
        %v368 = vld [vmem:[%s311 + $0x5c] sm:$0xf]
        %v369 = vld [vmem:[%s311 + $0x60] sm:$0xf]
        %v370 = vld [vmem:[%s311 + $0x64] sm:$0xf]
        %v371 = vld [vmem:[%s311 + $0x68] sm:$0xf]
        %v372 = vld [vmem:[%s311 + $0x6c] sm:$0xf]
        %v373 = vld [vmem:[%s311 + $0x70] sm:$0xf]
        %v374 = vld [vmem:[%s311 + $0x74] sm:$0xf]
        %v375 = vld [vmem:[%s311 + $0x78] sm:$0xf]
        %v376 = vld [vmem:[%s311 + $0x7c] sm:$0xf]
        %v377 = vld [vmem:[%s311 + $0x80] sm:$0xf]
        %v378 = vld [vmem:[%s311 + $0x84] sm:$0xf]
        %v379 = vld [vmem:[%s311 + $0x88] sm:$0xf]
        %v380 = vld [vmem:[%s311 + $0x8c] sm:$0xf]
        %v381 = vld [vmem:[%s311 + $0x90] sm:$0xf]
        %v382 = vld [vmem:[%s311 + $0x94] sm:$0xf]
        %v383 = vld [vmem:[%s311 + $0x98] sm:$0xf]
        %v384 = vld [vmem:[%s311 + $0x9c] sm:$0xf]
        %v385 = vld [vmem:[%s311 + $0xa0] sm:$0xf]
        %v386 = vld [vmem:[%s311 + $0xa4] sm:$0xf]
        %v387 = vld [vmem:[%s311 + $0xa8] sm:$0xf]
        %v388 = vld [vmem:[%s311 + $0xac] sm:$0xf]
        %v389 = vld [vmem:[%s311 + $0xb0] sm:$0xf]
        %v390 = vld [vmem:[%s311 + $0xb4] sm:$0xf]
        %v391 = vld [vmem:[%s311 + $0xb8] sm:$0xf]
        %v392 = vld [vmem:[%s311 + $0xbc] sm:$0xf]
        %v393 = vld [vmem:[%s311 + $0xc0] sm:$0xf]
        %v394 = vld [vmem:[%s311 + $0xc4] sm:$0xf]
        %v395 = vld [vmem:[%s311 + $0xc8] sm:$0xf]
        %v396 = vld [vmem:[%s311 + $0xcc] sm:$0xf]
        %v397 = vld [vmem:[%s311 + $0xd0] sm:$0xf]
        %v398 = vld [vmem:[%s311 + $0xd4] sm:$0xf]
        %v399 = vld [vmem:[%s311 + $0xd8] sm:$0xf]
        %v400 = vld [vmem:[%s311 + $0xdc] sm:$0xf]
        %v401 = vld [vmem:[%s311 + $0xe0] sm:$0xf]
        %v402 = vld [vmem:[%s311 + $0xe4] sm:$0xf]
        %v403 = vld [vmem:[%s311 + $0xe8] sm:$0xf]
        %v404 = vld [vmem:[%s311 + $0xec] sm:$0xf]
        %v405 = vld [vmem:[%s311 + $0xf0] sm:$0xf]
        %v406 = vld [vmem:[%s311 + $0xf4] sm:$0xf]
        %v407 = vld [vmem:[%s311 + $0xf8] sm:$0xf]
        %v408 = vld [vmem:[%s311 + $0xfc] sm:$0xf]
        %v409 = vld [vmem:[%s311 + $0x100] sm:$0xf]
        %v410 = vld [vmem:[%s311 + $0x104] sm:$0xf]
        %v411 = vld [vmem:[%s311 + $0x108] sm:$0xf]
        %v412 = vld [vmem:[%s311 + $0x10c] sm:$0xf]
        %v413 = vld [vmem:[%s311 + $0x110] sm:$0xf]
        %v414 = vld [vmem:[%s311 + $0x114] sm:$0xf]
        %v415 = vld [vmem:[%s311 + $0x118] sm:$0xf]
        %v416 = vld [vmem:[%s311 + $0x11c] sm:$0xf]
        %v417 = vld [vmem:[%s311 + $0x120] sm:$0xf]
        %v418 = vld [vmem:[%s311 + $0x124] sm:$0xf]
        %v419 = vld [vmem:[%s311 + $0x128] sm:$0xf]
        %v420 = vld [vmem:[%s311 + $0x12c] sm:$0xf]
        %v421 = vld [vmem:[%s311 + $0x130] sm:$0xf]
        %v422 = vld [vmem:[%s311 + $0x134] sm:$0xf]
        %v423 = vld [vmem:[%s311 + $0x138] sm:$0xf]
        %v424 = vld [vmem:[%s311 + $0x13c] sm:$0xf]
        %v425 = vld [vmem:[%s311 + $0x140] sm:$0xf]
        %v426 = vld [vmem:[%s311 + $0x144] sm:$0xf]
        %v427 = vld [vmem:[%s311 + $0x148] sm:$0xf]
        %v428 = vld [vmem:[%s311 + $0x14c] sm:$0xf]
        %v429 = vld [vmem:[%s311 + $0x150] sm:$0xf]
        %v430 = vld [vmem:[%s311 + $0x154] sm:$0xf]
        %v431 = vld [vmem:[%s311 + $0x158] sm:$0xf]
        %v432 = vld [vmem:[%s311 + $0x15c] sm:$0xf]
        %v433 = vld [vmem:[%s311 + $0x160] sm:$0xf]
        %v434 = vld [vmem:[%s311 + $0x164] sm:$0xf]
        %v435 = vld [vmem:[%s311 + $0x168] sm:$0xf]
        %v436 = vld [vmem:[%s311 + $0x16c] sm:$0xf]
        %v437 = vld [vmem:[%s311 + $0x170] sm:$0xf]
        %v438 = vld [vmem:[%s311 + $0x174] sm:$0xf]
        %v439 = vld [vmem:[%s311 + $0x178] sm:$0xf]
        %v440 = vld [vmem:[%s311 + $0x17c] sm:$0xf]
        %v441 = vld [vmem:[%s311 + $0x180] sm:$0xf]
        %v442 = vld [vmem:[%s311 + $0x184] sm:$0xf]
        %v443 = vld [vmem:[%s311 + $0x188] sm:$0xf]
        %v444 = vld [vmem:[%s311 + $0x18c] sm:$0xf]
        %v445 = vld [vmem:[%s311 + $0x190] sm:$0xf]
        %v446 = vld [vmem:[%s311 + $0x194] sm:$0xf]
        %v447 = vld [vmem:[%s311 + $0x198] sm:$0xf]
        %v448 = vld [vmem:[%s311 + $0x19c] sm:$0xf]
        %v449 = vld [vmem:[%s311 + $0x1a0] sm:$0xf]
        %v450 = vld [vmem:[%s311 + $0x1a4] sm:$0xf]
        %v451 = vld [vmem:[%s311 + $0x1a8] sm:$0xf]
        %v452 = vld [vmem:[%s311 + $0x1ac] sm:$0xf]
        %v453 = vld [vmem:[%s311 + $0x1b0] sm:$0xf]
        %v454 = vld [vmem:[%s311 + $0x1b4] sm:$0xf]
        %v455 = vld [vmem:[%s311 + $0x1b8] sm:$0xf]
        %v456 = vld [vmem:[%s311 + $0x1bc] sm:$0xf]
        %v457 = vld [vmem:[%s311 + $0x1c0] sm:$0xf]
        %v458 = vld [vmem:[%s311 + $0x1c4] sm:$0xf]
        %v459 = vld [vmem:[%s311 + $0x1c8] sm:$0xf]
        %v460 = vld [vmem:[%s311 + $0x1cc] sm:$0xf]
        %v461 = vld [vmem:[%s311 + $0x1d0] sm:$0xf]
        %v462 = vld [vmem:[%s311 + $0x1d4] sm:$0xf]
        %v463 = vld [vmem:[%s311 + $0x1d8] sm:$0xf]
        %v464 = vld [vmem:[%s311 + $0x1dc] sm:$0xf]
        %v465 = vld [vmem:[%s311 + $0x1e0] sm:$0xf]
        %v466 = vld [vmem:[%s311 + $0x1e4] sm:$0xf]
        %v467 = vld [vmem:[%s311 + $0x1e8] sm:$0xf]
        %v468 = vld [vmem:[%s311 + $0x1ec] sm:$0xf]
        %v469 = vld [vmem:[%s311 + $0x1f0] sm:$0xf]
        %v470 = vld [vmem:[%s311 + $0x1f4] sm:$0xf]
        %v471 = vld [vmem:[%s311 + $0x1f8] sm:$0xf]
        %v472 = vld [vmem:[%s311 + $0x1fc] sm:$0xf]
        %v481 = vunpack.c.l.b16 %v337
        %v482 = vunpack.c.h.b16 %v337
        %v483 = vunpack.c.l.b16 %v338
        %v484 = vunpack.c.h.b16 %v338
        %v485 = vunpack.c.l.b16 %v339
        %v486 = vunpack.c.h.b16 %v339
        %v487 = vunpack.c.l.b16 %v340
        %v488 = vunpack.c.h.b16 %v340
        %v489 = vunpack.c.l.b16 %v341
        %v490 = vunpack.c.h.b16 %v341
        %v491 = vunpack.c.l.b16 %v342
        %v492 = vunpack.c.h.b16 %v342
        %v493 = vunpack.c.l.b16 %v343
        %v494 = vunpack.c.h.b16 %v343
        %v495 = vunpack.c.l.b16 %v344
        %v496 = vunpack.c.h.b16 %v344
        %v497 = vpack.c.b16 %v489, %v481
        %v498 = vpack.c.b16 %v490, %v482
        %v499 = vpack.c.b16 %v491, %v483
        %v500 = vpack.c.b16 %v492, %v484
        %v501 = vpack.c.b16 %v493, %v485
        %v502 = vpack.c.b16 %v494, %v486
        %v503 = vpack.c.b16 %v495, %v487
        %v504 = vpack.c.b16 %v496, %v488
        %v641 = vunpack.c.l.b16 %v345
        %v642 = vunpack.c.l.b16 %v346
        %v643 = vunpack.c.l.b16 %v347
        %v644 = vunpack.c.l.b16 %v348
        %v645 = vunpack.c.l.b16 %v349
        %v646 = vunpack.c.l.b16 %v350
        %v647 = vunpack.c.l.b16 %v351
        %v648 = vunpack.c.l.b16 %v352
        %v649 = vunpack.c.l.b16 %v353
        %v650 = vunpack.c.l.b16 %v354
        %v651 = vunpack.c.l.b16 %v355
        %v652 = vunpack.c.l.b16 %v356
        %v653 = vunpack.c.l.b16 %v357
        %v654 = vunpack.c.l.b16 %v358
        %v655 = vunpack.c.l.b16 %v359
        %v656 = vunpack.c.l.b16 %v360
        %v657 = vunpack.c.l.b16 %v361
        %v658 = vunpack.c.l.b16 %v362
        %v659 = vunpack.c.l.b16 %v363
        %v660 = vunpack.c.l.b16 %v364
        %v661 = vunpack.c.l.b16 %v365
        %v662 = vunpack.c.l.b16 %v366
        %v663 = vunpack.c.l.b16 %v367
        %v664 = vunpack.c.l.b16 %v368
        %v665 = vunpack.c.l.b16 %v369
        %v666 = vunpack.c.l.b16 %v370
        %v667 = vunpack.c.l.b16 %v371
        %v668 = vunpack.c.l.b16 %v372
        %v669 = vunpack.c.l.b16 %v373
        %v670 = vunpack.c.l.b16 %v374
        %v671 = vunpack.c.l.b16 %v375
        %v672 = vunpack.c.l.b16 %v376
        %v673 = vunpack.c.l.b16 %v377
        %v674 = vunpack.c.l.b16 %v378
        %v675 = vunpack.c.l.b16 %v379
        %v676 = vunpack.c.l.b16 %v380
        %v677 = vunpack.c.l.b16 %v381
        %v678 = vunpack.c.l.b16 %v382
        %v679 = vunpack.c.l.b16 %v383
        %v680 = vunpack.c.l.b16 %v384
        %v681 = vunpack.c.l.b16 %v385
        %v682 = vunpack.c.l.b16 %v386
        %v683 = vunpack.c.l.b16 %v387
        %v684 = vunpack.c.l.b16 %v388
        %v685 = vunpack.c.l.b16 %v389
        %v686 = vunpack.c.l.b16 %v390
        %v687 = vunpack.c.l.b16 %v391
        %v688 = vunpack.c.l.b16 %v392
        %v689 = vunpack.c.l.b16 %v393
        %v690 = vunpack.c.l.b16 %v394
        %v691 = vunpack.c.l.b16 %v395
        %v692 = vunpack.c.l.b16 %v396
        %v693 = vunpack.c.l.b16 %v397
        %v694 = vunpack.c.l.b16 %v398
        %v695 = vunpack.c.l.b16 %v399
        %v696 = vunpack.c.l.b16 %v400
        %v697 = vunpack.c.l.b16 %v401
        %v698 = vunpack.c.l.b16 %v402
        %v699 = vunpack.c.l.b16 %v403
        %v700 = vunpack.c.l.b16 %v404
        %v701 = vunpack.c.l.b16 %v405
        %v702 = vunpack.c.l.b16 %v406
        %v703 = vunpack.c.l.b16 %v407
        %v704 = vunpack.c.l.b16 %v408
        %v705 = vunpack.c.l.b16 %v409
        %v706 = vunpack.c.l.b16 %v410
        %v707 = vunpack.c.l.b16 %v411
        %v708 = vunpack.c.l.b16 %v412
        %v709 = vunpack.c.l.b16 %v413
        %v710 = vunpack.c.l.b16 %v414
        %v711 = vunpack.c.l.b16 %v415
        %v712 = vunpack.c.l.b16 %v416
        %v713 = vunpack.c.l.b16 %v417
        %v714 = vunpack.c.l.b16 %v418
        %v715 = vunpack.c.l.b16 %v419
        %v716 = vunpack.c.l.b16 %v420
        %v717 = vunpack.c.l.b16 %v421
        %v718 = vunpack.c.l.b16 %v422
        %v719 = vunpack.c.l.b16 %v423
        %v720 = vunpack.c.l.b16 %v424
        %v721 = vunpack.c.l.b16 %v425
        %v722 = vunpack.c.l.b16 %v426
        %v723 = vunpack.c.l.b16 %v427
        %v724 = vunpack.c.l.b16 %v428
        %v725 = vunpack.c.l.b16 %v429
        %v726 = vunpack.c.l.b16 %v430
        %v727 = vunpack.c.l.b16 %v431
        %v728 = vunpack.c.l.b16 %v432
        %v729 = vunpack.c.l.b16 %v433
        %v730 = vunpack.c.l.b16 %v434
        %v731 = vunpack.c.l.b16 %v435
        %v732 = vunpack.c.l.b16 %v436
        %v733 = vunpack.c.l.b16 %v437
        %v734 = vunpack.c.l.b16 %v438
        %v735 = vunpack.c.l.b16 %v439
        %v736 = vunpack.c.l.b16 %v440
        %v737 = vunpack.c.l.b16 %v441
        %v738 = vunpack.c.l.b16 %v442
        %v739 = vunpack.c.l.b16 %v443
        %v740 = vunpack.c.l.b16 %v444
        %v741 = vunpack.c.l.b16 %v445
        %v742 = vunpack.c.l.b16 %v446
        %v743 = vunpack.c.l.b16 %v447
        %v744 = vunpack.c.l.b16 %v448
        %v745 = vunpack.c.l.b16 %v449
        %v746 = vunpack.c.l.b16 %v450
        %v747 = vunpack.c.l.b16 %v451
        %v748 = vunpack.c.l.b16 %v452
        %v749 = vunpack.c.l.b16 %v453
        %v750 = vunpack.c.l.b16 %v454
        %v751 = vunpack.c.l.b16 %v455
        %v752 = vunpack.c.l.b16 %v456
        %v753 = vunpack.c.l.b16 %v457
        %v754 = vunpack.c.l.b16 %v458
        %v755 = vunpack.c.l.b16 %v459
        %v756 = vunpack.c.l.b16 %v460
        %v757 = vunpack.c.l.b16 %v461
        %v758 = vunpack.c.l.b16 %v462
        %v759 = vunpack.c.l.b16 %v463
        %v760 = vunpack.c.l.b16 %v464
        %v761 = vunpack.c.l.b16 %v465
        %v762 = vunpack.c.l.b16 %v466
        %v763 = vunpack.c.l.b16 %v467
        %v764 = vunpack.c.l.b16 %v468
        %v765 = vunpack.c.l.b16 %v469
        %v766 = vunpack.c.l.b16 %v470
        %v767 = vunpack.c.l.b16 %v471
        %v768 = vunpack.c.l.b16 %v472
        %v769 = vpack.c.b16 %v642, %v641
        %v770 = vpack.c.b16 %v644, %v643
        %v771 = vpack.c.b16 %v646, %v645
        %v772 = vpack.c.b16 %v648, %v647
        %v773 = vpack.c.b16 %v650, %v649
        %v774 = vpack.c.b16 %v652, %v651
        %v775 = vpack.c.b16 %v654, %v653
        %v776 = vpack.c.b16 %v656, %v655
        %v777 = vpack.c.b16 %v658, %v657
        %v778 = vpack.c.b16 %v660, %v659
        %v779 = vpack.c.b16 %v662, %v661
        %v780 = vpack.c.b16 %v664, %v663
        %v781 = vpack.c.b16 %v666, %v665
        %v782 = vpack.c.b16 %v668, %v667
        %v783 = vpack.c.b16 %v670, %v669
        %v784 = vpack.c.b16 %v672, %v671
        %v785 = vpack.c.b16 %v674, %v673
        %v786 = vpack.c.b16 %v676, %v675
        %v787 = vpack.c.b16 %v678, %v677
        %v788 = vpack.c.b16 %v680, %v679
        %v789 = vpack.c.b16 %v682, %v681
        %v790 = vpack.c.b16 %v684, %v683
        %v791 = vpack.c.b16 %v686, %v685
        %v792 = vpack.c.b16 %v688, %v687
        %v793 = vpack.c.b16 %v690, %v689
        %v794 = vpack.c.b16 %v692, %v691
        %v795 = vpack.c.b16 %v694, %v693
        %v796 = vpack.c.b16 %v696, %v695
        %v797 = vpack.c.b16 %v698, %v697
        %v798 = vpack.c.b16 %v700, %v699
        %v799 = vpack.c.b16 %v702, %v701
        %v800 = vpack.c.b16 %v704, %v703
        %v801 = vpack.c.b16 %v706, %v705
        %v802 = vpack.c.b16 %v708, %v707
        %v803 = vpack.c.b16 %v710, %v709
        %v804 = vpack.c.b16 %v712, %v711
        %v805 = vpack.c.b16 %v714, %v713
        %v806 = vpack.c.b16 %v716, %v715
        %v807 = vpack.c.b16 %v718, %v717
        %v808 = vpack.c.b16 %v720, %v719
        %v809 = vpack.c.b16 %v722, %v721
        %v810 = vpack.c.b16 %v724, %v723
        %v811 = vpack.c.b16 %v726, %v725
        %v812 = vpack.c.b16 %v728, %v727
        %v813 = vpack.c.b16 %v730, %v729
        %v814 = vpack.c.b16 %v732, %v731
        %v815 = vpack.c.b16 %v734, %v733
        %v816 = vpack.c.b16 %v736, %v735
        %v817 = vpack.c.b16 %v738, %v737
        %v818 = vpack.c.b16 %v740, %v739
        %v819 = vpack.c.b16 %v742, %v741
        %v820 = vpack.c.b16 %v744, %v743
        %v821 = vpack.c.b16 %v746, %v745
        %v822 = vpack.c.b16 %v748, %v747
        %v823 = vpack.c.b16 %v750, %v749
        %v824 = vpack.c.b16 %v752, %v751
        %v825 = vpack.c.b16 %v754, %v753
        %v826 = vpack.c.b16 %v756, %v755
        %v827 = vpack.c.b16 %v758, %v757
        %v828 = vpack.c.b16 %v760, %v759
        %v829 = vpack.c.b16 %v762, %v761
        %v830 = vpack.c.b16 %v764, %v763
        %v831 = vpack.c.b16 %v766, %v765
        %v832 = vpack.c.b16 %v768, %v767
        %897 = vmatprep.subr.bf16.mxu0 0
        %898 = vmatpush1.bf16.msra.mxu0 %v769
        %899 = vmatprep.subr.bf16.mxu0 0
        %900 = vmatpush1.bf16.msra.mxu0 %v770
        %901 = vmatprep.subr.bf16.mxu0 0
        %902 = vmatpush1.bf16.msra.mxu0 %v771
        %903 = vmatprep.subr.bf16.mxu0 0
        %904 = vmatpush1.bf16.msra.mxu0 %v772
        %905 = vmatprep.subr.bf16.mxu0 0
        %906 = vmatpush1.bf16.msra.mxu0 %v773
        %907 = vmatprep.subr.bf16.mxu0 0
        %908 = vmatpush1.bf16.msra.mxu0 %v774
        %909 = vmatprep.subr.bf16.mxu0 0
        %910 = vmatpush1.bf16.msra.mxu0 %v775
        %911 = vmatprep.subr.bf16.mxu0 0
        %912 = vmatpush1.bf16.msra.mxu0 %v776
        %913 = vmatprep.subr.bf16.mxu0 0
        %914 = vmatpush1.bf16.msra.mxu0 %v777
        %915 = vmatprep.subr.bf16.mxu0 0
        %916 = vmatpush1.bf16.msra.mxu0 %v778
        %917 = vmatprep.subr.bf16.mxu0 0
        %918 = vmatpush1.bf16.msra.mxu0 %v779
        %919 = vmatprep.subr.bf16.mxu0 0
        %920 = vmatpush1.bf16.msra.mxu0 %v780
        %921 = vmatprep.subr.bf16.mxu0 0
        %922 = vmatpush1.bf16.msra.mxu0 %v781
        %923 = vmatprep.subr.bf16.mxu0 0
        %924 = vmatpush1.bf16.msra.mxu0 %v782
        %925 = vmatprep.subr.bf16.mxu0 0
        %926 = vmatpush1.bf16.msra.mxu0 %v783
        %927 = vmatprep.subr.bf16.mxu0 0
        %928 = vmatpush1.bf16.msra.mxu0 %v784
        %929 = vmatprep.mubr.bf16.mxu0 %v498
        %930 = vmatmul.mubr.bf16.gmra.mrb[0].mxu0 %v497
        %v931 = vpop.f32.mrb[0].mxu0
        %v932 = vadd.f32 0.0, %v931
        %v933 = vpop.f32.mrb[0].mxu0
        %v934 = vpop.f32.mrb[0].mxu0
        %v935 = vadd.f32 0.0, %v934
        %v936 = vpop.f32.mrb[0].mxu0
        %937 = vdwg.mxu0
        %938 = vmatprep.subr.bf16.mxu0 0
        %939 = vmatpush1.bf16.msra.mxu0 %v785
        %940 = vmatprep.subr.bf16.mxu0 0
        %941 = vmatpush1.bf16.msra.mxu0 %v786
        %942 = vmatprep.subr.bf16.mxu0 0
        %943 = vmatpush1.bf16.msra.mxu0 %v787
        %944 = vmatprep.subr.bf16.mxu0 0
        %945 = vmatpush1.bf16.msra.mxu0 %v788
        %946 = vmatprep.subr.bf16.mxu0 0
        %947 = vmatpush1.bf16.msra.mxu0 %v789
        %948 = vmatprep.subr.bf16.mxu0 0
        %949 = vmatpush1.bf16.msra.mxu0 %v790
        %950 = vmatprep.subr.bf16.mxu0 0
        %951 = vmatpush1.bf16.msra.mxu0 %v791
        %952 = vmatprep.subr.bf16.mxu0 0
        %953 = vmatpush1.bf16.msra.mxu0 %v792
        %954 = vmatprep.subr.bf16.mxu0 0
        %955 = vmatpush1.bf16.msra.mxu0 %v793
        %956 = vmatprep.subr.bf16.mxu0 0
        %957 = vmatpush1.bf16.msra.mxu0 %v794
        %958 = vmatprep.subr.bf16.mxu0 0
        %959 = vmatpush1.bf16.msra.mxu0 %v795
        %960 = vmatprep.subr.bf16.mxu0 0
        %961 = vmatpush1.bf16.msra.mxu0 %v796
        %962 = vmatprep.subr.bf16.mxu0 0
        %963 = vmatpush1.bf16.msra.mxu0 %v797
        %964 = vmatprep.subr.bf16.mxu0 0
        %965 = vmatpush1.bf16.msra.mxu0 %v798
        %966 = vmatprep.subr.bf16.mxu0 0
        %967 = vmatpush1.bf16.msra.mxu0 %v799
        %968 = vmatprep.subr.bf16.mxu0 0
        %969 = vmatpush1.bf16.msra.mxu0 %v800
        %970 = vmatprep.mubr.bf16.mxu0 %v500
        %971 = vmatmul.mubr.bf16.gmra.mrb[0].mxu0 %v499
        %v972 = vpop.f32.mrb[0].mxu0
        %v973 = vadd.f32 %v932, %v972
        %v974 = vpop.f32.mrb[0].mxu0
        %v975 = vpop.f32.mrb[0].mxu0
        %v976 = vadd.f32 %v935, %v975
        %v977 = vpop.f32.mrb[0].mxu0
        %978 = vdwg.mxu0
        %979 = vmatprep.subr.bf16.mxu0 0
        %980 = vmatpush1.bf16.msra.mxu0 %v801
        %981 = vmatprep.subr.bf16.mxu0 0
        %982 = vmatpush1.bf16.msra.mxu0 %v802
        %983 = vmatprep.subr.bf16.mxu0 0
        %984 = vmatpush1.bf16.msra.mxu0 %v803
        %985 = vmatprep.subr.bf16.mxu0 0
        %986 = vmatpush1.bf16.msra.mxu0 %v804
        %987 = vmatprep.subr.bf16.mxu0 0
        %988 = vmatpush1.bf16.msra.mxu0 %v805
        %989 = vmatprep.subr.bf16.mxu0 0
        %990 = vmatpush1.bf16.msra.mxu0 %v806
        %991 = vmatprep.subr.bf16.mxu0 0
        %992 = vmatpush1.bf16.msra.mxu0 %v807
        %993 = vmatprep.subr.bf16.mxu0 0
        %994 = vmatpush1.bf16.msra.mxu0 %v808
        %995 = vmatprep.subr.bf16.mxu0 0
        %996 = vmatpush1.bf16.msra.mxu0 %v809
        %997 = vmatprep.subr.bf16.mxu0 0
        %998 = vmatpush1.bf16.msra.mxu0 %v810
        %999 = vmatprep.subr.bf16.mxu0 0
        %1000 = vmatpush1.bf16.msra.mxu0 %v811
        %1001 = vmatprep.subr.bf16.mxu0 0
        %1002 = vmatpush1.bf16.msra.mxu0 %v812
        %1003 = vmatprep.subr.bf16.mxu0 0
        %1004 = vmatpush1.bf16.msra.mxu0 %v813
        %1005 = vmatprep.subr.bf16.mxu0 0
        %1006 = vmatpush1.bf16.msra.mxu0 %v814
        %1007 = vmatprep.subr.bf16.mxu0 0
        %1008 = vmatpush1.bf16.msra.mxu0 %v815
        %1009 = vmatprep.subr.bf16.mxu0 0
        %1010 = vmatpush1.bf16.msra.mxu0 %v816
        %1011 = vmatprep.mubr.bf16.mxu0 %v502
        %1012 = vmatmul.mubr.bf16.gmra.mrb[0].mxu0 %v501
        %v1013 = vpop.f32.mrb[0].mxu0
        %v1014 = vadd.f32 %v973, %v1013
        %v1015 = vpop.f32.mrb[0].mxu0
        %v1016 = vpop.f32.mrb[0].mxu0
        %v1017 = vadd.f32 %v976, %v1016
        %v1018 = vpop.f32.mrb[0].mxu0
        %1019 = vdwg.mxu0
        %1020 = vmatprep.subr.bf16.mxu0 0
        %1021 = vmatpush1.bf16.msra.mxu0 %v817
        %1022 = vmatprep.subr.bf16.mxu0 0
        %1023 = vmatpush1.bf16.msra.mxu0 %v818
        %1024 = vmatprep.subr.bf16.mxu0 0
        %1025 = vmatpush1.bf16.msra.mxu0 %v819
        %1026 = vmatprep.subr.bf16.mxu0 0
        %1027 = vmatpush1.bf16.msra.mxu0 %v820
        %1028 = vmatprep.subr.bf16.mxu0 0
        %1029 = vmatpush1.bf16.msra.mxu0 %v821
        %1030 = vmatprep.subr.bf16.mxu0 0
        %1031 = vmatpush1.bf16.msra.mxu0 %v822
        %1032 = vmatprep.subr.bf16.mxu0 0
        %1033 = vmatpush1.bf16.msra.mxu0 %v823
        %1034 = vmatprep.subr.bf16.mxu0 0
        %1035 = vmatpush1.bf16.msra.mxu0 %v824
        %1036 = vmatprep.subr.bf16.mxu0 0
        %1037 = vmatpush1.bf16.msra.mxu0 %v825
        %1038 = vmatprep.subr.bf16.mxu0 0
        %1039 = vmatpush1.bf16.msra.mxu0 %v826
        %1040 = vmatprep.subr.bf16.mxu0 0
        %1041 = vmatpush1.bf16.msra.mxu0 %v827
        %1042 = vmatprep.subr.bf16.mxu0 0
        %1043 = vmatpush1.bf16.msra.mxu0 %v828
        %1044 = vmatprep.subr.bf16.mxu0 0
        %1045 = vmatpush1.bf16.msra.mxu0 %v829
        %1046 = vmatprep.subr.bf16.mxu0 0
        %1047 = vmatpush1.bf16.msra.mxu0 %v830
        %1048 = vmatprep.subr.bf16.mxu0 0
        %1049 = vmatpush1.bf16.msra.mxu0 %v831
        %1050 = vmatprep.subr.bf16.mxu0 0
        %1051 = vmatpush1.bf16.msra.mxu0 %v832
        %1052 = vmatprep.mubr.bf16.mxu0 %v504
        %1053 = vmatmul.mubr.bf16.gmra.mrb[0].mxu0 %v503
        %v1054 = vpop.f32.mrb[0].mxu0
        %v1055 = vadd.f32 %v1014, %v1054
        %v1056 = vpop.f32.mrb[0].mxu0
        %v1057 = vpop.f32.mrb[0].mxu0
        %v1058 = vadd.f32 %v1017, %v1057
        %v1059 = vpop.f32.mrb[0].mxu0
        %1060 = vdwg.mxu0
        %v1061 = vadd.f32 %v335, %v1055
        %v1062 = vadd.f32 %v336, %v1058
        %1063 = vst [vmem:[#allocation2] sm:$0xff] %v1061
        %1064 = vst [vmem:[#allocation2 + $0x8] sm:$0xff] %v1062
        %p1065 = scmp.eq.s32.totalorder %s22, 7
        // Predicated region
        $region64: #{forward.9} parent=54 // pred_check
          %p1066 = pneg %p1065
        $region65: #{forward.9} parent=54 // pred_check_branch
          %1068 = sbr.rel (%p1066) target = $region67
        $region66: #{forward.9} parent=54 // pred_region
          %v1069 = vld [vmem:[#allocation2] sm:$0xff]
          %v1070 = vld [vmem:[#allocation2 + $0x8] sm:$0xff]
          %v1071 = vld [vmem:[%s315] sm:$0x1]
          %v1073 = vlaneseq
          %v1074 = vshrl.u32 %v1073, 7
          %v1075 = vsub.s32 0, %v1074
          %v1076 = vrot.slane %v1071, %v1075
          %v1078 = vmul.f32 %v1069, %v1076
          %v1079 = vmul.f32 %v1070, %v1076
          %v1080 = vld [vmem:[%s318] sm:$0x1]
          %v1082 = vlaneseq
          %v1083 = vshrl.u32 %v1082, 7
          %v1084 = vsub.s32 0, %v1083
          %v1085 = vrot.slane %v1080, %v1084
          %v1087 = vadd.f32 %v1078, %v1085
          %v1088 = vadd.f32 %v1079, %v1085
          %1089 = vst [vmem:[%s326] sm:$0xff] %v1087
          %1090 = vst [vmem:[%s326 + $0x8] sm:$0xff] %v1088
        $region67: #{forward.9} parent=54 // pred_fallthru
          _
        %s1091 = smul.u32 2, %s20
        %p1092 = scmp.lt.s32.totalorder %s1091, 1
        %s1093 = scalar_select %p1092, %s1091, 1
        %p1094 = scmp.lt.s32.totalorder %s21, 0
        %s1095 = scalar_select %p1094, %s21, 0
        %s1096 = sadd.s32 %s1095, %s1093
        %s1097 = smul.addr %s1096, 8
        %s1098 = scalar_lea.vmem %s4, %s1097
        // Predicated region
        $region68: #{forward.9} parent=54 // pred_check
          %p1099 = pneg %p162
        $region69: #{forward.9} parent=54 // pred_check_branch
          %1101 = sbr.rel (%p1099) target = $region71
        $region70: #{forward.9} parent=54 // pred_region
          %s1102 = smul.u32 2, %s20
        $region71: #{forward.9} parent=54 // pred_fallthru
          _
        // Predicated region
        $region72: #{forward.9} parent=54 // pred_check
          %p1103 = pneg %p162
        $region73: #{forward.9} parent=54 // pred_check_branch
          %1105 = sbr.rel (%p1103) target = $region75
        $region74: #{forward.9} parent=54 // pred_region
          %s1106 = smul.u32 2, %s20
          %p1107 = scmp.lt.s32.totalorder %s1106, 1
          %s1108 = scalar_select %p1107, %s1106, 1
          %p1109 = scmp.lt.s32.totalorder %s21, 0
          %s1110 = scalar_select %p1109, %s21, 0
          %s1111 = sadd.s32 %s1110, %s1108
          %s1112 = smul.addr %s1111, 8
          %s1113 = scalar_lea.vmem %s4, %s1112
        $region75: #{forward.9} parent=54 // pred_fallthru
          _
      $region55: #{forward.9} parent=5 // pred_fallthru
        _
      %p1114 = scmp.le.s32.totalorder 2, %s10
      // Predicated region
      $region76: #{forward.9} parent=5 // pred_check
        %p1115 = pneg %p1114
      $region77: #{forward.9} parent=5 // pred_check_branch
        %1117 = sbr.rel (%p1115) target = $region79
      $region78: #{forward.9} parent=5 // pred_region
        %s1118 = ssub.s32 %s10, 2
      $region79: #{forward.9} parent=5 // pred_fallthru
        _
    $region6: #{forward.9} parent=1 // loop_footer
      %s14 = sadd.s32 1, %s10
    $region7: #{forward.9} parent=1 // loop_footer_branch
      %9 = sbr.rel target = $region3
    $region8: #{forward.9} parent=1 // loop_exit
      _

</llo_original>
